<compile_context>
chip_gen: v7x
topology: tpu7x:2x2x1
jax: 0.10.0
libtpu: 0.0.40
codegen_flags: <defaults>
</compile_context>

<pallas_src>
import functools

import jax
import jax.numpy as jnp
from jax.experimental import pallas as pl
from jax.experimental.pallas import tpu as pltpu


# ----------------------------------------------------------------------------- kernels

def _upscale_kernel(x_ref, w_ref, b_ref, o_ref):
    # x_ref: (1, H, W, Cin)      w_ref: (2, Cin, 2*Ch)   [axis0 = output-row parity di,
    #                                                      lanes ordered (dj, c)]
    # b_ref: (1, 2*Ch) f32       o_ref: (1, H, 2, W, 2*Ch)
    #
    # o[n, i, di, j, dj*Ch + c] = transposed-conv output at pixel (2i+di, 2j+dj), chan c.
    # In row-major order that is exactly the (N, 2H, 2W, Ch) upsampled image, so the
    # wrapper's reshape after this call costs nothing (no interleave HBM pass).
    _, H, W, Cin = x_ref.shape
    two_ch = w_ref.shape[2]
    xm = x_ref[0].reshape(H * W, Cin)
    b = b_ref[...]                                            # (1, 2*Ch), f32
    for di in range(2):                                       # static unroll: 1 wide dot / parity
        y = jnp.dot(xm, w_ref[di], preferred_element_type=jnp.float32) + b
        o_ref[0, :, di, :, :] = y.reshape(H, W, two_ch).astype(o_ref.dtype)


def _fused_conv_blk_kernel(up_ref, res_ref, w1u_ref, w1r_ref, s1_ref, b1_ref,
                           w2_ref, s2_ref, b2_ref, o_ref,
                           up_pad, res_pad, h1_pad):
    # up_ref/res_ref: (1, OH, OW, Ch)   w1u/w1r: (9, Ch, Cout)   w2: (9, Cout, Cout)
    # s*/b*: (1, Cout) folded BN scale/bias (inference).        o_ref: (1, OH, OW, Cout)
    # *_pad: zero-ringed VMEM scratch -- the channel concat, the 3x3 halo padding and the
    # h1 intermediate only ever live in VMEM (no HBM round trips between the stages).
    _, OH, OW, Ch = up_ref.shape
    Cout = o_ref.shape[3]

    # Zero every step (cheap, and safe under megacore sharding of the batch axis).
    up_pad[...] = jnp.zeros_like(up_pad)
    res_pad[...] = jnp.zeros_like(res_pad)
    h1_pad[...] = jnp.zeros_like(h1_pad)
    up_pad[1:1 + OH, 1:1 + OW, :] = up_ref[0]
    res_pad[1:1 + OH, 1:1 + OW, :] = res_ref[0]

    # conv1 on cat([up, res], channel) == conv(up, w1[:, :Ch]) + conv(res, w1[:, Ch:])
    acc = jnp.zeros((OH * OW, Cout), jnp.float32)
    for k in range(9):                                        # static unroll over 3x3 taps
        ky, kx = k // 3, k % 3
        pu = up_pad[ky:ky + OH, kx:kx + OW, :].reshape(OH * OW, Ch)
        pr = res_pad[ky:ky + OH, kx:kx + OW, :].reshape(OH * OW, Ch)
        acc = acc + jnp.dot(pu, w1u_ref[k], preferred_element_type=jnp.float32)
        acc = acc + jnp.dot(pr, w1r_ref[k], preferred_element_type=jnp.float32)
    h1 = jnp.maximum(acc * s1_ref[...] + b1_ref[...], 0.0)    # fused BN (affine) + ReLU, f32
    h1_pad[1:1 + OH, 1:1 + OW, :] = h1.reshape(OH, OW, Cout).astype(h1_pad.dtype)

    # conv2 + BN + ReLU
    acc2 = jnp.zeros((OH * OW, Cout), jnp.float32)
    for k in range(9):
        ky, kx = k // 3, k % 3
        ph = h1_pad[ky:ky + OH, kx:kx + OW, :].reshape(OH * OW, Cout)
        acc2 = acc2 + jnp.dot(ph, w2_ref[k], preferred_element_type=jnp.float32)
    y = jnp.maximum(acc2 * s2_ref[...] + b2_ref[...], 0.0)
    o_ref[0] = y.reshape(OH, OW, Cout).astype(o_ref.dtype)


# ----------------------------------------------------------------------------- wrapper

def expand_blk_forward(x_nchw, res_nchw, p, *, compute_dtype=jnp.bfloat16, eps=1e-5):
    """Mirrors ExpandBlk.forward (use_upsample=False). Inputs/outputs are NCHW."""
    N, Cin, H, W = x_nchw.shape
    Ch = Cin // 2                                   # channels produced by the upscale
    Cout = p["w1"].shape[0]
    OH, OW = 2 * H, 2 * W

    # NCHW -> NHWC once at the block boundary (channels -> lane axis).
    x = jnp.transpose(x_nchw, (0, 2, 3, 1)).astype(compute_dtype)
    res = jnp.transpose(res_nchw, (0, 2, 3, 1)).astype(compute_dtype)

    # ---------------- upscale: ConvTranspose2d(kernel=2, stride=2) ----------------
    # weight (Cin, Ch, 2, 2) -> (di, Cin, dj*Ch + c): one wide dot per output-row parity.
    wup = jnp.transpose(p["up_w"], (2, 0, 3, 1)).reshape(2, Cin, 2 * Ch).astype(compute_dtype)
    bup = jnp.tile(p["up_b"].astype(jnp.float32), 2).reshape(1, 2 * Ch)

    up5 = pl.pallas_call(
        _upscale_kernel,
        out_shape=jax.ShapeDtypeStruct((N, H, 2, W, 2 * Ch), compute_dtype),
        grid=(N,),
        in_specs=[
            pl.BlockSpec((1, H, W, Cin), lambda n: (n, 0, 0, 0)),
            pl.BlockSpec((2, Cin, 2 * Ch), lambda n: (0, 0, 0)),
            pl.BlockSpec((1, 2 * Ch), lambda n: (0, 0)),
        ],
        out_specs=pl.BlockSpec((1, H, 2, W, 2 * Ch), lambda n: (n, 0, 0, 0, 0)),
        compiler_params=pltpu.CompilerParams(dimension_semantics=("parallel",)),
    )(x, wup, bup)
    up = up5.reshape(N, OH, OW, Ch)   # free: row-major order is already the interleaved image

    # --------------- fused concat + (conv3x3 + BN + ReLU) x 2 ---------------------
    w1 = jnp.transpose(p["w1"], (2, 3, 1, 0))                            # (3, 3, in_ch, Cout)
    w1u = w1[:, :, :Ch, :].reshape(9, Ch, Cout).astype(compute_dtype)    # acts on upscaled x
    w1r = w1[:, :, Ch:, :].reshape(9, Ch, Cout).astype(compute_dtype)    # acts on res
    w2 = jnp.transpose(p["w2"], (2, 3, 1, 0)).reshape(9, Cout, Cout).astype(compute_dtype)

    def fold_bn(g, b, m, v):
        s = (g / jnp.sqrt(v + eps)).astype(jnp.float32)
        return s.reshape(1, Cout), (b.astype(jnp.float32) - m * s).reshape(1, Cout)

    s1, b1 = fold_bn(p["g1"], p["b1"], p["m1"], p["v1"])
    s2, b2 = fold_bn(p["g2"], p["b2"], p["m2"], p["v2"])

    out = pl.pallas_call(
        _fused_conv_blk_kernel,
        out_shape=jax.ShapeDtypeStruct((N, OH, OW, Cout), jnp.float32),
        grid=(N,),
        in_specs=[
            pl.BlockSpec((1, OH, OW, Ch), lambda n: (n, 0, 0, 0)),
            pl.BlockSpec((1, OH, OW, Ch), lambda n: (n, 0, 0, 0)),
            pl.BlockSpec((9, Ch, Cout), lambda n: (0, 0, 0)),
            pl.BlockSpec((9, Ch, Cout), lambda n: (0, 0, 0)),
            pl.BlockSpec((1, Cout), lambda n: (0, 0)),
            pl.BlockSpec((1, Cout), lambda n: (0, 0)),
            pl.BlockSpec((9, Cout, Cout), lambda n: (0, 0, 0)),
            pl.BlockSpec((1, Cout), lambda n: (0, 0)),
            pl.BlockSpec((1, Cout), lambda n: (0, 0)),
        ],
        out_specs=pl.BlockSpec((1, OH, OW, Cout), lambda n: (n, 0, 0, 0)),
        scratch_shapes=[
            pltpu.VMEM((OH + 2, OW + 2, Ch), compute_dtype),    # up, zero-padded halo
            pltpu.VMEM((OH + 2, OW + 2, Ch), compute_dtype),    # res, zero-padded halo
            pltpu.VMEM((OH + 2, OW + 2, Cout), compute_dtype),  # h1, zero-padded halo
        ],
        compiler_params=pltpu.CompilerParams(dimension_semantics=("parallel",)),
    )(up, res, w1u, w1r, s1, b1, w2, s2, b2)

    return jnp.transpose(out, (0, 3, 1, 2))                     # -> NCHW


# ----------------------------------------------------------------------------- reference

def _reference_forward(x, res, p, eps=1e-5):
    # transposed conv via lhs-dilated conv with flipped kernel
    w_t = jnp.transpose(p["up_w"], (1, 0, 2, 3))[:, :, ::-1, ::-1]  # (Ch, Cin, 2, 2) OIHW
    up = jax.lax.conv_general_dilated(
        x, w_t, window_strides=(1, 1), padding=((1, 1), (1, 1)),
        lhs_dilation=(2, 2), dimension_numbers=("NCHW", "OIHW", "NCHW"))
    up = up + p["up_b"][None, :, None, None]
    h = jnp.concatenate([up, res], axis=1)

    def cbr(h, w, g, b, m, v):
        y = jax.lax.conv_general_dilated(
            h, w, window_strides=(1, 1), padding=((1, 1), (1, 1)),
            dimension_numbers=("NCHW", "OIHW", "NCHW"))
        s = g / jnp.sqrt(v + eps)
        y = y * s[None, :, None, None] + (b - m * s)[None, :, None, None]
        return jnp.maximum(y, 0.0)

    h = cbr(h, p["w1"], p["g1"], p["b1"], p["m1"], p["v1"])
    h = cbr(h, p["w2"], p["g2"], p["b2"], p["m2"], p["v2"])
    return h


# ----------------------------------------------------------------------------- main

if __name__ == "__main__":
    key = jax.random.PRNGKey(0)
    k = jax.random.split(key, 16)

    N, in_ch, out_ch, H, W = 2, 8, 4, 8, 8
    half = in_ch // 2

    x = jax.random.normal(k[0], (N, in_ch, H, W), jnp.float32)
    res = jax.random.normal(k[1], (N, half, 2 * H, 2 * W), jnp.float32)

    params = dict(
        up_w=0.2 * jax.random.normal(k[2], (in_ch, half, 2, 2), jnp.float32),
        up_b=0.1 * jax.random.normal(k[3], (half,), jnp.float32),
        w1=0.2 * jax.random.normal(k[4], (out_ch, in_ch, 3, 3), jnp.float32),
        g1=jax.random.uniform(k[5], (out_ch,), jnp.float32, 0.5, 1.5),
        b1=0.1 * jax.random.normal(k[6], (out_ch,), jnp.float32),
        m1=0.1 * jax.random.normal(k[7], (out_ch,), jnp.float32),
        v1=jax.random.uniform(k[8], (out_ch,), jnp.float32, 0.5, 1.5),
        w2=0.2 * jax.random.normal(k[9], (out_ch, out_ch, 3, 3), jnp.float32),
        g2=jax.random.uniform(k[10], (out_ch,), jnp.float32, 0.5, 1.5),
        b2=0.1 * jax.random.normal(k[11], (out_ch,), jnp.float32),
        m2=0.1 * jax.random.normal(k[12], (out_ch,), jnp.float32),
        v2=jax.random.uniform(k[13], (out_ch,), jnp.float32, 0.5, 1.5),
    )

    ref = _reference_forward(x, res, params)

    # Strict f32 validation of the fused-kernel structure.
    fwd_f32 = jax.jit(functools.partial(expand_blk_forward, compute_dtype=jnp.float32))
    out_f32 = jax.block_until_ready(fwd_f32(x, res, params))
    assert out_f32.shape == (N, out_ch, 2 * H, 2 * W), out_f32.shape
    assert bool(jnp.allclose(out_f32, ref, atol=1e-3, rtol=1e-3)), "f32 mismatch vs XLA reference"

    # Default fast path: bf16 MXU operands with f32 accumulation (looser, bf16-level tolerance).
    fwd_bf16 = jax.jit(functools.partial(expand_blk_forward, compute_dtype=jnp.bfloat16))
    out_bf16 = jax.block_until_ready(fwd_bf16(x, res, params))
    assert out_bf16.shape == (N, out_ch, 2 * H, 2 * W), out_bf16.shape
    assert bool(jnp.allclose(out_bf16, ref, atol=1e-1, rtol=1e-1)), "bf16 path too far from reference"

    print("KERNEL_OK")
</pallas_src>

<mosaic_0001>
module attributes {stable_mosaic.version = 11 : i64} {
  func.func @_upscale_kernel(%arg0: i32, %arg1: memref<1x8x8x8xf32, #tpu.memory_space<vmem>>, %arg2: memref<2x8x8xf32, #tpu.memory_space<vmem>>, %arg3: memref<1x8xf32, #tpu.memory_space<vmem>>, %arg4: memref<1x8x2x8x8xf32, #tpu.memory_space<vmem>>) attributes {dimension_semantics = [#tpu.dimension_semantics<parallel>], iteration_bounds = array<i64: 2>, scalar_prefetch = 0 : i64, scratch_operands = 0 : i64, tpu.core_type = #tpu.core_type<tc>, window_params = [{transform_indices = @transform_0, window_bounds = array<i64: 1, 8, 8, 8>}, {pipeline_mode = #tpu.pipeline_mode<synchronous>, transform_indices = @transform_1, window_bounds = array<i64: 2, 8, 8>}, {pipeline_mode = #tpu.pipeline_mode<synchronous>, transform_indices = @transform_2, window_bounds = array<i64: 1, 8>}, {transform_indices = @transform_3, window_bounds = array<i64: 1, 8, 2, 8, 8>}]} {
    %c0 = arith.constant 0 : index
    %c0_0 = arith.constant 0 : index
    %c0_1 = arith.constant 0 : index
    %c0_2 = arith.constant 0 : index
    %0 = vector.load %arg1[%c0, %c0_0, %c0_1, %c0_2] : memref<1x8x8x8xf32, #tpu.memory_space<vmem>>, vector<1x8x8x8xf32>
    %1 = vector.shape_cast %0 : vector<1x8x8x8xf32> to vector<8x8x8xf32>
    %2 = vector.shape_cast %1 : vector<8x8x8xf32> to vector<64x8xf32>
    %c0_3 = arith.constant 0 : index
    %c0_4 = arith.constant 0 : index
    %3 = vector.load %arg3[%c0_3, %c0_4] : memref<1x8xf32, #tpu.memory_space<vmem>>, vector<1x8xf32>
    %c0_5 = arith.constant 0 : index
    %c0_6 = arith.constant 0 : index
    %c0_7 = arith.constant 0 : index
    %4 = vector.load %arg2[%c0_5, %c0_6, %c0_7] : memref<2x8x8xf32, #tpu.memory_space<vmem>>, vector<1x8x8xf32>
    %5 = vector.shape_cast %4 : vector<1x8x8xf32> to vector<8x8xf32>
    %cst = arith.constant dense<0.000000e+00> : vector<64x8xf32>
    %6 = tpu.matmul %2, %5, %cst {dimension_numbers = #tpu.dot_dimension_numbers<[1], [0], [0], [1], [0, 0, 1, 1], [], []>} : vector<64x8xf32>, vector<8x8xf32>, vector<64x8xf32> -> vector<64x8xf32>
    %7 = vector.broadcast %3 : vector<1x8xf32> to vector<64x8xf32>
    %8 = arith.addf %6, %7 : vector<64x8xf32>
    %9 = vector.shape_cast %8 : vector<64x8xf32> to vector<8x8x8xf32>
    %c0_8 = arith.constant 0 : index
    %c0_9 = arith.constant 0 : index
    %c0_10 = arith.constant 0 : index
    %c0_11 = arith.constant 0 : index
    %c0_12 = arith.constant 0 : index
    %10 = vector.load %arg4[%c0_8, %c0_9, %c0_10, %c0_11, %c0_12] : memref<1x8x2x8x8xf32, #tpu.memory_space<vmem>>, vector<1x8x1x8x8xf32>
    %11 = vector.shape_cast %10 : vector<1x8x1x8x8xf32> to vector<8x8x8xf32>
    %12 = vector.shape_cast %9 : vector<8x8x8xf32> to vector<1x8x1x8x8xf32>
    tpu.vector_store %arg4[%c0_8, %c0_9, %c0_10, %c0_11, %c0_12], %12 {strides = array<i32>} : memref<1x8x2x8x8xf32, #tpu.memory_space<vmem>>, vector<1x8x1x8x8xf32>,
    %c1 = arith.constant 1 : index
    %c0_13 = arith.constant 0 : index
    %c0_14 = arith.constant 0 : index
    %13 = vector.load %arg2[%c1, %c0_13, %c0_14] : memref<2x8x8xf32, #tpu.memory_space<vmem>>, vector<1x8x8xf32>
    %14 = vector.shape_cast %13 : vector<1x8x8xf32> to vector<8x8xf32>
    %cst_15 = arith.constant dense<0.000000e+00> : vector<64x8xf32>
    %15 = tpu.matmul %2, %14, %cst_15 {dimension_numbers = #tpu.dot_dimension_numbers<[1], [0], [0], [1], [0, 0, 1, 1], [], []>} : vector<64x8xf32>, vector<8x8xf32>, vector<64x8xf32> -> vector<64x8xf32>
    %16 = vector.broadcast %3 : vector<1x8xf32> to vector<64x8xf32>
    %17 = arith.addf %15, %16 : vector<64x8xf32>
    %18 = vector.shape_cast %17 : vector<64x8xf32> to vector<8x8x8xf32>
    %c0_16 = arith.constant 0 : index
    %c0_17 = arith.constant 0 : index
    %c1_18 = arith.constant 1 : index
    %c0_19 = arith.constant 0 : index
    %c0_20 = arith.constant 0 : index
    %19 = vector.load %arg4[%c0_16, %c0_17, %c1_18, %c0_19, %c0_20] : memref<1x8x2x8x8xf32, #tpu.memory_space<vmem>>, vector<1x8x1x8x8xf32>
    %20 = vector.shape_cast %19 : vector<1x8x1x8x8xf32> to vector<8x8x8xf32>
    %21 = vector.shape_cast %18 : vector<8x8x8xf32> to vector<1x8x1x8x8xf32>
    tpu.vector_store %arg4[%c0_16, %c0_17, %c1_18, %c0_19, %c0_20], %21 {strides = array<i32>} : memref<1x8x2x8x8xf32, #tpu.memory_space<vmem>>, vector<1x8x1x8x8xf32>,
    return
  }
  func.func @transform_0(%arg0: i32) -> (i32, i32, i32, i32) {
    %c0_i32 = arith.constant 0 : i32
    %c0_i32_0 = arith.constant 0 : i32
    %c0_i32_1 = arith.constant 0 : i32
    %c0_i32_2 = arith.constant 0 : i32
    return %arg0, %c0_i32, %c0_i32_0, %c0_i32_1 : i32, i32, i32, i32
  }
  func.func @transform_1(%arg0: i32) -> (i32, i32, i32) {
    %c0_i32 = arith.constant 0 : i32
    %c0_i32_0 = arith.constant 0 : i32
    %c0_i32_1 = arith.constant 0 : i32
    %c0_i32_2 = arith.constant 0 : i32
    return %c0_i32, %c0_i32_0, %c0_i32_1 : i32, i32, i32
  }
  func.func @transform_2(%arg0: i32) -> (i32, i32) {
    %c0_i32 = arith.constant 0 : i32
    %c0_i32_0 = arith.constant 0 : i32
    %c0_i32_1 = arith.constant 0 : i32
    return %c0_i32, %c0_i32_0 : i32, i32
  }
  func.func @transform_3(%arg0: i32) -> (i32, i32, i32, i32, i32) {
    %c0_i32 = arith.constant 0 : i32
    %c0_i32_0 = arith.constant 0 : i32
    %c0_i32_1 = arith.constant 0 : i32
    %c0_i32_2 = arith.constant 0 : i32
    %c0_i32_3 = arith.constant 0 : i32
    return %arg0, %c0_i32, %c0_i32_0, %c0_i32_1, %c0_i32_2 : i32, i32, i32, i32, i32
  }
}

module attributes {stable_mosaic.version = 11 : i64} {
  func.func @_fused_conv_blk_kernel(%arg0: i32, %arg1: memref<1x16x16x4xf32, #tpu.memory_space<vmem>>, %arg2: memref<1x16x16x4xf32, #tpu.memory_space<vmem>>, %arg3: memref<9x4x4xf32, #tpu.memory_space<vmem>>, %arg4: memref<9x4x4xf32, #tpu.memory_space<vmem>>, %arg5: memref<1x4xf32, #tpu.memory_space<vmem>>, %arg6: memref<1x4xf32, #tpu.memory_space<vmem>>, %arg7: memref<9x4x4xf32, #tpu.memory_space<vmem>>, %arg8: memref<1x4xf32, #tpu.memory_space<vmem>>, %arg9: memref<1x4xf32, #tpu.memory_space<vmem>>, %arg10: memref<1x16x16x4xf32, #tpu.memory_space<vmem>>, %arg11: memref<18x18x4xf32, #tpu.memory_space<vmem>>, %arg12: memref<18x18x4xf32, #tpu.memory_space<vmem>>, %arg13: memref<18x18x4xf32, #tpu.memory_space<vmem>>) attributes {dimension_semantics = [#tpu.dimension_semantics<parallel>], iteration_bounds = array<i64: 2>, scalar_prefetch = 0 : i64, scratch_operands = 3 : i64, tpu.core_type = #tpu.core_type<tc>, window_params = [{transform_indices = @transform_0, window_bounds = array<i64: 1, 16, 16, 4>}, {transform_indices = @transform_1, window_bounds = array<i64: 1, 16, 16, 4>}, {pipeline_mode = #tpu.pipeline_mode<synchronous>, transform_indices = @transform_2, window_bounds = array<i64: 9, 4, 4>}, {pipeline_mode = #tpu.pipeline_mode<synchronous>, transform_indices = @transform_3, window_bounds = array<i64: 9, 4, 4>}, {pipeline_mode = #tpu.pipeline_mode<synchronous>, transform_indices = @transform_4, window_bounds = array<i64: 1, 4>}, {pipeline_mode = #tpu.pipeline_mode<synchronous>, transform_indices = @transform_5, window_bounds = array<i64: 1, 4>}, {pipeline_mode = #tpu.pipeline_mode<synchronous>, transform_indices = @transform_6, window_bounds = array<i64: 9, 4, 4>}, {pipeline_mode = #tpu.pipeline_mode<synchronous>, transform_indices = @transform_7, window_bounds = array<i64: 1, 4>}, {pipeline_mode = #tpu.pipeline_mode<synchronous>, transform_indices = @transform_8, window_bounds = array<i64: 1, 4>}, {transform_indices = @transform_9, window_bounds = array<i64: 1, 16, 16, 4>}]} {
    %cst = arith.constant 0.000000e+00 : f32
    %0 = vector.broadcast %cst : f32 to vector<18x18x4xf32>
    %c0 = arith.constant 0 : index
    %c0_0 = arith.constant 0 : index
    %c0_1 = arith.constant 0 : index
    %1 = vector.load %arg11[%c0, %c0_0, %c0_1] : memref<18x18x4xf32, #tpu.memory_space<vmem>>, vector<18x18x4xf32>
    tpu.vector_store %arg11[%c0, %c0_0, %c0_1], %0 {strides = array<i32>} : memref<18x18x4xf32, #tpu.memory_space<vmem>>, vector<18x18x4xf32>,
    %cst_2 = arith.constant 0.000000e+00 : f32
    %2 = vector.broadcast %cst_2 : f32 to vector<18x18x4xf32>
    %c0_3 = arith.constant 0 : index
    %c0_4 = arith.constant 0 : index
    %c0_5 = arith.constant 0 : index
    %3 = vector.load %arg12[%c0_3, %c0_4, %c0_5] : memref<18x18x4xf32, #tpu.memory_space<vmem>>, vector<18x18x4xf32>
    tpu.vector_store %arg12[%c0_3, %c0_4, %c0_5], %2 {strides = array<i32>} : memref<18x18x4xf32, #tpu.memory_space<vmem>>, vector<18x18x4xf32>,
    %cst_6 = arith.constant 0.000000e+00 : f32
    %4 = vector.broadcast %cst_6 : f32 to vector<18x18x4xf32>
    %c0_7 = arith.constant 0 : index
    %c0_8 = arith.constant 0 : index
    %c0_9 = arith.constant 0 : index
    %5 = vector.load %arg13[%c0_7, %c0_8, %c0_9] : memref<18x18x4xf32, #tpu.memory_space<vmem>>, vector<18x18x4xf32>
    tpu.vector_store %arg13[%c0_7, %c0_8, %c0_9], %4 {strides = array<i32>} : memref<18x18x4xf32, #tpu.memory_space<vmem>>, vector<18x18x4xf32>,
    %c0_10 = arith.constant 0 : index
    %c0_11 = arith.constant 0 : index
    %c0_12 = arith.constant 0 : index
    %c0_13 = arith.constant 0 : index
    %6 = vector.load %arg1[%c0_10, %c0_11, %c0_12, %c0_13] : memref<1x16x16x4xf32, #tpu.memory_space<vmem>>, vector<1x16x16x4xf32>
    %7 = vector.shape_cast %6 : vector<1x16x16x4xf32> to vector<16x16x4xf32>
    %c1 = arith.constant 1 : index
    %c1_14 = arith.constant 1 : index
    %c0_15 = arith.constant 0 : index
    %8 = vector.load %arg11[%c1, %c1_14, %c0_15] : memref<18x18x4xf32, #tpu.memory_space<vmem>>, vector<16x16x4xf32>
    tpu.vector_store %arg11[%c1, %c1_14, %c0_15], %7 {strides = array<i32>} : memref<18x18x4xf32, #tpu.memory_space<vmem>>, vector<16x16x4xf32>,
    %c0_16 = arith.constant 0 : index
    %c0_17 = arith.constant 0 : index
    %c0_18 = arith.constant 0 : index
    %c0_19 = arith.constant 0 : index
    %9 = vector.load %arg2[%c0_16, %c0_17, %c0_18, %c0_19] : memref<1x16x16x4xf32, #tpu.memory_space<vmem>>, vector<1x16x16x4xf32>
    %10 = vector.shape_cast %9 : vector<1x16x16x4xf32> to vector<16x16x4xf32>
    %c1_20 = arith.constant 1 : index
    %c1_21 = arith.constant 1 : index
    %c0_22 = arith.constant 0 : index
    %11 = vector.load %arg12[%c1_20, %c1_21, %c0_22] : memref<18x18x4xf32, #tpu.memory_space<vmem>>, vector<16x16x4xf32>
    tpu.vector_store %arg12[%c1_20, %c1_21, %c0_22], %10 {strides = array<i32>} : memref<18x18x4xf32, #tpu.memory_space<vmem>>, vector<16x16x4xf32>,
    %cst_23 = arith.constant 0.000000e+00 : f32
    %12 = vector.broadcast %cst_23 : f32 to vector<256x4xf32>
    %c0_24 = arith.constant 0 : index
    %c0_25 = arith.constant 0 : index
    %c0_26 = arith.constant 0 : index
    %13 = vector.load %arg11[%c0_24, %c0_25, %c0_26] : memref<18x18x4xf32, #tpu.memory_space<vmem>>, vector<16x16x4xf32>
    %14 = vector.shape_cast %13 : vector<16x16x4xf32> to vector<256x4xf32>
    %c0_27 = arith.constant 0 : index
    %c0_28 = arith.constant 0 : index
    %c0_29 = arith.constant 0 : index
    %15 = vector.load %arg12[%c0_27, %c0_28, %c0_29] : memref<18x18x4xf32, #tpu.memory_space<vmem>>, vector<16x16x4xf32>
    %16 = vector.shape_cast %15 : vector<16x16x4xf32> to vector<256x4xf32>
    %c0_30 = arith.constant 0 : index
    %c0_31 = arith.constant 0 : index
    %c0_32 = arith.constant 0 : index
    %17 = vector.load %arg3[%c0_30, %c0_31, %c0_32] : memref<9x4x4xf32, #tpu.memory_space<vmem>>, vector<1x4x4xf32>
    %18 = vector.shape_cast %17 : vector<1x4x4xf32> to vector<4x4xf32>
    %cst_33 = arith.constant dense<0.000000e+00> : vector<256x4xf32>
    %19 = tpu.matmul %14, %18, %cst_33 {dimension_numbers = #tpu.dot_dimension_numbers<[1], [0], [0], [1], [0, 0, 1, 1], [], []>} : vector<256x4xf32>, vector<4x4xf32>, vector<256x4xf32> -> vector<256x4xf32>
    %20 = arith.addf %12, %19 : vector<256x4xf32>
    %c0_34 = arith.constant 0 : index
    %c0_35 = arith.constant 0 : index
    %c0_36 = arith.constant 0 : index
    %21 = vector.load %arg4[%c0_34, %c0_35, %c0_36] : memref<9x4x4xf32, #tpu.memory_space<vmem>>, vector<1x4x4xf32>
    %22 = vector.shape_cast %21 : vector<1x4x4xf32> to vector<4x4xf32>
    %cst_37 = arith.constant dense<0.000000e+00> : vector<256x4xf32>
    %23 = tpu.matmul %16, %22, %cst_37 {dimension_numbers = #tpu.dot_dimension_numbers<[1], [0], [0], [1], [0, 0, 1, 1], [], []>} : vector<256x4xf32>, vector<4x4xf32>, vector<256x4xf32> -> vector<256x4xf32>
    %24 = arith.addf %20, %23 : vector<256x4xf32>
    %c0_38 = arith.constant 0 : index
    %c1_39 = arith.constant 1 : index
    %c0_40 = arith.constant 0 : index
    %25 = vector.load %arg11[%c0_38, %c1_39, %c0_40] : memref<18x18x4xf32, #tpu.memory_space<vmem>>, vector<16x16x4xf32>
    %26 = vector.shape_cast %25 : vector<16x16x4xf32> to vector<256x4xf32>
    %c0_41 = arith.constant 0 : index
    %c1_42 = arith.constant 1 : index
    %c0_43 = arith.constant 0 : index
    %27 = vector.load %arg12[%c0_41, %c1_42, %c0_43] : memref<18x18x4xf32, #tpu.memory_space<vmem>>, vector<16x16x4xf32>
    %28 = vector.shape_cast %27 : vector<16x16x4xf32> to vector<256x4xf32>
    %c1_44 = arith.constant 1 : index
    %c0_45 = arith.constant 0 : index
    %c0_46 = arith.constant 0 : index
    %29 = vector.load %arg3[%c1_44, %c0_45, %c0_46] : memref<9x4x4xf32, #tpu.memory_space<vmem>>, vector<1x4x4xf32>
    %30 = vector.shape_cast %29 : vector<1x4x4xf32> to vector<4x4xf32>
    %cst_47 = arith.constant dense<0.000000e+00> : vector<256x4xf32>
    %31 = tpu.matmul %26, %30, %cst_47 {dimension_numbers = #tpu.dot_dimension_numbers<[1], [0], [0], [1], [0, 0, 1, 1], [], []>} : vector<256x4xf32>, vector<4x4xf32>, vector<256x4xf32> -> vector<256x4xf32>
    %32 = arith.addf %24, %31 : vector<256x4xf32>
    %c1_48 = arith.constant 1 : index
    %c0_49 = arith.constant 0 : index
    %c0_50 = arith.constant 0 : index
    %33 = vector.load %arg4[%c1_48, %c0_49, %c0_50] : memref<9x4x4xf32, #tpu.memory_space<vmem>>, vector<1x4x4xf32>
    %34 = vector.shape_cast %33 : vector<1x4x4xf32> to vector<4x4xf32>
    %cst_51 = arith.constant dense<0.000000e+00> : vector<256x4xf32>
    %35 = tpu.matmul %28, %34, %cst_51 {dimension_numbers = #tpu.dot_dimension_numbers<[1], [0], [0], [1], [0, 0, 1, 1], [], []>} : vector<256x4xf32>, vector<4x4xf32>, vector<256x4xf32> -> vector<256x4xf32>
    %36 = arith.addf %32, %35 : vector<256x4xf32>
    %c0_52 = arith.constant 0 : index
    %c2 = arith.constant 2 : index
    %c0_53 = arith.constant 0 : index
    %37 = vector.load %arg11[%c0_52, %c2, %c0_53] : memref<18x18x4xf32, #tpu.memory_space<vmem>>, vector<16x16x4xf32>
    %38 = vector.shape_cast %37 : vector<16x16x4xf32> to vector<256x4xf32>
    %c0_54 = arith.constant 0 : index
    %c2_55 = arith.constant 2 : index
    %c0_56 = arith.constant 0 : index
    %39 = vector.load %arg12[%c0_54, %c2_55, %c0_56] : memref<18x18x4xf32, #tpu.memory_space<vmem>>, vector<16x16x4xf32>
    %40 = vector.shape_cast %39 : vector<16x16x4xf32> to vector<256x4xf32>
    %c2_57 = arith.constant 2 : index
    %c0_58 = arith.constant 0 : index
    %c0_59 = arith.constant 0 : index
    %41 = vector.load %arg3[%c2_57, %c0_58, %c0_59] : memref<9x4x4xf32, #tpu.memory_space<vmem>>, vector<1x4x4xf32>
    %42 = vector.shape_cast %41 : vector<1x4x4xf32> to vector<4x4xf32>
    %cst_60 = arith.constant dense<0.000000e+00> : vector<256x4xf32>
    %43 = tpu.matmul %38, %42, %cst_60 {dimension_numbers = #tpu.dot_dimension_numbers<[1], [0], [0], [1], [0, 0, 1, 1], [], []>} : vector<256x4xf32>, vector<4x4xf32>, vector<256x4xf32> -> vector<256x4xf32>
    %44 = arith.addf %36, %43 : vector<256x4xf32>
    %c2_61 = arith.constant 2 : index
    %c0_62 = arith.constant 0 : index
    %c0_63 = arith.constant 0 : index
    %45 = vector.load %arg4[%c2_61, %c0_62, %c0_63] : memref<9x4x4xf32, #tpu.memory_space<vmem>>, vector<1x4x4xf32>
    %46 = vector.shape_cast %45 : vector<1x4x4xf32> to vector<4x4xf32>
    %cst_64 = arith.constant dense<0.000000e+00> : vector<256x4xf32>
    %47 = tpu.matmul %40, %46, %cst_64 {dimension_numbers = #tpu.dot_dimension_numbers<[1], [0], [0], [1], [0, 0, 1, 1], [], []>} : vector<256x4xf32>, vector<4x4xf32>, vector<256x4xf32> -> vector<256x4xf32>
    %48 = arith.addf %44, %47 : vector<256x4xf32>
    %c1_65 = arith.constant 1 : index
    %c0_66 = arith.constant 0 : index
    %c0_67 = arith.constant 0 : index
    %49 = vector.load %arg11[%c1_65, %c0_66, %c0_67] : memref<18x18x4xf32, #tpu.memory_space<vmem>>, vector<16x16x4xf32>
    %50 = vector.shape_cast %49 : vector<16x16x4xf32> to vector<256x4xf32>
    %c1_68 = arith.constant 1 : index
    %c0_69 = arith.constant 0 : index
    %c0_70 = arith.constant 0 : index
    %51 = vector.load %arg12[%c1_68, %c0_69, %c0_70] : memref<18x18x4xf32, #tpu.memory_space<vmem>>, vector<16x16x4xf32>
    %52 = vector.shape_cast %51 : vector<16x16x4xf32> to vector<256x4xf32>
    %c3 = arith.constant 3 : index
    %c0_71 = arith.constant 0 : index
    %c0_72 = arith.constant 0 : index
    %53 = vector.load %arg3[%c3, %c0_71, %c0_72] : memref<9x4x4xf32, #tpu.memory_space<vmem>>, vector<1x4x4xf32>
    %54 = vector.shape_cast %53 : vector<1x4x4xf32> to vector<4x4xf32>
    %cst_73 = arith.constant dense<0.000000e+00> : vector<256x4xf32>
    %55 = tpu.matmul %50, %54, %cst_73 {dimension_numbers = #tpu.dot_dimension_numbers<[1], [0], [0], [1], [0, 0, 1, 1], [], []>} : vector<256x4xf32>, vector<4x4xf32>, vector<256x4xf32> -> vector<256x4xf32>
    %56 = arith.addf %48, %55 : vector<256x4xf32>
    %c3_74 = arith.constant 3 : index
    %c0_75 = arith.constant 0 : index
    %c0_76 = arith.constant 0 : index
    %57 = vector.load %arg4[%c3_74, %c0_75, %c0_76] : memref<9x4x4xf32, #tpu.memory_space<vmem>>, vector<1x4x4xf32>
    %58 = vector.shape_cast %57 : vector<1x4x4xf32> to vector<4x4xf32>
    %cst_77 = arith.constant dense<0.000000e+00> : vector<256x4xf32>
    %59 = tpu.matmul %52, %58, %cst_77 {dimension_numbers = #tpu.dot_dimension_numbers<[1], [0], [0], [1], [0, 0, 1, 1], [], []>} : vector<256x4xf32>, vector<4x4xf32>, vector<256x4xf32> -> vector<256x4xf32>
    %60 = arith.addf %56, %59 : vector<256x4xf32>
    %c1_78 = arith.constant 1 : index
    %c1_79 = arith.constant 1 : index
    %c0_80 = arith.constant 0 : index
    %61 = vector.load %arg11[%c1_78, %c1_79, %c0_80] : memref<18x18x4xf32, #tpu.memory_space<vmem>>, vector<16x16x4xf32>
    %62 = vector.shape_cast %61 : vector<16x16x4xf32> to vector<256x4xf32>
    %c1_81 = arith.constant 1 : index
    %c1_82 = arith.constant 1 : index
    %c0_83 = arith.constant 0 : index
    %63 = vector.load %arg12[%c1_81, %c1_82, %c0_83] : memref<18x18x4xf32, #tpu.memory_space<vmem>>, vector<16x16x4xf32>
    %64 = vector.shape_cast %63 : vector<16x16x4xf32> to vector<256x4xf32>
    %c4 = arith.constant 4 : index
    %c0_84 = arith.constant 0 : index
    %c0_85 = arith.constant 0 : index
    %65 = vector.load %arg3[%c4, %c0_84, %c0_85] : memref<9x4x4xf32, #tpu.memory_space<vmem>>, vector<1x4x4xf32>
    %66 = vector.shape_cast %65 : vector<1x4x4xf32> to vector<4x4xf32>
    %cst_86 = arith.constant dense<0.000000e+00> : vector<256x4xf32>
    %67 = tpu.matmul %62, %66, %cst_86 {dimension_numbers = #tpu.dot_dimension_numbers<[1], [0], [0], [1], [0, 0, 1, 1], [], []>} : vector<256x4xf32>, vector<4x4xf32>, vector<256x4xf32> -> vector<256x4xf32>
    %68 = arith.addf %60, %67 : vector<256x4xf32>
    %c4_87 = arith.constant 4 : index
    %c0_88 = arith.constant 0 : index
    %c0_89 = arith.constant 0 : index
    %69 = vector.load %arg4[%c4_87, %c0_88, %c0_89] : memref<9x4x4xf32, #tpu.memory_space<vmem>>, vector<1x4x4xf32>
    %70 = vector.shape_cast %69 : vector<1x4x4xf32> to vector<4x4xf32>
    %cst_90 = arith.constant dense<0.000000e+00> : vector<256x4xf32>
    %71 = tpu.matmul %64, %70, %cst_90 {dimension_numbers = #tpu.dot_dimension_numbers<[1], [0], [0], [1], [0, 0, 1, 1], [], []>} : vector<256x4xf32>, vector<4x4xf32>, vector<256x4xf32> -> vector<256x4xf32>
    %72 = arith.addf %68, %71 : vector<256x4xf32>
    %c1_91 = arith.constant 1 : index
    %c2_92 = arith.constant 2 : index
    %c0_93 = arith.constant 0 : index
    %73 = vector.load %arg11[%c1_91, %c2_92, %c0_93] : memref<18x18x4xf32, #tpu.memory_space<vmem>>, vector<16x16x4xf32>
    %74 = vector.shape_cast %73 : vector<16x16x4xf32> to vector<256x4xf32>
    %c1_94 = arith.constant 1 : index
    %c2_95 = arith.constant 2 : index
    %c0_96 = arith.constant 0 : index
    %75 = vector.load %arg12[%c1_94, %c2_95, %c0_96] : memref<18x18x4xf32, #tpu.memory_space<vmem>>, vector<16x16x4xf32>
    %76 = vector.shape_cast %75 : vector<16x16x4xf32> to vector<256x4xf32>
    %c5 = arith.constant 5 : index
    %c0_97 = arith.constant 0 : index
    %c0_98 = arith.constant 0 : index
    %77 = vector.load %arg3[%c5, %c0_97, %c0_98] : memref<9x4x4xf32, #tpu.memory_space<vmem>>, vector<1x4x4xf32>
    %78 = vector.shape_cast %77 : vector<1x4x4xf32> to vector<4x4xf32>
    %cst_99 = arith.constant dense<0.000000e+00> : vector<256x4xf32>
    %79 = tpu.matmul %74, %78, %cst_99 {dimension_numbers = #tpu.dot_dimension_numbers<[1], [0], [0], [1], [0, 0, 1, 1], [], []>} : vector<256x4xf32>, vector<4x4xf32>, vector<256x4xf32> -> vector<256x4xf32>
    %80 = arith.addf %72, %79 : vector<256x4xf32>
    %c5_100 = arith.constant 5 : index
    %c0_101 = arith.constant 0 : index
    %c0_102 = arith.constant 0 : index
    %81 = vector.load %arg4[%c5_100, %c0_101, %c0_102] : memref<9x4x4xf32, #tpu.memory_space<vmem>>, vector<1x4x4xf32>
    %82 = vector.shape_cast %81 : vector<1x4x4xf32> to vector<4x4xf32>
    %cst_103 = arith.constant dense<0.000000e+00> : vector<256x4xf32>
    %83 = tpu.matmul %76, %82, %cst_103 {dimension_numbers = #tpu.dot_dimension_numbers<[1], [0], [0], [1], [0, 0, 1, 1], [], []>} : vector<256x4xf32>, vector<4x4xf32>, vector<256x4xf32> -> vector<256x4xf32>
    %84 = arith.addf %80, %83 : vector<256x4xf32>
    %c2_104 = arith.constant 2 : index
    %c0_105 = arith.constant 0 : index
    %c0_106 = arith.constant 0 : index
    %85 = vector.load %arg11[%c2_104, %c0_105, %c0_106] : memref<18x18x4xf32, #tpu.memory_space<vmem>>, vector<16x16x4xf32>
    %86 = vector.shape_cast %85 : vector<16x16x4xf32> to vector<256x4xf32>
    %c2_107 = arith.constant 2 : index
    %c0_108 = arith.constant 0 : index
    %c0_109 = arith.constant 0 : index
    %87 = vector.load %arg12[%c2_107, %c0_108, %c0_109] : memref<18x18x4xf32, #tpu.memory_space<vmem>>, vector<16x16x4xf32>
    %88 = vector.shape_cast %87 : vector<16x16x4xf32> to vector<256x4xf32>
    %c6 = arith.constant 6 : index
    %c0_110 = arith.constant 0 : index
    %c0_111 = arith.constant 0 : index
    %89 = vector.load %arg3[%c6, %c0_110, %c0_111] : memref<9x4x4xf32, #tpu.memory_space<vmem>>, vector<1x4x4xf32>
    %90 = vector.shape_cast %89 : vector<1x4x4xf32> to vector<4x4xf32>
    %cst_112 = arith.constant dense<0.000000e+00> : vector<256x4xf32>
    %91 = tpu.matmul %86, %90, %cst_112 {dimension_numbers = #tpu.dot_dimension_numbers<[1], [0], [0], [1], [0, 0, 1, 1], [], []>} : vector<256x4xf32>, vector<4x4xf32>, vector<256x4xf32> -> vector<256x4xf32>
    %92 = arith.addf %84, %91 : vector<256x4xf32>
    %c6_113 = arith.constant 6 : index
    %c0_114 = arith.constant 0 : index
    %c0_115 = arith.constant 0 : index
    %93 = vector.load %arg4[%c6_113, %c0_114, %c0_115] : memref<9x4x4xf32, #tpu.memory_space<vmem>>, vector<1x4x4xf32>
    %94 = vector.shape_cast %93 : vector<1x4x4xf32> to vector<4x4xf32>
    %cst_116 = arith.constant dense<0.000000e+00> : vector<256x4xf32>
    %95 = tpu.matmul %88, %94, %cst_116 {dimension_numbers = #tpu.dot_dimension_numbers<[1], [0], [0], [1], [0, 0, 1, 1], [], []>} : vector<256x4xf32>, vector<4x4xf32>, vector<256x4xf32> -> vector<256x4xf32>
    %96 = arith.addf %92, %95 : vector<256x4xf32>
    %c2_117 = arith.constant 2 : index
    %c1_118 = arith.constant 1 : index
    %c0_119 = arith.constant 0 : index
    %97 = vector.load %arg11[%c2_117, %c1_118, %c0_119] : memref<18x18x4xf32, #tpu.memory_space<vmem>>, vector<16x16x4xf32>
    %98 = vector.shape_cast %97 : vector<16x16x4xf32> to vector<256x4xf32>
    %c2_120 = arith.constant 2 : index
    %c1_121 = arith.constant 1 : index
    %c0_122 = arith.constant 0 : index
    %99 = vector.load %arg12[%c2_120, %c1_121, %c0_122] : memref<18x18x4xf32, #tpu.memory_space<vmem>>, vector<16x16x4xf32>
    %100 = vector.shape_cast %99 : vector<16x16x4xf32> to vector<256x4xf32>
    %c7 = arith.constant 7 : index
    %c0_123 = arith.constant 0 : index
    %c0_124 = arith.constant 0 : index
    %101 = vector.load %arg3[%c7, %c0_123, %c0_124] : memref<9x4x4xf32, #tpu.memory_space<vmem>>, vector<1x4x4xf32>
    %102 = vector.shape_cast %101 : vector<1x4x4xf32> to vector<4x4xf32>
    %cst_125 = arith.constant dense<0.000000e+00> : vector<256x4xf32>
    %103 = tpu.matmul %98, %102, %cst_125 {dimension_numbers = #tpu.dot_dimension_numbers<[1], [0], [0], [1], [0, 0, 1, 1], [], []>} : vector<256x4xf32>, vector<4x4xf32>, vector<256x4xf32> -> vector<256x4xf32>
    %104 = arith.addf %96, %103 : vector<256x4xf32>
    %c7_126 = arith.constant 7 : index
    %c0_127 = arith.constant 0 : index
    %c0_128 = arith.constant 0 : index
    %105 = vector.load %arg4[%c7_126, %c0_127, %c0_128] : memref<9x4x4xf32, #tpu.memory_space<vmem>>, vector<1x4x4xf32>
    %106 = vector.shape_cast %105 : vector<1x4x4xf32> to vector<4x4xf32>
    %cst_129 = arith.constant dense<0.000000e+00> : vector<256x4xf32>
    %107 = tpu.matmul %100, %106, %cst_129 {dimension_numbers = #tpu.dot_dimension_numbers<[1], [0], [0], [1], [0, 0, 1, 1], [], []>} : vector<256x4xf32>, vector<4x4xf32>, vector<256x4xf32> -> vector<256x4xf32>
    %108 = arith.addf %104, %107 : vector<256x4xf32>
    %c2_130 = arith.constant 2 : index
    %c2_131 = arith.constant 2 : index
    %c0_132 = arith.constant 0 : index
    %109 = vector.load %arg11[%c2_130, %c2_131, %c0_132] : memref<18x18x4xf32, #tpu.memory_space<vmem>>, vector<16x16x4xf32>
    %110 = vector.shape_cast %109 : vector<16x16x4xf32> to vector<256x4xf32>
    %c2_133 = arith.constant 2 : index
    %c2_134 = arith.constant 2 : index
    %c0_135 = arith.constant 0 : index
    %111 = vector.load %arg12[%c2_133, %c2_134, %c0_135] : memref<18x18x4xf32, #tpu.memory_space<vmem>>, vector<16x16x4xf32>
    %112 = vector.shape_cast %111 : vector<16x16x4xf32> to vector<256x4xf32>
    %c8 = arith.constant 8 : index
    %c0_136 = arith.constant 0 : index
    %c0_137 = arith.constant 0 : index
    %113 = vector.load %arg3[%c8, %c0_136, %c0_137] : memref<9x4x4xf32, #tpu.memory_space<vmem>>, vector<1x4x4xf32>
    %114 = vector.shape_cast %113 : vector<1x4x4xf32> to vector<4x4xf32>
    %cst_138 = arith.constant dense<0.000000e+00> : vector<256x4xf32>
    %115 = tpu.matmul %110, %114, %cst_138 {dimension_numbers = #tpu.dot_dimension_numbers<[1], [0], [0], [1], [0, 0, 1, 1], [], []>} : vector<256x4xf32>, vector<4x4xf32>, vector<256x4xf32> -> vector<256x4xf32>
    %116 = arith.addf %108, %115 : vector<256x4xf32>
    %c8_139 = arith.constant 8 : index
    %c0_140 = arith.constant 0 : index
    %c0_141 = arith.constant 0 : index
    %117 = vector.load %arg4[%c8_139, %c0_140, %c0_141] : memref<9x4x4xf32, #tpu.memory_space<vmem>>, vector<1x4x4xf32>
    %118 = vector.shape_cast %117 : vector<1x4x4xf32> to vector<4x4xf32>
    %cst_142 = arith.constant dense<0.000000e+00> : vector<256x4xf32>
    %119 = tpu.matmul %112, %118, %cst_142 {dimension_numbers = #tpu.dot_dimension_numbers<[1], [0], [0], [1], [0, 0, 1, 1], [], []>} : vector<256x4xf32>, vector<4x4xf32>, vector<256x4xf32> -> vector<256x4xf32>
    %120 = arith.addf %116, %119 : vector<256x4xf32>
    %c0_143 = arith.constant 0 : index
    %c0_144 = arith.constant 0 : index
    %121 = vector.load %arg5[%c0_143, %c0_144] : memref<1x4xf32, #tpu.memory_space<vmem>>, vector<1x4xf32>
    %122 = vector.broadcast %121 : vector<1x4xf32> to vector<256x4xf32>
    %123 = arith.mulf %120, %122 : vector<256x4xf32>
    %c0_145 = arith.constant 0 : index
    %c0_146 = arith.constant 0 : index
    %124 = vector.load %arg6[%c0_145, %c0_146] : memref<1x4xf32, #tpu.memory_space<vmem>>, vector<1x4xf32>
    %125 = vector.broadcast %124 : vector<1x4xf32> to vector<256x4xf32>
    %126 = arith.addf %123, %125 : vector<256x4xf32>
    %cst_147 = arith.constant 0.000000e+00 : f32
    %127 = vector.broadcast %cst_147 : f32 to vector<256x4xf32>
    %128 = arith.maximumf %126, %127 : vector<256x4xf32>
    %129 = vector.shape_cast %128 : vector<256x4xf32> to vector<16x16x4xf32>
    %c1_148 = arith.constant 1 : index
    %c1_149 = arith.constant 1 : index
    %c0_150 = arith.constant 0 : index
    %130 = vector.load %arg13[%c1_148, %c1_149, %c0_150] : memref<18x18x4xf32, #tpu.memory_space<vmem>>, vector<16x16x4xf32>
    tpu.vector_store %arg13[%c1_148, %c1_149, %c0_150], %129 {strides = array<i32>} : memref<18x18x4xf32, #tpu.memory_space<vmem>>, vector<16x16x4xf32>,
    %cst_151 = arith.constant 0.000000e+00 : f32
    %131 = vector.broadcast %cst_151 : f32 to vector<256x4xf32>
    %c0_152 = arith.constant 0 : index
    %c0_153 = arith.constant 0 : index
    %c0_154 = arith.constant 0 : index
    %132 = vector.load %arg13[%c0_152, %c0_153, %c0_154] : memref<18x18x4xf32, #tpu.memory_space<vmem>>, vector<16x16x4xf32>
    %133 = vector.shape_cast %132 : vector<16x16x4xf32> to vector<256x4xf32>
    %c0_155 = arith.constant 0 : index
    %c0_156 = arith.constant 0 : index
    %c0_157 = arith.constant 0 : index
    %134 = vector.load %arg7[%c0_155, %c0_156, %c0_157] : memref<9x4x4xf32, #tpu.memory_space<vmem>>, vector<1x4x4xf32>
    %135 = vector.shape_cast %134 : vector<1x4x4xf32> to vector<4x4xf32>
    %cst_158 = arith.constant dense<0.000000e+00> : vector<256x4xf32>
    %136 = tpu.matmul %133, %135, %cst_158 {dimension_numbers = #tpu.dot_dimension_numbers<[1], [0], [0], [1], [0, 0, 1, 1], [], []>} : vector<256x4xf32>, vector<4x4xf32>, vector<256x4xf32> -> vector<256x4xf32>
    %137 = arith.addf %131, %136 : vector<256x4xf32>
    %c0_159 = arith.constant 0 : index
    %c1_160 = arith.constant 1 : index
    %c0_161 = arith.constant 0 : index
    %138 = vector.load %arg13[%c0_159, %c1_160, %c0_161] : memref<18x18x4xf32, #tpu.memory_space<vmem>>, vector<16x16x4xf32>
    %139 = vector.shape_cast %138 : vector<16x16x4xf32> to vector<256x4xf32>
    %c1_162 = arith.constant 1 : index
    %c0_163 = arith.constant 0 : index
    %c0_164 = arith.constant 0 : index
    %140 = vector.load %arg7[%c1_162, %c0_163, %c0_164] : memref<9x4x4xf32, #tpu.memory_space<vmem>>, vector<1x4x4xf32>
    %141 = vector.shape_cast %140 : vector<1x4x4xf32> to vector<4x4xf32>
    %cst_165 = arith.constant dense<0.000000e+00> : vector<256x4xf32>
    %142 = tpu.matmul %139, %141, %cst_165 {dimension_numbers = #tpu.dot_dimension_numbers<[1], [0], [0], [1], [0, 0, 1, 1], [], []>} : vector<256x4xf32>, vector<4x4xf32>, vector<256x4xf32> -> vector<256x4xf32>
    %143 = arith.addf %137, %142 : vector<256x4xf32>
    %c0_166 = arith.constant 0 : index
    %c2_167 = arith.constant 2 : index
    %c0_168 = arith.constant 0 : index
    %144 = vector.load %arg13[%c0_166, %c2_167, %c0_168] : memref<18x18x4xf32, #tpu.memory_space<vmem>>, vector<16x16x4xf32>
    %145 = vector.shape_cast %144 : vector<16x16x4xf32> to vector<256x4xf32>
    %c2_169 = arith.constant 2 : index
    %c0_170 = arith.constant 0 : index
    %c0_171 = arith.constant 0 : index
    %146 = vector.load %arg7[%c2_169, %c0_170, %c0_171] : memref<9x4x4xf32, #tpu.memory_space<vmem>>, vector<1x4x4xf32>
    %147 = vector.shape_cast %146 : vector<1x4x4xf32> to vector<4x4xf32>
    %cst_172 = arith.constant dense<0.000000e+00> : vector<256x4xf32>
    %148 = tpu.matmul %145, %147, %cst_172 {dimension_numbers = #tpu.dot_dimension_numbers<[1], [0], [0], [1], [0, 0, 1, 1], [], []>} : vector<256x4xf32>, vector<4x4xf32>, vector<256x4xf32> -> vector<256x4xf32>
    %149 = arith.addf %143, %148 : vector<256x4xf32>
    %c1_173 = arith.constant 1 : index
    %c0_174 = arith.constant 0 : index
    %c0_175 = arith.constant 0 : index
    %150 = vector.load %arg13[%c1_173, %c0_174, %c0_175] : memref<18x18x4xf32, #tpu.memory_space<vmem>>, vector<16x16x4xf32>
    %151 = vector.shape_cast %150 : vector<16x16x4xf32> to vector<256x4xf32>
    %c3_176 = arith.constant 3 : index
    %c0_177 = arith.constant 0 : index
    %c0_178 = arith.constant 0 : index
    %152 = vector.load %arg7[%c3_176, %c0_177, %c0_178] : memref<9x4x4xf32, #tpu.memory_space<vmem>>, vector<1x4x4xf32>
    %153 = vector.shape_cast %152 : vector<1x4x4xf32> to vector<4x4xf32>
    %cst_179 = arith.constant dense<0.000000e+00> : vector<256x4xf32>
    %154 = tpu.matmul %151, %153, %cst_179 {dimension_numbers = #tpu.dot_dimension_numbers<[1], [0], [0], [1], [0, 0, 1, 1], [], []>} : vector<256x4xf32>, vector<4x4xf32>, vector<256x4xf32> -> vector<256x4xf32>
    %155 = arith.addf %149, %154 : vector<256x4xf32>
    %c1_180 = arith.constant 1 : index
    %c1_181 = arith.constant 1 : index
    %c0_182 = arith.constant 0 : index
    %156 = vector.load %arg13[%c1_180, %c1_181, %c0_182] : memref<18x18x4xf32, #tpu.memory_space<vmem>>, vector<16x16x4xf32>
    %157 = vector.shape_cast %156 : vector<16x16x4xf32> to vector<256x4xf32>
    %c4_183 = arith.constant 4 : index
    %c0_184 = arith.constant 0 : index
    %c0_185 = arith.constant 0 : index
    %158 = vector.load %arg7[%c4_183, %c0_184, %c0_185] : memref<9x4x4xf32, #tpu.memory_space<vmem>>, vector<1x4x4xf32>
    %159 = vector.shape_cast %158 : vector<1x4x4xf32> to vector<4x4xf32>
    %cst_186 = arith.constant dense<0.000000e+00> : vector<256x4xf32>
    %160 = tpu.matmul %157, %159, %cst_186 {dimension_numbers = #tpu.dot_dimension_numbers<[1], [0], [0], [1], [0, 0, 1, 1], [], []>} : vector<256x4xf32>, vector<4x4xf32>, vector<256x4xf32> -> vector<256x4xf32>
    %161 = arith.addf %155, %160 : vector<256x4xf32>
    %c1_187 = arith.constant 1 : index
    %c2_188 = arith.constant 2 : index
    %c0_189 = arith.constant 0 : index
    %162 = vector.load %arg13[%c1_187, %c2_188, %c0_189] : memref<18x18x4xf32, #tpu.memory_space<vmem>>, vector<16x16x4xf32>
    %163 = vector.shape_cast %162 : vector<16x16x4xf32> to vector<256x4xf32>
    %c5_190 = arith.constant 5 : index
    %c0_191 = arith.constant 0 : index
    %c0_192 = arith.constant 0 : index
    %164 = vector.load %arg7[%c5_190, %c0_191, %c0_192] : memref<9x4x4xf32, #tpu.memory_space<vmem>>, vector<1x4x4xf32>
    %165 = vector.shape_cast %164 : vector<1x4x4xf32> to vector<4x4xf32>
    %cst_193 = arith.constant dense<0.000000e+00> : vector<256x4xf32>
    %166 = tpu.matmul %163, %165, %cst_193 {dimension_numbers = #tpu.dot_dimension_numbers<[1], [0], [0], [1], [0, 0, 1, 1], [], []>} : vector<256x4xf32>, vector<4x4xf32>, vector<256x4xf32> -> vector<256x4xf32>
    %167 = arith.addf %161, %166 : vector<256x4xf32>
    %c2_194 = arith.constant 2 : index
    %c0_195 = arith.constant 0 : index
    %c0_196 = arith.constant 0 : index
    %168 = vector.load %arg13[%c2_194, %c0_195, %c0_196] : memref<18x18x4xf32, #tpu.memory_space<vmem>>, vector<16x16x4xf32>
    %169 = vector.shape_cast %168 : vector<16x16x4xf32> to vector<256x4xf32>
    %c6_197 = arith.constant 6 : index
    %c0_198 = arith.constant 0 : index
    %c0_199 = arith.constant 0 : index
    %170 = vector.load %arg7[%c6_197, %c0_198, %c0_199] : memref<9x4x4xf32, #tpu.memory_space<vmem>>, vector<1x4x4xf32>
    %171 = vector.shape_cast %170 : vector<1x4x4xf32> to vector<4x4xf32>
    %cst_200 = arith.constant dense<0.000000e+00> : vector<256x4xf32>
    %172 = tpu.matmul %169, %171, %cst_200 {dimension_numbers = #tpu.dot_dimension_numbers<[1], [0], [0], [1], [0, 0, 1, 1], [], []>} : vector<256x4xf32>, vector<4x4xf32>, vector<256x4xf32> -> vector<256x4xf32>
    %173 = arith.addf %167, %172 : vector<256x4xf32>
    %c2_201 = arith.constant 2 : index
    %c1_202 = arith.constant 1 : index
    %c0_203 = arith.constant 0 : index
    %174 = vector.load %arg13[%c2_201, %c1_202, %c0_203] : memref<18x18x4xf32, #tpu.memory_space<vmem>>, vector<16x16x4xf32>
    %175 = vector.shape_cast %174 : vector<16x16x4xf32> to vector<256x4xf32>
    %c7_204 = arith.constant 7 : index
    %c0_205 = arith.constant 0 : index
    %c0_206 = arith.constant 0 : index
    %176 = vector.load %arg7[%c7_204, %c0_205, %c0_206] : memref<9x4x4xf32, #tpu.memory_space<vmem>>, vector<1x4x4xf32>
    %177 = vector.shape_cast %176 : vector<1x4x4xf32> to vector<4x4xf32>
    %cst_207 = arith.constant dense<0.000000e+00> : vector<256x4xf32>
    %178 = tpu.matmul %175, %177, %cst_207 {dimension_numbers = #tpu.dot_dimension_numbers<[1], [0], [0], [1], [0, 0, 1, 1], [], []>} : vector<256x4xf32>, vector<4x4xf32>, vector<256x4xf32> -> vector<256x4xf32>
    %179 = arith.addf %173, %178 : vector<256x4xf32>
    %c2_208 = arith.constant 2 : index
    %c2_209 = arith.constant 2 : index
    %c0_210 = arith.constant 0 : index
    %180 = vector.load %arg13[%c2_208, %c2_209, %c0_210] : memref<18x18x4xf32, #tpu.memory_space<vmem>>, vector<16x16x4xf32>
    %181 = vector.shape_cast %180 : vector<16x16x4xf32> to vector<256x4xf32>
    %c8_211 = arith.constant 8 : index
    %c0_212 = arith.constant 0 : index
    %c0_213 = arith.constant 0 : index
    %182 = vector.load %arg7[%c8_211, %c0_212, %c0_213] : memref<9x4x4xf32, #tpu.memory_space<vmem>>, vector<1x4x4xf32>
    %183 = vector.shape_cast %182 : vector<1x4x4xf32> to vector<4x4xf32>
    %cst_214 = arith.constant dense<0.000000e+00> : vector<256x4xf32>
    %184 = tpu.matmul %181, %183, %cst_214 {dimension_numbers = #tpu.dot_dimension_numbers<[1], [0], [0], [1], [0, 0, 1, 1], [], []>} : vector<256x4xf32>, vector<4x4xf32>, vector<256x4xf32> -> vector<256x4xf32>
    %185 = arith.addf %179, %184 : vector<256x4xf32>
    %c0_215 = arith.constant 0 : index
    %c0_216 = arith.constant 0 : index
    %186 = vector.load %arg8[%c0_215, %c0_216] : memref<1x4xf32, #tpu.memory_space<vmem>>, vector<1x4xf32>
    %187 = vector.broadcast %186 : vector<1x4xf32> to vector<256x4xf32>
    %188 = arith.mulf %185, %187 : vector<256x4xf32>
    %c0_217 = arith.constant 0 : index
    %c0_218 = arith.constant 0 : index
    %189 = vector.load %arg9[%c0_217, %c0_218] : memref<1x4xf32, #tpu.memory_space<vmem>>, vector<1x4xf32>
    %190 = vector.broadcast %189 : vector<1x4xf32> to vector<256x4xf32>
    %191 = arith.addf %188, %190 : vector<256x4xf32>
    %cst_219 = arith.constant 0.000000e+00 : f32
    %192 = vector.broadcast %cst_219 : f32 to vector<256x4xf32>
    %193 = arith.maximumf %191, %192 : vector<256x4xf32>
    %194 = vector.shape_cast %193 : vector<256x4xf32> to vector<16x16x4xf32>
    %c0_220 = arith.constant 0 : index
    %c0_221 = arith.constant 0 : index
    %c0_222 = arith.constant 0 : index
    %c0_223 = arith.constant 0 : index
    %195 = vector.load %arg10[%c0_220, %c0_221, %c0_222, %c0_223] : memref<1x16x16x4xf32, #tpu.memory_space<vmem>>, vector<1x16x16x4xf32>
    %196 = vector.shape_cast %195 : vector<1x16x16x4xf32> to vector<16x16x4xf32>
    %197 = vector.shape_cast %194 : vector<16x16x4xf32> to vector<1x16x16x4xf32>
    tpu.vector_store %arg10[%c0_220, %c0_221, %c0_222, %c0_223], %197 {strides = array<i32>} : memref<1x16x16x4xf32, #tpu.memory_space<vmem>>, vector<1x16x16x4xf32>,
    return
  }
  func.func @transform_0(%arg0: i32) -> (i32, i32, i32, i32) {
    %c0_i32 = arith.constant 0 : i32
    %c0_i32_0 = arith.constant 0 : i32
    %c0_i32_1 = arith.constant 0 : i32
    %c0_i32_2 = arith.constant 0 : i32
    return %arg0, %c0_i32, %c0_i32_0, %c0_i32_1 : i32, i32, i32, i32
  }
  func.func @transform_1(%arg0: i32) -> (i32, i32, i32, i32) {
    %c0_i32 = arith.constant 0 : i32
    %c0_i32_0 = arith.constant 0 : i32
    %c0_i32_1 = arith.constant 0 : i32
    %c0_i32_2 = arith.constant 0 : i32
    return %arg0, %c0_i32, %c0_i32_0, %c0_i32_1 : i32, i32, i32, i32
  }
  func.func @transform_2(%arg0: i32) -> (i32, i32, i32) {
    %c0_i32 = arith.constant 0 : i32
    %c0_i32_0 = arith.constant 0 : i32
    %c0_i32_1 = arith.constant 0 : i32
    %c0_i32_2 = arith.constant 0 : i32
    return %c0_i32, %c0_i32_0, %c0_i32_1 : i32, i32, i32
  }
  func.func @transform_3(%arg0: i32) -> (i32, i32, i32) {
    %c0_i32 = arith.constant 0 : i32
    %c0_i32_0 = arith.constant 0 : i32
    %c0_i32_1 = arith.constant 0 : i32
    %c0_i32_2 = arith.constant 0 : i32
    return %c0_i32, %c0_i32_0, %c0_i32_1 : i32, i32, i32
  }
  func.func @transform_4(%arg0: i32) -> (i32, i32) {
    %c0_i32 = arith.constant 0 : i32
    %c0_i32_0 = arith.constant 0 : i32
    %c0_i32_1 = arith.constant 0 : i32
    return %c0_i32, %c0_i32_0 : i32, i32
  }
  func.func @transform_5(%arg0: i32) -> (i32, i32) {
    %c0_i32 = arith.constant 0 : i32
    %c0_i32_0 = arith.constant 0 : i32
    %c0_i32_1 = arith.constant 0 : i32
    return %c0_i32, %c0_i32_0 : i32, i32
  }
  func.func @transform_6(%arg0: i32) -> (i32, i32, i32) {
    %c0_i32 = arith.constant 0 : i32
    %c0_i32_0 = arith.constant 0 : i32
    %c0_i32_1 = arith.constant 0 : i32
    %c0_i32_2 = arith.constant 0 : i32
    return %c0_i32, %c0_i32_0, %c0_i32_1 : i32, i32, i32
  }
  func.func @transform_7(%arg0: i32) -> (i32, i32) {
    %c0_i32 = arith.constant 0 : i32
    %c0_i32_0 = arith.constant 0 : i32
    %c0_i32_1 = arith.constant 0 : i32
    return %c0_i32, %c0_i32_0 : i32, i32
  }
  func.func @transform_8(%arg0: i32) -> (i32, i32) {
    %c0_i32 = arith.constant 0 : i32
    %c0_i32_0 = arith.constant 0 : i32
    %c0_i32_1 = arith.constant 0 : i32
    return %c0_i32, %c0_i32_0 : i32, i32
  }
  func.func @transform_9(%arg0: i32) -> (i32, i32, i32, i32) {
    %c0_i32 = arith.constant 0 : i32
    %c0_i32_0 = arith.constant 0 : i32
    %c0_i32_1 = arith.constant 0 : i32
    %c0_i32_2 = arith.constant 0 : i32
    return %arg0, %c0_i32, %c0_i32_0, %c0_i32_1 : i32, i32, i32, i32
  }
}

</mosaic_0001>

<llo_original>
// kernel: tile.8
$region0: #{tile.8}
  #allocation0 [shape = 's32[1]{0}', space=sflag, size = 0x4, scoped, tag = 'scoped memory for tile.8']
  %s0 = inlined_call_operand.vmem [shape: f32[4], index: 0, kind: input, shape index: {}]
  %s1 = inlined_call_operand.vmem [shape: f32[2,4], index: 1, kind: output, shape index: {}]
  // Predicated region
  $region2: #{tile.8} parent=0 // pred_check
    _
  $region3: #{tile.8} parent=0 // pred_check_branch
    %3 = sbr.rel (0) target = $region5
  $region4: #{tile.8} parent=0 // pred_region
    _
  $region5: #{tile.8} parent=0 // pred_fallthru
    _
  %v4 = vld [vmem:[%s0] ss:$0 sm:$0xff]
  %5 = vst [vmem:[%s1] sm:$0x3] %v4

// kernel: tile.9
$region0: #{tile.9}
  %s0 = inlined_call_operand.vmem [shape: f32[2,4], index: 0, kind: input, shape index: {}]
  %s1 = inlined_call_operand.vmem [shape: f32[1,8], index: 1, kind: output, shape index: {}]
  $region1: #{tile.9} parent=0
    #allocation0 [shape = 'u8[4096]{0}', space=vmem, size = 0x1000, scoped, tag = 'scoped mem for output reshape']
    #allocation1 [shape = 'u8[4096]{0}', space=vmem, size = 0x1000, scoped, tag = 'scoped mem for input reshape']
    %s3 = sshllo.u32 0, 2
    %v4 = vld [vmem:[%s0] sm:%s3]
    %5 = vst [vmem:[#allocation1] sm:%s3] %v4
    %v6 = vld [vmem:[#allocation1] sm:$0x1]
    %vm7 = vcmask 31744
    %8 = vst.msk [vmem:[#allocation0] sm:$0x1] %vm7, %v6
    %s9 = scalar_lea.vmem [#allocation1], 1
    %v10 = vld [vmem:[%s9] sm:$0x1]
    %11 = vrot.lane.b32.xlu0 %v10, 4
    %v12 = vpop.permute.xlu0 %11
    %vm13 = vcmask 64544
    %14 = vst.msk [vmem:[#allocation0] sm:$0x1] %vm13, %v12
    %s16 = sshllo.u32 0, 1
    %v18 = vld [vmem:[#allocation0] sm:%s16]
    %s19 = sshllo.u32 0, 1
    %20 = vst [vmem:[%s1] sm:%s19] %v18

// kernel: expand_blk_forward.2
$region0: #{expand_blk_forward.2}
  #allocation0 [shape = 'u32[]', space=smem, size = 0x4, offset = 0x4, fixed_abs, tag = 'smem constant byte address 0x4 - core index']
  #allocation1 [shape = 'u32[144,128]{1,0:T(1,128)}', space=vmem, size = 0x12000, scoped, tag = 'internal scratch']
  %s0 = inlined_call_operand.vmem [shape: f32[2,8,8,8], index: 0, kind: input, shape index: {}]
  %s1 = inlined_call_operand.vmem [shape: f32[2,8,8], index: 1, kind: input, shape index: {}]
  %s2 = inlined_call_operand.vmem [shape: f32[1,8], index: 2, kind: input, shape index: {}]
  %s3 = inlined_call_operand.vmem [shape: f32[2,8,2,8,8], index: 3, kind: output, shape index: {}]
  %s4 = sld [smem:[#allocation0]]
  $region45: #{expand_blk_forward.2} parent=0
    _
  %s6 = ssub.s32 1, %s4
  %s7 = scalar_select 0, %s6, %s4
  loop: start=0, step=1, limit=4
  $region2: #{expand_blk_forward.2} parent=0 // loop_pre_header
    _
  $region3: #{expand_blk_forward.2} parent=0 // loop_header
    %s9 = sphi 0, %s13
    %p10 = scmp.ge.s32.totalorder %s9, 4
    %s19 = sphi 0, %s21
    %s22 = sphi 0, %s19
    %s23 = sphi 0, %s22
    %s39 = sphi 0, %s23
    %s43 = sphi 0, %s43
    %s45 = sphi 0, %s43
    %s46 = sphi 0, %s45
    %s60 = sphi 0, %s46
    %s64 = sphi 0, %s64
    %s66 = sphi 0, %s64
    %s67 = sphi 0, %s66
    %s81 = sphi 0, %s67
    %s87 = sphi 0, %s89
    %s90 = sphi 0, %s87
    %s91 = sphi 0, %s90
    %s107 = sphi 0, %s91
  $region4: #{expand_blk_forward.2} parent=0 // loop_header_branch
    %12 = sbr.rel (%p10) target = $region8
  $region5: #{expand_blk_forward.2} parent=0 // loop_body
    %s14 = ssub.s32 %s9, 1
    %s15 = ssub.s32 %s9, 2
    %s16 = sadd.s32 %s9, 1
    %s17 = ssub.s32 %s9, %s16
    %p18 = scmp.eq.s32.totalorder %s17, 0
    %s20 = sadd.s32 %s19, 1
    %s21 = scalar_select %p18, %s19, %s20
    %p24 = pneg %p18
    %p25 = scmp.eq.s32.totalorder %s9, 1
    %p26 = por %p24, %p25
    %p27 = scmp.ne.s32.totalorder %s19, %s22
    %p28 = scmp.eq.s32.totalorder %s9, 0
    %p29 = por %p27, %p28
    %p30 = scmp.ne.s32.totalorder %s19, %s22
    %p31 = scmp.eq.s32.totalorder %s14, 1
    %p32 = por %p30, %p31
    %p33 = scmp.ne.s32.totalorder %s22, %s23
    %p34 = scmp.eq.s32.totalorder %s14, 0
    %p35 = por %p33, %p34
    %p36 = scmp.ne.s32.totalorder %s22, %s23
    %p37 = scmp.eq.s32.totalorder %s15, 1
    %p38 = por %p36, %p37
    %p40 = scmp.ne.s32.totalorder %s23, %s39
    %p41 = scmp.eq.s32.totalorder %s15, 0
    %p42 = por %p40, %p41
    %s44 = sadd.s32 %s43, 1
    %p47 = scmp.eq.s32.totalorder %s9, 1
    %p48 = scmp.ne.s32.totalorder %s43, %s45
    %p49 = scmp.eq.s32.totalorder %s9, 0
    %p50 = por %p48, %p49
    %p51 = scmp.ne.s32.totalorder %s43, %s45
    %p52 = scmp.eq.s32.totalorder %s14, 1
    %p53 = por %p51, %p52
    %p54 = scmp.ne.s32.totalorder %s45, %s46
    %p55 = scmp.eq.s32.totalorder %s14, 0
    %p56 = por %p54, %p55
    %p57 = scmp.ne.s32.totalorder %s45, %s46
    %p58 = scmp.eq.s32.totalorder %s15, 1
    %p59 = por %p57, %p58
    %p61 = scmp.ne.s32.totalorder %s46, %s60
    %p62 = scmp.eq.s32.totalorder %s15, 0
    %p63 = por %p61, %p62
    %s65 = sadd.s32 %s64, 1
    %p68 = scmp.eq.s32.totalorder %s9, 1
    %p69 = scmp.ne.s32.totalorder %s64, %s66
    %p70 = scmp.eq.s32.totalorder %s9, 0
    %p71 = por %p69, %p70
    %p72 = scmp.ne.s32.totalorder %s64, %s66
    %p73 = scmp.eq.s32.totalorder %s14, 1
    %p74 = por %p72, %p73
    %p75 = scmp.ne.s32.totalorder %s66, %s67
    %p76 = scmp.eq.s32.totalorder %s14, 0
    %p77 = por %p75, %p76
    %p78 = scmp.ne.s32.totalorder %s66, %s67
    %p79 = scmp.eq.s32.totalorder %s15, 1
    %p80 = por %p78, %p79
    %p82 = scmp.ne.s32.totalorder %s67, %s81
    %p83 = scmp.eq.s32.totalorder %s15, 0
    %p84 = por %p82, %p83
    %s85 = ssub.s32 %s9, %s16
    %p86 = scmp.eq.s32.totalorder %s85, 0
    %s88 = sadd.s32 %s87, 1
    %s89 = scalar_select %p86, %s87, %s88
    %p92 = pneg %p86
    %p93 = scmp.eq.s32.totalorder %s9, 1
    %p94 = por %p92, %p93
    %p95 = scmp.ne.s32.totalorder %s87, %s90
    %p96 = scmp.eq.s32.totalorder %s9, 0
    %p97 = por %p95, %p96
    %p98 = scmp.ne.s32.totalorder %s87, %s90
    %p99 = scmp.eq.s32.totalorder %s14, 1
    %p100 = por %p98, %p99
    %p101 = scmp.ne.s32.totalorder %s90, %s91
    %p102 = scmp.eq.s32.totalorder %s14, 0
    %p103 = por %p101, %p102
    %p104 = scmp.ne.s32.totalorder %s90, %s91
    %p105 = scmp.eq.s32.totalorder %s15, 1
    %p106 = por %p104, %p105
    %p108 = scmp.ne.s32.totalorder %s91, %s107
    %p109 = scmp.eq.s32.totalorder %s15, 0
    %p110 = por %p108, %p109
    %p111 = scmp.le.s32.totalorder 1, %s9
    %p112 = scmp.lt.s32.totalorder %s9, 3
    %p113 = pnand %p111, %p112
    %p114 = pneg %p113
    // Predicated region
    $region9: #{expand_blk_forward.2} parent=5 // pred_check
      _
    $region10: #{expand_blk_forward.2} parent=5 // pred_check_branch
      %116 = sbr.rel (%p113) target = $region12
    $region11: #{expand_blk_forward.2} parent=5 // pred_region
      %s117 = ssub.s32 %s9, 1
      // Predicated region
      $region13: #{expand_blk_forward.2} parent=11 // pred_check
        %p118 = pneg %p56
      $region14: #{expand_blk_forward.2} parent=11 // pred_check_branch
        %120 = sbr.rel (%p118) target = $region16
      $region15: #{expand_blk_forward.2} parent=11 // pred_region
        _
      $region16: #{expand_blk_forward.2} parent=11 // pred_fallthru
        _
      // Predicated region
      $region17: #{expand_blk_forward.2} parent=11 // pred_check
        %p121 = pneg %p77
      $region18: #{expand_blk_forward.2} parent=11 // pred_check_branch
        %123 = sbr.rel (%p121) target = $region20
      $region19: #{expand_blk_forward.2} parent=11 // pred_region
        _
      $region20: #{expand_blk_forward.2} parent=11 // pred_fallthru
        _
    $region12: #{expand_blk_forward.2} parent=5 // pred_fallthru
      _
    %p124 = scmp.lt.s32.totalorder %s9, 2
    // Predicated region
    $region21: #{expand_blk_forward.2} parent=5 // pred_check
      %p125 = pneg %p124
    $region22: #{expand_blk_forward.2} parent=5 // pred_check_branch
      %127 = sbr.rel (%p125) target = $region24
    $region23: #{expand_blk_forward.2} parent=5 // pred_region
      // Predicated region
      $region25: #{expand_blk_forward.2} parent=23 // pred_check
        %p128 = pneg %p29
      $region26: #{expand_blk_forward.2} parent=23 // pred_check_branch
        %130 = sbr.rel (%p128) target = $region28
      $region27: #{expand_blk_forward.2} parent=23 // pred_region
        %p131 = scmp.lt.s32.totalorder %s9, 1
        %s132 = scalar_select %p131, %s9, 1
        %s133 = smul.addr %s132, 8
        %s134 = smul.addr %s133, 8
        %s135 = scalar_lea.vmem %s0, %s134
      $region28: #{expand_blk_forward.2} parent=23 // pred_fallthru
        _
    $region24: #{expand_blk_forward.2} parent=5 // pred_fallthru
      _
    %p136 = scmp.le.s32.totalorder 1, %s9
    %p137 = scmp.lt.s32.totalorder %s9, 3
    %p138 = pnand %p136, %p137
    %p139 = pneg %p138
    // Predicated region
    $region29: #{expand_blk_forward.2} parent=5 // pred_check
      _
    $region30: #{expand_blk_forward.2} parent=5 // pred_check_branch
      %141 = sbr.rel (%p138) target = $region32
    $region31: #{expand_blk_forward.2} parent=5 // pred_region
      %s142 = ssub.s32 %s9, 1
      %p143 = scmp.lt.s32.totalorder %s14, 1
      %s144 = scalar_select %p143, %s14, 1
      %s145 = smul.addr %s144, 8
      %s146 = smul.addr %s145, 8
      %s147 = scalar_lea.vmem %s0, %s146
      %p148 = pneg %p35
      %p149 = pneg %p32
      %p150 = pneg %p56
      %p151 = pneg %p53
      %p152 = pneg %p77
      %p153 = pneg %p74
      %p154 = pneg %p103
      %p155 = pneg %p100
      %p156 = scmp.lt.s32.totalorder %s14, 1
      %s157 = scalar_select %p156, %s14, 1
      %s158 = smul.addr %s157, 16
      %s159 = smul.addr %s158, 8
      %s160 = scalar_lea.vmem %s3, %s159
      %p161 = scmp.lt.s32.totalorder %s14, 1
      %s162 = scalar_select %p161, %s14, 1
      %s163 = smul.addr %s162, 8
      %s164 = smul.addr %s163, 8
      %s165 = scalar_lea.vmem %s0, %s164
      %p166 = scmp.lt.s32.totalorder %s14, 1
      %s167 = scalar_select %p166, %s14, 1
      %s168 = smul.addr %s167, 16
      %s169 = smul.addr %s168, 8
      %s170 = scalar_lea.vmem %s3, %s169
      %v171 = vld [vmem:[%s165] sm:$0xff]
      %v172 = vld [vmem:[%s165 + $0x8] sm:$0xff]
      %v173 = vld [vmem:[%s165 + $0x10] sm:$0xff]
      %v174 = vld [vmem:[%s165 + $0x18] sm:$0xff]
      %v175 = vld [vmem:[%s165 + $0x20] sm:$0xff]
      %v176 = vld [vmem:[%s165 + $0x28] sm:$0xff]
      %v177 = vld [vmem:[%s165 + $0x30] sm:$0xff]
      %v178 = vld [vmem:[%s165 + $0x38] sm:$0xff]
      %v179 = vld [vmem:[%s2] sm:$0x1]
      %v180 = vld [vmem:[%s1] sm:$0xff]
      %v182 = vlaneseq
      %v183 = vshrl.u32 %v182, 7
      %v184 = vsub.s32 0, %v183
      %v185 = vrot.slane %v179, %v184
      %vm187 = vcmask 64512
      %v189 = vsel %vm187, %v171, 0
      %v192 = vsel %vm187, %v172, 0
      %v195 = vsel %vm187, %v173, 0
      %v198 = vsel %vm187, %v174, 0
      %v201 = vsel %vm187, %v175, 0
      %v204 = vsel %vm187, %v176, 0
      %v207 = vsel %vm187, %v177, 0
      %v210 = vsel %vm187, %v178, 0
      %212 = vmatprep.subr.mxu0 0.0
      %213 = vmatpush1.msra.mxu0 %v180
      %214 = vmatprep.subr.mxu0 0.0
      %215 = vmatpush1.msra.mxu0 0.0
      %216 = vmatprep.subr.mxu0 0.0
      %217 = vmatpush1.msra.mxu0 0.0
      %218 = vmatprep.subr.mxu0 0.0
      %219 = vmatpush1.msra.mxu0 0.0
      %220 = vmatprep.subr.mxu0 0.0
      %221 = vmatpush1.msra.mxu0 0.0
      %222 = vmatprep.subr.mxu0 0.0
      %223 = vmatpush1.msra.mxu0 0.0
      %224 = vmatprep.subr.mxu0 0.0
      %225 = vmatpush1.msra.mxu0 0.0
      %226 = vmatprep.subr.mxu0 0.0
      %227 = vmatpush1.msra.mxu0 0.0
      %228 = vmatprep.subr.mxu0 0.0
      %229 = vmatpush1.msra.mxu0 0.0
      %230 = vmatprep.subr.mxu0 0.0
      %231 = vmatpush1.msra.mxu0 0.0
      %232 = vmatprep.subr.mxu0 0.0
      %233 = vmatpush1.msra.mxu0 0.0
      %234 = vmatprep.subr.mxu0 0.0
      %235 = vmatpush1.msra.mxu0 0.0
      %236 = vmatprep.subr.mxu0 0.0
      %237 = vmatpush1.msra.mxu0 0.0
      %238 = vmatprep.subr.mxu0 0.0
      %239 = vmatpush1.msra.mxu0 0.0
      %240 = vmatprep.subr.mxu0 0.0
      %241 = vmatpush1.msra.mxu0 0.0
      %242 = vmatprep.subr.mxu0 0.0
      %243 = vmatpush1.msra.mxu0 0.0
      %244 = vmatprep.subr.mxu0 0.0
      %245 = vmatpush1.msra.mxu0 0.0
      %246 = vmatprep.subr.mxu0 0.0
      %247 = vmatpush1.msra.mxu0 0.0
      %248 = vmatprep.subr.mxu0 0.0
      %249 = vmatpush1.msra.mxu0 0.0
      %250 = vmatprep.subr.mxu0 0.0
      %251 = vmatpush1.msra.mxu0 0.0
      %252 = vmatprep.subr.mxu0 0.0
      %253 = vmatpush1.msra.mxu0 0.0
      %254 = vmatprep.subr.mxu0 0.0
      %255 = vmatpush1.msra.mxu0 0.0
      %256 = vmatprep.subr.mxu0 0.0
      %257 = vmatpush1.msra.mxu0 0.0
      %258 = vmatprep.subr.mxu0 0.0
      %259 = vmatpush1.msra.mxu0 0.0
      %260 = vmatprep.subr.mxu0 0.0
      %261 = vmatpush1.msra.mxu0 0.0
      %262 = vmatprep.subr.mxu0 0.0
      %263 = vmatpush1.msra.mxu0 0.0
      %264 = vmatprep.subr.mxu0 0.0
      %265 = vmatpush1.msra.mxu0 0.0
      %266 = vmatprep.subr.mxu0 0.0
      %267 = vmatpush1.msra.mxu0 0.0
      %268 = vmatprep.subr.mxu0 0.0
      %269 = vmatpush1.msra.mxu0 0.0
      %270 = vmatprep.subr.mxu0 0.0
      %271 = vmatpush1.msra.mxu0 0.0
      %272 = vmatprep.subr.mxu0 0.0
      %273 = vmatpush1.msra.mxu0 0.0
      %274 = vmatprep.subr.mxu0 0.0
      %275 = vmatpush1.msra.mxu0 0.0
      %276 = vmatprep.mubr.f32.mxu0 0.0
      %277 = vmatmul.mubr.f32.gmra.mrb[0].mxu0 %v189
      %v278 = vpop.f32.mrb[0].mxu0
      %v279 = vadd.f32 %v185, %v278
      %v280 = vpop.f32.mrb[0].mxu0
      %281 = vmatprep.mubr.f32.mxu0 0.0
      %282 = vmatmul.mubr.f32.gmra.mrb[0].mxu0 %v192
      %v283 = vpop.f32.mrb[0].mxu0
      %v284 = vadd.f32 %v185, %v283
      %v285 = vpop.f32.mrb[0].mxu0
      %286 = vmatprep.mubr.f32.mxu0 0.0
      %287 = vmatmul.mubr.f32.gmra.mrb[0].mxu0 %v195
      %v288 = vpop.f32.mrb[0].mxu0
      %v289 = vadd.f32 %v185, %v288
      %v290 = vpop.f32.mrb[0].mxu0
      %291 = vmatprep.mubr.f32.mxu0 0.0
      %292 = vmatmul.mubr.f32.gmra.mrb[0].mxu0 %v198
      %v293 = vpop.f32.mrb[0].mxu0
      %v294 = vadd.f32 %v185, %v293
      %v295 = vpop.f32.mrb[0].mxu0
      %296 = vmatprep.mubr.f32.mxu0 0.0
      %297 = vmatmul.mubr.f32.gmra.mrb[0].mxu0 %v201
      %v298 = vpop.f32.mrb[0].mxu0
      %v299 = vadd.f32 %v185, %v298
      %v300 = vpop.f32.mrb[0].mxu0
      %301 = vmatprep.mubr.f32.mxu0 0.0
      %302 = vmatmul.mubr.f32.gmra.mrb[0].mxu0 %v204
      %v303 = vpop.f32.mrb[0].mxu0
      %v304 = vadd.f32 %v185, %v303
      %v305 = vpop.f32.mrb[0].mxu0
      %306 = vmatprep.mubr.f32.mxu0 0.0
      %307 = vmatmul.mubr.f32.gmra.mrb[0].mxu0 %v207
      %v308 = vpop.f32.mrb[0].mxu0
      %v309 = vadd.f32 %v185, %v308
      %v310 = vpop.f32.mrb[0].mxu0
      %311 = vmatprep.mubr.f32.mxu0 0.0
      %312 = vmatmul.mubr.f32.gmra.mrb[0].mxu0 %v210
      %v313 = vpop.f32.mrb[0].mxu0
      %v314 = vadd.f32 %v185, %v313
      %v315 = vpop.f32.mrb[0].mxu0
      %316 = vdwg.mxu0
      %317 = vst.msk [vmem:[%s170] sm:$0xff] %vm187, %v279
      %318 = vst.msk [vmem:[%s170 + $0x10] sm:$0xff] %vm187, %v284
      %319 = vst.msk [vmem:[%s170 + $0x20] sm:$0xff] %vm187, %v289
      %320 = vst.msk [vmem:[%s170 + $0x30] sm:$0xff] %vm187, %v294
      %321 = vst.msk [vmem:[%s170 + $0x40] sm:$0xff] %vm187, %v299
      %322 = vst.msk [vmem:[%s170 + $0x50] sm:$0xff] %vm187, %v304
      %323 = vst.msk [vmem:[%s170 + $0x60] sm:$0xff] %vm187, %v309
      %324 = vst.msk [vmem:[%s170 + $0x70] sm:$0xff] %vm187, %v314
      %s325 = scalar_lea.vmem %s1, 8
      %v326 = vld [vmem:[%s325] sm:$0xff]
      %327 = vmatprep.subr.mxu0 0.0
      %328 = vmatpush1.msra.mxu0 %v326
      %329 = vmatprep.subr.mxu0 0.0
      %330 = vmatpush1.msra.mxu0 0.0
      %331 = vmatprep.subr.mxu0 0.0
      %332 = vmatpush1.msra.mxu0 0.0
      %333 = vmatprep.subr.mxu0 0.0
      %334 = vmatpush1.msra.mxu0 0.0
      %335 = vmatprep.subr.mxu0 0.0
      %336 = vmatpush1.msra.mxu0 0.0
      %337 = vmatprep.subr.mxu0 0.0
      %338 = vmatpush1.msra.mxu0 0.0
      %339 = vmatprep.subr.mxu0 0.0
      %340 = vmatpush1.msra.mxu0 0.0
      %341 = vmatprep.subr.mxu0 0.0
      %342 = vmatpush1.msra.mxu0 0.0
      %343 = vmatprep.subr.mxu0 0.0
      %344 = vmatpush1.msra.mxu0 0.0
      %345 = vmatprep.subr.mxu0 0.0
      %346 = vmatpush1.msra.mxu0 0.0
      %347 = vmatprep.subr.mxu0 0.0
      %348 = vmatpush1.msra.mxu0 0.0
      %349 = vmatprep.subr.mxu0 0.0
      %350 = vmatpush1.msra.mxu0 0.0
      %351 = vmatprep.subr.mxu0 0.0
      %352 = vmatpush1.msra.mxu0 0.0
      %353 = vmatprep.subr.mxu0 0.0
      %354 = vmatpush1.msra.mxu0 0.0
      %355 = vmatprep.subr.mxu0 0.0
      %356 = vmatpush1.msra.mxu0 0.0
      %357 = vmatprep.subr.mxu0 0.0
      %358 = vmatpush1.msra.mxu0 0.0
      %359 = vmatprep.subr.mxu0 0.0
      %360 = vmatpush1.msra.mxu0 0.0
      %361 = vmatprep.subr.mxu0 0.0
      %362 = vmatpush1.msra.mxu0 0.0
      %363 = vmatprep.subr.mxu0 0.0
      %364 = vmatpush1.msra.mxu0 0.0
      %365 = vmatprep.subr.mxu0 0.0
      %366 = vmatpush1.msra.mxu0 0.0
      %367 = vmatprep.subr.mxu0 0.0
      %368 = vmatpush1.msra.mxu0 0.0
      %369 = vmatprep.subr.mxu0 0.0
      %370 = vmatpush1.msra.mxu0 0.0
      %371 = vmatprep.subr.mxu0 0.0
      %372 = vmatpush1.msra.mxu0 0.0
      %373 = vmatprep.subr.mxu0 0.0
      %374 = vmatpush1.msra.mxu0 0.0
      %375 = vmatprep.subr.mxu0 0.0
      %376 = vmatpush1.msra.mxu0 0.0
      %377 = vmatprep.subr.mxu0 0.0
      %378 = vmatpush1.msra.mxu0 0.0
      %379 = vmatprep.subr.mxu0 0.0
      %380 = vmatpush1.msra.mxu0 0.0
      %381 = vmatprep.subr.mxu0 0.0
      %382 = vmatpush1.msra.mxu0 0.0
      %383 = vmatprep.subr.mxu0 0.0
      %384 = vmatpush1.msra.mxu0 0.0
      %385 = vmatprep.subr.mxu0 0.0
      %386 = vmatpush1.msra.mxu0 0.0
      %387 = vmatprep.subr.mxu0 0.0
      %388 = vmatpush1.msra.mxu0 0.0
      %389 = vmatprep.subr.mxu0 0.0
      %390 = vmatpush1.msra.mxu0 0.0
      %391 = vmatprep.mubr.f32.mxu0 0.0
      %392 = vmatmul.mubr.f32.gmra.mrb[0].mxu0 %v189
      %v393 = vpop.f32.mrb[0].mxu0
      %v394 = vadd.f32 %v185, %v393
      %v395 = vpop.f32.mrb[0].mxu0
      %396 = vmatprep.mubr.f32.mxu0 0.0
      %397 = vmatmul.mubr.f32.gmra.mrb[0].mxu0 %v192
      %v398 = vpop.f32.mrb[0].mxu0
      %v399 = vadd.f32 %v185, %v398
      %v400 = vpop.f32.mrb[0].mxu0
      %401 = vmatprep.mubr.f32.mxu0 0.0
      %402 = vmatmul.mubr.f32.gmra.mrb[0].mxu0 %v195
      %v403 = vpop.f32.mrb[0].mxu0
      %v404 = vadd.f32 %v185, %v403
      %v405 = vpop.f32.mrb[0].mxu0
      %406 = vmatprep.mubr.f32.mxu0 0.0
      %407 = vmatmul.mubr.f32.gmra.mrb[0].mxu0 %v198
      %v408 = vpop.f32.mrb[0].mxu0
      %v409 = vadd.f32 %v185, %v408
      %v410 = vpop.f32.mrb[0].mxu0
      %411 = vmatprep.mubr.f32.mxu0 0.0
      %412 = vmatmul.mubr.f32.gmra.mrb[0].mxu0 %v201
      %v413 = vpop.f32.mrb[0].mxu0
      %v414 = vadd.f32 %v185, %v413
      %v415 = vpop.f32.mrb[0].mxu0
      %416 = vmatprep.mubr.f32.mxu0 0.0
      %417 = vmatmul.mubr.f32.gmra.mrb[0].mxu0 %v204
      %v418 = vpop.f32.mrb[0].mxu0
      %v419 = vadd.f32 %v185, %v418
      %v420 = vpop.f32.mrb[0].mxu0
      %421 = vmatprep.mubr.f32.mxu0 0.0
      %422 = vmatmul.mubr.f32.gmra.mrb[0].mxu0 %v207
      %v423 = vpop.f32.mrb[0].mxu0
      %v424 = vadd.f32 %v185, %v423
      %v425 = vpop.f32.mrb[0].mxu0
      %426 = vmatprep.mubr.f32.mxu0 0.0
      %427 = vmatmul.mubr.f32.gmra.mrb[0].mxu0 %v210
      %v428 = vpop.f32.mrb[0].mxu0
      %v429 = vadd.f32 %v185, %v428
      %v430 = vpop.f32.mrb[0].mxu0
      %431 = vdwg.mxu0
      %s432 = scalar_lea.vmem %s170, 8
      %433 = vst.msk [vmem:[%s432] sm:$0xff] %vm187, %v394
      %434 = vst.msk [vmem:[%s432 + $0x10] sm:$0xff] %vm187, %v399
      %435 = vst.msk [vmem:[%s432 + $0x20] sm:$0xff] %vm187, %v404
      %436 = vst.msk [vmem:[%s432 + $0x30] sm:$0xff] %vm187, %v409
      %437 = vst.msk [vmem:[%s432 + $0x40] sm:$0xff] %vm187, %v414
      %438 = vst.msk [vmem:[%s432 + $0x50] sm:$0xff] %vm187, %v419
      %439 = vst.msk [vmem:[%s432 + $0x60] sm:$0xff] %vm187, %v424
      %440 = vst.msk [vmem:[%s432 + $0x70] sm:$0xff] %vm187, %v429
      %p441 = scmp.lt.s32.totalorder %s14, 1
      %s442 = scalar_select %p441, %s14, 1
      %s443 = smul.addr %s442, 16
      %s444 = smul.addr %s443, 8
      %s445 = scalar_lea.vmem %s3, %s444
      // Predicated region
      $region33: #{expand_blk_forward.2} parent=31 // pred_check
        %p446 = pneg %p100
      $region34: #{expand_blk_forward.2} parent=31 // pred_check_branch
        %448 = sbr.rel (%p446) target = $region36
      $region35: #{expand_blk_forward.2} parent=31 // pred_region
        _
      $region36: #{expand_blk_forward.2} parent=31 // pred_fallthru
        _
    $region32: #{expand_blk_forward.2} parent=5 // pred_fallthru
      _
    %p449 = scmp.le.s32.totalorder 2, %s9
    // Predicated region
    $region37: #{expand_blk_forward.2} parent=5 // pred_check
      %p450 = pneg %p449
    $region38: #{expand_blk_forward.2} parent=5 // pred_check_branch
      %452 = sbr.rel (%p450) target = $region40
    $region39: #{expand_blk_forward.2} parent=5 // pred_region
      %s453 = ssub.s32 %s9, 2
      // Predicated region
      $region41: #{expand_blk_forward.2} parent=39 // pred_check
        %p454 = pneg %p106
      $region42: #{expand_blk_forward.2} parent=39 // pred_check_branch
        %456 = sbr.rel (%p454) target = $region44
      $region43: #{expand_blk_forward.2} parent=39 // pred_region
        %p457 = scmp.lt.s32.totalorder %s15, 1
        %s458 = scalar_select %p457, %s15, 1
        %s459 = smul.addr %s458, 16
        %s460 = smul.addr %s459, 8
        %s461 = scalar_lea.vmem %s3, %s460
      $region44: #{expand_blk_forward.2} parent=39 // pred_fallthru
        _
    $region40: #{expand_blk_forward.2} parent=5 // pred_fallthru
      _
  $region6: #{expand_blk_forward.2} parent=0 // loop_footer
    %s13 = sadd.s32 1, %s9
  $region7: #{expand_blk_forward.2} parent=0 // loop_footer_branch
    %8 = sbr.rel target = $region3
  $region8: #{expand_blk_forward.2} parent=0 // loop_exit
    _

// kernel: expand_blk_forward.3
$region0: #{expand_blk_forward.3}
  #allocation0 [shape = 'u32[]', space=smem, size = 0x4, offset = 0x4, fixed_abs, tag = 'smem constant byte address 0x4 - core index']
  #allocation1 [shape = 'u32[144,128]{1,0:T(1,128)}', space=vmem, size = 0x12000, scoped, tag = 'internal scratch']
  #allocation2 [shape = 'f32[18,18,4]{2,1,0:T(8,128)}', space=vmem, size = 0x36000, scoped, tag = 'scratch operand']
  #allocation3 [shape = 'f32[18,18,4]{2,1,0:T(8,128)}', space=vmem, size = 0x36000, scoped, tag = 'scratch operand']
  #allocation4 [shape = 'f32[18,18,4]{2,1,0:T(8,128)}', space=vmem, size = 0x36000, scoped, tag = 'scratch operand']
  %s0 = inlined_call_operand.vmem [shape: f32[2,16,16,4], index: 0, kind: input, shape index: {}]
  %s1 = inlined_call_operand.vmem [shape: f32[2,16,16,4], index: 1, kind: input, shape index: {}]
  %s2 = inlined_call_operand.vmem [shape: f32[9,4,4], index: 2, kind: input, shape index: {}]
  %s3 = inlined_call_operand.vmem [shape: f32[9,4,4], index: 3, kind: input, shape index: {}]
  %s4 = inlined_call_operand.vmem [shape: f32[1,4], index: 4, kind: input, shape index: {}]
  %s5 = inlined_call_operand.vmem [shape: f32[1,4], index: 5, kind: input, shape index: {}]
  %s6 = inlined_call_operand.vmem [shape: f32[9,4,4], index: 6, kind: input, shape index: {}]
  %s7 = inlined_call_operand.vmem [shape: f32[1,4], index: 7, kind: input, shape index: {}]
  %s8 = inlined_call_operand.vmem [shape: f32[1,4], index: 8, kind: input, shape index: {}]
  %s9 = inlined_call_operand.vmem [shape: f32[2,16,16,4], index: 9, kind: output, shape index: {}]
  %s10 = sld [smem:[#allocation0]]
  $region69: #{expand_blk_forward.3} parent=0
    _
  %s12 = ssub.s32 1, %s10
  %s13 = scalar_select 0, %s12, %s10
  loop: start=0, step=1, limit=4
  $region2: #{expand_blk_forward.3} parent=0 // loop_pre_header
    _
  $region3: #{expand_blk_forward.3} parent=0 // loop_header
    %s15 = sphi 0, %s19
    %p16 = scmp.ge.s32.totalorder %s15, 4
    %s25 = sphi 0, %s27
    %s28 = sphi 0, %s25
    %s29 = sphi 0, %s28
    %s45 = sphi 0, %s29
    %s51 = sphi 0, %s53
    %s54 = sphi 0, %s51
    %s55 = sphi 0, %s54
    %s71 = sphi 0, %s55
    %s75 = sphi 0, %s75
    %s77 = sphi 0, %s75
    %s78 = sphi 0, %s77
    %s92 = sphi 0, %s78
    %s96 = sphi 0, %s96
    %s98 = sphi 0, %s96
    %s99 = sphi 0, %s98
    %s113 = sphi 0, %s99
    %s117 = sphi 0, %s117
    %s119 = sphi 0, %s117
    %s120 = sphi 0, %s119
    %s134 = sphi 0, %s120
    %s138 = sphi 0, %s138
    %s140 = sphi 0, %s138
    %s141 = sphi 0, %s140
    %s155 = sphi 0, %s141
    %s159 = sphi 0, %s159
    %s161 = sphi 0, %s159
    %s162 = sphi 0, %s161
    %s176 = sphi 0, %s162
    %s180 = sphi 0, %s180
    %s182 = sphi 0, %s180
    %s183 = sphi 0, %s182
    %s197 = sphi 0, %s183
    %s201 = sphi 0, %s201
    %s203 = sphi 0, %s201
    %s204 = sphi 0, %s203
    %s218 = sphi 0, %s204
    %s224 = sphi 0, %s226
    %s227 = sphi 0, %s224
    %s228 = sphi 0, %s227
    %s244 = sphi 0, %s228
  $region4: #{expand_blk_forward.3} parent=0 // loop_header_branch
    %18 = sbr.rel (%p16) target = $region8
  $region5: #{expand_blk_forward.3} parent=0 // loop_body
    %s20 = ssub.s32 %s15, 1
    %s21 = ssub.s32 %s15, 2
    %s22 = sadd.s32 %s15, 1
    %s23 = ssub.s32 %s15, %s22
    %p24 = scmp.eq.s32.totalorder %s23, 0
    %s26 = sadd.s32 %s25, 1
    %s27 = scalar_select %p24, %s25, %s26
    %p30 = pneg %p24
    %p31 = scmp.eq.s32.totalorder %s15, 1
    %p32 = por %p30, %p31
    %p33 = scmp.ne.s32.totalorder %s25, %s28
    %p34 = scmp.eq.s32.totalorder %s15, 0
    %p35 = por %p33, %p34
    %p36 = scmp.ne.s32.totalorder %s25, %s28
    %p37 = scmp.eq.s32.totalorder %s20, 1
    %p38 = por %p36, %p37
    %p39 = scmp.ne.s32.totalorder %s28, %s29
    %p40 = scmp.eq.s32.totalorder %s20, 0
    %p41 = por %p39, %p40
    %p42 = scmp.ne.s32.totalorder %s28, %s29
    %p43 = scmp.eq.s32.totalorder %s21, 1
    %p44 = por %p42, %p43
    %p46 = scmp.ne.s32.totalorder %s29, %s45
    %p47 = scmp.eq.s32.totalorder %s21, 0
    %p48 = por %p46, %p47
    %s49 = ssub.s32 %s15, %s22
    %p50 = scmp.eq.s32.totalorder %s49, 0
    %s52 = sadd.s32 %s51, 1
    %s53 = scalar_select %p50, %s51, %s52
    %p56 = pneg %p50
    %p57 = scmp.eq.s32.totalorder %s15, 1
    %p58 = por %p56, %p57
    %p59 = scmp.ne.s32.totalorder %s51, %s54
    %p60 = scmp.eq.s32.totalorder %s15, 0
    %p61 = por %p59, %p60
    %p62 = scmp.ne.s32.totalorder %s51, %s54
    %p63 = scmp.eq.s32.totalorder %s20, 1
    %p64 = por %p62, %p63
    %p65 = scmp.ne.s32.totalorder %s54, %s55
    %p66 = scmp.eq.s32.totalorder %s20, 0
    %p67 = por %p65, %p66
    %p68 = scmp.ne.s32.totalorder %s54, %s55
    %p69 = scmp.eq.s32.totalorder %s21, 1
    %p70 = por %p68, %p69
    %p72 = scmp.ne.s32.totalorder %s55, %s71
    %p73 = scmp.eq.s32.totalorder %s21, 0
    %p74 = por %p72, %p73
    %s76 = sadd.s32 %s75, 1
    %p79 = scmp.eq.s32.totalorder %s15, 1
    %p80 = scmp.ne.s32.totalorder %s75, %s77
    %p81 = scmp.eq.s32.totalorder %s15, 0
    %p82 = por %p80, %p81
    %p83 = scmp.ne.s32.totalorder %s75, %s77
    %p84 = scmp.eq.s32.totalorder %s20, 1
    %p85 = por %p83, %p84
    %p86 = scmp.ne.s32.totalorder %s77, %s78
    %p87 = scmp.eq.s32.totalorder %s20, 0
    %p88 = por %p86, %p87
    %p89 = scmp.ne.s32.totalorder %s77, %s78
    %p90 = scmp.eq.s32.totalorder %s21, 1
    %p91 = por %p89, %p90
    %p93 = scmp.ne.s32.totalorder %s78, %s92
    %p94 = scmp.eq.s32.totalorder %s21, 0
    %p95 = por %p93, %p94
    %s97 = sadd.s32 %s96, 1
    %p100 = scmp.eq.s32.totalorder %s15, 1
    %p101 = scmp.ne.s32.totalorder %s96, %s98
    %p102 = scmp.eq.s32.totalorder %s15, 0
    %p103 = por %p101, %p102
    %p104 = scmp.ne.s32.totalorder %s96, %s98
    %p105 = scmp.eq.s32.totalorder %s20, 1
    %p106 = por %p104, %p105
    %p107 = scmp.ne.s32.totalorder %s98, %s99
    %p108 = scmp.eq.s32.totalorder %s20, 0
    %p109 = por %p107, %p108
    %p110 = scmp.ne.s32.totalorder %s98, %s99
    %p111 = scmp.eq.s32.totalorder %s21, 1
    %p112 = por %p110, %p111
    %p114 = scmp.ne.s32.totalorder %s99, %s113
    %p115 = scmp.eq.s32.totalorder %s21, 0
    %p116 = por %p114, %p115
    %s118 = sadd.s32 %s117, 1
    %p121 = scmp.eq.s32.totalorder %s15, 1
    %p122 = scmp.ne.s32.totalorder %s117, %s119
    %p123 = scmp.eq.s32.totalorder %s15, 0
    %p124 = por %p122, %p123
    %p125 = scmp.ne.s32.totalorder %s117, %s119
    %p126 = scmp.eq.s32.totalorder %s20, 1
    %p127 = por %p125, %p126
    %p128 = scmp.ne.s32.totalorder %s119, %s120
    %p129 = scmp.eq.s32.totalorder %s20, 0
    %p130 = por %p128, %p129
    %p131 = scmp.ne.s32.totalorder %s119, %s120
    %p132 = scmp.eq.s32.totalorder %s21, 1
    %p133 = por %p131, %p132
    %p135 = scmp.ne.s32.totalorder %s120, %s134
    %p136 = scmp.eq.s32.totalorder %s21, 0
    %p137 = por %p135, %p136
    %s139 = sadd.s32 %s138, 1
    %p142 = scmp.eq.s32.totalorder %s15, 1
    %p143 = scmp.ne.s32.totalorder %s138, %s140
    %p144 = scmp.eq.s32.totalorder %s15, 0
    %p145 = por %p143, %p144
    %p146 = scmp.ne.s32.totalorder %s138, %s140
    %p147 = scmp.eq.s32.totalorder %s20, 1
    %p148 = por %p146, %p147
    %p149 = scmp.ne.s32.totalorder %s140, %s141
    %p150 = scmp.eq.s32.totalorder %s20, 0
    %p151 = por %p149, %p150
    %p152 = scmp.ne.s32.totalorder %s140, %s141
    %p153 = scmp.eq.s32.totalorder %s21, 1
    %p154 = por %p152, %p153
    %p156 = scmp.ne.s32.totalorder %s141, %s155
    %p157 = scmp.eq.s32.totalorder %s21, 0
    %p158 = por %p156, %p157
    %s160 = sadd.s32 %s159, 1
    %p163 = scmp.eq.s32.totalorder %s15, 1
    %p164 = scmp.ne.s32.totalorder %s159, %s161
    %p165 = scmp.eq.s32.totalorder %s15, 0
    %p166 = por %p164, %p165
    %p167 = scmp.ne.s32.totalorder %s159, %s161
    %p168 = scmp.eq.s32.totalorder %s20, 1
    %p169 = por %p167, %p168
    %p170 = scmp.ne.s32.totalorder %s161, %s162
    %p171 = scmp.eq.s32.totalorder %s20, 0
    %p172 = por %p170, %p171
    %p173 = scmp.ne.s32.totalorder %s161, %s162
    %p174 = scmp.eq.s32.totalorder %s21, 1
    %p175 = por %p173, %p174
    %p177 = scmp.ne.s32.totalorder %s162, %s176
    %p178 = scmp.eq.s32.totalorder %s21, 0
    %p179 = por %p177, %p178
    %s181 = sadd.s32 %s180, 1
    %p184 = scmp.eq.s32.totalorder %s15, 1
    %p185 = scmp.ne.s32.totalorder %s180, %s182
    %p186 = scmp.eq.s32.totalorder %s15, 0
    %p187 = por %p185, %p186
    %p188 = scmp.ne.s32.totalorder %s180, %s182
    %p189 = scmp.eq.s32.totalorder %s20, 1
    %p190 = por %p188, %p189
    %p191 = scmp.ne.s32.totalorder %s182, %s183
    %p192 = scmp.eq.s32.totalorder %s20, 0
    %p193 = por %p191, %p192
    %p194 = scmp.ne.s32.totalorder %s182, %s183
    %p195 = scmp.eq.s32.totalorder %s21, 1
    %p196 = por %p194, %p195
    %p198 = scmp.ne.s32.totalorder %s183, %s197
    %p199 = scmp.eq.s32.totalorder %s21, 0
    %p200 = por %p198, %p199
    %s202 = sadd.s32 %s201, 1
    %p205 = scmp.eq.s32.totalorder %s15, 1
    %p206 = scmp.ne.s32.totalorder %s201, %s203
    %p207 = scmp.eq.s32.totalorder %s15, 0
    %p208 = por %p206, %p207
    %p209 = scmp.ne.s32.totalorder %s201, %s203
    %p210 = scmp.eq.s32.totalorder %s20, 1
    %p211 = por %p209, %p210
    %p212 = scmp.ne.s32.totalorder %s203, %s204
    %p213 = scmp.eq.s32.totalorder %s20, 0
    %p214 = por %p212, %p213
    %p215 = scmp.ne.s32.totalorder %s203, %s204
    %p216 = scmp.eq.s32.totalorder %s21, 1
    %p217 = por %p215, %p216
    %p219 = scmp.ne.s32.totalorder %s204, %s218
    %p220 = scmp.eq.s32.totalorder %s21, 0
    %p221 = por %p219, %p220
    %s222 = ssub.s32 %s15, %s22
    %p223 = scmp.eq.s32.totalorder %s222, 0
    %s225 = sadd.s32 %s224, 1
    %s226 = scalar_select %p223, %s224, %s225
    %p229 = pneg %p223
    %p230 = scmp.eq.s32.totalorder %s15, 1
    %p231 = por %p229, %p230
    %p232 = scmp.ne.s32.totalorder %s224, %s227
    %p233 = scmp.eq.s32.totalorder %s15, 0
    %p234 = por %p232, %p233
    %p235 = scmp.ne.s32.totalorder %s224, %s227
    %p236 = scmp.eq.s32.totalorder %s20, 1
    %p237 = por %p235, %p236
    %p238 = scmp.ne.s32.totalorder %s227, %s228
    %p239 = scmp.eq.s32.totalorder %s20, 0
    %p240 = por %p238, %p239
    %p241 = scmp.ne.s32.totalorder %s227, %s228
    %p242 = scmp.eq.s32.totalorder %s21, 1
    %p243 = por %p241, %p242
    %p245 = scmp.ne.s32.totalorder %s228, %s244
    %p246 = scmp.eq.s32.totalorder %s21, 0
    %p247 = por %p245, %p246
    %p248 = scmp.le.s32.totalorder 1, %s15
    %p249 = scmp.lt.s32.totalorder %s15, 3
    %p250 = pnand %p248, %p249
    %p251 = pneg %p250
    // Predicated region
    $region9: #{expand_blk_forward.3} parent=5 // pred_check
      _
    $region10: #{expand_blk_forward.3} parent=5 // pred_check_branch
      %253 = sbr.rel (%p250) target = $region12
    $region11: #{expand_blk_forward.3} parent=5 // pred_region
      %s254 = ssub.s32 %s15, 1
      // Predicated region
      $region13: #{expand_blk_forward.3} parent=11 // pred_check
        %p255 = pneg %p88
      $region14: #{expand_blk_forward.3} parent=11 // pred_check_branch
        %257 = sbr.rel (%p255) target = $region16
      $region15: #{expand_blk_forward.3} parent=11 // pred_region
        _
      $region16: #{expand_blk_forward.3} parent=11 // pred_fallthru
        _
      // Predicated region
      $region17: #{expand_blk_forward.3} parent=11 // pred_check
        %p258 = pneg %p109
      $region18: #{expand_blk_forward.3} parent=11 // pred_check_branch
        %260 = sbr.rel (%p258) target = $region20
      $region19: #{expand_blk_forward.3} parent=11 // pred_region
        _
      $region20: #{expand_blk_forward.3} parent=11 // pred_fallthru
        _
      // Predicated region
      $region21: #{expand_blk_forward.3} parent=11 // pred_check
        %p261 = pneg %p130
      $region22: #{expand_blk_forward.3} parent=11 // pred_check_branch
        %263 = sbr.rel (%p261) target = $region24
      $region23: #{expand_blk_forward.3} parent=11 // pred_region
        _
      $region24: #{expand_blk_forward.3} parent=11 // pred_fallthru
        _
      // Predicated region
      $region25: #{expand_blk_forward.3} parent=11 // pred_check
        %p264 = pneg %p151
      $region26: #{expand_blk_forward.3} parent=11 // pred_check_branch
        %266 = sbr.rel (%p264) target = $region28
      $region27: #{expand_blk_forward.3} parent=11 // pred_region
        _
      $region28: #{expand_blk_forward.3} parent=11 // pred_fallthru
        _
      // Predicated region
      $region29: #{expand_blk_forward.3} parent=11 // pred_check
        %p267 = pneg %p172
      $region30: #{expand_blk_forward.3} parent=11 // pred_check_branch
        %269 = sbr.rel (%p267) target = $region32
      $region31: #{expand_blk_forward.3} parent=11 // pred_region
        _
      $region32: #{expand_blk_forward.3} parent=11 // pred_fallthru
        _
      // Predicated region
      $region33: #{expand_blk_forward.3} parent=11 // pred_check
        %p270 = pneg %p193
      $region34: #{expand_blk_forward.3} parent=11 // pred_check_branch
        %272 = sbr.rel (%p270) target = $region36
      $region35: #{expand_blk_forward.3} parent=11 // pred_region
        _
      $region36: #{expand_blk_forward.3} parent=11 // pred_fallthru
        _
      // Predicated region
      $region37: #{expand_blk_forward.3} parent=11 // pred_check
        %p273 = pneg %p214
      $region38: #{expand_blk_forward.3} parent=11 // pred_check_branch
        %275 = sbr.rel (%p273) target = $region40
      $region39: #{expand_blk_forward.3} parent=11 // pred_region
        _
      $region40: #{expand_blk_forward.3} parent=11 // pred_fallthru
        _
    $region12: #{expand_blk_forward.3} parent=5 // pred_fallthru
      _
    %p276 = scmp.lt.s32.totalorder %s15, 2
    // Predicated region
    $region41: #{expand_blk_forward.3} parent=5 // pred_check
      %p277 = pneg %p276
    $region42: #{expand_blk_forward.3} parent=5 // pred_check_branch
      %279 = sbr.rel (%p277) target = $region44
    $region43: #{expand_blk_forward.3} parent=5 // pred_region
      // Predicated region
      $region45: #{expand_blk_forward.3} parent=43 // pred_check
        %p280 = pneg %p35
      $region46: #{expand_blk_forward.3} parent=43 // pred_check_branch
        %282 = sbr.rel (%p280) target = $region48
      $region47: #{expand_blk_forward.3} parent=43 // pred_region
        %p283 = scmp.lt.s32.totalorder %s15, 1
        %s284 = scalar_select %p283, %s15, 1
        %s285 = smul.addr %s284, 32
        %s286 = smul.addr %s285, 8
        %s287 = scalar_lea.vmem %s0, %s286
      $region48: #{expand_blk_forward.3} parent=43 // pred_fallthru
        _
      // Predicated region
      $region49: #{expand_blk_forward.3} parent=43 // pred_check
        %p288 = pneg %p61
      $region50: #{expand_blk_forward.3} parent=43 // pred_check_branch
        %290 = sbr.rel (%p288) target = $region52
      $region51: #{expand_blk_forward.3} parent=43 // pred_region
        %p291 = scmp.lt.s32.totalorder %s15, 1
        %s292 = scalar_select %p291, %s15, 1
        %s293 = smul.addr %s292, 32
        %s294 = smul.addr %s293, 8
        %s295 = scalar_lea.vmem %s1, %s294
      $region52: #{expand_blk_forward.3} parent=43 // pred_fallthru
        _
    $region44: #{expand_blk_forward.3} parent=5 // pred_fallthru
      _
    %p296 = scmp.le.s32.totalorder 1, %s15
    %p297 = scmp.lt.s32.totalorder %s15, 3
    %p298 = pnand %p296, %p297
    %p299 = pneg %p298
    // Predicated region
    $region53: #{expand_blk_forward.3} parent=5 // pred_check
      _
    $region54: #{expand_blk_forward.3} parent=5 // pred_check_branch
      %301 = sbr.rel (%p298) target = $region56
    $region55: #{expand_blk_forward.3} parent=5 // pred_region
      %s302 = ssub.s32 %s15, 1
      %p303 = scmp.lt.s32.totalorder %s20, 1
      %s304 = scalar_select %p303, %s20, 1
      %s305 = smul.addr %s304, 32
      %s306 = smul.addr %s305, 8
      %s307 = scalar_lea.vmem %s0, %s306
      %p308 = pneg %p41
      %p309 = pneg %p38
      %p310 = scmp.lt.s32.totalorder %s20, 1
      %s311 = scalar_select %p310, %s20, 1
      %s312 = smul.addr %s311, 32
      %s313 = smul.addr %s312, 8
      %s314 = scalar_lea.vmem %s1, %s313
      %p315 = pneg %p67
      %p316 = pneg %p64
      %p317 = pneg %p88
      %p318 = pneg %p85
      %p319 = pneg %p109
      %p320 = pneg %p106
      %p321 = pneg %p130
      %p322 = pneg %p127
      %p323 = pneg %p151
      %p324 = pneg %p148
      %p325 = pneg %p172
      %p326 = pneg %p169
      %p327 = pneg %p193
      %p328 = pneg %p190
      %p329 = pneg %p214
      %p330 = pneg %p211
      %p331 = pneg %p240
      %p332 = pneg %p237
      %p333 = scmp.lt.s32.totalorder %s20, 1
      %s334 = scalar_select %p333, %s20, 1
      %s335 = smul.addr %s334, 32
      %s336 = smul.addr %s335, 8
      %s337 = scalar_lea.vmem %s9, %s336
      %p338 = scmp.lt.s32.totalorder %s20, 1
      %s339 = scalar_select %p338, %s20, 1
      %s340 = smul.addr %s339, 32
      %s341 = smul.addr %s340, 8
      %s342 = scalar_lea.vmem %s0, %s341
      %p343 = scmp.lt.s32.totalorder %s20, 1
      %s344 = scalar_select %p343, %s20, 1
      %s345 = smul.addr %s344, 32
      %s346 = smul.addr %s345, 8
      %s347 = scalar_lea.vmem %s1, %s346
      %p348 = scmp.lt.s32.totalorder %s20, 1
      %s349 = scalar_select %p348, %s20, 1
      %s350 = smul.addr %s349, 32
      %s351 = smul.addr %s350, 8
      %s352 = scalar_lea.vmem %s9, %s351
      %vm353 = vcmask 31744
      %354 = vst.msk [vmem:[#allocation2] sm:$0xff] %vm353, 0.0
      %355 = vst.msk [vmem:[#allocation2 + $0x8] sm:$0xff] %vm353, 0.0
      %vm356 = vcmask 25600
      %357 = vst.msk [vmem:[#allocation2 + $0x10] sm:$0x3] %vm356, 0.0
      %358 = vst.msk [vmem:[#allocation2 + $0x18] sm:$0xff] %vm353, 0.0
      %359 = vst.msk [vmem:[#allocation2 + $0x20] sm:$0xff] %vm353, 0.0
      %360 = vst.msk [vmem:[#allocation2 + $0x28] sm:$0x3] %vm356, 0.0
      %361 = vst.msk [vmem:[#allocation2 + $0x30] sm:$0xff] %vm353, 0.0
      %362 = vst.msk [vmem:[#allocation2 + $0x38] sm:$0xff] %vm353, 0.0
      %363 = vst.msk [vmem:[#allocation2 + $0x40] sm:$0x3] %vm356, 0.0
      %364 = vst.msk [vmem:[#allocation2 + $0x48] sm:$0xff] %vm353, 0.0
      %365 = vst.msk [vmem:[#allocation2 + $0x50] sm:$0xff] %vm353, 0.0
      %366 = vst.msk [vmem:[#allocation2 + $0x58] sm:$0x3] %vm356, 0.0
      %367 = vst.msk [vmem:[#allocation2 + $0x60] sm:$0xff] %vm353, 0.0
      %368 = vst.msk [vmem:[#allocation2 + $0x68] sm:$0xff] %vm353, 0.0
      %369 = vst.msk [vmem:[#allocation2 + $0x70] sm:$0x3] %vm356, 0.0
      %370 = vst.msk [vmem:[#allocation2 + $0x78] sm:$0xff] %vm353, 0.0
      %371 = vst.msk [vmem:[#allocation2 + $0x80] sm:$0xff] %vm353, 0.0
      %372 = vst.msk [vmem:[#allocation2 + $0x88] sm:$0x3] %vm356, 0.0
      %373 = vst.msk [vmem:[#allocation2 + $0x90] sm:$0xff] %vm353, 0.0
      %374 = vst.msk [vmem:[#allocation2 + $0x98] sm:$0xff] %vm353, 0.0
      %375 = vst.msk [vmem:[#allocation2 + $0xa0] sm:$0x3] %vm356, 0.0
      %376 = vst.msk [vmem:[#allocation2 + $0xa8] sm:$0xff] %vm353, 0.0
      %377 = vst.msk [vmem:[#allocation2 + $0xb0] sm:$0xff] %vm353, 0.0
      %378 = vst.msk [vmem:[#allocation2 + $0xb8] sm:$0x3] %vm356, 0.0
      %379 = vst.msk [vmem:[#allocation2 + $0xc0] sm:$0xff] %vm353, 0.0
      %380 = vst.msk [vmem:[#allocation2 + $0xc8] sm:$0xff] %vm353, 0.0
      %381 = vst.msk [vmem:[#allocation2 + $0xd0] sm:$0x3] %vm356, 0.0
      %382 = vst.msk [vmem:[#allocation2 + $0xd8] sm:$0xff] %vm353, 0.0
      %383 = vst.msk [vmem:[#allocation2 + $0xe0] sm:$0xff] %vm353, 0.0
      %384 = vst.msk [vmem:[#allocation2 + $0xe8] sm:$0x3] %vm356, 0.0
      %385 = vst.msk [vmem:[#allocation2 + $0xf0] sm:$0xff] %vm353, 0.0
      %386 = vst.msk [vmem:[#allocation2 + $0xf8] sm:$0xff] %vm353, 0.0
      %387 = vst.msk [vmem:[#allocation2 + $0x100] sm:$0x3] %vm356, 0.0
      %388 = vst.msk [vmem:[#allocation2 + $0x108] sm:$0xff] %vm353, 0.0
      %389 = vst.msk [vmem:[#allocation2 + $0x110] sm:$0xff] %vm353, 0.0
      %390 = vst.msk [vmem:[#allocation2 + $0x118] sm:$0x3] %vm356, 0.0
      %391 = vst.msk [vmem:[#allocation2 + $0x120] sm:$0xff] %vm353, 0.0
      %392 = vst.msk [vmem:[#allocation2 + $0x128] sm:$0xff] %vm353, 0.0
      %393 = vst.msk [vmem:[#allocation2 + $0x130] sm:$0x3] %vm356, 0.0
      %394 = vst.msk [vmem:[#allocation2 + $0x138] sm:$0xff] %vm353, 0.0
      %395 = vst.msk [vmem:[#allocation2 + $0x140] sm:$0xff] %vm353, 0.0
      %396 = vst.msk [vmem:[#allocation2 + $0x148] sm:$0x3] %vm356, 0.0
      %397 = vst.msk [vmem:[#allocation2 + $0x150] sm:$0xff] %vm353, 0.0
      %398 = vst.msk [vmem:[#allocation2 + $0x158] sm:$0xff] %vm353, 0.0
      %399 = vst.msk [vmem:[#allocation2 + $0x160] sm:$0x3] %vm356, 0.0
      %400 = vst.msk [vmem:[#allocation2 + $0x168] sm:$0xff] %vm353, 0.0
      %401 = vst.msk [vmem:[#allocation2 + $0x170] sm:$0xff] %vm353, 0.0
      %402 = vst.msk [vmem:[#allocation2 + $0x178] sm:$0x3] %vm356, 0.0
      %403 = vst.msk [vmem:[#allocation2 + $0x180] sm:$0xff] %vm353, 0.0
      %404 = vst.msk [vmem:[#allocation2 + $0x188] sm:$0xff] %vm353, 0.0
      %405 = vst.msk [vmem:[#allocation2 + $0x190] sm:$0x3] %vm356, 0.0
      %406 = vst.msk [vmem:[#allocation2 + $0x198] sm:$0xff] %vm353, 0.0
      %407 = vst.msk [vmem:[#allocation2 + $0x1a0] sm:$0xff] %vm353, 0.0
      %408 = vst.msk [vmem:[#allocation2 + $0x1a8] sm:$0x3] %vm356, 0.0
      %409 = vst.msk [vmem:[#allocation3] sm:$0xff] %vm353, 0.0
      %410 = vst.msk [vmem:[#allocation3 + $0x8] sm:$0xff] %vm353, 0.0
      %411 = vst.msk [vmem:[#allocation3 + $0x10] sm:$0x3] %vm356, 0.0
      %412 = vst.msk [vmem:[#allocation3 + $0x18] sm:$0xff] %vm353, 0.0
      %413 = vst.msk [vmem:[#allocation3 + $0x20] sm:$0xff] %vm353, 0.0
      %414 = vst.msk [vmem:[#allocation3 + $0x28] sm:$0x3] %vm356, 0.0
      %415 = vst.msk [vmem:[#allocation3 + $0x30] sm:$0xff] %vm353, 0.0
      %416 = vst.msk [vmem:[#allocation3 + $0x38] sm:$0xff] %vm353, 0.0
      %417 = vst.msk [vmem:[#allocation3 + $0x40] sm:$0x3] %vm356, 0.0
      %418 = vst.msk [vmem:[#allocation3 + $0x48] sm:$0xff] %vm353, 0.0
      %419 = vst.msk [vmem:[#allocation3 + $0x50] sm:$0xff] %vm353, 0.0
      %420 = vst.msk [vmem:[#allocation3 + $0x58] sm:$0x3] %vm356, 0.0
      %421 = vst.msk [vmem:[#allocation3 + $0x60] sm:$0xff] %vm353, 0.0
      %422 = vst.msk [vmem:[#allocation3 + $0x68] sm:$0xff] %vm353, 0.0
      %423 = vst.msk [vmem:[#allocation3 + $0x70] sm:$0x3] %vm356, 0.0
      %424 = vst.msk [vmem:[#allocation3 + $0x78] sm:$0xff] %vm353, 0.0
      %425 = vst.msk [vmem:[#allocation3 + $0x80] sm:$0xff] %vm353, 0.0
      %426 = vst.msk [vmem:[#allocation3 + $0x88] sm:$0x3] %vm356, 0.0
      %427 = vst.msk [vmem:[#allocation3 + $0x90] sm:$0xff] %vm353, 0.0
      %428 = vst.msk [vmem:[#allocation3 + $0x98] sm:$0xff] %vm353, 0.0
      %429 = vst.msk [vmem:[#allocation3 + $0xa0] sm:$0x3] %vm356, 0.0
      %430 = vst.msk [vmem:[#allocation3 + $0xa8] sm:$0xff] %vm353, 0.0
      %431 = vst.msk [vmem:[#allocation3 + $0xb0] sm:$0xff] %vm353, 0.0
      %432 = vst.msk [vmem:[#allocation3 + $0xb8] sm:$0x3] %vm356, 0.0
      %433 = vst.msk [vmem:[#allocation3 + $0xc0] sm:$0xff] %vm353, 0.0
      %434 = vst.msk [vmem:[#allocation3 + $0xc8] sm:$0xff] %vm353, 0.0
      %435 = vst.msk [vmem:[#allocation3 + $0xd0] sm:$0x3] %vm356, 0.0
      %436 = vst.msk [vmem:[#allocation3 + $0xd8] sm:$0xff] %vm353, 0.0
      %437 = vst.msk [vmem:[#allocation3 + $0xe0] sm:$0xff] %vm353, 0.0
      %438 = vst.msk [vmem:[#allocation3 + $0xe8] sm:$0x3] %vm356, 0.0
      %439 = vst.msk [vmem:[#allocation3 + $0xf0] sm:$0xff] %vm353, 0.0
      %440 = vst.msk [vmem:[#allocation3 + $0xf8] sm:$0xff] %vm353, 0.0
      %441 = vst.msk [vmem:[#allocation3 + $0x100] sm:$0x3] %vm356, 0.0
      %442 = vst.msk [vmem:[#allocation3 + $0x108] sm:$0xff] %vm353, 0.0
      %443 = vst.msk [vmem:[#allocation3 + $0x110] sm:$0xff] %vm353, 0.0
      %444 = vst.msk [vmem:[#allocation3 + $0x118] sm:$0x3] %vm356, 0.0
      %445 = vst.msk [vmem:[#allocation3 + $0x120] sm:$0xff] %vm353, 0.0
      %446 = vst.msk [vmem:[#allocation3 + $0x128] sm:$0xff] %vm353, 0.0
      %447 = vst.msk [vmem:[#allocation3 + $0x130] sm:$0x3] %vm356, 0.0
      %448 = vst.msk [vmem:[#allocation3 + $0x138] sm:$0xff] %vm353, 0.0
      %449 = vst.msk [vmem:[#allocation3 + $0x140] sm:$0xff] %vm353, 0.0
      %450 = vst.msk [vmem:[#allocation3 + $0x148] sm:$0x3] %vm356, 0.0
      %451 = vst.msk [vmem:[#allocation3 + $0x150] sm:$0xff] %vm353, 0.0
      %452 = vst.msk [vmem:[#allocation3 + $0x158] sm:$0xff] %vm353, 0.0
      %453 = vst.msk [vmem:[#allocation3 + $0x160] sm:$0x3] %vm356, 0.0
      %454 = vst.msk [vmem:[#allocation3 + $0x168] sm:$0xff] %vm353, 0.0
      %455 = vst.msk [vmem:[#allocation3 + $0x170] sm:$0xff] %vm353, 0.0
      %456 = vst.msk [vmem:[#allocation3 + $0x178] sm:$0x3] %vm356, 0.0
      %457 = vst.msk [vmem:[#allocation3 + $0x180] sm:$0xff] %vm353, 0.0
      %458 = vst.msk [vmem:[#allocation3 + $0x188] sm:$0xff] %vm353, 0.0
      %459 = vst.msk [vmem:[#allocation3 + $0x190] sm:$0x3] %vm356, 0.0
      %460 = vst.msk [vmem:[#allocation3 + $0x198] sm:$0xff] %vm353, 0.0
      %461 = vst.msk [vmem:[#allocation3 + $0x1a0] sm:$0xff] %vm353, 0.0
      %462 = vst.msk [vmem:[#allocation3 + $0x1a8] sm:$0x3] %vm356, 0.0
      %463 = vst.msk [vmem:[#allocation4] sm:$0xff] %vm353, 0.0
      %464 = vst.msk [vmem:[#allocation4 + $0x8] sm:$0xff] %vm353, 0.0
      %465 = vst.msk [vmem:[#allocation4 + $0x10] sm:$0x3] %vm356, 0.0
      %466 = vst.msk [vmem:[#allocation4 + $0x18] sm:$0xff] %vm353, 0.0
      %467 = vst.msk [vmem:[#allocation4 + $0x20] sm:$0xff] %vm353, 0.0
      %468 = vst.msk [vmem:[#allocation4 + $0x28] sm:$0x3] %vm356, 0.0
      %469 = vst.msk [vmem:[#allocation4 + $0x30] sm:$0xff] %vm353, 0.0
      %470 = vst.msk [vmem:[#allocation4 + $0x38] sm:$0xff] %vm353, 0.0
      %471 = vst.msk [vmem:[#allocation4 + $0x40] sm:$0x3] %vm356, 0.0
      %472 = vst.msk [vmem:[#allocation4 + $0x48] sm:$0xff] %vm353, 0.0
      %473 = vst.msk [vmem:[#allocation4 + $0x50] sm:$0xff] %vm353, 0.0
      %474 = vst.msk [vmem:[#allocation4 + $0x58] sm:$0x3] %vm356, 0.0
      %475 = vst.msk [vmem:[#allocation4 + $0x60] sm:$0xff] %vm353, 0.0
      %476 = vst.msk [vmem:[#allocation4 + $0x68] sm:$0xff] %vm353, 0.0
      %477 = vst.msk [vmem:[#allocation4 + $0x70] sm:$0x3] %vm356, 0.0
      %478 = vst.msk [vmem:[#allocation4 + $0x78] sm:$0xff] %vm353, 0.0
      %479 = vst.msk [vmem:[#allocation4 + $0x80] sm:$0xff] %vm353, 0.0
      %480 = vst.msk [vmem:[#allocation4 + $0x88] sm:$0x3] %vm356, 0.0
      %481 = vst.msk [vmem:[#allocation4 + $0x90] sm:$0xff] %vm353, 0.0
      %482 = vst.msk [vmem:[#allocation4 + $0x98] sm:$0xff] %vm353, 0.0
      %483 = vst.msk [vmem:[#allocation4 + $0xa0] sm:$0x3] %vm356, 0.0
      %484 = vst.msk [vmem:[#allocation4 + $0xa8] sm:$0xff] %vm353, 0.0
      %485 = vst.msk [vmem:[#allocation4 + $0xb0] sm:$0xff] %vm353, 0.0
      %486 = vst.msk [vmem:[#allocation4 + $0xb8] sm:$0x3] %vm356, 0.0
      %487 = vst.msk [vmem:[#allocation4 + $0xc0] sm:$0xff] %vm353, 0.0
      %488 = vst.msk [vmem:[#allocation4 + $0xc8] sm:$0xff] %vm353, 0.0
      %489 = vst.msk [vmem:[#allocation4 + $0xd0] sm:$0x3] %vm356, 0.0
      %490 = vst.msk [vmem:[#allocation4 + $0xd8] sm:$0xff] %vm353, 0.0
      %491 = vst.msk [vmem:[#allocation4 + $0xe0] sm:$0xff] %vm353, 0.0
      %492 = vst.msk [vmem:[#allocation4 + $0xe8] sm:$0x3] %vm356, 0.0
      %493 = vst.msk [vmem:[#allocation4 + $0xf0] sm:$0xff] %vm353, 0.0
      %494 = vst.msk [vmem:[#allocation4 + $0xf8] sm:$0xff] %vm353, 0.0
      %495 = vst.msk [vmem:[#allocation4 + $0x100] sm:$0x3] %vm356, 0.0
      %496 = vst.msk [vmem:[#allocation4 + $0x108] sm:$0xff] %vm353, 0.0
      %497 = vst.msk [vmem:[#allocation4 + $0x110] sm:$0xff] %vm353, 0.0
      %498 = vst.msk [vmem:[#allocation4 + $0x118] sm:$0x3] %vm356, 0.0
      %499 = vst.msk [vmem:[#allocation4 + $0x120] sm:$0xff] %vm353, 0.0
      %500 = vst.msk [vmem:[#allocation4 + $0x128] sm:$0xff] %vm353, 0.0
      %501 = vst.msk [vmem:[#allocation4 + $0x130] sm:$0x3] %vm356, 0.0
      %502 = vst.msk [vmem:[#allocation4 + $0x138] sm:$0xff] %vm353, 0.0
      %503 = vst.msk [vmem:[#allocation4 + $0x140] sm:$0xff] %vm353, 0.0
      %504 = vst.msk [vmem:[#allocation4 + $0x148] sm:$0x3] %vm356, 0.0
      %505 = vst.msk [vmem:[#allocation4 + $0x150] sm:$0xff] %vm353, 0.0
      %506 = vst.msk [vmem:[#allocation4 + $0x158] sm:$0xff] %vm353, 0.0
      %507 = vst.msk [vmem:[#allocation4 + $0x160] sm:$0x3] %vm356, 0.0
      %508 = vst.msk [vmem:[#allocation4 + $0x168] sm:$0xff] %vm353, 0.0
      %509 = vst.msk [vmem:[#allocation4 + $0x170] sm:$0xff] %vm353, 0.0
      %510 = vst.msk [vmem:[#allocation4 + $0x178] sm:$0x3] %vm356, 0.0
      %511 = vst.msk [vmem:[#allocation4 + $0x180] sm:$0xff] %vm353, 0.0
      %512 = vst.msk [vmem:[#allocation4 + $0x188] sm:$0xff] %vm353, 0.0
      %513 = vst.msk [vmem:[#allocation4 + $0x190] sm:$0x3] %vm356, 0.0
      %514 = vst.msk [vmem:[#allocation4 + $0x198] sm:$0xff] %vm353, 0.0
      %515 = vst.msk [vmem:[#allocation4 + $0x1a0] sm:$0xff] %vm353, 0.0
      %516 = vst.msk [vmem:[#allocation4 + $0x1a8] sm:$0x3] %vm356, 0.0
      %v517 = vld [vmem:[%s342] sm:$0xff]
      %v518 = vld [vmem:[%s342 + $0x8] sm:$0xff]
      %v519 = vld [vmem:[%s342 + $0x10] sm:$0xff]
      %v520 = vld [vmem:[%s342 + $0x18] sm:$0xff]
      %v521 = vld [vmem:[%s342 + $0x20] sm:$0xff]
      %v522 = vld [vmem:[%s342 + $0x28] sm:$0xff]
      %v523 = vld [vmem:[%s342 + $0x30] sm:$0xff]
      %v524 = vld [vmem:[%s342 + $0x38] sm:$0xff]
      %v525 = vld [vmem:[%s342 + $0x40] sm:$0xff]
      %v526 = vld [vmem:[%s342 + $0x48] sm:$0xff]
      %v527 = vld [vmem:[%s342 + $0x50] sm:$0xff]
      %v528 = vld [vmem:[%s342 + $0x58] sm:$0xff]
      %v529 = vld [vmem:[%s342 + $0x60] sm:$0xff]
      %v530 = vld [vmem:[%s342 + $0x68] sm:$0xff]
      %v531 = vld [vmem:[%s342 + $0x70] sm:$0xff]
      %v532 = vld [vmem:[%s342 + $0x78] sm:$0xff]
      %v533 = vld [vmem:[%s342 + $0x80] sm:$0xff]
      %v534 = vld [vmem:[%s342 + $0x88] sm:$0xff]
      %v535 = vld [vmem:[%s342 + $0x90] sm:$0xff]
      %v536 = vld [vmem:[%s342 + $0x98] sm:$0xff]
      %v537 = vld [vmem:[%s342 + $0xa0] sm:$0xff]
      %v538 = vld [vmem:[%s342 + $0xa8] sm:$0xff]
      %v539 = vld [vmem:[%s342 + $0xb0] sm:$0xff]
      %v540 = vld [vmem:[%s342 + $0xb8] sm:$0xff]
      %v541 = vld [vmem:[%s342 + $0xc0] sm:$0xff]
      %v542 = vld [vmem:[%s342 + $0xc8] sm:$0xff]
      %v543 = vld [vmem:[%s342 + $0xd0] sm:$0xff]
      %v544 = vld [vmem:[%s342 + $0xd8] sm:$0xff]
      %v545 = vld [vmem:[%s342 + $0xe0] sm:$0xff]
      %v546 = vld [vmem:[%s342 + $0xe8] sm:$0xff]
      %v547 = vld [vmem:[%s342 + $0xf0] sm:$0xff]
      %v548 = vld [vmem:[%s342 + $0xf8] sm:$0xff]
      %s549 = scalar_lea.vmem [#allocation2], 24
      %550 = vst.msk [vmem:[%s549 + $0x1] sm:$0xff] %vm353, %v517
      %551 = vst.msk [vmem:[%s549 + $0x9] sm:$0xff] %vm353, %v518
      %552 = vst.msk [vmem:[%s549 + $0x19] sm:$0xff] %vm353, %v519
      %553 = vst.msk [vmem:[%s549 + $0x21] sm:$0xff] %vm353, %v520
      %554 = vst.msk [vmem:[%s549 + $0x31] sm:$0xff] %vm353, %v521
      %555 = vst.msk [vmem:[%s549 + $0x39] sm:$0xff] %vm353, %v522
      %556 = vst.msk [vmem:[%s549 + $0x49] sm:$0xff] %vm353, %v523
      %557 = vst.msk [vmem:[%s549 + $0x51] sm:$0xff] %vm353, %v524
      %558 = vst.msk [vmem:[%s549 + $0x61] sm:$0xff] %vm353, %v525
      %559 = vst.msk [vmem:[%s549 + $0x69] sm:$0xff] %vm353, %v526
      %560 = vst.msk [vmem:[%s549 + $0x79] sm:$0xff] %vm353, %v527
      %561 = vst.msk [vmem:[%s549 + $0x81] sm:$0xff] %vm353, %v528
      %562 = vst.msk [vmem:[%s549 + $0x91] sm:$0xff] %vm353, %v529
      %563 = vst.msk [vmem:[%s549 + $0x99] sm:$0xff] %vm353, %v530
      %564 = vst.msk [vmem:[%s549 + $0xa9] sm:$0xff] %vm353, %v531
      %565 = vst.msk [vmem:[%s549 + $0xb1] sm:$0xff] %vm353, %v532
      %566 = vst.msk [vmem:[%s549 + $0xc1] sm:$0xff] %vm353, %v533
      %567 = vst.msk [vmem:[%s549 + $0xc9] sm:$0xff] %vm353, %v534
      %568 = vst.msk [vmem:[%s549 + $0xd9] sm:$0xff] %vm353, %v535
      %569 = vst.msk [vmem:[%s549 + $0xe1] sm:$0xff] %vm353, %v536
      %570 = vst.msk [vmem:[%s549 + $0xf1] sm:$0xff] %vm353, %v537
      %571 = vst.msk [vmem:[%s549 + $0xf9] sm:$0xff] %vm353, %v538
      %572 = vst.msk [vmem:[%s549 + $0x109] sm:$0xff] %vm353, %v539
      %573 = vst.msk [vmem:[%s549 + $0x111] sm:$0xff] %vm353, %v540
      %574 = vst.msk [vmem:[%s549 + $0x121] sm:$0xff] %vm353, %v541
      %575 = vst.msk [vmem:[%s549 + $0x129] sm:$0xff] %vm353, %v542
      %576 = vst.msk [vmem:[%s549 + $0x139] sm:$0xff] %vm353, %v543
      %577 = vst.msk [vmem:[%s549 + $0x141] sm:$0xff] %vm353, %v544
      %578 = vst.msk [vmem:[%s549 + $0x151] sm:$0xff] %vm353, %v545
      %579 = vst.msk [vmem:[%s549 + $0x159] sm:$0xff] %vm353, %v546
      %580 = vst.msk [vmem:[%s549 + $0x169] sm:$0xff] %vm353, %v547
      %581 = vst.msk [vmem:[%s549 + $0x171] sm:$0xff] %vm353, %v548
      %v582 = vld [vmem:[%s347] sm:$0xff]
      %v583 = vld [vmem:[%s347 + $0x8] sm:$0xff]
      %v584 = vld [vmem:[%s347 + $0x10] sm:$0xff]
      %v585 = vld [vmem:[%s347 + $0x18] sm:$0xff]
      %v586 = vld [vmem:[%s347 + $0x20] sm:$0xff]
      %v587 = vld [vmem:[%s347 + $0x28] sm:$0xff]
      %v588 = vld [vmem:[%s347 + $0x30] sm:$0xff]
      %v589 = vld [vmem:[%s347 + $0x38] sm:$0xff]
      %v590 = vld [vmem:[%s347 + $0x40] sm:$0xff]
      %v591 = vld [vmem:[%s347 + $0x48] sm:$0xff]
      %v592 = vld [vmem:[%s347 + $0x50] sm:$0xff]
      %v593 = vld [vmem:[%s347 + $0x58] sm:$0xff]
      %v594 = vld [vmem:[%s347 + $0x60] sm:$0xff]
      %v595 = vld [vmem:[%s347 + $0x68] sm:$0xff]
      %v596 = vld [vmem:[%s347 + $0x70] sm:$0xff]
      %v597 = vld [vmem:[%s347 + $0x78] sm:$0xff]
      %v598 = vld [vmem:[%s347 + $0x80] sm:$0xff]
      %v599 = vld [vmem:[%s347 + $0x88] sm:$0xff]
      %v600 = vld [vmem:[%s347 + $0x90] sm:$0xff]
      %v601 = vld [vmem:[%s347 + $0x98] sm:$0xff]
      %v602 = vld [vmem:[%s347 + $0xa0] sm:$0xff]
      %v603 = vld [vmem:[%s347 + $0xa8] sm:$0xff]
      %v604 = vld [vmem:[%s347 + $0xb0] sm:$0xff]
      %v605 = vld [vmem:[%s347 + $0xb8] sm:$0xff]
      %v606 = vld [vmem:[%s347 + $0xc0] sm:$0xff]
      %v607 = vld [vmem:[%s347 + $0xc8] sm:$0xff]
      %v608 = vld [vmem:[%s347 + $0xd0] sm:$0xff]
      %v609 = vld [vmem:[%s347 + $0xd8] sm:$0xff]
      %v610 = vld [vmem:[%s347 + $0xe0] sm:$0xff]
      %v611 = vld [vmem:[%s347 + $0xe8] sm:$0xff]
      %v612 = vld [vmem:[%s347 + $0xf0] sm:$0xff]
      %v613 = vld [vmem:[%s347 + $0xf8] sm:$0xff]
      %s614 = scalar_lea.vmem [#allocation3], 24
      %615 = vst.msk [vmem:[%s614 + $0x1] sm:$0xff] %vm353, %v582
      %616 = vst.msk [vmem:[%s614 + $0x9] sm:$0xff] %vm353, %v583
      %617 = vst.msk [vmem:[%s614 + $0x19] sm:$0xff] %vm353, %v584
      %618 = vst.msk [vmem:[%s614 + $0x21] sm:$0xff] %vm353, %v585
      %619 = vst.msk [vmem:[%s614 + $0x31] sm:$0xff] %vm353, %v586
      %620 = vst.msk [vmem:[%s614 + $0x39] sm:$0xff] %vm353, %v587
      %621 = vst.msk [vmem:[%s614 + $0x49] sm:$0xff] %vm353, %v588
      %622 = vst.msk [vmem:[%s614 + $0x51] sm:$0xff] %vm353, %v589
      %623 = vst.msk [vmem:[%s614 + $0x61] sm:$0xff] %vm353, %v590
      %624 = vst.msk [vmem:[%s614 + $0x69] sm:$0xff] %vm353, %v591
      %625 = vst.msk [vmem:[%s614 + $0x79] sm:$0xff] %vm353, %v592
      %626 = vst.msk [vmem:[%s614 + $0x81] sm:$0xff] %vm353, %v593
      %627 = vst.msk [vmem:[%s614 + $0x91] sm:$0xff] %vm353, %v594
      %628 = vst.msk [vmem:[%s614 + $0x99] sm:$0xff] %vm353, %v595
      %629 = vst.msk [vmem:[%s614 + $0xa9] sm:$0xff] %vm353, %v596
      %630 = vst.msk [vmem:[%s614 + $0xb1] sm:$0xff] %vm353, %v597
      %631 = vst.msk [vmem:[%s614 + $0xc1] sm:$0xff] %vm353, %v598
      %632 = vst.msk [vmem:[%s614 + $0xc9] sm:$0xff] %vm353, %v599
      %633 = vst.msk [vmem:[%s614 + $0xd9] sm:$0xff] %vm353, %v600
      %634 = vst.msk [vmem:[%s614 + $0xe1] sm:$0xff] %vm353, %v601
      %635 = vst.msk [vmem:[%s614 + $0xf1] sm:$0xff] %vm353, %v602
      %636 = vst.msk [vmem:[%s614 + $0xf9] sm:$0xff] %vm353, %v603
      %637 = vst.msk [vmem:[%s614 + $0x109] sm:$0xff] %vm353, %v604
      %638 = vst.msk [vmem:[%s614 + $0x111] sm:$0xff] %vm353, %v605
      %639 = vst.msk [vmem:[%s614 + $0x121] sm:$0xff] %vm353, %v606
      %640 = vst.msk [vmem:[%s614 + $0x129] sm:$0xff] %vm353, %v607
      %641 = vst.msk [vmem:[%s614 + $0x139] sm:$0xff] %vm353, %v608
      %642 = vst.msk [vmem:[%s614 + $0x141] sm:$0xff] %vm353, %v609
      %643 = vst.msk [vmem:[%s614 + $0x151] sm:$0xff] %vm353, %v610
      %644 = vst.msk [vmem:[%s614 + $0x159] sm:$0xff] %vm353, %v611
      %645 = vst.msk [vmem:[%s614 + $0x169] sm:$0xff] %vm353, %v612
      %646 = vst.msk [vmem:[%s614 + $0x171] sm:$0xff] %vm353, %v613
      %v647 = vld [vmem:[#allocation2] sm:$0xff]
      %v648 = vld [vmem:[#allocation2 + $0x8] sm:$0xff]
      %v649 = vld [vmem:[#allocation2 + $0x18] sm:$0xff]
      %v650 = vld [vmem:[#allocation2 + $0x20] sm:$0xff]
      %v651 = vld [vmem:[#allocation2 + $0x30] sm:$0xff]
      %v652 = vld [vmem:[#allocation2 + $0x38] sm:$0xff]
      %v653 = vld [vmem:[#allocation2 + $0x48] sm:$0xff]
      %v654 = vld [vmem:[#allocation2 + $0x50] sm:$0xff]
      %v655 = vld [vmem:[#allocation2 + $0x60] sm:$0xff]
      %v656 = vld [vmem:[#allocation2 + $0x68] sm:$0xff]
      %v657 = vld [vmem:[#allocation2 + $0x78] sm:$0xff]
      %v658 = vld [vmem:[#allocation2 + $0x80] sm:$0xff]
      %v659 = vld [vmem:[#allocation2 + $0x90] sm:$0xff]
      %v660 = vld [vmem:[#allocation2 + $0x98] sm:$0xff]
      %v661 = vld [vmem:[#allocation2 + $0xa8] sm:$0xff]
      %v662 = vld [vmem:[#allocation2 + $0xb0] sm:$0xff]
      %v663 = vld [vmem:[#allocation2 + $0xc0] sm:$0xff]
      %v664 = vld [vmem:[#allocation2 + $0xc8] sm:$0xff]
      %v665 = vld [vmem:[#allocation2 + $0xd8] sm:$0xff]
      %v666 = vld [vmem:[#allocation2 + $0xe0] sm:$0xff]
      %v667 = vld [vmem:[#allocation2 + $0xf0] sm:$0xff]
      %v668 = vld [vmem:[#allocation2 + $0xf8] sm:$0xff]
      %v669 = vld [vmem:[#allocation2 + $0x108] sm:$0xff]
      %v670 = vld [vmem:[#allocation2 + $0x110] sm:$0xff]
      %v671 = vld [vmem:[#allocation2 + $0x120] sm:$0xff]
      %v672 = vld [vmem:[#allocation2 + $0x128] sm:$0xff]
      %v673 = vld [vmem:[#allocation2 + $0x138] sm:$0xff]
      %v674 = vld [vmem:[#allocation2 + $0x140] sm:$0xff]
      %v675 = vld [vmem:[#allocation2 + $0x150] sm:$0xff]
      %v676 = vld [vmem:[#allocation2 + $0x158] sm:$0xff]
      %v677 = vld [vmem:[#allocation2 + $0x168] sm:$0xff]
      %v678 = vld [vmem:[#allocation2 + $0x170] sm:$0xff]
      %v679 = vld [vmem:[#allocation3] sm:$0xff]
      %v680 = vld [vmem:[#allocation3 + $0x8] sm:$0xff]
      %v681 = vld [vmem:[#allocation3 + $0x18] sm:$0xff]
      %v682 = vld [vmem:[#allocation3 + $0x20] sm:$0xff]
      %v683 = vld [vmem:[#allocation3 + $0x30] sm:$0xff]
      %v684 = vld [vmem:[#allocation3 + $0x38] sm:$0xff]
      %v685 = vld [vmem:[#allocation3 + $0x48] sm:$0xff]
      %v686 = vld [vmem:[#allocation3 + $0x50] sm:$0xff]
      %v687 = vld [vmem:[#allocation3 + $0x60] sm:$0xff]
      %v688 = vld [vmem:[#allocation3 + $0x68] sm:$0xff]
      %v689 = vld [vmem:[#allocation3 + $0x78] sm:$0xff]
      %v690 = vld [vmem:[#allocation3 + $0x80] sm:$0xff]
      %v691 = vld [vmem:[#allocation3 + $0x90] sm:$0xff]
      %v692 = vld [vmem:[#allocation3 + $0x98] sm:$0xff]
      %v693 = vld [vmem:[#allocation3 + $0xa8] sm:$0xff]
      %v694 = vld [vmem:[#allocation3 + $0xb0] sm:$0xff]
      %v695 = vld [vmem:[#allocation3 + $0xc0] sm:$0xff]
      %v696 = vld [vmem:[#allocation3 + $0xc8] sm:$0xff]
      %v697 = vld [vmem:[#allocation3 + $0xd8] sm:$0xff]
      %v698 = vld [vmem:[#allocation3 + $0xe0] sm:$0xff]
      %v699 = vld [vmem:[#allocation3 + $0xf0] sm:$0xff]
      %v700 = vld [vmem:[#allocation3 + $0xf8] sm:$0xff]
      %v701 = vld [vmem:[#allocation3 + $0x108] sm:$0xff]
      %v702 = vld [vmem:[#allocation3 + $0x110] sm:$0xff]
      %v703 = vld [vmem:[#allocation3 + $0x120] sm:$0xff]
      %v704 = vld [vmem:[#allocation3 + $0x128] sm:$0xff]
      %v705 = vld [vmem:[#allocation3 + $0x138] sm:$0xff]
      %v706 = vld [vmem:[#allocation3 + $0x140] sm:$0xff]
      %v707 = vld [vmem:[#allocation3 + $0x150] sm:$0xff]
      %v708 = vld [vmem:[#allocation3 + $0x158] sm:$0xff]
      %v709 = vld [vmem:[#allocation3 + $0x168] sm:$0xff]
      %v710 = vld [vmem:[#allocation3 + $0x170] sm:$0xff]
      %v711 = vld [vmem:[%s2] sm:$0xf]
      %v712 = vld [vmem:[%s3] sm:$0xf]
      %v714 = vsel %vm353, %v679, 0
      %v717 = vsel %vm353, %v680, 0
      %v720 = vsel %vm353, %v681, 0
      %v723 = vsel %vm353, %v682, 0
      %v726 = vsel %vm353, %v683, 0
      %v729 = vsel %vm353, %v684, 0
      %v732 = vsel %vm353, %v685, 0
      %v735 = vsel %vm353, %v686, 0
      %v738 = vsel %vm353, %v687, 0
      %v741 = vsel %vm353, %v688, 0
      %v744 = vsel %vm353, %v689, 0
      %v747 = vsel %vm353, %v690, 0
      %v750 = vsel %vm353, %v691, 0
      %v753 = vsel %vm353, %v692, 0
      %v756 = vsel %vm353, %v693, 0
      %v759 = vsel %vm353, %v694, 0
      %v762 = vsel %vm353, %v695, 0
      %v765 = vsel %vm353, %v696, 0
      %v768 = vsel %vm353, %v697, 0
      %v771 = vsel %vm353, %v698, 0
      %v774 = vsel %vm353, %v699, 0
      %v777 = vsel %vm353, %v700, 0
      %v780 = vsel %vm353, %v701, 0
      %v783 = vsel %vm353, %v702, 0
      %v786 = vsel %vm353, %v703, 0
      %v789 = vsel %vm353, %v704, 0
      %v792 = vsel %vm353, %v705, 0
      %v795 = vsel %vm353, %v706, 0
      %v798 = vsel %vm353, %v707, 0
      %v801 = vsel %vm353, %v708, 0
      %v804 = vsel %vm353, %v709, 0
      %v807 = vsel %vm353, %v710, 0
      %vm809 = vcmask 1043456
      %v811 = vsel %vm809, %v712, 0
      %813 = vmatprep.subr.mxu0 0.0
      %814 = vmatpush1.msra.mxu0 %v811
      %815 = vmatprep.subr.mxu0 0.0
      %816 = vmatpush1.msra.mxu0 0.0
      %817 = vmatprep.subr.mxu0 0.0
      %818 = vmatpush1.msra.mxu0 0.0
      %819 = vmatprep.subr.mxu0 0.0
      %820 = vmatpush1.msra.mxu0 0.0
      %821 = vmatprep.subr.mxu0 0.0
      %822 = vmatpush1.msra.mxu0 0.0
      %823 = vmatprep.subr.mxu0 0.0
      %824 = vmatpush1.msra.mxu0 0.0
      %825 = vmatprep.subr.mxu0 0.0
      %826 = vmatpush1.msra.mxu0 0.0
      %827 = vmatprep.subr.mxu0 0.0
      %828 = vmatpush1.msra.mxu0 0.0
      %829 = vmatprep.subr.mxu0 0.0
      %830 = vmatpush1.msra.mxu0 0.0
      %831 = vmatprep.subr.mxu0 0.0
      %832 = vmatpush1.msra.mxu0 0.0
      %833 = vmatprep.subr.mxu0 0.0
      %834 = vmatpush1.msra.mxu0 0.0
      %835 = vmatprep.subr.mxu0 0.0
      %836 = vmatpush1.msra.mxu0 0.0
      %837 = vmatprep.subr.mxu0 0.0
      %838 = vmatpush1.msra.mxu0 0.0
      %839 = vmatprep.subr.mxu0 0.0
      %840 = vmatpush1.msra.mxu0 0.0
      %841 = vmatprep.subr.mxu0 0.0
      %842 = vmatpush1.msra.mxu0 0.0
      %843 = vmatprep.subr.mxu0 0.0
      %844 = vmatpush1.msra.mxu0 0.0
      %845 = vmatprep.subr.mxu0 0.0
      %846 = vmatpush1.msra.mxu0 0.0
      %847 = vmatprep.subr.mxu0 0.0
      %848 = vmatpush1.msra.mxu0 0.0
      %849 = vmatprep.subr.mxu0 0.0
      %850 = vmatpush1.msra.mxu0 0.0
      %851 = vmatprep.subr.mxu0 0.0
      %852 = vmatpush1.msra.mxu0 0.0
      %853 = vmatprep.subr.mxu0 0.0
      %854 = vmatpush1.msra.mxu0 0.0
      %855 = vmatprep.subr.mxu0 0.0
      %856 = vmatpush1.msra.mxu0 0.0
      %857 = vmatprep.subr.mxu0 0.0
      %858 = vmatpush1.msra.mxu0 0.0
      %859 = vmatprep.subr.mxu0 0.0
      %860 = vmatpush1.msra.mxu0 0.0
      %861 = vmatprep.subr.mxu0 0.0
      %862 = vmatpush1.msra.mxu0 0.0
      %863 = vmatprep.subr.mxu0 0.0
      %864 = vmatpush1.msra.mxu0 0.0
      %865 = vmatprep.subr.mxu0 0.0
      %866 = vmatpush1.msra.mxu0 0.0
      %867 = vmatprep.subr.mxu0 0.0
      %868 = vmatpush1.msra.mxu0 0.0
      %869 = vmatprep.subr.mxu0 0.0
      %870 = vmatpush1.msra.mxu0 0.0
      %871 = vmatprep.subr.mxu0 0.0
      %872 = vmatpush1.msra.mxu0 0.0
      %873 = vmatprep.subr.mxu0 0.0
      %874 = vmatpush1.msra.mxu0 0.0
      %875 = vmatprep.subr.mxu0 0.0
      %876 = vmatpush1.msra.mxu0 0.0
      %877 = vmatprep.mubr.f32.mxu0 0.0
      %878 = vmatmul.mubr.f32.gmra.mrb[0].mxu0 %v714
      %v879 = vpop.f32.mrb[0].mxu0
      %v880 = vadd.f32 0.0, %v879
      %v881 = vpop.f32.mrb[0].mxu0
      %882 = vmatprep.mubr.f32.mxu0 0.0
      %883 = vmatmul.mubr.f32.gmra.mrb[0].mxu0 %v717
      %v884 = vpop.f32.mrb[0].mxu0
      %v885 = vadd.f32 0.0, %v884
      %v886 = vpop.f32.mrb[0].mxu0
      %887 = vmatprep.mubr.f32.mxu0 0.0
      %888 = vmatmul.mubr.f32.gmra.mrb[0].mxu0 %v720
      %v889 = vpop.f32.mrb[0].mxu0
      %v890 = vadd.f32 0.0, %v889
      %v891 = vpop.f32.mrb[0].mxu0
      %892 = vmatprep.mubr.f32.mxu0 0.0
      %893 = vmatmul.mubr.f32.gmra.mrb[0].mxu0 %v723
      %v894 = vpop.f32.mrb[0].mxu0
      %v895 = vadd.f32 0.0, %v894
      %v896 = vpop.f32.mrb[0].mxu0
      %897 = vmatprep.mubr.f32.mxu0 0.0
      %898 = vmatmul.mubr.f32.gmra.mrb[0].mxu0 %v726
      %v899 = vpop.f32.mrb[0].mxu0
      %v900 = vadd.f32 0.0, %v899
      %v901 = vpop.f32.mrb[0].mxu0
      %902 = vmatprep.mubr.f32.mxu0 0.0
      %903 = vmatmul.mubr.f32.gmra.mrb[0].mxu0 %v729
      %v904 = vpop.f32.mrb[0].mxu0
      %v905 = vadd.f32 0.0, %v904
      %v906 = vpop.f32.mrb[0].mxu0
      %907 = vmatprep.mubr.f32.mxu0 0.0
      %908 = vmatmul.mubr.f32.gmra.mrb[0].mxu0 %v732
      %v909 = vpop.f32.mrb[0].mxu0
      %v910 = vadd.f32 0.0, %v909
      %v911 = vpop.f32.mrb[0].mxu0
      %912 = vmatprep.mubr.f32.mxu0 0.0
      %913 = vmatmul.mubr.f32.gmra.mrb[0].mxu0 %v735
      %v914 = vpop.f32.mrb[0].mxu0
      %v915 = vadd.f32 0.0, %v914
      %v916 = vpop.f32.mrb[0].mxu0
      %917 = vmatprep.mubr.f32.mxu0 0.0
      %918 = vmatmul.mubr.f32.gmra.mrb[0].mxu0 %v738
      %v919 = vpop.f32.mrb[0].mxu0
      %v920 = vadd.f32 0.0, %v919
      %v921 = vpop.f32.mrb[0].mxu0
      %922 = vmatprep.mubr.f32.mxu0 0.0
      %923 = vmatmul.mubr.f32.gmra.mrb[0].mxu0 %v741
      %v924 = vpop.f32.mrb[0].mxu0
      %v925 = vadd.f32 0.0, %v924
      %v926 = vpop.f32.mrb[0].mxu0
      %927 = vmatprep.mubr.f32.mxu0 0.0
      %928 = vmatmul.mubr.f32.gmra.mrb[0].mxu0 %v744
      %v929 = vpop.f32.mrb[0].mxu0
      %v930 = vadd.f32 0.0, %v929
      %v931 = vpop.f32.mrb[0].mxu0
      %932 = vmatprep.mubr.f32.mxu0 0.0
      %933 = vmatmul.mubr.f32.gmra.mrb[0].mxu0 %v747
      %v934 = vpop.f32.mrb[0].mxu0
      %v935 = vadd.f32 0.0, %v934
      %v936 = vpop.f32.mrb[0].mxu0
      %937 = vmatprep.mubr.f32.mxu0 0.0
      %938 = vmatmul.mubr.f32.gmra.mrb[0].mxu0 %v750
      %v939 = vpop.f32.mrb[0].mxu0
      %v940 = vadd.f32 0.0, %v939
      %v941 = vpop.f32.mrb[0].mxu0
      %942 = vmatprep.mubr.f32.mxu0 0.0
      %943 = vmatmul.mubr.f32.gmra.mrb[0].mxu0 %v753
      %v944 = vpop.f32.mrb[0].mxu0
      %v945 = vadd.f32 0.0, %v944
      %v946 = vpop.f32.mrb[0].mxu0
      %947 = vmatprep.mubr.f32.mxu0 0.0
      %948 = vmatmul.mubr.f32.gmra.mrb[0].mxu0 %v756
      %v949 = vpop.f32.mrb[0].mxu0
      %v950 = vadd.f32 0.0, %v949
      %v951 = vpop.f32.mrb[0].mxu0
      %952 = vmatprep.mubr.f32.mxu0 0.0
      %953 = vmatmul.mubr.f32.gmra.mrb[0].mxu0 %v759
      %v954 = vpop.f32.mrb[0].mxu0
      %v955 = vadd.f32 0.0, %v954
      %v956 = vpop.f32.mrb[0].mxu0
      %957 = vmatprep.mubr.f32.mxu0 0.0
      %958 = vmatmul.mubr.f32.gmra.mrb[0].mxu0 %v762
      %v959 = vpop.f32.mrb[0].mxu0
      %v960 = vadd.f32 0.0, %v959
      %v961 = vpop.f32.mrb[0].mxu0
      %962 = vmatprep.mubr.f32.mxu0 0.0
      %963 = vmatmul.mubr.f32.gmra.mrb[0].mxu0 %v765
      %v964 = vpop.f32.mrb[0].mxu0
      %v965 = vadd.f32 0.0, %v964
      %v966 = vpop.f32.mrb[0].mxu0
      %967 = vmatprep.mubr.f32.mxu0 0.0
      %968 = vmatmul.mubr.f32.gmra.mrb[0].mxu0 %v768
      %v969 = vpop.f32.mrb[0].mxu0
      %v970 = vadd.f32 0.0, %v969
      %v971 = vpop.f32.mrb[0].mxu0
      %972 = vmatprep.mubr.f32.mxu0 0.0
      %973 = vmatmul.mubr.f32.gmra.mrb[0].mxu0 %v771
      %v974 = vpop.f32.mrb[0].mxu0
      %v975 = vadd.f32 0.0, %v974
      %v976 = vpop.f32.mrb[0].mxu0
      %977 = vmatprep.mubr.f32.mxu0 0.0
      %978 = vmatmul.mubr.f32.gmra.mrb[0].mxu0 %v774
      %v979 = vpop.f32.mrb[0].mxu0
      %v980 = vadd.f32 0.0, %v979
      %v981 = vpop.f32.mrb[0].mxu0
      %982 = vmatprep.mubr.f32.mxu0 0.0
      %983 = vmatmul.mubr.f32.gmra.mrb[0].mxu0 %v777
      %v984 = vpop.f32.mrb[0].mxu0
      %v985 = vadd.f32 0.0, %v984
      %v986 = vpop.f32.mrb[0].mxu0
      %987 = vmatprep.mubr.f32.mxu0 0.0
      %988 = vmatmul.mubr.f32.gmra.mrb[0].mxu0 %v780
      %v989 = vpop.f32.mrb[0].mxu0
      %v990 = vadd.f32 0.0, %v989
      %v991 = vpop.f32.mrb[0].mxu0
      %992 = vmatprep.mubr.f32.mxu0 0.0
      %993 = vmatmul.mubr.f32.gmra.mrb[0].mxu0 %v783
      %v994 = vpop.f32.mrb[0].mxu0
      %v995 = vadd.f32 0.0, %v994
      %v996 = vpop.f32.mrb[0].mxu0
      %997 = vmatprep.mubr.f32.mxu0 0.0
      %998 = vmatmul.mubr.f32.gmra.mrb[0].mxu0 %v786
      %v999 = vpop.f32.mrb[0].mxu0
      %v1000 = vadd.f32 0.0, %v999
      %v1001 = vpop.f32.mrb[0].mxu0
      %1002 = vmatprep.mubr.f32.mxu0 0.0
      %1003 = vmatmul.mubr.f32.gmra.mrb[0].mxu0 %v789
      %v1004 = vpop.f32.mrb[0].mxu0
      %v1005 = vadd.f32 0.0, %v1004
      %v1006 = vpop.f32.mrb[0].mxu0
      %1007 = vmatprep.mubr.f32.mxu0 0.0
      %1008 = vmatmul.mubr.f32.gmra.mrb[0].mxu0 %v792
      %v1009 = vpop.f32.mrb[0].mxu0
      %v1010 = vadd.f32 0.0, %v1009
      %v1011 = vpop.f32.mrb[0].mxu0
      %1012 = vmatprep.mubr.f32.mxu0 0.0
      %1013 = vmatmul.mubr.f32.gmra.mrb[0].mxu0 %v795
      %v1014 = vpop.f32.mrb[0].mxu0
      %v1015 = vadd.f32 0.0, %v1014
      %v1016 = vpop.f32.mrb[0].mxu0
      %1017 = vmatprep.mubr.f32.mxu0 0.0
      %1018 = vmatmul.mubr.f32.gmra.mrb[0].mxu0 %v798
      %v1019 = vpop.f32.mrb[0].mxu0
      %v1020 = vadd.f32 0.0, %v1019
      %v1021 = vpop.f32.mrb[0].mxu0
      %1022 = vmatprep.mubr.f32.mxu0 0.0
      %1023 = vmatmul.mubr.f32.gmra.mrb[0].mxu0 %v801
      %v1024 = vpop.f32.mrb[0].mxu0
      %v1025 = vadd.f32 0.0, %v1024
      %v1026 = vpop.f32.mrb[0].mxu0
      %1027 = vmatprep.mubr.f32.mxu0 0.0
      %1028 = vmatmul.mubr.f32.gmra.mrb[0].mxu0 %v804
      %v1029 = vpop.f32.mrb[0].mxu0
      %v1030 = vadd.f32 0.0, %v1029
      %v1031 = vpop.f32.mrb[0].mxu0
      %1032 = vmatprep.mubr.f32.mxu0 0.0
      %1033 = vmatmul.mubr.f32.gmra.mrb[0].mxu0 %v807
      %v1034 = vpop.f32.mrb[0].mxu0
      %v1035 = vadd.f32 0.0, %v1034
      %v1036 = vpop.f32.mrb[0].mxu0
      %1037 = vdwg.mxu0
      %v1039 = vsel %vm353, %v647, 0
      %v1042 = vsel %vm353, %v648, 0
      %v1045 = vsel %vm353, %v649, 0
      %v1048 = vsel %vm353, %v650, 0
      %v1051 = vsel %vm353, %v651, 0
      %v1054 = vsel %vm353, %v652, 0
      %v1057 = vsel %vm353, %v653, 0
      %v1060 = vsel %vm353, %v654, 0
      %v1063 = vsel %vm353, %v655, 0
      %v1066 = vsel %vm353, %v656, 0
      %v1069 = vsel %vm353, %v657, 0
      %v1072 = vsel %vm353, %v658, 0
      %v1075 = vsel %vm353, %v659, 0
      %v1078 = vsel %vm353, %v660, 0
      %v1081 = vsel %vm353, %v661, 0
      %v1084 = vsel %vm353, %v662, 0
      %v1087 = vsel %vm353, %v663, 0
      %v1090 = vsel %vm353, %v664, 0
      %v1093 = vsel %vm353, %v665, 0
      %v1096 = vsel %vm353, %v666, 0
      %v1099 = vsel %vm353, %v667, 0
      %v1102 = vsel %vm353, %v668, 0
      %v1105 = vsel %vm353, %v669, 0
      %v1108 = vsel %vm353, %v670, 0
      %v1111 = vsel %vm353, %v671, 0
      %v1114 = vsel %vm353, %v672, 0
      %v1117 = vsel %vm353, %v673, 0
      %v1120 = vsel %vm353, %v674, 0
      %v1123 = vsel %vm353, %v675, 0
      %v1126 = vsel %vm353, %v676, 0
      %v1129 = vsel %vm353, %v677, 0
      %v1132 = vsel %vm353, %v678, 0
      %v1135 = vsel %vm809, %v711, 0
      %1137 = vmatprep.subr.mxu0 0.0
      %1138 = vmatpush1.msra.mxu0 %v1135
      %1139 = vmatprep.subr.mxu0 0.0
      %1140 = vmatpush1.msra.mxu0 0.0
      %1141 = vmatprep.subr.mxu0 0.0
      %1142 = vmatpush1.msra.mxu0 0.0
      %1143 = vmatprep.subr.mxu0 0.0
      %1144 = vmatpush1.msra.mxu0 0.0
      %1145 = vmatprep.subr.mxu0 0.0
      %1146 = vmatpush1.msra.mxu0 0.0
      %1147 = vmatprep.subr.mxu0 0.0
      %1148 = vmatpush1.msra.mxu0 0.0
      %1149 = vmatprep.subr.mxu0 0.0
      %1150 = vmatpush1.msra.mxu0 0.0
      %1151 = vmatprep.subr.mxu0 0.0
      %1152 = vmatpush1.msra.mxu0 0.0
      %1153 = vmatprep.subr.mxu0 0.0
      %1154 = vmatpush1.msra.mxu0 0.0
      %1155 = vmatprep.subr.mxu0 0.0
      %1156 = vmatpush1.msra.mxu0 0.0
      %1157 = vmatprep.subr.mxu0 0.0
      %1158 = vmatpush1.msra.mxu0 0.0
      %1159 = vmatprep.subr.mxu0 0.0
      %1160 = vmatpush1.msra.mxu0 0.0
      %1161 = vmatprep.subr.mxu0 0.0
      %1162 = vmatpush1.msra.mxu0 0.0
      %1163 = vmatprep.subr.mxu0 0.0
      %1164 = vmatpush1.msra.mxu0 0.0
      %1165 = vmatprep.subr.mxu0 0.0
      %1166 = vmatpush1.msra.mxu0 0.0
      %1167 = vmatprep.subr.mxu0 0.0
      %1168 = vmatpush1.msra.mxu0 0.0
      %1169 = vmatprep.subr.mxu0 0.0
      %1170 = vmatpush1.msra.mxu0 0.0
      %1171 = vmatprep.subr.mxu0 0.0
      %1172 = vmatpush1.msra.mxu0 0.0
      %1173 = vmatprep.subr.mxu0 0.0
      %1174 = vmatpush1.msra.mxu0 0.0
      %1175 = vmatprep.subr.mxu0 0.0
      %1176 = vmatpush1.msra.mxu0 0.0
      %1177 = vmatprep.subr.mxu0 0.0
      %1178 = vmatpush1.msra.mxu0 0.0
      %1179 = vmatprep.subr.mxu0 0.0
      %1180 = vmatpush1.msra.mxu0 0.0
      %1181 = vmatprep.subr.mxu0 0.0
      %1182 = vmatpush1.msra.mxu0 0.0
      %1183 = vmatprep.subr.mxu0 0.0
      %1184 = vmatpush1.msra.mxu0 0.0
      %1185 = vmatprep.subr.mxu0 0.0
      %1186 = vmatpush1.msra.mxu0 0.0
      %1187 = vmatprep.subr.mxu0 0.0
      %1188 = vmatpush1.msra.mxu0 0.0
      %1189 = vmatprep.subr.mxu0 0.0
      %1190 = vmatpush1.msra.mxu0 0.0
      %1191 = vmatprep.subr.mxu0 0.0
      %1192 = vmatpush1.msra.mxu0 0.0
      %1193 = vmatprep.subr.mxu0 0.0
      %1194 = vmatpush1.msra.mxu0 0.0
      %1195 = vmatprep.subr.mxu0 0.0
      %1196 = vmatpush1.msra.mxu0 0.0
      %1197 = vmatprep.subr.mxu0 0.0
      %1198 = vmatpush1.msra.mxu0 0.0
      %1199 = vmatprep.subr.mxu0 0.0
      %1200 = vmatpush1.msra.mxu0 0.0
      %1201 = vmatprep.mubr.f32.mxu0 0.0
      %1202 = vmatmul.mubr.f32.gmra.mrb[0].mxu0 %v1039
      %v1203 = vpop.f32.mrb[0].mxu0
      %v1204 = vadd.f32 %v880, %v1203
      %v1205 = vpop.f32.mrb[0].mxu0
      %1206 = vmatprep.mubr.f32.mxu0 0.0
      %1207 = vmatmul.mubr.f32.gmra.mrb[0].mxu0 %v1042
      %v1208 = vpop.f32.mrb[0].mxu0
      %v1209 = vadd.f32 %v885, %v1208
      %v1210 = vpop.f32.mrb[0].mxu0
      %1211 = vmatprep.mubr.f32.mxu0 0.0
      %1212 = vmatmul.mubr.f32.gmra.mrb[0].mxu0 %v1045
      %v1213 = vpop.f32.mrb[0].mxu0
      %v1214 = vadd.f32 %v890, %v1213
      %v1215 = vpop.f32.mrb[0].mxu0
      %1216 = vmatprep.mubr.f32.mxu0 0.0
      %1217 = vmatmul.mubr.f32.gmra.mrb[0].mxu0 %v1048
      %v1218 = vpop.f32.mrb[0].mxu0
      %v1219 = vadd.f32 %v895, %v1218
      %v1220 = vpop.f32.mrb[0].mxu0
      %1221 = vmatprep.mubr.f32.mxu0 0.0
      %1222 = vmatmul.mubr.f32.gmra.mrb[0].mxu0 %v1051
      %v1223 = vpop.f32.mrb[0].mxu0
      %v1224 = vadd.f32 %v900, %v1223
      %v1225 = vpop.f32.mrb[0].mxu0
      %1226 = vmatprep.mubr.f32.mxu0 0.0
      %1227 = vmatmul.mubr.f32.gmra.mrb[0].mxu0 %v1054
      %v1228 = vpop.f32.mrb[0].mxu0
      %v1229 = vadd.f32 %v905, %v1228
      %v1230 = vpop.f32.mrb[0].mxu0
      %1231 = vmatprep.mubr.f32.mxu0 0.0
      %1232 = vmatmul.mubr.f32.gmra.mrb[0].mxu0 %v1057
      %v1233 = vpop.f32.mrb[0].mxu0
      %v1234 = vadd.f32 %v910, %v1233
      %v1235 = vpop.f32.mrb[0].mxu0
      %1236 = vmatprep.mubr.f32.mxu0 0.0
      %1237 = vmatmul.mubr.f32.gmra.mrb[0].mxu0 %v1060
      %v1238 = vpop.f32.mrb[0].mxu0
      %v1239 = vadd.f32 %v915, %v1238
      %v1240 = vpop.f32.mrb[0].mxu0
      %1241 = vmatprep.mubr.f32.mxu0 0.0
      %1242 = vmatmul.mubr.f32.gmra.mrb[0].mxu0 %v1063
      %v1243 = vpop.f32.mrb[0].mxu0
      %v1244 = vadd.f32 %v920, %v1243
      %v1245 = vpop.f32.mrb[0].mxu0
      %1246 = vmatprep.mubr.f32.mxu0 0.0
      %1247 = vmatmul.mubr.f32.gmra.mrb[0].mxu0 %v1066
      %v1248 = vpop.f32.mrb[0].mxu0
      %v1249 = vadd.f32 %v925, %v1248
      %v1250 = vpop.f32.mrb[0].mxu0
      %1251 = vmatprep.mubr.f32.mxu0 0.0
      %1252 = vmatmul.mubr.f32.gmra.mrb[0].mxu0 %v1069
      %v1253 = vpop.f32.mrb[0].mxu0
      %v1254 = vadd.f32 %v930, %v1253
      %v1255 = vpop.f32.mrb[0].mxu0
      %1256 = vmatprep.mubr.f32.mxu0 0.0
      %1257 = vmatmul.mubr.f32.gmra.mrb[0].mxu0 %v1072
      %v1258 = vpop.f32.mrb[0].mxu0
      %v1259 = vadd.f32 %v935, %v1258
      %v1260 = vpop.f32.mrb[0].mxu0
      %1261 = vmatprep.mubr.f32.mxu0 0.0
      %1262 = vmatmul.mubr.f32.gmra.mrb[0].mxu0 %v1075
      %v1263 = vpop.f32.mrb[0].mxu0
      %v1264 = vadd.f32 %v940, %v1263
      %v1265 = vpop.f32.mrb[0].mxu0
      %1266 = vmatprep.mubr.f32.mxu0 0.0
      %1267 = vmatmul.mubr.f32.gmra.mrb[0].mxu0 %v1078
      %v1268 = vpop.f32.mrb[0].mxu0
      %v1269 = vadd.f32 %v945, %v1268
      %v1270 = vpop.f32.mrb[0].mxu0
      %1271 = vmatprep.mubr.f32.mxu0 0.0
      %1272 = vmatmul.mubr.f32.gmra.mrb[0].mxu0 %v1081
      %v1273 = vpop.f32.mrb[0].mxu0
      %v1274 = vadd.f32 %v950, %v1273
      %v1275 = vpop.f32.mrb[0].mxu0
      %1276 = vmatprep.mubr.f32.mxu0 0.0
      %1277 = vmatmul.mubr.f32.gmra.mrb[0].mxu0 %v1084
      %v1278 = vpop.f32.mrb[0].mxu0
      %v1279 = vadd.f32 %v955, %v1278
      %v1280 = vpop.f32.mrb[0].mxu0
      %1281 = vmatprep.mubr.f32.mxu0 0.0
      %1282 = vmatmul.mubr.f32.gmra.mrb[0].mxu0 %v1087
      %v1283 = vpop.f32.mrb[0].mxu0
      %v1284 = vadd.f32 %v960, %v1283
      %v1285 = vpop.f32.mrb[0].mxu0
      %1286 = vmatprep.mubr.f32.mxu0 0.0
      %1287 = vmatmul.mubr.f32.gmra.mrb[0].mxu0 %v1090
      %v1288 = vpop.f32.mrb[0].mxu0
      %v1289 = vadd.f32 %v965, %v1288
      %v1290 = vpop.f32.mrb[0].mxu0
      %1291 = vmatprep.mubr.f32.mxu0 0.0
      %1292 = vmatmul.mubr.f32.gmra.mrb[0].mxu0 %v1093
      %v1293 = vpop.f32.mrb[0].mxu0
      %v1294 = vadd.f32 %v970, %v1293
      %v1295 = vpop.f32.mrb[0].mxu0
      %1296 = vmatprep.mubr.f32.mxu0 0.0
      %1297 = vmatmul.mubr.f32.gmra.mrb[0].mxu0 %v1096
      %v1298 = vpop.f32.mrb[0].mxu0
      %v1299 = vadd.f32 %v975, %v1298
      %v1300 = vpop.f32.mrb[0].mxu0
      %1301 = vmatprep.mubr.f32.mxu0 0.0
      %1302 = vmatmul.mubr.f32.gmra.mrb[0].mxu0 %v1099
      %v1303 = vpop.f32.mrb[0].mxu0
      %v1304 = vadd.f32 %v980, %v1303
      %v1305 = vpop.f32.mrb[0].mxu0
      %1306 = vmatprep.mubr.f32.mxu0 0.0
      %1307 = vmatmul.mubr.f32.gmra.mrb[0].mxu0 %v1102
      %v1308 = vpop.f32.mrb[0].mxu0
      %v1309 = vadd.f32 %v985, %v1308
      %v1310 = vpop.f32.mrb[0].mxu0
      %1311 = vmatprep.mubr.f32.mxu0 0.0
      %1312 = vmatmul.mubr.f32.gmra.mrb[0].mxu0 %v1105
      %v1313 = vpop.f32.mrb[0].mxu0
      %v1314 = vadd.f32 %v990, %v1313
      %v1315 = vpop.f32.mrb[0].mxu0
      %1316 = vmatprep.mubr.f32.mxu0 0.0
      %1317 = vmatmul.mubr.f32.gmra.mrb[0].mxu0 %v1108
      %v1318 = vpop.f32.mrb[0].mxu0
      %v1319 = vadd.f32 %v995, %v1318
      %v1320 = vpop.f32.mrb[0].mxu0
      %1321 = vmatprep.mubr.f32.mxu0 0.0
      %1322 = vmatmul.mubr.f32.gmra.mrb[0].mxu0 %v1111
      %v1323 = vpop.f32.mrb[0].mxu0
      %v1324 = vadd.f32 %v1000, %v1323
      %v1325 = vpop.f32.mrb[0].mxu0
      %1326 = vmatprep.mubr.f32.mxu0 0.0
      %1327 = vmatmul.mubr.f32.gmra.mrb[0].mxu0 %v1114
      %v1328 = vpop.f32.mrb[0].mxu0
      %v1329 = vadd.f32 %v1005, %v1328
      %v1330 = vpop.f32.mrb[0].mxu0
      %1331 = vmatprep.mubr.f32.mxu0 0.0
      %1332 = vmatmul.mubr.f32.gmra.mrb[0].mxu0 %v1117
      %v1333 = vpop.f32.mrb[0].mxu0
      %v1334 = vadd.f32 %v1010, %v1333
      %v1335 = vpop.f32.mrb[0].mxu0
      %1336 = vmatprep.mubr.f32.mxu0 0.0
      %1337 = vmatmul.mubr.f32.gmra.mrb[0].mxu0 %v1120
      %v1338 = vpop.f32.mrb[0].mxu0
      %v1339 = vadd.f32 %v1015, %v1338
      %v1340 = vpop.f32.mrb[0].mxu0
      %1341 = vmatprep.mubr.f32.mxu0 0.0
      %1342 = vmatmul.mubr.f32.gmra.mrb[0].mxu0 %v1123
      %v1343 = vpop.f32.mrb[0].mxu0
      %v1344 = vadd.f32 %v1020, %v1343
      %v1345 = vpop.f32.mrb[0].mxu0
      %1346 = vmatprep.mubr.f32.mxu0 0.0
      %1347 = vmatmul.mubr.f32.gmra.mrb[0].mxu0 %v1126
      %v1348 = vpop.f32.mrb[0].mxu0
      %v1349 = vadd.f32 %v1025, %v1348
      %v1350 = vpop.f32.mrb[0].mxu0
      %1351 = vmatprep.mubr.f32.mxu0 0.0
      %1352 = vmatmul.mubr.f32.gmra.mrb[0].mxu0 %v1129
      %v1353 = vpop.f32.mrb[0].mxu0
      %v1354 = vadd.f32 %v1030, %v1353
      %v1355 = vpop.f32.mrb[0].mxu0
      %1356 = vmatprep.mubr.f32.mxu0 0.0
      %1357 = vmatmul.mubr.f32.gmra.mrb[0].mxu0 %v1132
      %v1358 = vpop.f32.mrb[0].mxu0
      %v1359 = vadd.f32 %v1035, %v1358
      %v1360 = vpop.f32.mrb[0].mxu0
      %1361 = vdwg.mxu0
      %v1362 = vld [vmem:[#allocation2 + $0x1] sm:$0xff]
      %v1363 = vld [vmem:[#allocation2 + $0x9] sm:$0xff]
      %v1364 = vld [vmem:[#allocation2 + $0x19] sm:$0xff]
      %v1365 = vld [vmem:[#allocation2 + $0x21] sm:$0xff]
      %v1366 = vld [vmem:[#allocation2 + $0x31] sm:$0xff]
      %v1367 = vld [vmem:[#allocation2 + $0x39] sm:$0xff]
      %v1368 = vld [vmem:[#allocation2 + $0x49] sm:$0xff]
      %v1369 = vld [vmem:[#allocation2 + $0x51] sm:$0xff]
      %v1370 = vld [vmem:[#allocation2 + $0x61] sm:$0xff]
      %v1371 = vld [vmem:[#allocation2 + $0x69] sm:$0xff]
      %v1372 = vld [vmem:[#allocation2 + $0x79] sm:$0xff]
      %v1373 = vld [vmem:[#allocation2 + $0x81] sm:$0xff]
      %v1374 = vld [vmem:[#allocation2 + $0x91] sm:$0xff]
      %v1375 = vld [vmem:[#allocation2 + $0x99] sm:$0xff]
      %v1376 = vld [vmem:[#allocation2 + $0xa9] sm:$0xff]
      %v1377 = vld [vmem:[#allocation2 + $0xb1] sm:$0xff]
      %v1378 = vld [vmem:[#allocation2 + $0xc1] sm:$0xff]
      %v1379 = vld [vmem:[#allocation2 + $0xc9] sm:$0xff]
      %v1380 = vld [vmem:[#allocation2 + $0xd9] sm:$0xff]
      %v1381 = vld [vmem:[#allocation2 + $0xe1] sm:$0xff]
      %v1382 = vld [vmem:[#allocation2 + $0xf1] sm:$0xff]
      %v1383 = vld [vmem:[#allocation2 + $0xf9] sm:$0xff]
      %v1384 = vld [vmem:[#allocation2 + $0x109] sm:$0xff]
      %v1385 = vld [vmem:[#allocation2 + $0x111] sm:$0xff]
      %v1386 = vld [vmem:[#allocation2 + $0x121] sm:$0xff]
      %v1387 = vld [vmem:[#allocation2 + $0x129] sm:$0xff]
      %v1388 = vld [vmem:[#allocation2 + $0x139] sm:$0xff]
      %v1389 = vld [vmem:[#allocation2 + $0x141] sm:$0xff]
      %v1390 = vld [vmem:[#allocation2 + $0x151] sm:$0xff]
      %v1391 = vld [vmem:[#allocation2 + $0x159] sm:$0xff]
      %v1392 = vld [vmem:[#allocation2 + $0x169] sm:$0xff]
      %v1393 = vld [vmem:[#allocation2 + $0x171] sm:$0xff]
      %v1394 = vld [vmem:[#allocation3 + $0x1] sm:$0xff]
      %v1395 = vld [vmem:[#allocation3 + $0x9] sm:$0xff]
      %v1396 = vld [vmem:[#allocation3 + $0x19] sm:$0xff]
      %v1397 = vld [vmem:[#allocation3 + $0x21] sm:$0xff]
      %v1398 = vld [vmem:[#allocation3 + $0x31] sm:$0xff]
      %v1399 = vld [vmem:[#allocation3 + $0x39] sm:$0xff]
      %v1400 = vld [vmem:[#allocation3 + $0x49] sm:$0xff]
      %v1401 = vld [vmem:[#allocation3 + $0x51] sm:$0xff]
      %v1402 = vld [vmem:[#allocation3 + $0x61] sm:$0xff]
      %v1403 = vld [vmem:[#allocation3 + $0x69] sm:$0xff]
      %v1404 = vld [vmem:[#allocation3 + $0x79] sm:$0xff]
      %v1405 = vld [vmem:[#allocation3 + $0x81] sm:$0xff]
      %v1406 = vld [vmem:[#allocation3 + $0x91] sm:$0xff]
      %v1407 = vld [vmem:[#allocation3 + $0x99] sm:$0xff]
      %v1408 = vld [vmem:[#allocation3 + $0xa9] sm:$0xff]
      %v1409 = vld [vmem:[#allocation3 + $0xb1] sm:$0xff]
      %v1410 = vld [vmem:[#allocation3 + $0xc1] sm:$0xff]
      %v1411 = vld [vmem:[#allocation3 + $0xc9] sm:$0xff]
      %v1412 = vld [vmem:[#allocation3 + $0xd9] sm:$0xff]
      %v1413 = vld [vmem:[#allocation3 + $0xe1] sm:$0xff]
      %v1414 = vld [vmem:[#allocation3 + $0xf1] sm:$0xff]
      %v1415 = vld [vmem:[#allocation3 + $0xf9] sm:$0xff]
      %v1416 = vld [vmem:[#allocation3 + $0x109] sm:$0xff]
      %v1417 = vld [vmem:[#allocation3 + $0x111] sm:$0xff]
      %v1418 = vld [vmem:[#allocation3 + $0x121] sm:$0xff]
      %v1419 = vld [vmem:[#allocation3 + $0x129] sm:$0xff]
      %v1420 = vld [vmem:[#allocation3 + $0x139] sm:$0xff]
      %v1421 = vld [vmem:[#allocation3 + $0x141] sm:$0xff]
      %v1422 = vld [vmem:[#allocation3 + $0x151] sm:$0xff]
      %v1423 = vld [vmem:[#allocation3 + $0x159] sm:$0xff]
      %v1424 = vld [vmem:[#allocation3 + $0x169] sm:$0xff]
      %v1425 = vld [vmem:[#allocation3 + $0x171] sm:$0xff]
      %s1426 = scalar_lea.vmem %s2, 4
      %v1427 = vld [vmem:[%s1426] sm:$0xf]
      %v1429 = vsel %vm353, %v1362, 0
      %v1432 = vsel %vm353, %v1363, 0
      %v1435 = vsel %vm353, %v1364, 0
      %v1438 = vsel %vm353, %v1365, 0
      %v1441 = vsel %vm353, %v1366, 0
      %v1444 = vsel %vm353, %v1367, 0
      %v1447 = vsel %vm353, %v1368, 0
      %v1450 = vsel %vm353, %v1369, 0
      %v1453 = vsel %vm353, %v1370, 0
      %v1456 = vsel %vm353, %v1371, 0
      %v1459 = vsel %vm353, %v1372, 0
      %v1462 = vsel %vm353, %v1373, 0
      %v1465 = vsel %vm353, %v1374, 0
      %v1468 = vsel %vm353, %v1375, 0
      %v1471 = vsel %vm353, %v1376, 0
      %v1474 = vsel %vm353, %v1377, 0
      %v1477 = vsel %vm353, %v1378, 0
      %v1480 = vsel %vm353, %v1379, 0
      %v1483 = vsel %vm353, %v1380, 0
      %v1486 = vsel %vm353, %v1381, 0
      %v1489 = vsel %vm353, %v1382, 0
      %v1492 = vsel %vm353, %v1383, 0
      %v1495 = vsel %vm353, %v1384, 0
      %v1498 = vsel %vm353, %v1385, 0
      %v1501 = vsel %vm353, %v1386, 0
      %v1504 = vsel %vm353, %v1387, 0
      %v1507 = vsel %vm353, %v1388, 0
      %v1510 = vsel %vm353, %v1389, 0
      %v1513 = vsel %vm353, %v1390, 0
      %v1516 = vsel %vm353, %v1391, 0
      %v1519 = vsel %vm353, %v1392, 0
      %v1522 = vsel %vm353, %v1393, 0
      %v1525 = vsel %vm809, %v1427, 0
      %1527 = vmatprep.subr.mxu0 0.0
      %1528 = vmatpush1.msra.mxu0 %v1525
      %1529 = vmatprep.subr.mxu0 0.0
      %1530 = vmatpush1.msra.mxu0 0.0
      %1531 = vmatprep.subr.mxu0 0.0
      %1532 = vmatpush1.msra.mxu0 0.0
      %1533 = vmatprep.subr.mxu0 0.0
      %1534 = vmatpush1.msra.mxu0 0.0
      %1535 = vmatprep.subr.mxu0 0.0
      %1536 = vmatpush1.msra.mxu0 0.0
      %1537 = vmatprep.subr.mxu0 0.0
      %1538 = vmatpush1.msra.mxu0 0.0
      %1539 = vmatprep.subr.mxu0 0.0
      %1540 = vmatpush1.msra.mxu0 0.0
      %1541 = vmatprep.subr.mxu0 0.0
      %1542 = vmatpush1.msra.mxu0 0.0
      %1543 = vmatprep.subr.mxu0 0.0
      %1544 = vmatpush1.msra.mxu0 0.0
      %1545 = vmatprep.subr.mxu0 0.0
      %1546 = vmatpush1.msra.mxu0 0.0
      %1547 = vmatprep.subr.mxu0 0.0
      %1548 = vmatpush1.msra.mxu0 0.0
      %1549 = vmatprep.subr.mxu0 0.0
      %1550 = vmatpush1.msra.mxu0 0.0
      %1551 = vmatprep.subr.mxu0 0.0
      %1552 = vmatpush1.msra.mxu0 0.0
      %1553 = vmatprep.subr.mxu0 0.0
      %1554 = vmatpush1.msra.mxu0 0.0
      %1555 = vmatprep.subr.mxu0 0.0
      %1556 = vmatpush1.msra.mxu0 0.0
      %1557 = vmatprep.subr.mxu0 0.0
      %1558 = vmatpush1.msra.mxu0 0.0
      %1559 = vmatprep.subr.mxu0 0.0
      %1560 = vmatpush1.msra.mxu0 0.0
      %1561 = vmatprep.subr.mxu0 0.0
      %1562 = vmatpush1.msra.mxu0 0.0
      %1563 = vmatprep.subr.mxu0 0.0
      %1564 = vmatpush1.msra.mxu0 0.0
      %1565 = vmatprep.subr.mxu0 0.0
      %1566 = vmatpush1.msra.mxu0 0.0
      %1567 = vmatprep.subr.mxu0 0.0
      %1568 = vmatpush1.msra.mxu0 0.0
      %1569 = vmatprep.subr.mxu0 0.0
      %1570 = vmatpush1.msra.mxu0 0.0
      %1571 = vmatprep.subr.mxu0 0.0
      %1572 = vmatpush1.msra.mxu0 0.0
      %1573 = vmatprep.subr.mxu0 0.0
      %1574 = vmatpush1.msra.mxu0 0.0
      %1575 = vmatprep.subr.mxu0 0.0
      %1576 = vmatpush1.msra.mxu0 0.0
      %1577 = vmatprep.subr.mxu0 0.0
      %1578 = vmatpush1.msra.mxu0 0.0
      %1579 = vmatprep.subr.mxu0 0.0
      %1580 = vmatpush1.msra.mxu0 0.0
      %1581 = vmatprep.subr.mxu0 0.0
      %1582 = vmatpush1.msra.mxu0 0.0
      %1583 = vmatprep.subr.mxu0 0.0
      %1584 = vmatpush1.msra.mxu0 0.0
      %1585 = vmatprep.subr.mxu0 0.0
      %1586 = vmatpush1.msra.mxu0 0.0
      %1587 = vmatprep.subr.mxu0 0.0
      %1588 = vmatpush1.msra.mxu0 0.0
      %1589 = vmatprep.subr.mxu0 0.0
      %1590 = vmatpush1.msra.mxu0 0.0
      %1591 = vmatprep.mubr.f32.mxu0 0.0
      %1592 = vmatmul.mubr.f32.gmra.mrb[0].mxu0 %v1429
      %v1593 = vpop.f32.mrb[0].mxu0
      %v1594 = vadd.f32 0.0, %v1593
      %v1595 = vpop.f32.mrb[0].mxu0
      %1596 = vmatprep.mubr.f32.mxu0 0.0
      %1597 = vmatmul.mubr.f32.gmra.mrb[0].mxu0 %v1432
      %v1598 = vpop.f32.mrb[0].mxu0
      %v1599 = vadd.f32 0.0, %v1598
      %v1600 = vpop.f32.mrb[0].mxu0
      %1601 = vmatprep.mubr.f32.mxu0 0.0
      %1602 = vmatmul.mubr.f32.gmra.mrb[0].mxu0 %v1435
      %v1603 = vpop.f32.mrb[0].mxu0
      %v1604 = vadd.f32 0.0, %v1603
      %v1605 = vpop.f32.mrb[0].mxu0
      %1606 = vmatprep.mubr.f32.mxu0 0.0
      %1607 = vmatmul.mubr.f32.gmra.mrb[0].mxu0 %v1438
      %v1608 = vpop.f32.mrb[0].mxu0
      %v1609 = vadd.f32 0.0, %v1608
      %v1610 = vpop.f32.mrb[0].mxu0
      %1611 = vmatprep.mubr.f32.mxu0 0.0
      %1612 = vmatmul.mubr.f32.gmra.mrb[0].mxu0 %v1441
      %v1613 = vpop.f32.mrb[0].mxu0
      %v1614 = vadd.f32 0.0, %v1613
      %v1615 = vpop.f32.mrb[0].mxu0
      %1616 = vmatprep.mubr.f32.mxu0 0.0
      %1617 = vmatmul.mubr.f32.gmra.mrb[0].mxu0 %v1444
      %v1618 = vpop.f32.mrb[0].mxu0
      %v1619 = vadd.f32 0.0, %v1618
      %v1620 = vpop.f32.mrb[0].mxu0
      %1621 = vmatprep.mubr.f32.mxu0 0.0
      %1622 = vmatmul.mubr.f32.gmra.mrb[0].mxu0 %v1447
      %v1623 = vpop.f32.mrb[0].mxu0
      %v1624 = vadd.f32 0.0, %v1623
      %v1625 = vpop.f32.mrb[0].mxu0
      %1626 = vmatprep.mubr.f32.mxu0 0.0
      %1627 = vmatmul.mubr.f32.gmra.mrb[0].mxu0 %v1450
      %v1628 = vpop.f32.mrb[0].mxu0
      %v1629 = vadd.f32 0.0, %v1628
      %v1630 = vpop.f32.mrb[0].mxu0
      %1631 = vmatprep.mubr.f32.mxu0 0.0
      %1632 = vmatmul.mubr.f32.gmra.mrb[0].mxu0 %v1453
      %v1633 = vpop.f32.mrb[0].mxu0
      %v1634 = vadd.f32 0.0, %v1633
      %v1635 = vpop.f32.mrb[0].mxu0
      %1636 = vmatprep.mubr.f32.mxu0 0.0
      %1637 = vmatmul.mubr.f32.gmra.mrb[0].mxu0 %v1456
      %v1638 = vpop.f32.mrb[0].mxu0
      %v1639 = vadd.f32 0.0, %v1638
      %v1640 = vpop.f32.mrb[0].mxu0
      %1641 = vmatprep.mubr.f32.mxu0 0.0
      %1642 = vmatmul.mubr.f32.gmra.mrb[0].mxu0 %v1459
      %v1643 = vpop.f32.mrb[0].mxu0
      %v1644 = vadd.f32 0.0, %v1643
      %v1645 = vpop.f32.mrb[0].mxu0
      %1646 = vmatprep.mubr.f32.mxu0 0.0
      %1647 = vmatmul.mubr.f32.gmra.mrb[0].mxu0 %v1462
      %v1648 = vpop.f32.mrb[0].mxu0
      %v1649 = vadd.f32 0.0, %v1648
      %v1650 = vpop.f32.mrb[0].mxu0
      %1651 = vmatprep.mubr.f32.mxu0 0.0
      %1652 = vmatmul.mubr.f32.gmra.mrb[0].mxu0 %v1465
      %v1653 = vpop.f32.mrb[0].mxu0
      %v1654 = vadd.f32 0.0, %v1653
      %v1655 = vpop.f32.mrb[0].mxu0
      %1656 = vmatprep.mubr.f32.mxu0 0.0
      %1657 = vmatmul.mubr.f32.gmra.mrb[0].mxu0 %v1468
      %v1658 = vpop.f32.mrb[0].mxu0
      %v1659 = vadd.f32 0.0, %v1658
      %v1660 = vpop.f32.mrb[0].mxu0
      %1661 = vmatprep.mubr.f32.mxu0 0.0
      %1662 = vmatmul.mubr.f32.gmra.mrb[0].mxu0 %v1471
      %v1663 = vpop.f32.mrb[0].mxu0
      %v1664 = vadd.f32 0.0, %v1663
      %v1665 = vpop.f32.mrb[0].mxu0
      %1666 = vmatprep.mubr.f32.mxu0 0.0
      %1667 = vmatmul.mubr.f32.gmra.mrb[0].mxu0 %v1474
      %v1668 = vpop.f32.mrb[0].mxu0
      %v1669 = vadd.f32 0.0, %v1668
      %v1670 = vpop.f32.mrb[0].mxu0
      %1671 = vmatprep.mubr.f32.mxu0 0.0
      %1672 = vmatmul.mubr.f32.gmra.mrb[0].mxu0 %v1477
      %v1673 = vpop.f32.mrb[0].mxu0
      %v1674 = vadd.f32 0.0, %v1673
      %v1675 = vpop.f32.mrb[0].mxu0
      %1676 = vmatprep.mubr.f32.mxu0 0.0
      %1677 = vmatmul.mubr.f32.gmra.mrb[0].mxu0 %v1480
      %v1678 = vpop.f32.mrb[0].mxu0
      %v1679 = vadd.f32 0.0, %v1678
      %v1680 = vpop.f32.mrb[0].mxu0
      %1681 = vmatprep.mubr.f32.mxu0 0.0
      %1682 = vmatmul.mubr.f32.gmra.mrb[0].mxu0 %v1483
      %v1683 = vpop.f32.mrb[0].mxu0
      %v1684 = vadd.f32 0.0, %v1683
      %v1685 = vpop.f32.mrb[0].mxu0
      %1686 = vmatprep.mubr.f32.mxu0 0.0
      %1687 = vmatmul.mubr.f32.gmra.mrb[0].mxu0 %v1486
      %v1688 = vpop.f32.mrb[0].mxu0
      %v1689 = vadd.f32 0.0, %v1688
      %v1690 = vpop.f32.mrb[0].mxu0
      %1691 = vmatprep.mubr.f32.mxu0 0.0
      %1692 = vmatmul.mubr.f32.gmra.mrb[0].mxu0 %v1489
      %v1693 = vpop.f32.mrb[0].mxu0
      %v1694 = vadd.f32 0.0, %v1693
      %v1695 = vpop.f32.mrb[0].mxu0
      %1696 = vmatprep.mubr.f32.mxu0 0.0
      %1697 = vmatmul.mubr.f32.gmra.mrb[0].mxu0 %v1492
      %v1698 = vpop.f32.mrb[0].mxu0
      %v1699 = vadd.f32 0.0, %v1698
      %v1700 = vpop.f32.mrb[0].mxu0
      %1701 = vmatprep.mubr.f32.mxu0 0.0
      %1702 = vmatmul.mubr.f32.gmra.mrb[0].mxu0 %v1495
      %v1703 = vpop.f32.mrb[0].mxu0
      %v1704 = vadd.f32 0.0, %v1703
      %v1705 = vpop.f32.mrb[0].mxu0
      %1706 = vmatprep.mubr.f32.mxu0 0.0
      %1707 = vmatmul.mubr.f32.gmra.mrb[0].mxu0 %v1498
      %v1708 = vpop.f32.mrb[0].mxu0
      %v1709 = vadd.f32 0.0, %v1708
      %v1710 = vpop.f32.mrb[0].mxu0
      %1711 = vmatprep.mubr.f32.mxu0 0.0
      %1712 = vmatmul.mubr.f32.gmra.mrb[0].mxu0 %v1501
      %v1713 = vpop.f32.mrb[0].mxu0
      %v1714 = vadd.f32 0.0, %v1713
      %v1715 = vpop.f32.mrb[0].mxu0
      %1716 = vmatprep.mubr.f32.mxu0 0.0
      %1717 = vmatmul.mubr.f32.gmra.mrb[0].mxu0 %v1504
      %v1718 = vpop.f32.mrb[0].mxu0
      %v1719 = vadd.f32 0.0, %v1718
      %v1720 = vpop.f32.mrb[0].mxu0
      %1721 = vmatprep.mubr.f32.mxu0 0.0
      %1722 = vmatmul.mubr.f32.gmra.mrb[0].mxu0 %v1507
      %v1723 = vpop.f32.mrb[0].mxu0
      %v1724 = vadd.f32 0.0, %v1723
      %v1725 = vpop.f32.mrb[0].mxu0
      %1726 = vmatprep.mubr.f32.mxu0 0.0
      %1727 = vmatmul.mubr.f32.gmra.mrb[0].mxu0 %v1510
      %v1728 = vpop.f32.mrb[0].mxu0
      %v1729 = vadd.f32 0.0, %v1728
      %v1730 = vpop.f32.mrb[0].mxu0
      %1731 = vmatprep.mubr.f32.mxu0 0.0
      %1732 = vmatmul.mubr.f32.gmra.mrb[0].mxu0 %v1513
      %v1733 = vpop.f32.mrb[0].mxu0
      %v1734 = vadd.f32 0.0, %v1733
      %v1735 = vpop.f32.mrb[0].mxu0
      %1736 = vmatprep.mubr.f32.mxu0 0.0
      %1737 = vmatmul.mubr.f32.gmra.mrb[0].mxu0 %v1516
      %v1738 = vpop.f32.mrb[0].mxu0
      %v1739 = vadd.f32 0.0, %v1738
      %v1740 = vpop.f32.mrb[0].mxu0
      %1741 = vmatprep.mubr.f32.mxu0 0.0
      %1742 = vmatmul.mubr.f32.gmra.mrb[0].mxu0 %v1519
      %v1743 = vpop.f32.mrb[0].mxu0
      %v1744 = vadd.f32 0.0, %v1743
      %v1745 = vpop.f32.mrb[0].mxu0
      %1746 = vmatprep.mubr.f32.mxu0 0.0
      %1747 = vmatmul.mubr.f32.gmra.mrb[0].mxu0 %v1522
      %v1748 = vpop.f32.mrb[0].mxu0
      %v1749 = vadd.f32 0.0, %v1748
      %v1750 = vpop.f32.mrb[0].mxu0
      %1751 = vdwg.mxu0
      %v1752 = vadd.f32 %v1204, %v1594
      %v1753 = vadd.f32 %v1209, %v1599
      %v1754 = vadd.f32 %v1214, %v1604
      %v1755 = vadd.f32 %v1219, %v1609
      %v1756 = vadd.f32 %v1224, %v1614
      %v1757 = vadd.f32 %v1229, %v1619
      %v1758 = vadd.f32 %v1234, %v1624
      %v1759 = vadd.f32 %v1239, %v1629
      %v1760 = vadd.f32 %v1244, %v1634
      %v1761 = vadd.f32 %v1249, %v1639
      %v1762 = vadd.f32 %v1254, %v1644
      %v1763 = vadd.f32 %v1259, %v1649
      %v1764 = vadd.f32 %v1264, %v1654
      %v1765 = vadd.f32 %v1269, %v1659
      %v1766 = vadd.f32 %v1274, %v1664
      %v1767 = vadd.f32 %v1279, %v1669
      %v1768 = vadd.f32 %v1284, %v1674
      %v1769 = vadd.f32 %v1289, %v1679
      %v1770 = vadd.f32 %v1294, %v1684
      %v1771 = vadd.f32 %v1299, %v1689
      %v1772 = vadd.f32 %v1304, %v1694
      %v1773 = vadd.f32 %v1309, %v1699
      %v1774 = vadd.f32 %v1314, %v1704
      %v1775 = vadd.f32 %v1319, %v1709
      %v1776 = vadd.f32 %v1324, %v1714
      %v1777 = vadd.f32 %v1329, %v1719
      %v1778 = vadd.f32 %v1334, %v1724
      %v1779 = vadd.f32 %v1339, %v1729
      %v1780 = vadd.f32 %v1344, %v1734
      %v1781 = vadd.f32 %v1349, %v1739
      %v1782 = vadd.f32 %v1354, %v1744
      %v1783 = vadd.f32 %v1359, %v1749
      %s1784 = scalar_lea.vmem %s3, 4
      %v1785 = vld [vmem:[%s1784] sm:$0xf]
      %v1787 = vsel %vm353, %v1394, 0
      %v1790 = vsel %vm353, %v1395, 0
      %v1793 = vsel %vm353, %v1396, 0
      %v1796 = vsel %vm353, %v1397, 0
      %v1799 = vsel %vm353, %v1398, 0
      %v1802 = vsel %vm353, %v1399, 0
      %v1805 = vsel %vm353, %v1400, 0
      %v1808 = vsel %vm353, %v1401, 0
      %v1811 = vsel %vm353, %v1402, 0
      %v1814 = vsel %vm353, %v1403, 0
      %v1817 = vsel %vm353, %v1404, 0
      %v1820 = vsel %vm353, %v1405, 0
      %v1823 = vsel %vm353, %v1406, 0
      %v1826 = vsel %vm353, %v1407, 0
      %v1829 = vsel %vm353, %v1408, 0
      %v1832 = vsel %vm353, %v1409, 0
      %v1835 = vsel %vm353, %v1410, 0
      %v1838 = vsel %vm353, %v1411, 0
      %v1841 = vsel %vm353, %v1412, 0
      %v1844 = vsel %vm353, %v1413, 0
      %v1847 = vsel %vm353, %v1414, 0
      %v1850 = vsel %vm353, %v1415, 0
      %v1853 = vsel %vm353, %v1416, 0
      %v1856 = vsel %vm353, %v1417, 0
      %v1859 = vsel %vm353, %v1418, 0
      %v1862 = vsel %vm353, %v1419, 0
      %v1865 = vsel %vm353, %v1420, 0
      %v1868 = vsel %vm353, %v1421, 0
      %v1871 = vsel %vm353, %v1422, 0
      %v1874 = vsel %vm353, %v1423, 0
      %v1877 = vsel %vm353, %v1424, 0
      %v1880 = vsel %vm353, %v1425, 0
      %v1883 = vsel %vm809, %v1785, 0
      %1885 = vmatprep.subr.mxu0 0.0
      %1886 = vmatpush1.msra.mxu0 %v1883
      %1887 = vmatprep.subr.mxu0 0.0
      %1888 = vmatpush1.msra.mxu0 0.0
      %1889 = vmatprep.subr.mxu0 0.0
      %1890 = vmatpush1.msra.mxu0 0.0
      %1891 = vmatprep.subr.mxu0 0.0
      %1892 = vmatpush1.msra.mxu0 0.0
      %1893 = vmatprep.subr.mxu0 0.0
      %1894 = vmatpush1.msra.mxu0 0.0
      %1895 = vmatprep.subr.mxu0 0.0
      %1896 = vmatpush1.msra.mxu0 0.0
      %1897 = vmatprep.subr.mxu0 0.0
      %1898 = vmatpush1.msra.mxu0 0.0
      %1899 = vmatprep.subr.mxu0 0.0
      %1900 = vmatpush1.msra.mxu0 0.0
      %1901 = vmatprep.subr.mxu0 0.0
      %1902 = vmatpush1.msra.mxu0 0.0
      %1903 = vmatprep.subr.mxu0 0.0
      %1904 = vmatpush1.msra.mxu0 0.0
      %1905 = vmatprep.subr.mxu0 0.0
      %1906 = vmatpush1.msra.mxu0 0.0
      %1907 = vmatprep.subr.mxu0 0.0
      %1908 = vmatpush1.msra.mxu0 0.0
      %1909 = vmatprep.subr.mxu0 0.0
      %1910 = vmatpush1.msra.mxu0 0.0
      %1911 = vmatprep.subr.mxu0 0.0
      %1912 = vmatpush1.msra.mxu0 0.0
      %1913 = vmatprep.subr.mxu0 0.0
      %1914 = vmatpush1.msra.mxu0 0.0
      %1915 = vmatprep.subr.mxu0 0.0
      %1916 = vmatpush1.msra.mxu0 0.0
      %1917 = vmatprep.subr.mxu0 0.0
      %1918 = vmatpush1.msra.mxu0 0.0
      %1919 = vmatprep.subr.mxu0 0.0
      %1920 = vmatpush1.msra.mxu0 0.0
      %1921 = vmatprep.subr.mxu0 0.0
      %1922 = vmatpush1.msra.mxu0 0.0
      %1923 = vmatprep.subr.mxu0 0.0
      %1924 = vmatpush1.msra.mxu0 0.0
      %1925 = vmatprep.subr.mxu0 0.0
      %1926 = vmatpush1.msra.mxu0 0.0
      %1927 = vmatprep.subr.mxu0 0.0
      %1928 = vmatpush1.msra.mxu0 0.0
      %1929 = vmatprep.subr.mxu0 0.0
      %1930 = vmatpush1.msra.mxu0 0.0
      %1931 = vmatprep.subr.mxu0 0.0
      %1932 = vmatpush1.msra.mxu0 0.0
      %1933 = vmatprep.subr.mxu0 0.0
      %1934 = vmatpush1.msra.mxu0 0.0
      %1935 = vmatprep.subr.mxu0 0.0
      %1936 = vmatpush1.msra.mxu0 0.0
      %1937 = vmatprep.subr.mxu0 0.0
      %1938 = vmatpush1.msra.mxu0 0.0
      %1939 = vmatprep.subr.mxu0 0.0
      %1940 = vmatpush1.msra.mxu0 0.0
      %1941 = vmatprep.subr.mxu0 0.0
      %1942 = vmatpush1.msra.mxu0 0.0
      %1943 = vmatprep.subr.mxu0 0.0
      %1944 = vmatpush1.msra.mxu0 0.0
      %1945 = vmatprep.subr.mxu0 0.0
      %1946 = vmatpush1.msra.mxu0 0.0
      %1947 = vmatprep.subr.mxu0 0.0
      %1948 = vmatpush1.msra.mxu0 0.0
      %1949 = vmatprep.mubr.f32.mxu0 0.0
      %1950 = vmatmul.mubr.f32.gmra.mrb[0].mxu0 %v1787
      %v1951 = vpop.f32.mrb[0].mxu0
      %v1952 = vadd.f32 0.0, %v1951
      %v1953 = vpop.f32.mrb[0].mxu0
      %1954 = vmatprep.mubr.f32.mxu0 0.0
      %1955 = vmatmul.mubr.f32.gmra.mrb[0].mxu0 %v1790
      %v1956 = vpop.f32.mrb[0].mxu0
      %v1957 = vadd.f32 0.0, %v1956
      %v1958 = vpop.f32.mrb[0].mxu0
      %1959 = vmatprep.mubr.f32.mxu0 0.0
      %1960 = vmatmul.mubr.f32.gmra.mrb[0].mxu0 %v1793
      %v1961 = vpop.f32.mrb[0].mxu0
      %v1962 = vadd.f32 0.0, %v1961
      %v1963 = vpop.f32.mrb[0].mxu0
      %1964 = vmatprep.mubr.f32.mxu0 0.0
      %1965 = vmatmul.mubr.f32.gmra.mrb[0].mxu0 %v1796
      %v1966 = vpop.f32.mrb[0].mxu0
      %v1967 = vadd.f32 0.0, %v1966
      %v1968 = vpop.f32.mrb[0].mxu0
      %1969 = vmatprep.mubr.f32.mxu0 0.0
      %1970 = vmatmul.mubr.f32.gmra.mrb[0].mxu0 %v1799
      %v1971 = vpop.f32.mrb[0].mxu0
      %v1972 = vadd.f32 0.0, %v1971
      %v1973 = vpop.f32.mrb[0].mxu0
      %1974 = vmatprep.mubr.f32.mxu0 0.0
      %1975 = vmatmul.mubr.f32.gmra.mrb[0].mxu0 %v1802
      %v1976 = vpop.f32.mrb[0].mxu0
      %v1977 = vadd.f32 0.0, %v1976
      %v1978 = vpop.f32.mrb[0].mxu0
      %1979 = vmatprep.mubr.f32.mxu0 0.0
      %1980 = vmatmul.mubr.f32.gmra.mrb[0].mxu0 %v1805
      %v1981 = vpop.f32.mrb[0].mxu0
      %v1982 = vadd.f32 0.0, %v1981
      %v1983 = vpop.f32.mrb[0].mxu0
      %1984 = vmatprep.mubr.f32.mxu0 0.0
      %1985 = vmatmul.mubr.f32.gmra.mrb[0].mxu0 %v1808
      %v1986 = vpop.f32.mrb[0].mxu0
      %v1987 = vadd.f32 0.0, %v1986
      %v1988 = vpop.f32.mrb[0].mxu0
      %1989 = vmatprep.mubr.f32.mxu0 0.0
      %1990 = vmatmul.mubr.f32.gmra.mrb[0].mxu0 %v1811
      %v1991 = vpop.f32.mrb[0].mxu0
      %v1992 = vadd.f32 0.0, %v1991
      %v1993 = vpop.f32.mrb[0].mxu0
      %1994 = vmatprep.mubr.f32.mxu0 0.0
      %1995 = vmatmul.mubr.f32.gmra.mrb[0].mxu0 %v1814
      %v1996 = vpop.f32.mrb[0].mxu0
      %v1997 = vadd.f32 0.0, %v1996
      %v1998 = vpop.f32.mrb[0].mxu0
      %1999 = vmatprep.mubr.f32.mxu0 0.0
      %2000 = vmatmul.mubr.f32.gmra.mrb[0].mxu0 %v1817
      %v2001 = vpop.f32.mrb[0].mxu0
      %v2002 = vadd.f32 0.0, %v2001
      %v2003 = vpop.f32.mrb[0].mxu0
      %2004 = vmatprep.mubr.f32.mxu0 0.0
      %2005 = vmatmul.mubr.f32.gmra.mrb[0].mxu0 %v1820
      %v2006 = vpop.f32.mrb[0].mxu0
      %v2007 = vadd.f32 0.0, %v2006
      %v2008 = vpop.f32.mrb[0].mxu0
      %2009 = vmatprep.mubr.f32.mxu0 0.0
      %2010 = vmatmul.mubr.f32.gmra.mrb[0].mxu0 %v1823
      %v2011 = vpop.f32.mrb[0].mxu0
      %v2012 = vadd.f32 0.0, %v2011
      %v2013 = vpop.f32.mrb[0].mxu0
      %2014 = vmatprep.mubr.f32.mxu0 0.0
      %2015 = vmatmul.mubr.f32.gmra.mrb[0].mxu0 %v1826
      %v2016 = vpop.f32.mrb[0].mxu0
      %v2017 = vadd.f32 0.0, %v2016
      %v2018 = vpop.f32.mrb[0].mxu0
      %2019 = vmatprep.mubr.f32.mxu0 0.0
      %2020 = vmatmul.mubr.f32.gmra.mrb[0].mxu0 %v1829
      %v2021 = vpop.f32.mrb[0].mxu0
      %v2022 = vadd.f32 0.0, %v2021
      %v2023 = vpop.f32.mrb[0].mxu0
      %2024 = vmatprep.mubr.f32.mxu0 0.0
      %2025 = vmatmul.mubr.f32.gmra.mrb[0].mxu0 %v1832
      %v2026 = vpop.f32.mrb[0].mxu0
      %v2027 = vadd.f32 0.0, %v2026
      %v2028 = vpop.f32.mrb[0].mxu0
      %2029 = vmatprep.mubr.f32.mxu0 0.0
      %2030 = vmatmul.mubr.f32.gmra.mrb[0].mxu0 %v1835
      %v2031 = vpop.f32.mrb[0].mxu0
      %v2032 = vadd.f32 0.0, %v2031
      %v2033 = vpop.f32.mrb[0].mxu0
      %2034 = vmatprep.mubr.f32.mxu0 0.0
      %2035 = vmatmul.mubr.f32.gmra.mrb[0].mxu0 %v1838
      %v2036 = vpop.f32.mrb[0].mxu0
      %v2037 = vadd.f32 0.0, %v2036
      %v2038 = vpop.f32.mrb[0].mxu0
      %2039 = vmatprep.mubr.f32.mxu0 0.0
      %2040 = vmatmul.mubr.f32.gmra.mrb[0].mxu0 %v1841
      %v2041 = vpop.f32.mrb[0].mxu0
      %v2042 = vadd.f32 0.0, %v2041
      %v2043 = vpop.f32.mrb[0].mxu0
      %2044 = vmatprep.mubr.f32.mxu0 0.0
      %2045 = vmatmul.mubr.f32.gmra.mrb[0].mxu0 %v1844
      %v2046 = vpop.f32.mrb[0].mxu0
      %v2047 = vadd.f32 0.0, %v2046
      %v2048 = vpop.f32.mrb[0].mxu0
      %2049 = vmatprep.mubr.f32.mxu0 0.0
      %2050 = vmatmul.mubr.f32.gmra.mrb[0].mxu0 %v1847
      %v2051 = vpop.f32.mrb[0].mxu0
      %v2052 = vadd.f32 0.0, %v2051
      %v2053 = vpop.f32.mrb[0].mxu0
      %2054 = vmatprep.mubr.f32.mxu0 0.0
      %2055 = vmatmul.mubr.f32.gmra.mrb[0].mxu0 %v1850
      %v2056 = vpop.f32.mrb[0].mxu0
      %v2057 = vadd.f32 0.0, %v2056
      %v2058 = vpop.f32.mrb[0].mxu0
      %2059 = vmatprep.mubr.f32.mxu0 0.0
      %2060 = vmatmul.mubr.f32.gmra.mrb[0].mxu0 %v1853
      %v2061 = vpop.f32.mrb[0].mxu0
      %v2062 = vadd.f32 0.0, %v2061
      %v2063 = vpop.f32.mrb[0].mxu0
      %2064 = vmatprep.mubr.f32.mxu0 0.0
      %2065 = vmatmul.mubr.f32.gmra.mrb[0].mxu0 %v1856
      %v2066 = vpop.f32.mrb[0].mxu0
      %v2067 = vadd.f32 0.0, %v2066
      %v2068 = vpop.f32.mrb[0].mxu0
      %2069 = vmatprep.mubr.f32.mxu0 0.0
      %2070 = vmatmul.mubr.f32.gmra.mrb[0].mxu0 %v1859
      %v2071 = vpop.f32.mrb[0].mxu0
      %v2072 = vadd.f32 0.0, %v2071
      %v2073 = vpop.f32.mrb[0].mxu0
      %2074 = vmatprep.mubr.f32.mxu0 0.0
      %2075 = vmatmul.mubr.f32.gmra.mrb[0].mxu0 %v1862
      %v2076 = vpop.f32.mrb[0].mxu0
      %v2077 = vadd.f32 0.0, %v2076
      %v2078 = vpop.f32.mrb[0].mxu0
      %2079 = vmatprep.mubr.f32.mxu0 0.0
      %2080 = vmatmul.mubr.f32.gmra.mrb[0].mxu0 %v1865
      %v2081 = vpop.f32.mrb[0].mxu0
      %v2082 = vadd.f32 0.0, %v2081
      %v2083 = vpop.f32.mrb[0].mxu0
      %2084 = vmatprep.mubr.f32.mxu0 0.0
      %2085 = vmatmul.mubr.f32.gmra.mrb[0].mxu0 %v1868
      %v2086 = vpop.f32.mrb[0].mxu0
      %v2087 = vadd.f32 0.0, %v2086
      %v2088 = vpop.f32.mrb[0].mxu0
      %2089 = vmatprep.mubr.f32.mxu0 0.0
      %2090 = vmatmul.mubr.f32.gmra.mrb[0].mxu0 %v1871
      %v2091 = vpop.f32.mrb[0].mxu0
      %v2092 = vadd.f32 0.0, %v2091
      %v2093 = vpop.f32.mrb[0].mxu0
      %2094 = vmatprep.mubr.f32.mxu0 0.0
      %2095 = vmatmul.mubr.f32.gmra.mrb[0].mxu0 %v1874
      %v2096 = vpop.f32.mrb[0].mxu0
      %v2097 = vadd.f32 0.0, %v2096
      %v2098 = vpop.f32.mrb[0].mxu0
      %2099 = vmatprep.mubr.f32.mxu0 0.0
      %2100 = vmatmul.mubr.f32.gmra.mrb[0].mxu0 %v1877
      %v2101 = vpop.f32.mrb[0].mxu0
      %v2102 = vadd.f32 0.0, %v2101
      %v2103 = vpop.f32.mrb[0].mxu0
      %2104 = vmatprep.mubr.f32.mxu0 0.0
      %2105 = vmatmul.mubr.f32.gmra.mrb[0].mxu0 %v1880
      %v2106 = vpop.f32.mrb[0].mxu0
      %v2107 = vadd.f32 0.0, %v2106
      %v2108 = vpop.f32.mrb[0].mxu0
      %2109 = vdwg.mxu0
      %v2110 = vadd.f32 %v1752, %v1952
      %v2111 = vadd.f32 %v1753, %v1957
      %v2112 = vadd.f32 %v1754, %v1962
      %v2113 = vadd.f32 %v1755, %v1967
      %v2114 = vadd.f32 %v1756, %v1972
      %v2115 = vadd.f32 %v1757, %v1977
      %v2116 = vadd.f32 %v1758, %v1982
      %v2117 = vadd.f32 %v1759, %v1987
      %v2118 = vadd.f32 %v1760, %v1992
      %v2119 = vadd.f32 %v1761, %v1997
      %v2120 = vadd.f32 %v1762, %v2002
      %v2121 = vadd.f32 %v1763, %v2007
      %v2122 = vadd.f32 %v1764, %v2012
      %v2123 = vadd.f32 %v1765, %v2017
      %v2124 = vadd.f32 %v1766, %v2022
      %v2125 = vadd.f32 %v1767, %v2027
      %v2126 = vadd.f32 %v1768, %v2032
      %v2127 = vadd.f32 %v1769, %v2037
      %v2128 = vadd.f32 %v1770, %v2042
      %v2129 = vadd.f32 %v1771, %v2047
      %v2130 = vadd.f32 %v1772, %v2052
      %v2131 = vadd.f32 %v1773, %v2057
      %v2132 = vadd.f32 %v1774, %v2062
      %v2133 = vadd.f32 %v1775, %v2067
      %v2134 = vadd.f32 %v1776, %v2072
      %v2135 = vadd.f32 %v1777, %v2077
      %v2136 = vadd.f32 %v1778, %v2082
      %v2137 = vadd.f32 %v1779, %v2087
      %v2138 = vadd.f32 %v1780, %v2092
      %v2139 = vadd.f32 %v1781, %v2097
      %v2140 = vadd.f32 %v1782, %v2102
      %v2141 = vadd.f32 %v1783, %v2107
      %v2142 = vld [vmem:[#allocation2 + $0x2] sm:$0xff]
      %v2143 = vld [vmem:[#allocation2 + $0xa] sm:$0xff]
      %v2144 = vld [vmem:[#allocation2 + $0x1a] sm:$0xff]
      %v2145 = vld [vmem:[#allocation2 + $0x22] sm:$0xff]
      %v2146 = vld [vmem:[#allocation2 + $0x32] sm:$0xff]
      %v2147 = vld [vmem:[#allocation2 + $0x3a] sm:$0xff]
      %v2148 = vld [vmem:[#allocation2 + $0x4a] sm:$0xff]
      %v2149 = vld [vmem:[#allocation2 + $0x52] sm:$0xff]
      %v2150 = vld [vmem:[#allocation2 + $0x62] sm:$0xff]
      %v2151 = vld [vmem:[#allocation2 + $0x6a] sm:$0xff]
      %v2152 = vld [vmem:[#allocation2 + $0x7a] sm:$0xff]
      %v2153 = vld [vmem:[#allocation2 + $0x82] sm:$0xff]
      %v2154 = vld [vmem:[#allocation2 + $0x92] sm:$0xff]
      %v2155 = vld [vmem:[#allocation2 + $0x9a] sm:$0xff]
      %v2156 = vld [vmem:[#allocation2 + $0xaa] sm:$0xff]
      %v2157 = vld [vmem:[#allocation2 + $0xb2] sm:$0xff]
      %v2158 = vld [vmem:[#allocation2 + $0xc2] sm:$0xff]
      %v2159 = vld [vmem:[#allocation2 + $0xca] sm:$0xff]
      %v2160 = vld [vmem:[#allocation2 + $0xda] sm:$0xff]
      %v2161 = vld [vmem:[#allocation2 + $0xe2] sm:$0xff]
      %v2162 = vld [vmem:[#allocation2 + $0xf2] sm:$0xff]
      %v2163 = vld [vmem:[#allocation2 + $0xfa] sm:$0xff]
      %v2164 = vld [vmem:[#allocation2 + $0x10a] sm:$0xff]
      %v2165 = vld [vmem:[#allocation2 + $0x112] sm:$0xff]
      %v2166 = vld [vmem:[#allocation2 + $0x122] sm:$0xff]
      %v2167 = vld [vmem:[#allocation2 + $0x12a] sm:$0xff]
      %v2168 = vld [vmem:[#allocation2 + $0x13a] sm:$0xff]
      %v2169 = vld [vmem:[#allocation2 + $0x142] sm:$0xff]
      %v2170 = vld [vmem:[#allocation2 + $0x152] sm:$0xff]
      %v2171 = vld [vmem:[#allocation2 + $0x15a] sm:$0xff]
      %v2172 = vld [vmem:[#allocation2 + $0x16a] sm:$0xff]
      %v2173 = vld [vmem:[#allocation2 + $0x172] sm:$0xff]
      %v2174 = vld [vmem:[#allocation3 + $0x2] sm:$0xff]
      %v2175 = vld [vmem:[#allocation3 + $0xa] sm:$0xff]
      %v2176 = vld [vmem:[#allocation3 + $0x1a] sm:$0xff]
      %v2177 = vld [vmem:[#allocation3 + $0x22] sm:$0xff]
      %v2178 = vld [vmem:[#allocation3 + $0x32] sm:$0xff]
      %v2179 = vld [vmem:[#allocation3 + $0x3a] sm:$0xff]
      %v2180 = vld [vmem:[#allocation3 + $0x4a] sm:$0xff]
      %v2181 = vld [vmem:[#allocation3 + $0x52] sm:$0xff]
      %v2182 = vld [vmem:[#allocation3 + $0x62] sm:$0xff]
      %v2183 = vld [vmem:[#allocation3 + $0x6a] sm:$0xff]
      %v2184 = vld [vmem:[#allocation3 + $0x7a] sm:$0xff]
      %v2185 = vld [vmem:[#allocation3 + $0x82] sm:$0xff]
      %v2186 = vld [vmem:[#allocation3 + $0x92] sm:$0xff]
      %v2187 = vld [vmem:[#allocation3 + $0x9a] sm:$0xff]
      %v2188 = vld [vmem:[#allocation3 + $0xaa] sm:$0xff]
      %v2189 = vld [vmem:[#allocation3 + $0xb2] sm:$0xff]
      %v2190 = vld [vmem:[#allocation3 + $0xc2] sm:$0xff]
      %v2191 = vld [vmem:[#allocation3 + $0xca] sm:$0xff]
      %v2192 = vld [vmem:[#allocation3 + $0xda] sm:$0xff]
      %v2193 = vld [vmem:[#allocation3 + $0xe2] sm:$0xff]
      %v2194 = vld [vmem:[#allocation3 + $0xf2] sm:$0xff]
      %v2195 = vld [vmem:[#allocation3 + $0xfa] sm:$0xff]
      %v2196 = vld [vmem:[#allocation3 + $0x10a] sm:$0xff]
      %v2197 = vld [vmem:[#allocation3 + $0x112] sm:$0xff]
      %v2198 = vld [vmem:[#allocation3 + $0x122] sm:$0xff]
      %v2199 = vld [vmem:[#allocation3 + $0x12a] sm:$0xff]
      %v2200 = vld [vmem:[#allocation3 + $0x13a] sm:$0xff]
      %v2201 = vld [vmem:[#allocation3 + $0x142] sm:$0xff]
      %v2202 = vld [vmem:[#allocation3 + $0x152] sm:$0xff]
      %v2203 = vld [vmem:[#allocation3 + $0x15a] sm:$0xff]
      %v2204 = vld [vmem:[#allocation3 + $0x16a] sm:$0xff]
      %v2205 = vld [vmem:[#allocation3 + $0x172] sm:$0xff]
      %s2206 = scalar_lea.vmem %s2, 8
      %v2207 = vld [vmem:[%s2206] sm:$0xf]
      %v2209 = vsel %vm353, %v2142, 0
      %v2212 = vsel %vm353, %v2143, 0
      %v2215 = vsel %vm353, %v2144, 0
      %v2218 = vsel %vm353, %v2145, 0
      %v2221 = vsel %vm353, %v2146, 0
      %v2224 = vsel %vm353, %v2147, 0
      %v2227 = vsel %vm353, %v2148, 0
      %v2230 = vsel %vm353, %v2149, 0
      %v2233 = vsel %vm353, %v2150, 0
      %v2236 = vsel %vm353, %v2151, 0
      %v2239 = vsel %vm353, %v2152, 0
      %v2242 = vsel %vm353, %v2153, 0
      %v2245 = vsel %vm353, %v2154, 0
      %v2248 = vsel %vm353, %v2155, 0
      %v2251 = vsel %vm353, %v2156, 0
      %v2254 = vsel %vm353, %v2157, 0
      %v2257 = vsel %vm353, %v2158, 0
      %v2260 = vsel %vm353, %v2159, 0
      %v2263 = vsel %vm353, %v2160, 0
      %v2266 = vsel %vm353, %v2161, 0
      %v2269 = vsel %vm353, %v2162, 0
      %v2272 = vsel %vm353, %v2163, 0
      %v2275 = vsel %vm353, %v2164, 0
      %v2278 = vsel %vm353, %v2165, 0
      %v2281 = vsel %vm353, %v2166, 0
      %v2284 = vsel %vm353, %v2167, 0
      %v2287 = vsel %vm353, %v2168, 0
      %v2290 = vsel %vm353, %v2169, 0
      %v2293 = vsel %vm353, %v2170, 0
      %v2296 = vsel %vm353, %v2171, 0
      %v2299 = vsel %vm353, %v2172, 0
      %v2302 = vsel %vm353, %v2173, 0
      %v2305 = vsel %vm809, %v2207, 0
      %2307 = vmatprep.subr.mxu0 0.0
      %2308 = vmatpush1.msra.mxu0 %v2305
      %2309 = vmatprep.subr.mxu0 0.0
      %2310 = vmatpush1.msra.mxu0 0.0
      %2311 = vmatprep.subr.mxu0 0.0
      %2312 = vmatpush1.msra.mxu0 0.0
      %2313 = vmatprep.subr.mxu0 0.0
      %2314 = vmatpush1.msra.mxu0 0.0
      %2315 = vmatprep.subr.mxu0 0.0
      %2316 = vmatpush1.msra.mxu0 0.0
      %2317 = vmatprep.subr.mxu0 0.0
      %2318 = vmatpush1.msra.mxu0 0.0
      %2319 = vmatprep.subr.mxu0 0.0
      %2320 = vmatpush1.msra.mxu0 0.0
      %2321 = vmatprep.subr.mxu0 0.0
      %2322 = vmatpush1.msra.mxu0 0.0
      %2323 = vmatprep.subr.mxu0 0.0
      %2324 = vmatpush1.msra.mxu0 0.0
      %2325 = vmatprep.subr.mxu0 0.0
      %2326 = vmatpush1.msra.mxu0 0.0
      %2327 = vmatprep.subr.mxu0 0.0
      %2328 = vmatpush1.msra.mxu0 0.0
      %2329 = vmatprep.subr.mxu0 0.0
      %2330 = vmatpush1.msra.mxu0 0.0
      %2331 = vmatprep.subr.mxu0 0.0
      %2332 = vmatpush1.msra.mxu0 0.0
      %2333 = vmatprep.subr.mxu0 0.0
      %2334 = vmatpush1.msra.mxu0 0.0
      %2335 = vmatprep.subr.mxu0 0.0
      %2336 = vmatpush1.msra.mxu0 0.0
      %2337 = vmatprep.subr.mxu0 0.0
      %2338 = vmatpush1.msra.mxu0 0.0
      %2339 = vmatprep.subr.mxu0 0.0
      %2340 = vmatpush1.msra.mxu0 0.0
      %2341 = vmatprep.subr.mxu0 0.0
      %2342 = vmatpush1.msra.mxu0 0.0
      %2343 = vmatprep.subr.mxu0 0.0
      %2344 = vmatpush1.msra.mxu0 0.0
      %2345 = vmatprep.subr.mxu0 0.0
      %2346 = vmatpush1.msra.mxu0 0.0
      %2347 = vmatprep.subr.mxu0 0.0
      %2348 = vmatpush1.msra.mxu0 0.0
      %2349 = vmatprep.subr.mxu0 0.0
      %2350 = vmatpush1.msra.mxu0 0.0
      %2351 = vmatprep.subr.mxu0 0.0
      %2352 = vmatpush1.msra.mxu0 0.0
      %2353 = vmatprep.subr.mxu0 0.0
      %2354 = vmatpush1.msra.mxu0 0.0
      %2355 = vmatprep.subr.mxu0 0.0
      %2356 = vmatpush1.msra.mxu0 0.0
      %2357 = vmatprep.subr.mxu0 0.0
      %2358 = vmatpush1.msra.mxu0 0.0
      %2359 = vmatprep.subr.mxu0 0.0
      %2360 = vmatpush1.msra.mxu0 0.0
      %2361 = vmatprep.subr.mxu0 0.0
      %2362 = vmatpush1.msra.mxu0 0.0
      %2363 = vmatprep.subr.mxu0 0.0
      %2364 = vmatpush1.msra.mxu0 0.0
      %2365 = vmatprep.subr.mxu0 0.0
      %2366 = vmatpush1.msra.mxu0 0.0
      %2367 = vmatprep.subr.mxu0 0.0
      %2368 = vmatpush1.msra.mxu0 0.0
      %2369 = vmatprep.subr.mxu0 0.0
      %2370 = vmatpush1.msra.mxu0 0.0
      %2371 = vmatprep.mubr.f32.mxu0 0.0
      %2372 = vmatmul.mubr.f32.gmra.mrb[0].mxu0 %v2209
      %v2373 = vpop.f32.mrb[0].mxu0
      %v2374 = vadd.f32 0.0, %v2373
      %v2375 = vpop.f32.mrb[0].mxu0
      %2376 = vmatprep.mubr.f32.mxu0 0.0
      %2377 = vmatmul.mubr.f32.gmra.mrb[0].mxu0 %v2212
      %v2378 = vpop.f32.mrb[0].mxu0
      %v2379 = vadd.f32 0.0, %v2378
      %v2380 = vpop.f32.mrb[0].mxu0
      %2381 = vmatprep.mubr.f32.mxu0 0.0
      %2382 = vmatmul.mubr.f32.gmra.mrb[0].mxu0 %v2215
      %v2383 = vpop.f32.mrb[0].mxu0
      %v2384 = vadd.f32 0.0, %v2383
      %v2385 = vpop.f32.mrb[0].mxu0
      %2386 = vmatprep.mubr.f32.mxu0 0.0
      %2387 = vmatmul.mubr.f32.gmra.mrb[0].mxu0 %v2218
      %v2388 = vpop.f32.mrb[0].mxu0
      %v2389 = vadd.f32 0.0, %v2388
      %v2390 = vpop.f32.mrb[0].mxu0
      %2391 = vmatprep.mubr.f32.mxu0 0.0
      %2392 = vmatmul.mubr.f32.gmra.mrb[0].mxu0 %v2221
      %v2393 = vpop.f32.mrb[0].mxu0
      %v2394 = vadd.f32 0.0, %v2393
      %v2395 = vpop.f32.mrb[0].mxu0
      %2396 = vmatprep.mubr.f32.mxu0 0.0
      %2397 = vmatmul.mubr.f32.gmra.mrb[0].mxu0 %v2224
      %v2398 = vpop.f32.mrb[0].mxu0
      %v2399 = vadd.f32 0.0, %v2398
      %v2400 = vpop.f32.mrb[0].mxu0
      %2401 = vmatprep.mubr.f32.mxu0 0.0
      %2402 = vmatmul.mubr.f32.gmra.mrb[0].mxu0 %v2227
      %v2403 = vpop.f32.mrb[0].mxu0
      %v2404 = vadd.f32 0.0, %v2403
      %v2405 = vpop.f32.mrb[0].mxu0
      %2406 = vmatprep.mubr.f32.mxu0 0.0
      %2407 = vmatmul.mubr.f32.gmra.mrb[0].mxu0 %v2230
      %v2408 = vpop.f32.mrb[0].mxu0
      %v2409 = vadd.f32 0.0, %v2408
      %v2410 = vpop.f32.mrb[0].mxu0
      %2411 = vmatprep.mubr.f32.mxu0 0.0
      %2412 = vmatmul.mubr.f32.gmra.mrb[0].mxu0 %v2233
      %v2413 = vpop.f32.mrb[0].mxu0
      %v2414 = vadd.f32 0.0, %v2413
      %v2415 = vpop.f32.mrb[0].mxu0
      %2416 = vmatprep.mubr.f32.mxu0 0.0
      %2417 = vmatmul.mubr.f32.gmra.mrb[0].mxu0 %v2236
      %v2418 = vpop.f32.mrb[0].mxu0
      %v2419 = vadd.f32 0.0, %v2418
      %v2420 = vpop.f32.mrb[0].mxu0
      %2421 = vmatprep.mubr.f32.mxu0 0.0
      %2422 = vmatmul.mubr.f32.gmra.mrb[0].mxu0 %v2239
      %v2423 = vpop.f32.mrb[0].mxu0
      %v2424 = vadd.f32 0.0, %v2423
      %v2425 = vpop.f32.mrb[0].mxu0
      %2426 = vmatprep.mubr.f32.mxu0 0.0
      %2427 = vmatmul.mubr.f32.gmra.mrb[0].mxu0 %v2242
      %v2428 = vpop.f32.mrb[0].mxu0
      %v2429 = vadd.f32 0.0, %v2428
      %v2430 = vpop.f32.mrb[0].mxu0
      %2431 = vmatprep.mubr.f32.mxu0 0.0
      %2432 = vmatmul.mubr.f32.gmra.mrb[0].mxu0 %v2245
      %v2433 = vpop.f32.mrb[0].mxu0
      %v2434 = vadd.f32 0.0, %v2433
      %v2435 = vpop.f32.mrb[0].mxu0
      %2436 = vmatprep.mubr.f32.mxu0 0.0
      %2437 = vmatmul.mubr.f32.gmra.mrb[0].mxu0 %v2248
      %v2438 = vpop.f32.mrb[0].mxu0
      %v2439 = vadd.f32 0.0, %v2438
      %v2440 = vpop.f32.mrb[0].mxu0
      %2441 = vmatprep.mubr.f32.mxu0 0.0
      %2442 = vmatmul.mubr.f32.gmra.mrb[0].mxu0 %v2251
      %v2443 = vpop.f32.mrb[0].mxu0
      %v2444 = vadd.f32 0.0, %v2443
      %v2445 = vpop.f32.mrb[0].mxu0
      %2446 = vmatprep.mubr.f32.mxu0 0.0
      %2447 = vmatmul.mubr.f32.gmra.mrb[0].mxu0 %v2254
      %v2448 = vpop.f32.mrb[0].mxu0
      %v2449 = vadd.f32 0.0, %v2448
      %v2450 = vpop.f32.mrb[0].mxu0
      %2451 = vmatprep.mubr.f32.mxu0 0.0
      %2452 = vmatmul.mubr.f32.gmra.mrb[0].mxu0 %v2257
      %v2453 = vpop.f32.mrb[0].mxu0
      %v2454 = vadd.f32 0.0, %v2453
      %v2455 = vpop.f32.mrb[0].mxu0
      %2456 = vmatprep.mubr.f32.mxu0 0.0
      %2457 = vmatmul.mubr.f32.gmra.mrb[0].mxu0 %v2260
      %v2458 = vpop.f32.mrb[0].mxu0
      %v2459 = vadd.f32 0.0, %v2458
      %v2460 = vpop.f32.mrb[0].mxu0
      %2461 = vmatprep.mubr.f32.mxu0 0.0
      %2462 = vmatmul.mubr.f32.gmra.mrb[0].mxu0 %v2263
      %v2463 = vpop.f32.mrb[0].mxu0
      %v2464 = vadd.f32 0.0, %v2463
      %v2465 = vpop.f32.mrb[0].mxu0
      %2466 = vmatprep.mubr.f32.mxu0 0.0
      %2467 = vmatmul.mubr.f32.gmra.mrb[0].mxu0 %v2266
      %v2468 = vpop.f32.mrb[0].mxu0
      %v2469 = vadd.f32 0.0, %v2468
      %v2470 = vpop.f32.mrb[0].mxu0
      %2471 = vmatprep.mubr.f32.mxu0 0.0
      %2472 = vmatmul.mubr.f32.gmra.mrb[0].mxu0 %v2269
      %v2473 = vpop.f32.mrb[0].mxu0
      %v2474 = vadd.f32 0.0, %v2473
      %v2475 = vpop.f32.mrb[0].mxu0
      %2476 = vmatprep.mubr.f32.mxu0 0.0
      %2477 = vmatmul.mubr.f32.gmra.mrb[0].mxu0 %v2272
      %v2478 = vpop.f32.mrb[0].mxu0
      %v2479 = vadd.f32 0.0, %v2478
      %v2480 = vpop.f32.mrb[0].mxu0
      %2481 = vmatprep.mubr.f32.mxu0 0.0
      %2482 = vmatmul.mubr.f32.gmra.mrb[0].mxu0 %v2275
      %v2483 = vpop.f32.mrb[0].mxu0
      %v2484 = vadd.f32 0.0, %v2483
      %v2485 = vpop.f32.mrb[0].mxu0
      %2486 = vmatprep.mubr.f32.mxu0 0.0
      %2487 = vmatmul.mubr.f32.gmra.mrb[0].mxu0 %v2278
      %v2488 = vpop.f32.mrb[0].mxu0
      %v2489 = vadd.f32 0.0, %v2488
      %v2490 = vpop.f32.mrb[0].mxu0
      %2491 = vmatprep.mubr.f32.mxu0 0.0
      %2492 = vmatmul.mubr.f32.gmra.mrb[0].mxu0 %v2281
      %v2493 = vpop.f32.mrb[0].mxu0
      %v2494 = vadd.f32 0.0, %v2493
      %v2495 = vpop.f32.mrb[0].mxu0
      %2496 = vmatprep.mubr.f32.mxu0 0.0
      %2497 = vmatmul.mubr.f32.gmra.mrb[0].mxu0 %v2284
      %v2498 = vpop.f32.mrb[0].mxu0
      %v2499 = vadd.f32 0.0, %v2498
      %v2500 = vpop.f32.mrb[0].mxu0
      %2501 = vmatprep.mubr.f32.mxu0 0.0
      %2502 = vmatmul.mubr.f32.gmra.mrb[0].mxu0 %v2287
      %v2503 = vpop.f32.mrb[0].mxu0
      %v2504 = vadd.f32 0.0, %v2503
      %v2505 = vpop.f32.mrb[0].mxu0
      %2506 = vmatprep.mubr.f32.mxu0 0.0
      %2507 = vmatmul.mubr.f32.gmra.mrb[0].mxu0 %v2290
      %v2508 = vpop.f32.mrb[0].mxu0
      %v2509 = vadd.f32 0.0, %v2508
      %v2510 = vpop.f32.mrb[0].mxu0
      %2511 = vmatprep.mubr.f32.mxu0 0.0
      %2512 = vmatmul.mubr.f32.gmra.mrb[0].mxu0 %v2293
      %v2513 = vpop.f32.mrb[0].mxu0
      %v2514 = vadd.f32 0.0, %v2513
      %v2515 = vpop.f32.mrb[0].mxu0
      %2516 = vmatprep.mubr.f32.mxu0 0.0
      %2517 = vmatmul.mubr.f32.gmra.mrb[0].mxu0 %v2296
      %v2518 = vpop.f32.mrb[0].mxu0
      %v2519 = vadd.f32 0.0, %v2518
      %v2520 = vpop.f32.mrb[0].mxu0
      %2521 = vmatprep.mubr.f32.mxu0 0.0
      %2522 = vmatmul.mubr.f32.gmra.mrb[0].mxu0 %v2299
      %v2523 = vpop.f32.mrb[0].mxu0
      %v2524 = vadd.f32 0.0, %v2523
      %v2525 = vpop.f32.mrb[0].mxu0
      %2526 = vmatprep.mubr.f32.mxu0 0.0
      %2527 = vmatmul.mubr.f32.gmra.mrb[0].mxu0 %v2302
      %v2528 = vpop.f32.mrb[0].mxu0
      %v2529 = vadd.f32 0.0, %v2528
      %v2530 = vpop.f32.mrb[0].mxu0
      %2531 = vdwg.mxu0
      %v2532 = vadd.f32 %v2110, %v2374
      %v2533 = vadd.f32 %v2111, %v2379
      %v2534 = vadd.f32 %v2112, %v2384
      %v2535 = vadd.f32 %v2113, %v2389
      %v2536 = vadd.f32 %v2114, %v2394
      %v2537 = vadd.f32 %v2115, %v2399
      %v2538 = vadd.f32 %v2116, %v2404
      %v2539 = vadd.f32 %v2117, %v2409
      %v2540 = vadd.f32 %v2118, %v2414
      %v2541 = vadd.f32 %v2119, %v2419
      %v2542 = vadd.f32 %v2120, %v2424
      %v2543 = vadd.f32 %v2121, %v2429
      %v2544 = vadd.f32 %v2122, %v2434
      %v2545 = vadd.f32 %v2123, %v2439
      %v2546 = vadd.f32 %v2124, %v2444
      %v2547 = vadd.f32 %v2125, %v2449
      %v2548 = vadd.f32 %v2126, %v2454
      %v2549 = vadd.f32 %v2127, %v2459
      %v2550 = vadd.f32 %v2128, %v2464
      %v2551 = vadd.f32 %v2129, %v2469
      %v2552 = vadd.f32 %v2130, %v2474
      %v2553 = vadd.f32 %v2131, %v2479
      %v2554 = vadd.f32 %v2132, %v2484
      %v2555 = vadd.f32 %v2133, %v2489
      %v2556 = vadd.f32 %v2134, %v2494
      %v2557 = vadd.f32 %v2135, %v2499
      %v2558 = vadd.f32 %v2136, %v2504
      %v2559 = vadd.f32 %v2137, %v2509
      %v2560 = vadd.f32 %v2138, %v2514
      %v2561 = vadd.f32 %v2139, %v2519
      %v2562 = vadd.f32 %v2140, %v2524
      %v2563 = vadd.f32 %v2141, %v2529
      %s2564 = scalar_lea.vmem %s3, 8
      %v2565 = vld [vmem:[%s2564] sm:$0xf]
      %v2567 = vsel %vm353, %v2174, 0
      %v2570 = vsel %vm353, %v2175, 0
      %v2573 = vsel %vm353, %v2176, 0
      %v2576 = vsel %vm353, %v2177, 0
      %v2579 = vsel %vm353, %v2178, 0
      %v2582 = vsel %vm353, %v2179, 0
      %v2585 = vsel %vm353, %v2180, 0
      %v2588 = vsel %vm353, %v2181, 0
      %v2591 = vsel %vm353, %v2182, 0
      %v2594 = vsel %vm353, %v2183, 0
      %v2597 = vsel %vm353, %v2184, 0
      %v2600 = vsel %vm353, %v2185, 0
      %v2603 = vsel %vm353, %v2186, 0
      %v2606 = vsel %vm353, %v2187, 0
      %v2609 = vsel %vm353, %v2188, 0
      %v2612 = vsel %vm353, %v2189, 0
      %v2615 = vsel %vm353, %v2190, 0
      %v2618 = vsel %vm353, %v2191, 0
      %v2621 = vsel %vm353, %v2192, 0
      %v2624 = vsel %vm353, %v2193, 0
      %v2627 = vsel %vm353, %v2194, 0
      %v2630 = vsel %vm353, %v2195, 0
      %v2633 = vsel %vm353, %v2196, 0
      %v2636 = vsel %vm353, %v2197, 0
      %v2639 = vsel %vm353, %v2198, 0
      %v2642 = vsel %vm353, %v2199, 0
      %v2645 = vsel %vm353, %v2200, 0
      %v2648 = vsel %vm353, %v2201, 0
      %v2651 = vsel %vm353, %v2202, 0
      %v2654 = vsel %vm353, %v2203, 0
      %v2657 = vsel %vm353, %v2204, 0
      %v2660 = vsel %vm353, %v2205, 0
      %v2663 = vsel %vm809, %v2565, 0
      %2665 = vmatprep.subr.mxu0 0.0
      %2666 = vmatpush1.msra.mxu0 %v2663
      %2667 = vmatprep.subr.mxu0 0.0
      %2668 = vmatpush1.msra.mxu0 0.0
      %2669 = vmatprep.subr.mxu0 0.0
      %2670 = vmatpush1.msra.mxu0 0.0
      %2671 = vmatprep.subr.mxu0 0.0
      %2672 = vmatpush1.msra.mxu0 0.0
      %2673 = vmatprep.subr.mxu0 0.0
      %2674 = vmatpush1.msra.mxu0 0.0
      %2675 = vmatprep.subr.mxu0 0.0
      %2676 = vmatpush1.msra.mxu0 0.0
      %2677 = vmatprep.subr.mxu0 0.0
      %2678 = vmatpush1.msra.mxu0 0.0
      %2679 = vmatprep.subr.mxu0 0.0
      %2680 = vmatpush1.msra.mxu0 0.0
      %2681 = vmatprep.subr.mxu0 0.0
      %2682 = vmatpush1.msra.mxu0 0.0
      %2683 = vmatprep.subr.mxu0 0.0
      %2684 = vmatpush1.msra.mxu0 0.0
      %2685 = vmatprep.subr.mxu0 0.0
      %2686 = vmatpush1.msra.mxu0 0.0
      %2687 = vmatprep.subr.mxu0 0.0
      %2688 = vmatpush1.msra.mxu0 0.0
      %2689 = vmatprep.subr.mxu0 0.0
      %2690 = vmatpush1.msra.mxu0 0.0
      %2691 = vmatprep.subr.mxu0 0.0
      %2692 = vmatpush1.msra.mxu0 0.0
      %2693 = vmatprep.subr.mxu0 0.0
      %2694 = vmatpush1.msra.mxu0 0.0
      %2695 = vmatprep.subr.mxu0 0.0
      %2696 = vmatpush1.msra.mxu0 0.0
      %2697 = vmatprep.subr.mxu0 0.0
      %2698 = vmatpush1.msra.mxu0 0.0
      %2699 = vmatprep.subr.mxu0 0.0
      %2700 = vmatpush1.msra.mxu0 0.0
      %2701 = vmatprep.subr.mxu0 0.0
      %2702 = vmatpush1.msra.mxu0 0.0
      %2703 = vmatprep.subr.mxu0 0.0
      %2704 = vmatpush1.msra.mxu0 0.0
      %2705 = vmatprep.subr.mxu0 0.0
      %2706 = vmatpush1.msra.mxu0 0.0
      %2707 = vmatprep.subr.mxu0 0.0
      %2708 = vmatpush1.msra.mxu0 0.0
      %2709 = vmatprep.subr.mxu0 0.0
      %2710 = vmatpush1.msra.mxu0 0.0
      %2711 = vmatprep.subr.mxu0 0.0
      %2712 = vmatpush1.msra.mxu0 0.0
      %2713 = vmatprep.subr.mxu0 0.0
      %2714 = vmatpush1.msra.mxu0 0.0
      %2715 = vmatprep.subr.mxu0 0.0
      %2716 = vmatpush1.msra.mxu0 0.0
      %2717 = vmatprep.subr.mxu0 0.0
      %2718 = vmatpush1.msra.mxu0 0.0
      %2719 = vmatprep.subr.mxu0 0.0
      %2720 = vmatpush1.msra.mxu0 0.0
      %2721 = vmatprep.subr.mxu0 0.0
      %2722 = vmatpush1.msra.mxu0 0.0
      %2723 = vmatprep.subr.mxu0 0.0
      %2724 = vmatpush1.msra.mxu0 0.0
      %2725 = vmatprep.subr.mxu0 0.0
      %2726 = vmatpush1.msra.mxu0 0.0
      %2727 = vmatprep.subr.mxu0 0.0
      %2728 = vmatpush1.msra.mxu0 0.0
      %2729 = vmatprep.mubr.f32.mxu0 0.0
      %2730 = vmatmul.mubr.f32.gmra.mrb[0].mxu0 %v2567
      %v2731 = vpop.f32.mrb[0].mxu0
      %v2732 = vadd.f32 0.0, %v2731
      %v2733 = vpop.f32.mrb[0].mxu0
      %2734 = vmatprep.mubr.f32.mxu0 0.0
      %2735 = vmatmul.mubr.f32.gmra.mrb[0].mxu0 %v2570
      %v2736 = vpop.f32.mrb[0].mxu0
      %v2737 = vadd.f32 0.0, %v2736
      %v2738 = vpop.f32.mrb[0].mxu0
      %2739 = vmatprep.mubr.f32.mxu0 0.0
      %2740 = vmatmul.mubr.f32.gmra.mrb[0].mxu0 %v2573
      %v2741 = vpop.f32.mrb[0].mxu0
      %v2742 = vadd.f32 0.0, %v2741
      %v2743 = vpop.f32.mrb[0].mxu0
      %2744 = vmatprep.mubr.f32.mxu0 0.0
      %2745 = vmatmul.mubr.f32.gmra.mrb[0].mxu0 %v2576
      %v2746 = vpop.f32.mrb[0].mxu0
      %v2747 = vadd.f32 0.0, %v2746
      %v2748 = vpop.f32.mrb[0].mxu0
      %2749 = vmatprep.mubr.f32.mxu0 0.0
      %2750 = vmatmul.mubr.f32.gmra.mrb[0].mxu0 %v2579
      %v2751 = vpop.f32.mrb[0].mxu0
      %v2752 = vadd.f32 0.0, %v2751
      %v2753 = vpop.f32.mrb[0].mxu0
      %2754 = vmatprep.mubr.f32.mxu0 0.0
      %2755 = vmatmul.mubr.f32.gmra.mrb[0].mxu0 %v2582
      %v2756 = vpop.f32.mrb[0].mxu0
      %v2757 = vadd.f32 0.0, %v2756
      %v2758 = vpop.f32.mrb[0].mxu0
      %2759 = vmatprep.mubr.f32.mxu0 0.0
      %2760 = vmatmul.mubr.f32.gmra.mrb[0].mxu0 %v2585
      %v2761 = vpop.f32.mrb[0].mxu0
      %v2762 = vadd.f32 0.0, %v2761
      %v2763 = vpop.f32.mrb[0].mxu0
      %2764 = vmatprep.mubr.f32.mxu0 0.0
      %2765 = vmatmul.mubr.f32.gmra.mrb[0].mxu0 %v2588
      %v2766 = vpop.f32.mrb[0].mxu0
      %v2767 = vadd.f32 0.0, %v2766
      %v2768 = vpop.f32.mrb[0].mxu0
      %2769 = vmatprep.mubr.f32.mxu0 0.0
      %2770 = vmatmul.mubr.f32.gmra.mrb[0].mxu0 %v2591
      %v2771 = vpop.f32.mrb[0].mxu0
      %v2772 = vadd.f32 0.0, %v2771
      %v2773 = vpop.f32.mrb[0].mxu0
      %2774 = vmatprep.mubr.f32.mxu0 0.0
      %2775 = vmatmul.mubr.f32.gmra.mrb[0].mxu0 %v2594
      %v2776 = vpop.f32.mrb[0].mxu0
      %v2777 = vadd.f32 0.0, %v2776
      %v2778 = vpop.f32.mrb[0].mxu0
      %2779 = vmatprep.mubr.f32.mxu0 0.0
      %2780 = vmatmul.mubr.f32.gmra.mrb[0].mxu0 %v2597
      %v2781 = vpop.f32.mrb[0].mxu0
      %v2782 = vadd.f32 0.0, %v2781
      %v2783 = vpop.f32.mrb[0].mxu0
      %2784 = vmatprep.mubr.f32.mxu0 0.0
      %2785 = vmatmul.mubr.f32.gmra.mrb[0].mxu0 %v2600
      %v2786 = vpop.f32.mrb[0].mxu0
      %v2787 = vadd.f32 0.0, %v2786
      %v2788 = vpop.f32.mrb[0].mxu0
      %2789 = vmatprep.mubr.f32.mxu0 0.0
      %2790 = vmatmul.mubr.f32.gmra.mrb[0].mxu0 %v2603
      %v2791 = vpop.f32.mrb[0].mxu0
      %v2792 = vadd.f32 0.0, %v2791
      %v2793 = vpop.f32.mrb[0].mxu0
      %2794 = vmatprep.mubr.f32.mxu0 0.0
      %2795 = vmatmul.mubr.f32.gmra.mrb[0].mxu0 %v2606
      %v2796 = vpop.f32.mrb[0].mxu0
      %v2797 = vadd.f32 0.0, %v2796
      %v2798 = vpop.f32.mrb[0].mxu0
      %2799 = vmatprep.mubr.f32.mxu0 0.0
      %2800 = vmatmul.mubr.f32.gmra.mrb[0].mxu0 %v2609
      %v2801 = vpop.f32.mrb[0].mxu0
      %v2802 = vadd.f32 0.0, %v2801
      %v2803 = vpop.f32.mrb[0].mxu0
      %2804 = vmatprep.mubr.f32.mxu0 0.0
      %2805 = vmatmul.mubr.f32.gmra.mrb[0].mxu0 %v2612
      %v2806 = vpop.f32.mrb[0].mxu0
      %v2807 = vadd.f32 0.0, %v2806
      %v2808 = vpop.f32.mrb[0].mxu0
      %2809 = vmatprep.mubr.f32.mxu0 0.0
      %2810 = vmatmul.mubr.f32.gmra.mrb[0].mxu0 %v2615
      %v2811 = vpop.f32.mrb[0].mxu0
      %v2812 = vadd.f32 0.0, %v2811
      %v2813 = vpop.f32.mrb[0].mxu0
      %2814 = vmatprep.mubr.f32.mxu0 0.0
      %2815 = vmatmul.mubr.f32.gmra.mrb[0].mxu0 %v2618
      %v2816 = vpop.f32.mrb[0].mxu0
      %v2817 = vadd.f32 0.0, %v2816
      %v2818 = vpop.f32.mrb[0].mxu0
      %2819 = vmatprep.mubr.f32.mxu0 0.0
      %2820 = vmatmul.mubr.f32.gmra.mrb[0].mxu0 %v2621
      %v2821 = vpop.f32.mrb[0].mxu0
      %v2822 = vadd.f32 0.0, %v2821
      %v2823 = vpop.f32.mrb[0].mxu0
      %2824 = vmatprep.mubr.f32.mxu0 0.0
      %2825 = vmatmul.mubr.f32.gmra.mrb[0].mxu0 %v2624
      %v2826 = vpop.f32.mrb[0].mxu0
      %v2827 = vadd.f32 0.0, %v2826
      %v2828 = vpop.f32.mrb[0].mxu0
      %2829 = vmatprep.mubr.f32.mxu0 0.0
      %2830 = vmatmul.mubr.f32.gmra.mrb[0].mxu0 %v2627
      %v2831 = vpop.f32.mrb[0].mxu0
      %v2832 = vadd.f32 0.0, %v2831
      %v2833 = vpop.f32.mrb[0].mxu0
      %2834 = vmatprep.mubr.f32.mxu0 0.0
      %2835 = vmatmul.mubr.f32.gmra.mrb[0].mxu0 %v2630
      %v2836 = vpop.f32.mrb[0].mxu0
      %v2837 = vadd.f32 0.0, %v2836
      %v2838 = vpop.f32.mrb[0].mxu0
      %2839 = vmatprep.mubr.f32.mxu0 0.0
      %2840 = vmatmul.mubr.f32.gmra.mrb[0].mxu0 %v2633
      %v2841 = vpop.f32.mrb[0].mxu0
      %v2842 = vadd.f32 0.0, %v2841
      %v2843 = vpop.f32.mrb[0].mxu0
      %2844 = vmatprep.mubr.f32.mxu0 0.0
      %2845 = vmatmul.mubr.f32.gmra.mrb[0].mxu0 %v2636
      %v2846 = vpop.f32.mrb[0].mxu0
      %v2847 = vadd.f32 0.0, %v2846
      %v2848 = vpop.f32.mrb[0].mxu0
      %2849 = vmatprep.mubr.f32.mxu0 0.0
      %2850 = vmatmul.mubr.f32.gmra.mrb[0].mxu0 %v2639
      %v2851 = vpop.f32.mrb[0].mxu0
      %v2852 = vadd.f32 0.0, %v2851
      %v2853 = vpop.f32.mrb[0].mxu0
      %2854 = vmatprep.mubr.f32.mxu0 0.0
      %2855 = vmatmul.mubr.f32.gmra.mrb[0].mxu0 %v2642
      %v2856 = vpop.f32.mrb[0].mxu0
      %v2857 = vadd.f32 0.0, %v2856
      %v2858 = vpop.f32.mrb[0].mxu0
      %2859 = vmatprep.mubr.f32.mxu0 0.0
      %2860 = vmatmul.mubr.f32.gmra.mrb[0].mxu0 %v2645
      %v2861 = vpop.f32.mrb[0].mxu0
      %v2862 = vadd.f32 0.0, %v2861
      %v2863 = vpop.f32.mrb[0].mxu0
      %2864 = vmatprep.mubr.f32.mxu0 0.0
      %2865 = vmatmul.mubr.f32.gmra.mrb[0].mxu0 %v2648
      %v2866 = vpop.f32.mrb[0].mxu0
      %v2867 = vadd.f32 0.0, %v2866
      %v2868 = vpop.f32.mrb[0].mxu0
      %2869 = vmatprep.mubr.f32.mxu0 0.0
      %2870 = vmatmul.mubr.f32.gmra.mrb[0].mxu0 %v2651
      %v2871 = vpop.f32.mrb[0].mxu0
      %v2872 = vadd.f32 0.0, %v2871
      %v2873 = vpop.f32.mrb[0].mxu0
      %2874 = vmatprep.mubr.f32.mxu0 0.0
      %2875 = vmatmul.mubr.f32.gmra.mrb[0].mxu0 %v2654
      %v2876 = vpop.f32.mrb[0].mxu0
      %v2877 = vadd.f32 0.0, %v2876
      %v2878 = vpop.f32.mrb[0].mxu0
      %2879 = vmatprep.mubr.f32.mxu0 0.0
      %2880 = vmatmul.mubr.f32.gmra.mrb[0].mxu0 %v2657
      %v2881 = vpop.f32.mrb[0].mxu0
      %v2882 = vadd.f32 0.0, %v2881
      %v2883 = vpop.f32.mrb[0].mxu0
      %2884 = vmatprep.mubr.f32.mxu0 0.0
      %2885 = vmatmul.mubr.f32.gmra.mrb[0].mxu0 %v2660
      %v2886 = vpop.f32.mrb[0].mxu0
      %v2887 = vadd.f32 0.0, %v2886
      %v2888 = vpop.f32.mrb[0].mxu0
      %2889 = vdwg.mxu0
      %v2890 = vadd.f32 %v2532, %v2732
      %v2891 = vadd.f32 %v2533, %v2737
      %v2892 = vadd.f32 %v2534, %v2742
      %v2893 = vadd.f32 %v2535, %v2747
      %v2894 = vadd.f32 %v2536, %v2752
      %v2895 = vadd.f32 %v2537, %v2757
      %v2896 = vadd.f32 %v2538, %v2762
      %v2897 = vadd.f32 %v2539, %v2767
      %v2898 = vadd.f32 %v2540, %v2772
      %v2899 = vadd.f32 %v2541, %v2777
      %v2900 = vadd.f32 %v2542, %v2782
      %v2901 = vadd.f32 %v2543, %v2787
      %v2902 = vadd.f32 %v2544, %v2792
      %v2903 = vadd.f32 %v2545, %v2797
      %v2904 = vadd.f32 %v2546, %v2802
      %v2905 = vadd.f32 %v2547, %v2807
      %v2906 = vadd.f32 %v2548, %v2812
      %v2907 = vadd.f32 %v2549, %v2817
      %v2908 = vadd.f32 %v2550, %v2822
      %v2909 = vadd.f32 %v2551, %v2827
      %v2910 = vadd.f32 %v2552, %v2832
      %v2911 = vadd.f32 %v2553, %v2837
      %v2912 = vadd.f32 %v2554, %v2842
      %v2913 = vadd.f32 %v2555, %v2847
      %v2914 = vadd.f32 %v2556, %v2852
      %v2915 = vadd.f32 %v2557, %v2857
      %v2916 = vadd.f32 %v2558, %v2862
      %v2917 = vadd.f32 %v2559, %v2867
      %v2918 = vadd.f32 %v2560, %v2872
      %v2919 = vadd.f32 %v2561, %v2877
      %v2920 = vadd.f32 %v2562, %v2882
      %v2921 = vadd.f32 %v2563, %v2887
      %v2922 = vld [vmem:[%s549] sm:$0xff]
      %v2923 = vld [vmem:[%s549 + $0x8] sm:$0xff]
      %v2924 = vld [vmem:[%s549 + $0x18] sm:$0xff]
      %v2925 = vld [vmem:[%s549 + $0x20] sm:$0xff]
      %v2926 = vld [vmem:[%s549 + $0x30] sm:$0xff]
      %v2927 = vld [vmem:[%s549 + $0x38] sm:$0xff]
      %v2928 = vld [vmem:[%s549 + $0x48] sm:$0xff]
      %v2929 = vld [vmem:[%s549 + $0x50] sm:$0xff]
      %v2930 = vld [vmem:[%s549 + $0x60] sm:$0xff]
      %v2931 = vld [vmem:[%s549 + $0x68] sm:$0xff]
      %v2932 = vld [vmem:[%s549 + $0x78] sm:$0xff]
      %v2933 = vld [vmem:[%s549 + $0x80] sm:$0xff]
      %v2934 = vld [vmem:[%s549 + $0x90] sm:$0xff]
      %v2935 = vld [vmem:[%s549 + $0x98] sm:$0xff]
      %v2936 = vld [vmem:[%s549 + $0xa8] sm:$0xff]
      %v2937 = vld [vmem:[%s549 + $0xb0] sm:$0xff]
      %v2938 = vld [vmem:[%s549 + $0xc0] sm:$0xff]
      %v2939 = vld [vmem:[%s549 + $0xc8] sm:$0xff]
      %v2940 = vld [vmem:[%s549 + $0xd8] sm:$0xff]
      %v2941 = vld [vmem:[%s549 + $0xe0] sm:$0xff]
      %v2942 = vld [vmem:[%s549 + $0xf0] sm:$0xff]
      %v2943 = vld [vmem:[%s549 + $0xf8] sm:$0xff]
      %v2944 = vld [vmem:[%s549 + $0x108] sm:$0xff]
      %v2945 = vld [vmem:[%s549 + $0x110] sm:$0xff]
      %v2946 = vld [vmem:[%s549 + $0x120] sm:$0xff]
      %v2947 = vld [vmem:[%s549 + $0x128] sm:$0xff]
      %v2948 = vld [vmem:[%s549 + $0x138] sm:$0xff]
      %v2949 = vld [vmem:[%s549 + $0x140] sm:$0xff]
      %v2950 = vld [vmem:[%s549 + $0x150] sm:$0xff]
      %v2951 = vld [vmem:[%s549 + $0x158] sm:$0xff]
      %v2952 = vld [vmem:[%s549 + $0x168] sm:$0xff]
      %v2953 = vld [vmem:[%s549 + $0x170] sm:$0xff]
      %v2954 = vld [vmem:[%s614] sm:$0xff]
      %v2955 = vld [vmem:[%s614 + $0x8] sm:$0xff]
      %v2956 = vld [vmem:[%s614 + $0x18] sm:$0xff]
      %v2957 = vld [vmem:[%s614 + $0x20] sm:$0xff]
      %v2958 = vld [vmem:[%s614 + $0x30] sm:$0xff]
      %v2959 = vld [vmem:[%s614 + $0x38] sm:$0xff]
      %v2960 = vld [vmem:[%s614 + $0x48] sm:$0xff]
      %v2961 = vld [vmem:[%s614 + $0x50] sm:$0xff]
      %v2962 = vld [vmem:[%s614 + $0x60] sm:$0xff]
      %v2963 = vld [vmem:[%s614 + $0x68] sm:$0xff]
      %v2964 = vld [vmem:[%s614 + $0x78] sm:$0xff]
      %v2965 = vld [vmem:[%s614 + $0x80] sm:$0xff]
      %v2966 = vld [vmem:[%s614 + $0x90] sm:$0xff]
      %v2967 = vld [vmem:[%s614 + $0x98] sm:$0xff]
      %v2968 = vld [vmem:[%s614 + $0xa8] sm:$0xff]
      %v2969 = vld [vmem:[%s614 + $0xb0] sm:$0xff]
      %v2970 = vld [vmem:[%s614 + $0xc0] sm:$0xff]
      %v2971 = vld [vmem:[%s614 + $0xc8] sm:$0xff]
      %v2972 = vld [vmem:[%s614 + $0xd8] sm:$0xff]
      %v2973 = vld [vmem:[%s614 + $0xe0] sm:$0xff]
      %v2974 = vld [vmem:[%s614 + $0xf0] sm:$0xff]
      %v2975 = vld [vmem:[%s614 + $0xf8] sm:$0xff]
      %v2976 = vld [vmem:[%s614 + $0x108] sm:$0xff]
      %v2977 = vld [vmem:[%s614 + $0x110] sm:$0xff]
      %v2978 = vld [vmem:[%s614 + $0x120] sm:$0xff]
      %v2979 = vld [vmem:[%s614 + $0x128] sm:$0xff]
      %v2980 = vld [vmem:[%s614 + $0x138] sm:$0xff]
      %v2981 = vld [vmem:[%s614 + $0x140] sm:$0xff]
      %v2982 = vld [vmem:[%s614 + $0x150] sm:$0xff]
      %v2983 = vld [vmem:[%s614 + $0x158] sm:$0xff]
      %v2984 = vld [vmem:[%s614 + $0x168] sm:$0xff]
      %v2985 = vld [vmem:[%s614 + $0x170] sm:$0xff]
      %s2986 = scalar_lea.vmem %s2, 12
      %v2987 = vld [vmem:[%s2986] sm:$0xf]
      %v2989 = vsel %vm353, %v2922, 0
      %v2992 = vsel %vm353, %v2923, 0
      %v2995 = vsel %vm353, %v2924, 0
      %v2998 = vsel %vm353, %v2925, 0
      %v3001 = vsel %vm353, %v2926, 0
      %v3004 = vsel %vm353, %v2927, 0
      %v3007 = vsel %vm353, %v2928, 0
      %v3010 = vsel %vm353, %v2929, 0
      %v3013 = vsel %vm353, %v2930, 0
      %v3016 = vsel %vm353, %v2931, 0
      %v3019 = vsel %vm353, %v2932, 0
      %v3022 = vsel %vm353, %v2933, 0
      %v3025 = vsel %vm353, %v2934, 0
      %v3028 = vsel %vm353, %v2935, 0
      %v3031 = vsel %vm353, %v2936, 0
      %v3034 = vsel %vm353, %v2937, 0
      %v3037 = vsel %vm353, %v2938, 0
      %v3040 = vsel %vm353, %v2939, 0
      %v3043 = vsel %vm353, %v2940, 0
      %v3046 = vsel %vm353, %v2941, 0
      %v3049 = vsel %vm353, %v2942, 0
      %v3052 = vsel %vm353, %v2943, 0
      %v3055 = vsel %vm353, %v2944, 0
      %v3058 = vsel %vm353, %v2945, 0
      %v3061 = vsel %vm353, %v2946, 0
      %v3064 = vsel %vm353, %v2947, 0
      %v3067 = vsel %vm353, %v2948, 0
      %v3070 = vsel %vm353, %v2949, 0
      %v3073 = vsel %vm353, %v2950, 0
      %v3076 = vsel %vm353, %v2951, 0
      %v3079 = vsel %vm353, %v2952, 0
      %v3082 = vsel %vm353, %v2953, 0
      %v3085 = vsel %vm809, %v2987, 0
      %3087 = vmatprep.subr.mxu0 0.0
      %3088 = vmatpush1.msra.mxu0 %v3085
      %3089 = vmatprep.subr.mxu0 0.0
      %3090 = vmatpush1.msra.mxu0 0.0
      %3091 = vmatprep.subr.mxu0 0.0
      %3092 = vmatpush1.msra.mxu0 0.0
      %3093 = vmatprep.subr.mxu0 0.0
      %3094 = vmatpush1.msra.mxu0 0.0
      %3095 = vmatprep.subr.mxu0 0.0
      %3096 = vmatpush1.msra.mxu0 0.0
      %3097 = vmatprep.subr.mxu0 0.0
      %3098 = vmatpush1.msra.mxu0 0.0
      %3099 = vmatprep.subr.mxu0 0.0
      %3100 = vmatpush1.msra.mxu0 0.0
      %3101 = vmatprep.subr.mxu0 0.0
      %3102 = vmatpush1.msra.mxu0 0.0
      %3103 = vmatprep.subr.mxu0 0.0
      %3104 = vmatpush1.msra.mxu0 0.0
      %3105 = vmatprep.subr.mxu0 0.0
      %3106 = vmatpush1.msra.mxu0 0.0
      %3107 = vmatprep.subr.mxu0 0.0
      %3108 = vmatpush1.msra.mxu0 0.0
      %3109 = vmatprep.subr.mxu0 0.0
      %3110 = vmatpush1.msra.mxu0 0.0
      %3111 = vmatprep.subr.mxu0 0.0
      %3112 = vmatpush1.msra.mxu0 0.0
      %3113 = vmatprep.subr.mxu0 0.0
      %3114 = vmatpush1.msra.mxu0 0.0
      %3115 = vmatprep.subr.mxu0 0.0
      %3116 = vmatpush1.msra.mxu0 0.0
      %3117 = vmatprep.subr.mxu0 0.0
      %3118 = vmatpush1.msra.mxu0 0.0
      %3119 = vmatprep.subr.mxu0 0.0
      %3120 = vmatpush1.msra.mxu0 0.0
      %3121 = vmatprep.subr.mxu0 0.0
      %3122 = vmatpush1.msra.mxu0 0.0
      %3123 = vmatprep.subr.mxu0 0.0
      %3124 = vmatpush1.msra.mxu0 0.0
      %3125 = vmatprep.subr.mxu0 0.0
      %3126 = vmatpush1.msra.mxu0 0.0
      %3127 = vmatprep.subr.mxu0 0.0
      %3128 = vmatpush1.msra.mxu0 0.0
      %3129 = vmatprep.subr.mxu0 0.0
      %3130 = vmatpush1.msra.mxu0 0.0
      %3131 = vmatprep.subr.mxu0 0.0
      %3132 = vmatpush1.msra.mxu0 0.0
      %3133 = vmatprep.subr.mxu0 0.0
      %3134 = vmatpush1.msra.mxu0 0.0
      %3135 = vmatprep.subr.mxu0 0.0
      %3136 = vmatpush1.msra.mxu0 0.0
      %3137 = vmatprep.subr.mxu0 0.0
      %3138 = vmatpush1.msra.mxu0 0.0
      %3139 = vmatprep.subr.mxu0 0.0
      %3140 = vmatpush1.msra.mxu0 0.0
      %3141 = vmatprep.subr.mxu0 0.0
      %3142 = vmatpush1.msra.mxu0 0.0
      %3143 = vmatprep.subr.mxu0 0.0
      %3144 = vmatpush1.msra.mxu0 0.0
      %3145 = vmatprep.subr.mxu0 0.0
      %3146 = vmatpush1.msra.mxu0 0.0
      %3147 = vmatprep.subr.mxu0 0.0
      %3148 = vmatpush1.msra.mxu0 0.0
      %3149 = vmatprep.subr.mxu0 0.0
      %3150 = vmatpush1.msra.mxu0 0.0
      %3151 = vmatprep.mubr.f32.mxu0 0.0
      %3152 = vmatmul.mubr.f32.gmra.mrb[0].mxu0 %v2989
      %v3153 = vpop.f32.mrb[0].mxu0
      %v3154 = vadd.f32 0.0, %v3153
      %v3155 = vpop.f32.mrb[0].mxu0
      %3156 = vmatprep.mubr.f32.mxu0 0.0
      %3157 = vmatmul.mubr.f32.gmra.mrb[0].mxu0 %v2992
      %v3158 = vpop.f32.mrb[0].mxu0
      %v3159 = vadd.f32 0.0, %v3158
      %v3160 = vpop.f32.mrb[0].mxu0
      %3161 = vmatprep.mubr.f32.mxu0 0.0
      %3162 = vmatmul.mubr.f32.gmra.mrb[0].mxu0 %v2995
      %v3163 = vpop.f32.mrb[0].mxu0
      %v3164 = vadd.f32 0.0, %v3163
      %v3165 = vpop.f32.mrb[0].mxu0
      %3166 = vmatprep.mubr.f32.mxu0 0.0
      %3167 = vmatmul.mubr.f32.gmra.mrb[0].mxu0 %v2998
      %v3168 = vpop.f32.mrb[0].mxu0
      %v3169 = vadd.f32 0.0, %v3168
      %v3170 = vpop.f32.mrb[0].mxu0
      %3171 = vmatprep.mubr.f32.mxu0 0.0
      %3172 = vmatmul.mubr.f32.gmra.mrb[0].mxu0 %v3001
      %v3173 = vpop.f32.mrb[0].mxu0
      %v3174 = vadd.f32 0.0, %v3173
      %v3175 = vpop.f32.mrb[0].mxu0
      %3176 = vmatprep.mubr.f32.mxu0 0.0
      %3177 = vmatmul.mubr.f32.gmra.mrb[0].mxu0 %v3004
      %v3178 = vpop.f32.mrb[0].mxu0
      %v3179 = vadd.f32 0.0, %v3178
      %v3180 = vpop.f32.mrb[0].mxu0
      %3181 = vmatprep.mubr.f32.mxu0 0.0
      %3182 = vmatmul.mubr.f32.gmra.mrb[0].mxu0 %v3007
      %v3183 = vpop.f32.mrb[0].mxu0
      %v3184 = vadd.f32 0.0, %v3183
      %v3185 = vpop.f32.mrb[0].mxu0
      %3186 = vmatprep.mubr.f32.mxu0 0.0
      %3187 = vmatmul.mubr.f32.gmra.mrb[0].mxu0 %v3010
      %v3188 = vpop.f32.mrb[0].mxu0
      %v3189 = vadd.f32 0.0, %v3188
      %v3190 = vpop.f32.mrb[0].mxu0
      %3191 = vmatprep.mubr.f32.mxu0 0.0
      %3192 = vmatmul.mubr.f32.gmra.mrb[0].mxu0 %v3013
      %v3193 = vpop.f32.mrb[0].mxu0
      %v3194 = vadd.f32 0.0, %v3193
      %v3195 = vpop.f32.mrb[0].mxu0
      %3196 = vmatprep.mubr.f32.mxu0 0.0
      %3197 = vmatmul.mubr.f32.gmra.mrb[0].mxu0 %v3016
      %v3198 = vpop.f32.mrb[0].mxu0
      %v3199 = vadd.f32 0.0, %v3198
      %v3200 = vpop.f32.mrb[0].mxu0
      %3201 = vmatprep.mubr.f32.mxu0 0.0
      %3202 = vmatmul.mubr.f32.gmra.mrb[0].mxu0 %v3019
      %v3203 = vpop.f32.mrb[0].mxu0
      %v3204 = vadd.f32 0.0, %v3203
      %v3205 = vpop.f32.mrb[0].mxu0
      %3206 = vmatprep.mubr.f32.mxu0 0.0
      %3207 = vmatmul.mubr.f32.gmra.mrb[0].mxu0 %v3022
      %v3208 = vpop.f32.mrb[0].mxu0
      %v3209 = vadd.f32 0.0, %v3208
      %v3210 = vpop.f32.mrb[0].mxu0
      %3211 = vmatprep.mubr.f32.mxu0 0.0
      %3212 = vmatmul.mubr.f32.gmra.mrb[0].mxu0 %v3025
      %v3213 = vpop.f32.mrb[0].mxu0
      %v3214 = vadd.f32 0.0, %v3213
      %v3215 = vpop.f32.mrb[0].mxu0
      %3216 = vmatprep.mubr.f32.mxu0 0.0
      %3217 = vmatmul.mubr.f32.gmra.mrb[0].mxu0 %v3028
      %v3218 = vpop.f32.mrb[0].mxu0
      %v3219 = vadd.f32 0.0, %v3218
      %v3220 = vpop.f32.mrb[0].mxu0
      %3221 = vmatprep.mubr.f32.mxu0 0.0
      %3222 = vmatmul.mubr.f32.gmra.mrb[0].mxu0 %v3031
      %v3223 = vpop.f32.mrb[0].mxu0
      %v3224 = vadd.f32 0.0, %v3223
      %v3225 = vpop.f32.mrb[0].mxu0
      %3226 = vmatprep.mubr.f32.mxu0 0.0
      %3227 = vmatmul.mubr.f32.gmra.mrb[0].mxu0 %v3034
      %v3228 = vpop.f32.mrb[0].mxu0
      %v3229 = vadd.f32 0.0, %v3228
      %v3230 = vpop.f32.mrb[0].mxu0
      %3231 = vmatprep.mubr.f32.mxu0 0.0
      %3232 = vmatmul.mubr.f32.gmra.mrb[0].mxu0 %v3037
      %v3233 = vpop.f32.mrb[0].mxu0
      %v3234 = vadd.f32 0.0, %v3233
      %v3235 = vpop.f32.mrb[0].mxu0
      %3236 = vmatprep.mubr.f32.mxu0 0.0
      %3237 = vmatmul.mubr.f32.gmra.mrb[0].mxu0 %v3040
      %v3238 = vpop.f32.mrb[0].mxu0
      %v3239 = vadd.f32 0.0, %v3238
      %v3240 = vpop.f32.mrb[0].mxu0
      %3241 = vmatprep.mubr.f32.mxu0 0.0
      %3242 = vmatmul.mubr.f32.gmra.mrb[0].mxu0 %v3043
      %v3243 = vpop.f32.mrb[0].mxu0
      %v3244 = vadd.f32 0.0, %v3243
      %v3245 = vpop.f32.mrb[0].mxu0
      %3246 = vmatprep.mubr.f32.mxu0 0.0
      %3247 = vmatmul.mubr.f32.gmra.mrb[0].mxu0 %v3046
      %v3248 = vpop.f32.mrb[0].mxu0
      %v3249 = vadd.f32 0.0, %v3248
      %v3250 = vpop.f32.mrb[0].mxu0
      %3251 = vmatprep.mubr.f32.mxu0 0.0
      %3252 = vmatmul.mubr.f32.gmra.mrb[0].mxu0 %v3049
      %v3253 = vpop.f32.mrb[0].mxu0
      %v3254 = vadd.f32 0.0, %v3253
      %v3255 = vpop.f32.mrb[0].mxu0
      %3256 = vmatprep.mubr.f32.mxu0 0.0
      %3257 = vmatmul.mubr.f32.gmra.mrb[0].mxu0 %v3052
      %v3258 = vpop.f32.mrb[0].mxu0
      %v3259 = vadd.f32 0.0, %v3258
      %v3260 = vpop.f32.mrb[0].mxu0
      %3261 = vmatprep.mubr.f32.mxu0 0.0
      %3262 = vmatmul.mubr.f32.gmra.mrb[0].mxu0 %v3055
      %v3263 = vpop.f32.mrb[0].mxu0
      %v3264 = vadd.f32 0.0, %v3263
      %v3265 = vpop.f32.mrb[0].mxu0
      %3266 = vmatprep.mubr.f32.mxu0 0.0
      %3267 = vmatmul.mubr.f32.gmra.mrb[0].mxu0 %v3058
      %v3268 = vpop.f32.mrb[0].mxu0
      %v3269 = vadd.f32 0.0, %v3268
      %v3270 = vpop.f32.mrb[0].mxu0
      %3271 = vmatprep.mubr.f32.mxu0 0.0
      %3272 = vmatmul.mubr.f32.gmra.mrb[0].mxu0 %v3061
      %v3273 = vpop.f32.mrb[0].mxu0
      %v3274 = vadd.f32 0.0, %v3273
      %v3275 = vpop.f32.mrb[0].mxu0
      %3276 = vmatprep.mubr.f32.mxu0 0.0
      %3277 = vmatmul.mubr.f32.gmra.mrb[0].mxu0 %v3064
      %v3278 = vpop.f32.mrb[0].mxu0
      %v3279 = vadd.f32 0.0, %v3278
      %v3280 = vpop.f32.mrb[0].mxu0
      %3281 = vmatprep.mubr.f32.mxu0 0.0
      %3282 = vmatmul.mubr.f32.gmra.mrb[0].mxu0 %v3067
      %v3283 = vpop.f32.mrb[0].mxu0
      %v3284 = vadd.f32 0.0, %v3283
      %v3285 = vpop.f32.mrb[0].mxu0
      %3286 = vmatprep.mubr.f32.mxu0 0.0
      %3287 = vmatmul.mubr.f32.gmra.mrb[0].mxu0 %v3070
      %v3288 = vpop.f32.mrb[0].mxu0
      %v3289 = vadd.f32 0.0, %v3288
      %v3290 = vpop.f32.mrb[0].mxu0
      %3291 = vmatprep.mubr.f32.mxu0 0.0
      %3292 = vmatmul.mubr.f32.gmra.mrb[0].mxu0 %v3073
      %v3293 = vpop.f32.mrb[0].mxu0
      %v3294 = vadd.f32 0.0, %v3293
      %v3295 = vpop.f32.mrb[0].mxu0
      %3296 = vmatprep.mubr.f32.mxu0 0.0
      %3297 = vmatmul.mubr.f32.gmra.mrb[0].mxu0 %v3076
      %v3298 = vpop.f32.mrb[0].mxu0
      %v3299 = vadd.f32 0.0, %v3298
      %v3300 = vpop.f32.mrb[0].mxu0
      %3301 = vmatprep.mubr.f32.mxu0 0.0
      %3302 = vmatmul.mubr.f32.gmra.mrb[0].mxu0 %v3079
      %v3303 = vpop.f32.mrb[0].mxu0
      %v3304 = vadd.f32 0.0, %v3303
      %v3305 = vpop.f32.mrb[0].mxu0
      %3306 = vmatprep.mubr.f32.mxu0 0.0
      %3307 = vmatmul.mubr.f32.gmra.mrb[0].mxu0 %v3082
      %v3308 = vpop.f32.mrb[0].mxu0
      %v3309 = vadd.f32 0.0, %v3308
      %v3310 = vpop.f32.mrb[0].mxu0
      %3311 = vdwg.mxu0
      %v3312 = vadd.f32 %v2890, %v3154
      %v3313 = vadd.f32 %v2891, %v3159
      %v3314 = vadd.f32 %v2892, %v3164
      %v3315 = vadd.f32 %v2893, %v3169
      %v3316 = vadd.f32 %v2894, %v3174
      %v3317 = vadd.f32 %v2895, %v3179
      %v3318 = vadd.f32 %v2896, %v3184
      %v3319 = vadd.f32 %v2897, %v3189
      %v3320 = vadd.f32 %v2898, %v3194
      %v3321 = vadd.f32 %v2899, %v3199
      %v3322 = vadd.f32 %v2900, %v3204
      %v3323 = vadd.f32 %v2901, %v3209
      %v3324 = vadd.f32 %v2902, %v3214
      %v3325 = vadd.f32 %v2903, %v3219
      %v3326 = vadd.f32 %v2904, %v3224
      %v3327 = vadd.f32 %v2905, %v3229
      %v3328 = vadd.f32 %v2906, %v3234
      %v3329 = vadd.f32 %v2907, %v3239
      %v3330 = vadd.f32 %v2908, %v3244
      %v3331 = vadd.f32 %v2909, %v3249
      %v3332 = vadd.f32 %v2910, %v3254
      %v3333 = vadd.f32 %v2911, %v3259
      %v3334 = vadd.f32 %v2912, %v3264
      %v3335 = vadd.f32 %v2913, %v3269
      %v3336 = vadd.f32 %v2914, %v3274
      %v3337 = vadd.f32 %v2915, %v3279
      %v3338 = vadd.f32 %v2916, %v3284
      %v3339 = vadd.f32 %v2917, %v3289
      %v3340 = vadd.f32 %v2918, %v3294
      %v3341 = vadd.f32 %v2919, %v3299
      %v3342 = vadd.f32 %v2920, %v3304
      %v3343 = vadd.f32 %v2921, %v3309
      %s3344 = scalar_lea.vmem %s3, 12
      %v3345 = vld [vmem:[%s3344] sm:$0xf]
      %v3347 = vsel %vm353, %v2954, 0
      %v3350 = vsel %vm353, %v2955, 0
      %v3353 = vsel %vm353, %v2956, 0
      %v3356 = vsel %vm353, %v2957, 0
      %v3359 = vsel %vm353, %v2958, 0
      %v3362 = vsel %vm353, %v2959, 0
      %v3365 = vsel %vm353, %v2960, 0
      %v3368 = vsel %vm353, %v2961, 0
      %v3371 = vsel %vm353, %v2962, 0
      %v3374 = vsel %vm353, %v2963, 0
      %v3377 = vsel %vm353, %v2964, 0
      %v3380 = vsel %vm353, %v2965, 0
      %v3383 = vsel %vm353, %v2966, 0
      %v3386 = vsel %vm353, %v2967, 0
      %v3389 = vsel %vm353, %v2968, 0
      %v3392 = vsel %vm353, %v2969, 0
      %v3395 = vsel %vm353, %v2970, 0
      %v3398 = vsel %vm353, %v2971, 0
      %v3401 = vsel %vm353, %v2972, 0
      %v3404 = vsel %vm353, %v2973, 0
      %v3407 = vsel %vm353, %v2974, 0
      %v3410 = vsel %vm353, %v2975, 0
      %v3413 = vsel %vm353, %v2976, 0
      %v3416 = vsel %vm353, %v2977, 0
      %v3419 = vsel %vm353, %v2978, 0
      %v3422 = vsel %vm353, %v2979, 0
      %v3425 = vsel %vm353, %v2980, 0
      %v3428 = vsel %vm353, %v2981, 0
      %v3431 = vsel %vm353, %v2982, 0
      %v3434 = vsel %vm353, %v2983, 0
      %v3437 = vsel %vm353, %v2984, 0
      %v3440 = vsel %vm353, %v2985, 0
      %v3443 = vsel %vm809, %v3345, 0
      %3445 = vmatprep.subr.mxu0 0.0
      %3446 = vmatpush1.msra.mxu0 %v3443
      %3447 = vmatprep.subr.mxu0 0.0
      %3448 = vmatpush1.msra.mxu0 0.0
      %3449 = vmatprep.subr.mxu0 0.0
      %3450 = vmatpush1.msra.mxu0 0.0
      %3451 = vmatprep.subr.mxu0 0.0
      %3452 = vmatpush1.msra.mxu0 0.0
      %3453 = vmatprep.subr.mxu0 0.0
      %3454 = vmatpush1.msra.mxu0 0.0
      %3455 = vmatprep.subr.mxu0 0.0
      %3456 = vmatpush1.msra.mxu0 0.0
      %3457 = vmatprep.subr.mxu0 0.0
      %3458 = vmatpush1.msra.mxu0 0.0
      %3459 = vmatprep.subr.mxu0 0.0
      %3460 = vmatpush1.msra.mxu0 0.0
      %3461 = vmatprep.subr.mxu0 0.0
      %3462 = vmatpush1.msra.mxu0 0.0
      %3463 = vmatprep.subr.mxu0 0.0
      %3464 = vmatpush1.msra.mxu0 0.0
      %3465 = vmatprep.subr.mxu0 0.0
      %3466 = vmatpush1.msra.mxu0 0.0
      %3467 = vmatprep.subr.mxu0 0.0
      %3468 = vmatpush1.msra.mxu0 0.0
      %3469 = vmatprep.subr.mxu0 0.0
      %3470 = vmatpush1.msra.mxu0 0.0
      %3471 = vmatprep.subr.mxu0 0.0
      %3472 = vmatpush1.msra.mxu0 0.0
      %3473 = vmatprep.subr.mxu0 0.0
      %3474 = vmatpush1.msra.mxu0 0.0
      %3475 = vmatprep.subr.mxu0 0.0
      %3476 = vmatpush1.msra.mxu0 0.0
      %3477 = vmatprep.subr.mxu0 0.0
      %3478 = vmatpush1.msra.mxu0 0.0
      %3479 = vmatprep.subr.mxu0 0.0
      %3480 = vmatpush1.msra.mxu0 0.0
      %3481 = vmatprep.subr.mxu0 0.0
      %3482 = vmatpush1.msra.mxu0 0.0
      %3483 = vmatprep.subr.mxu0 0.0
      %3484 = vmatpush1.msra.mxu0 0.0
      %3485 = vmatprep.subr.mxu0 0.0
      %3486 = vmatpush1.msra.mxu0 0.0
      %3487 = vmatprep.subr.mxu0 0.0
      %3488 = vmatpush1.msra.mxu0 0.0
      %3489 = vmatprep.subr.mxu0 0.0
      %3490 = vmatpush1.msra.mxu0 0.0
      %3491 = vmatprep.subr.mxu0 0.0
      %3492 = vmatpush1.msra.mxu0 0.0
      %3493 = vmatprep.subr.mxu0 0.0
      %3494 = vmatpush1.msra.mxu0 0.0
      %3495 = vmatprep.subr.mxu0 0.0
      %3496 = vmatpush1.msra.mxu0 0.0
      %3497 = vmatprep.subr.mxu0 0.0
      %3498 = vmatpush1.msra.mxu0 0.0
      %3499 = vmatprep.subr.mxu0 0.0
      %3500 = vmatpush1.msra.mxu0 0.0
      %3501 = vmatprep.subr.mxu0 0.0
      %3502 = vmatpush1.msra.mxu0 0.0
      %3503 = vmatprep.subr.mxu0 0.0
      %3504 = vmatpush1.msra.mxu0 0.0
      %3505 = vmatprep.subr.mxu0 0.0
      %3506 = vmatpush1.msra.mxu0 0.0
      %3507 = vmatprep.subr.mxu0 0.0
      %3508 = vmatpush1.msra.mxu0 0.0
      %3509 = vmatprep.mubr.f32.mxu0 0.0
      %3510 = vmatmul.mubr.f32.gmra.mrb[0].mxu0 %v3347
      %v3511 = vpop.f32.mrb[0].mxu0
      %v3512 = vadd.f32 0.0, %v3511
      %v3513 = vpop.f32.mrb[0].mxu0
      %3514 = vmatprep.mubr.f32.mxu0 0.0
      %3515 = vmatmul.mubr.f32.gmra.mrb[0].mxu0 %v3350
      %v3516 = vpop.f32.mrb[0].mxu0
      %v3517 = vadd.f32 0.0, %v3516
      %v3518 = vpop.f32.mrb[0].mxu0
      %3519 = vmatprep.mubr.f32.mxu0 0.0
      %3520 = vmatmul.mubr.f32.gmra.mrb[0].mxu0 %v3353
      %v3521 = vpop.f32.mrb[0].mxu0
      %v3522 = vadd.f32 0.0, %v3521
      %v3523 = vpop.f32.mrb[0].mxu0
      %3524 = vmatprep.mubr.f32.mxu0 0.0
      %3525 = vmatmul.mubr.f32.gmra.mrb[0].mxu0 %v3356
      %v3526 = vpop.f32.mrb[0].mxu0
      %v3527 = vadd.f32 0.0, %v3526
      %v3528 = vpop.f32.mrb[0].mxu0
      %3529 = vmatprep.mubr.f32.mxu0 0.0
      %3530 = vmatmul.mubr.f32.gmra.mrb[0].mxu0 %v3359
      %v3531 = vpop.f32.mrb[0].mxu0
      %v3532 = vadd.f32 0.0, %v3531
      %v3533 = vpop.f32.mrb[0].mxu0
      %3534 = vmatprep.mubr.f32.mxu0 0.0
      %3535 = vmatmul.mubr.f32.gmra.mrb[0].mxu0 %v3362
      %v3536 = vpop.f32.mrb[0].mxu0
      %v3537 = vadd.f32 0.0, %v3536
      %v3538 = vpop.f32.mrb[0].mxu0
      %3539 = vmatprep.mubr.f32.mxu0 0.0
      %3540 = vmatmul.mubr.f32.gmra.mrb[0].mxu0 %v3365
      %v3541 = vpop.f32.mrb[0].mxu0
      %v3542 = vadd.f32 0.0, %v3541
      %v3543 = vpop.f32.mrb[0].mxu0
      %3544 = vmatprep.mubr.f32.mxu0 0.0
      %3545 = vmatmul.mubr.f32.gmra.mrb[0].mxu0 %v3368
      %v3546 = vpop.f32.mrb[0].mxu0
      %v3547 = vadd.f32 0.0, %v3546
      %v3548 = vpop.f32.mrb[0].mxu0
      %3549 = vmatprep.mubr.f32.mxu0 0.0
      %3550 = vmatmul.mubr.f32.gmra.mrb[0].mxu0 %v3371
      %v3551 = vpop.f32.mrb[0].mxu0
      %v3552 = vadd.f32 0.0, %v3551
      %v3553 = vpop.f32.mrb[0].mxu0
      %3554 = vmatprep.mubr.f32.mxu0 0.0
      %3555 = vmatmul.mubr.f32.gmra.mrb[0].mxu0 %v3374
      %v3556 = vpop.f32.mrb[0].mxu0
      %v3557 = vadd.f32 0.0, %v3556
      %v3558 = vpop.f32.mrb[0].mxu0
      %3559 = vmatprep.mubr.f32.mxu0 0.0
      %3560 = vmatmul.mubr.f32.gmra.mrb[0].mxu0 %v3377
      %v3561 = vpop.f32.mrb[0].mxu0
      %v3562 = vadd.f32 0.0, %v3561
      %v3563 = vpop.f32.mrb[0].mxu0
      %3564 = vmatprep.mubr.f32.mxu0 0.0
      %3565 = vmatmul.mubr.f32.gmra.mrb[0].mxu0 %v3380
      %v3566 = vpop.f32.mrb[0].mxu0
      %v3567 = vadd.f32 0.0, %v3566
      %v3568 = vpop.f32.mrb[0].mxu0
      %3569 = vmatprep.mubr.f32.mxu0 0.0
      %3570 = vmatmul.mubr.f32.gmra.mrb[0].mxu0 %v3383
      %v3571 = vpop.f32.mrb[0].mxu0
      %v3572 = vadd.f32 0.0, %v3571
      %v3573 = vpop.f32.mrb[0].mxu0
      %3574 = vmatprep.mubr.f32.mxu0 0.0
      %3575 = vmatmul.mubr.f32.gmra.mrb[0].mxu0 %v3386
      %v3576 = vpop.f32.mrb[0].mxu0
      %v3577 = vadd.f32 0.0, %v3576
      %v3578 = vpop.f32.mrb[0].mxu0
      %3579 = vmatprep.mubr.f32.mxu0 0.0
      %3580 = vmatmul.mubr.f32.gmra.mrb[0].mxu0 %v3389
      %v3581 = vpop.f32.mrb[0].mxu0
      %v3582 = vadd.f32 0.0, %v3581
      %v3583 = vpop.f32.mrb[0].mxu0
      %3584 = vmatprep.mubr.f32.mxu0 0.0
      %3585 = vmatmul.mubr.f32.gmra.mrb[0].mxu0 %v3392
      %v3586 = vpop.f32.mrb[0].mxu0
      %v3587 = vadd.f32 0.0, %v3586
      %v3588 = vpop.f32.mrb[0].mxu0
      %3589 = vmatprep.mubr.f32.mxu0 0.0
      %3590 = vmatmul.mubr.f32.gmra.mrb[0].mxu0 %v3395
      %v3591 = vpop.f32.mrb[0].mxu0
      %v3592 = vadd.f32 0.0, %v3591
      %v3593 = vpop.f32.mrb[0].mxu0
      %3594 = vmatprep.mubr.f32.mxu0 0.0
      %3595 = vmatmul.mubr.f32.gmra.mrb[0].mxu0 %v3398
      %v3596 = vpop.f32.mrb[0].mxu0
      %v3597 = vadd.f32 0.0, %v3596
      %v3598 = vpop.f32.mrb[0].mxu0
      %3599 = vmatprep.mubr.f32.mxu0 0.0
      %3600 = vmatmul.mubr.f32.gmra.mrb[0].mxu0 %v3401
      %v3601 = vpop.f32.mrb[0].mxu0
      %v3602 = vadd.f32 0.0, %v3601
      %v3603 = vpop.f32.mrb[0].mxu0
      %3604 = vmatprep.mubr.f32.mxu0 0.0
      %3605 = vmatmul.mubr.f32.gmra.mrb[0].mxu0 %v3404
      %v3606 = vpop.f32.mrb[0].mxu0
      %v3607 = vadd.f32 0.0, %v3606
      %v3608 = vpop.f32.mrb[0].mxu0
      %3609 = vmatprep.mubr.f32.mxu0 0.0
      %3610 = vmatmul.mubr.f32.gmra.mrb[0].mxu0 %v3407
      %v3611 = vpop.f32.mrb[0].mxu0
      %v3612 = vadd.f32 0.0, %v3611
      %v3613 = vpop.f32.mrb[0].mxu0
      %3614 = vmatprep.mubr.f32.mxu0 0.0
      %3615 = vmatmul.mubr.f32.gmra.mrb[0].mxu0 %v3410
      %v3616 = vpop.f32.mrb[0].mxu0
      %v3617 = vadd.f32 0.0, %v3616
      %v3618 = vpop.f32.mrb[0].mxu0
      %3619 = vmatprep.mubr.f32.mxu0 0.0
      %3620 = vmatmul.mubr.f32.gmra.mrb[0].mxu0 %v3413
      %v3621 = vpop.f32.mrb[0].mxu0
      %v3622 = vadd.f32 0.0, %v3621
      %v3623 = vpop.f32.mrb[0].mxu0
      %3624 = vmatprep.mubr.f32.mxu0 0.0
      %3625 = vmatmul.mubr.f32.gmra.mrb[0].mxu0 %v3416
      %v3626 = vpop.f32.mrb[0].mxu0
      %v3627 = vadd.f32 0.0, %v3626
      %v3628 = vpop.f32.mrb[0].mxu0
      %3629 = vmatprep.mubr.f32.mxu0 0.0
      %3630 = vmatmul.mubr.f32.gmra.mrb[0].mxu0 %v3419
      %v3631 = vpop.f32.mrb[0].mxu0
      %v3632 = vadd.f32 0.0, %v3631
      %v3633 = vpop.f32.mrb[0].mxu0
      %3634 = vmatprep.mubr.f32.mxu0 0.0
      %3635 = vmatmul.mubr.f32.gmra.mrb[0].mxu0 %v3422
      %v3636 = vpop.f32.mrb[0].mxu0
      %v3637 = vadd.f32 0.0, %v3636
      %v3638 = vpop.f32.mrb[0].mxu0
      %3639 = vmatprep.mubr.f32.mxu0 0.0
      %3640 = vmatmul.mubr.f32.gmra.mrb[0].mxu0 %v3425
      %v3641 = vpop.f32.mrb[0].mxu0
      %v3642 = vadd.f32 0.0, %v3641
      %v3643 = vpop.f32.mrb[0].mxu0
      %3644 = vmatprep.mubr.f32.mxu0 0.0
      %3645 = vmatmul.mubr.f32.gmra.mrb[0].mxu0 %v3428
      %v3646 = vpop.f32.mrb[0].mxu0
      %v3647 = vadd.f32 0.0, %v3646
      %v3648 = vpop.f32.mrb[0].mxu0
      %3649 = vmatprep.mubr.f32.mxu0 0.0
      %3650 = vmatmul.mubr.f32.gmra.mrb[0].mxu0 %v3431
      %v3651 = vpop.f32.mrb[0].mxu0
      %v3652 = vadd.f32 0.0, %v3651
      %v3653 = vpop.f32.mrb[0].mxu0
      %3654 = vmatprep.mubr.f32.mxu0 0.0
      %3655 = vmatmul.mubr.f32.gmra.mrb[0].mxu0 %v3434
      %v3656 = vpop.f32.mrb[0].mxu0
      %v3657 = vadd.f32 0.0, %v3656
      %v3658 = vpop.f32.mrb[0].mxu0
      %3659 = vmatprep.mubr.f32.mxu0 0.0
      %3660 = vmatmul.mubr.f32.gmra.mrb[0].mxu0 %v3437
      %v3661 = vpop.f32.mrb[0].mxu0
      %v3662 = vadd.f32 0.0, %v3661
      %v3663 = vpop.f32.mrb[0].mxu0
      %3664 = vmatprep.mubr.f32.mxu0 0.0
      %3665 = vmatmul.mubr.f32.gmra.mrb[0].mxu0 %v3440
      %v3666 = vpop.f32.mrb[0].mxu0
      %v3667 = vadd.f32 0.0, %v3666
      %v3668 = vpop.f32.mrb[0].mxu0
      %3669 = vdwg.mxu0
      %v3670 = vadd.f32 %v3312, %v3512
      %v3671 = vadd.f32 %v3313, %v3517
      %v3672 = vadd.f32 %v3314, %v3522
      %v3673 = vadd.f32 %v3315, %v3527
      %v3674 = vadd.f32 %v3316, %v3532
      %v3675 = vadd.f32 %v3317, %v3537
      %v3676 = vadd.f32 %v3318, %v3542
      %v3677 = vadd.f32 %v3319, %v3547
      %v3678 = vadd.f32 %v3320, %v3552
      %v3679 = vadd.f32 %v3321, %v3557
      %v3680 = vadd.f32 %v3322, %v3562
      %v3681 = vadd.f32 %v3323, %v3567
      %v3682 = vadd.f32 %v3324, %v3572
      %v3683 = vadd.f32 %v3325, %v3577
      %v3684 = vadd.f32 %v3326, %v3582
      %v3685 = vadd.f32 %v3327, %v3587
      %v3686 = vadd.f32 %v3328, %v3592
      %v3687 = vadd.f32 %v3329, %v3597
      %v3688 = vadd.f32 %v3330, %v3602
      %v3689 = vadd.f32 %v3331, %v3607
      %v3690 = vadd.f32 %v3332, %v3612
      %v3691 = vadd.f32 %v3333, %v3617
      %v3692 = vadd.f32 %v3334, %v3622
      %v3693 = vadd.f32 %v3335, %v3627
      %v3694 = vadd.f32 %v3336, %v3632
      %v3695 = vadd.f32 %v3337, %v3637
      %v3696 = vadd.f32 %v3338, %v3642
      %v3697 = vadd.f32 %v3339, %v3647
      %v3698 = vadd.f32 %v3340, %v3652
      %v3699 = vadd.f32 %v3341, %v3657
      %v3700 = vadd.f32 %v3342, %v3662
      %v3701 = vadd.f32 %v3343, %v3667
      %v3702 = vld [vmem:[%s549 + $0x1] sm:$0xff]
      %v3703 = vld [vmem:[%s549 + $0x9] sm:$0xff]
      %v3704 = vld [vmem:[%s549 + $0x19] sm:$0xff]
      %v3705 = vld [vmem:[%s549 + $0x21] sm:$0xff]
      %v3706 = vld [vmem:[%s549 + $0x31] sm:$0xff]
      %v3707 = vld [vmem:[%s549 + $0x39] sm:$0xff]
      %v3708 = vld [vmem:[%s549 + $0x49] sm:$0xff]
      %v3709 = vld [vmem:[%s549 + $0x51] sm:$0xff]
      %v3710 = vld [vmem:[%s549 + $0x61] sm:$0xff]
      %v3711 = vld [vmem:[%s549 + $0x69] sm:$0xff]
      %v3712 = vld [vmem:[%s549 + $0x79] sm:$0xff]
      %v3713 = vld [vmem:[%s549 + $0x81] sm:$0xff]
      %v3714 = vld [vmem:[%s549 + $0x91] sm:$0xff]
      %v3715 = vld [vmem:[%s549 + $0x99] sm:$0xff]
      %v3716 = vld [vmem:[%s549 + $0xa9] sm:$0xff]
      %v3717 = vld [vmem:[%s549 + $0xb1] sm:$0xff]
      %v3718 = vld [vmem:[%s549 + $0xc1] sm:$0xff]
      %v3719 = vld [vmem:[%s549 + $0xc9] sm:$0xff]
      %v3720 = vld [vmem:[%s549 + $0xd9] sm:$0xff]
      %v3721 = vld [vmem:[%s549 + $0xe1] sm:$0xff]
      %v3722 = vld [vmem:[%s549 + $0xf1] sm:$0xff]
      %v3723 = vld [vmem:[%s549 + $0xf9] sm:$0xff]
      %v3724 = vld [vmem:[%s549 + $0x109] sm:$0xff]
      %v3725 = vld [vmem:[%s549 + $0x111] sm:$0xff]
      %v3726 = vld [vmem:[%s549 + $0x121] sm:$0xff]
      %v3727 = vld [vmem:[%s549 + $0x129] sm:$0xff]
      %v3728 = vld [vmem:[%s549 + $0x139] sm:$0xff]
      %v3729 = vld [vmem:[%s549 + $0x141] sm:$0xff]
      %v3730 = vld [vmem:[%s549 + $0x151] sm:$0xff]
      %v3731 = vld [vmem:[%s549 + $0x159] sm:$0xff]
      %v3732 = vld [vmem:[%s549 + $0x169] sm:$0xff]
      %v3733 = vld [vmem:[%s549 + $0x171] sm:$0xff]
      %v3734 = vld [vmem:[%s614 + $0x1] sm:$0xff]
      %v3735 = vld [vmem:[%s614 + $0x9] sm:$0xff]
      %v3736 = vld [vmem:[%s614 + $0x19] sm:$0xff]
      %v3737 = vld [vmem:[%s614 + $0x21] sm:$0xff]
      %v3738 = vld [vmem:[%s614 + $0x31] sm:$0xff]
      %v3739 = vld [vmem:[%s614 + $0x39] sm:$0xff]
      %v3740 = vld [vmem:[%s614 + $0x49] sm:$0xff]
      %v3741 = vld [vmem:[%s614 + $0x51] sm:$0xff]
      %v3742 = vld [vmem:[%s614 + $0x61] sm:$0xff]
      %v3743 = vld [vmem:[%s614 + $0x69] sm:$0xff]
      %v3744 = vld [vmem:[%s614 + $0x79] sm:$0xff]
      %v3745 = vld [vmem:[%s614 + $0x81] sm:$0xff]
      %v3746 = vld [vmem:[%s614 + $0x91] sm:$0xff]
      %v3747 = vld [vmem:[%s614 + $0x99] sm:$0xff]
      %v3748 = vld [vmem:[%s614 + $0xa9] sm:$0xff]
      %v3749 = vld [vmem:[%s614 + $0xb1] sm:$0xff]
      %v3750 = vld [vmem:[%s614 + $0xc1] sm:$0xff]
      %v3751 = vld [vmem:[%s614 + $0xc9] sm:$0xff]
      %v3752 = vld [vmem:[%s614 + $0xd9] sm:$0xff]
      %v3753 = vld [vmem:[%s614 + $0xe1] sm:$0xff]
      %v3754 = vld [vmem:[%s614 + $0xf1] sm:$0xff]
      %v3755 = vld [vmem:[%s614 + $0xf9] sm:$0xff]
      %v3756 = vld [vmem:[%s614 + $0x109] sm:$0xff]
      %v3757 = vld [vmem:[%s614 + $0x111] sm:$0xff]
      %v3758 = vld [vmem:[%s614 + $0x121] sm:$0xff]
      %v3759 = vld [vmem:[%s614 + $0x129] sm:$0xff]
      %v3760 = vld [vmem:[%s614 + $0x139] sm:$0xff]
      %v3761 = vld [vmem:[%s614 + $0x141] sm:$0xff]
      %v3762 = vld [vmem:[%s614 + $0x151] sm:$0xff]
      %v3763 = vld [vmem:[%s614 + $0x159] sm:$0xff]
      %v3764 = vld [vmem:[%s614 + $0x169] sm:$0xff]
      %v3765 = vld [vmem:[%s614 + $0x171] sm:$0xff]
      %s3766 = scalar_lea.vmem %s2, 16
      %v3767 = vld [vmem:[%s3766] sm:$0xf]
      %v3769 = vsel %vm353, %v3702, 0
      %v3772 = vsel %vm353, %v3703, 0
      %v3775 = vsel %vm353, %v3704, 0
      %v3778 = vsel %vm353, %v3705, 0
      %v3781 = vsel %vm353, %v3706, 0
      %v3784 = vsel %vm353, %v3707, 0
      %v3787 = vsel %vm353, %v3708, 0
      %v3790 = vsel %vm353, %v3709, 0
      %v3793 = vsel %vm353, %v3710, 0
      %v3796 = vsel %vm353, %v3711, 0
      %v3799 = vsel %vm353, %v3712, 0
      %v3802 = vsel %vm353, %v3713, 0
      %v3805 = vsel %vm353, %v3714, 0
      %v3808 = vsel %vm353, %v3715, 0
      %v3811 = vsel %vm353, %v3716, 0
      %v3814 = vsel %vm353, %v3717, 0
      %v3817 = vsel %vm353, %v3718, 0
      %v3820 = vsel %vm353, %v3719, 0
      %v3823 = vsel %vm353, %v3720, 0
      %v3826 = vsel %vm353, %v3721, 0
      %v3829 = vsel %vm353, %v3722, 0
      %v3832 = vsel %vm353, %v3723, 0
      %v3835 = vsel %vm353, %v3724, 0
      %v3838 = vsel %vm353, %v3725, 0
      %v3841 = vsel %vm353, %v3726, 0
      %v3844 = vsel %vm353, %v3727, 0
      %v3847 = vsel %vm353, %v3728, 0
      %v3850 = vsel %vm353, %v3729, 0
      %v3853 = vsel %vm353, %v3730, 0
      %v3856 = vsel %vm353, %v3731, 0
      %v3859 = vsel %vm353, %v3732, 0
      %v3862 = vsel %vm353, %v3733, 0
      %v3865 = vsel %vm809, %v3767, 0
      %3867 = vmatprep.subr.mxu0 0.0
      %3868 = vmatpush1.msra.mxu0 %v3865
      %3869 = vmatprep.subr.mxu0 0.0
      %3870 = vmatpush1.msra.mxu0 0.0
      %3871 = vmatprep.subr.mxu0 0.0
      %3872 = vmatpush1.msra.mxu0 0.0
      %3873 = vmatprep.subr.mxu0 0.0
      %3874 = vmatpush1.msra.mxu0 0.0
      %3875 = vmatprep.subr.mxu0 0.0
      %3876 = vmatpush1.msra.mxu0 0.0
      %3877 = vmatprep.subr.mxu0 0.0
      %3878 = vmatpush1.msra.mxu0 0.0
      %3879 = vmatprep.subr.mxu0 0.0
      %3880 = vmatpush1.msra.mxu0 0.0
      %3881 = vmatprep.subr.mxu0 0.0
      %3882 = vmatpush1.msra.mxu0 0.0
      %3883 = vmatprep.subr.mxu0 0.0
      %3884 = vmatpush1.msra.mxu0 0.0
      %3885 = vmatprep.subr.mxu0 0.0
      %3886 = vmatpush1.msra.mxu0 0.0
      %3887 = vmatprep.subr.mxu0 0.0
      %3888 = vmatpush1.msra.mxu0 0.0
      %3889 = vmatprep.subr.mxu0 0.0
      %3890 = vmatpush1.msra.mxu0 0.0
      %3891 = vmatprep.subr.mxu0 0.0
      %3892 = vmatpush1.msra.mxu0 0.0
      %3893 = vmatprep.subr.mxu0 0.0
      %3894 = vmatpush1.msra.mxu0 0.0
      %3895 = vmatprep.subr.mxu0 0.0
      %3896 = vmatpush1.msra.mxu0 0.0
      %3897 = vmatprep.subr.mxu0 0.0
      %3898 = vmatpush1.msra.mxu0 0.0
      %3899 = vmatprep.subr.mxu0 0.0
      %3900 = vmatpush1.msra.mxu0 0.0
      %3901 = vmatprep.subr.mxu0 0.0
      %3902 = vmatpush1.msra.mxu0 0.0
      %3903 = vmatprep.subr.mxu0 0.0
      %3904 = vmatpush1.msra.mxu0 0.0
      %3905 = vmatprep.subr.mxu0 0.0
      %3906 = vmatpush1.msra.mxu0 0.0
      %3907 = vmatprep.subr.mxu0 0.0
      %3908 = vmatpush1.msra.mxu0 0.0
      %3909 = vmatprep.subr.mxu0 0.0
      %3910 = vmatpush1.msra.mxu0 0.0
      %3911 = vmatprep.subr.mxu0 0.0
      %3912 = vmatpush1.msra.mxu0 0.0
      %3913 = vmatprep.subr.mxu0 0.0
      %3914 = vmatpush1.msra.mxu0 0.0
      %3915 = vmatprep.subr.mxu0 0.0
      %3916 = vmatpush1.msra.mxu0 0.0
      %3917 = vmatprep.subr.mxu0 0.0
      %3918 = vmatpush1.msra.mxu0 0.0
      %3919 = vmatprep.subr.mxu0 0.0
      %3920 = vmatpush1.msra.mxu0 0.0
      %3921 = vmatprep.subr.mxu0 0.0
      %3922 = vmatpush1.msra.mxu0 0.0
      %3923 = vmatprep.subr.mxu0 0.0
      %3924 = vmatpush1.msra.mxu0 0.0
      %3925 = vmatprep.subr.mxu0 0.0
      %3926 = vmatpush1.msra.mxu0 0.0
      %3927 = vmatprep.subr.mxu0 0.0
      %3928 = vmatpush1.msra.mxu0 0.0
      %3929 = vmatprep.subr.mxu0 0.0
      %3930 = vmatpush1.msra.mxu0 0.0
      %3931 = vmatprep.mubr.f32.mxu0 0.0
      %3932 = vmatmul.mubr.f32.gmra.mrb[0].mxu0 %v3769
      %v3933 = vpop.f32.mrb[0].mxu0
      %v3934 = vadd.f32 0.0, %v3933
      %v3935 = vpop.f32.mrb[0].mxu0
      %3936 = vmatprep.mubr.f32.mxu0 0.0
      %3937 = vmatmul.mubr.f32.gmra.mrb[0].mxu0 %v3772
      %v3938 = vpop.f32.mrb[0].mxu0
      %v3939 = vadd.f32 0.0, %v3938
      %v3940 = vpop.f32.mrb[0].mxu0
      %3941 = vmatprep.mubr.f32.mxu0 0.0
      %3942 = vmatmul.mubr.f32.gmra.mrb[0].mxu0 %v3775
      %v3943 = vpop.f32.mrb[0].mxu0
      %v3944 = vadd.f32 0.0, %v3943
      %v3945 = vpop.f32.mrb[0].mxu0
      %3946 = vmatprep.mubr.f32.mxu0 0.0
      %3947 = vmatmul.mubr.f32.gmra.mrb[0].mxu0 %v3778
      %v3948 = vpop.f32.mrb[0].mxu0
      %v3949 = vadd.f32 0.0, %v3948
      %v3950 = vpop.f32.mrb[0].mxu0
      %3951 = vmatprep.mubr.f32.mxu0 0.0
      %3952 = vmatmul.mubr.f32.gmra.mrb[0].mxu0 %v3781
      %v3953 = vpop.f32.mrb[0].mxu0
      %v3954 = vadd.f32 0.0, %v3953
      %v3955 = vpop.f32.mrb[0].mxu0
      %3956 = vmatprep.mubr.f32.mxu0 0.0
      %3957 = vmatmul.mubr.f32.gmra.mrb[0].mxu0 %v3784
      %v3958 = vpop.f32.mrb[0].mxu0
      %v3959 = vadd.f32 0.0, %v3958
      %v3960 = vpop.f32.mrb[0].mxu0
      %3961 = vmatprep.mubr.f32.mxu0 0.0
      %3962 = vmatmul.mubr.f32.gmra.mrb[0].mxu0 %v3787
      %v3963 = vpop.f32.mrb[0].mxu0
      %v3964 = vadd.f32 0.0, %v3963
      %v3965 = vpop.f32.mrb[0].mxu0
      %3966 = vmatprep.mubr.f32.mxu0 0.0
      %3967 = vmatmul.mubr.f32.gmra.mrb[0].mxu0 %v3790
      %v3968 = vpop.f32.mrb[0].mxu0
      %v3969 = vadd.f32 0.0, %v3968
      %v3970 = vpop.f32.mrb[0].mxu0
      %3971 = vmatprep.mubr.f32.mxu0 0.0
      %3972 = vmatmul.mubr.f32.gmra.mrb[0].mxu0 %v3793
      %v3973 = vpop.f32.mrb[0].mxu0
      %v3974 = vadd.f32 0.0, %v3973
      %v3975 = vpop.f32.mrb[0].mxu0
      %3976 = vmatprep.mubr.f32.mxu0 0.0
      %3977 = vmatmul.mubr.f32.gmra.mrb[0].mxu0 %v3796
      %v3978 = vpop.f32.mrb[0].mxu0
      %v3979 = vadd.f32 0.0, %v3978
      %v3980 = vpop.f32.mrb[0].mxu0
      %3981 = vmatprep.mubr.f32.mxu0 0.0
      %3982 = vmatmul.mubr.f32.gmra.mrb[0].mxu0 %v3799
      %v3983 = vpop.f32.mrb[0].mxu0
      %v3984 = vadd.f32 0.0, %v3983
      %v3985 = vpop.f32.mrb[0].mxu0
      %3986 = vmatprep.mubr.f32.mxu0 0.0
      %3987 = vmatmul.mubr.f32.gmra.mrb[0].mxu0 %v3802
      %v3988 = vpop.f32.mrb[0].mxu0
      %v3989 = vadd.f32 0.0, %v3988
      %v3990 = vpop.f32.mrb[0].mxu0
      %3991 = vmatprep.mubr.f32.mxu0 0.0
      %3992 = vmatmul.mubr.f32.gmra.mrb[0].mxu0 %v3805
      %v3993 = vpop.f32.mrb[0].mxu0
      %v3994 = vadd.f32 0.0, %v3993
      %v3995 = vpop.f32.mrb[0].mxu0
      %3996 = vmatprep.mubr.f32.mxu0 0.0
      %3997 = vmatmul.mubr.f32.gmra.mrb[0].mxu0 %v3808
      %v3998 = vpop.f32.mrb[0].mxu0
      %v3999 = vadd.f32 0.0, %v3998
      %v4000 = vpop.f32.mrb[0].mxu0
      %4001 = vmatprep.mubr.f32.mxu0 0.0
      %4002 = vmatmul.mubr.f32.gmra.mrb[0].mxu0 %v3811
      %v4003 = vpop.f32.mrb[0].mxu0
      %v4004 = vadd.f32 0.0, %v4003
      %v4005 = vpop.f32.mrb[0].mxu0
      %4006 = vmatprep.mubr.f32.mxu0 0.0
      %4007 = vmatmul.mubr.f32.gmra.mrb[0].mxu0 %v3814
      %v4008 = vpop.f32.mrb[0].mxu0
      %v4009 = vadd.f32 0.0, %v4008
      %v4010 = vpop.f32.mrb[0].mxu0
      %4011 = vmatprep.mubr.f32.mxu0 0.0
      %4012 = vmatmul.mubr.f32.gmra.mrb[0].mxu0 %v3817
      %v4013 = vpop.f32.mrb[0].mxu0
      %v4014 = vadd.f32 0.0, %v4013
      %v4015 = vpop.f32.mrb[0].mxu0
      %4016 = vmatprep.mubr.f32.mxu0 0.0
      %4017 = vmatmul.mubr.f32.gmra.mrb[0].mxu0 %v3820
      %v4018 = vpop.f32.mrb[0].mxu0
      %v4019 = vadd.f32 0.0, %v4018
      %v4020 = vpop.f32.mrb[0].mxu0
      %4021 = vmatprep.mubr.f32.mxu0 0.0
      %4022 = vmatmul.mubr.f32.gmra.mrb[0].mxu0 %v3823
      %v4023 = vpop.f32.mrb[0].mxu0
      %v4024 = vadd.f32 0.0, %v4023
      %v4025 = vpop.f32.mrb[0].mxu0
      %4026 = vmatprep.mubr.f32.mxu0 0.0
      %4027 = vmatmul.mubr.f32.gmra.mrb[0].mxu0 %v3826
      %v4028 = vpop.f32.mrb[0].mxu0
      %v4029 = vadd.f32 0.0, %v4028
      %v4030 = vpop.f32.mrb[0].mxu0
      %4031 = vmatprep.mubr.f32.mxu0 0.0
      %4032 = vmatmul.mubr.f32.gmra.mrb[0].mxu0 %v3829
      %v4033 = vpop.f32.mrb[0].mxu0
      %v4034 = vadd.f32 0.0, %v4033
      %v4035 = vpop.f32.mrb[0].mxu0
      %4036 = vmatprep.mubr.f32.mxu0 0.0
      %4037 = vmatmul.mubr.f32.gmra.mrb[0].mxu0 %v3832
      %v4038 = vpop.f32.mrb[0].mxu0
      %v4039 = vadd.f32 0.0, %v4038
      %v4040 = vpop.f32.mrb[0].mxu0
      %4041 = vmatprep.mubr.f32.mxu0 0.0
      %4042 = vmatmul.mubr.f32.gmra.mrb[0].mxu0 %v3835
      %v4043 = vpop.f32.mrb[0].mxu0
      %v4044 = vadd.f32 0.0, %v4043
      %v4045 = vpop.f32.mrb[0].mxu0
      %4046 = vmatprep.mubr.f32.mxu0 0.0
      %4047 = vmatmul.mubr.f32.gmra.mrb[0].mxu0 %v3838
      %v4048 = vpop.f32.mrb[0].mxu0
      %v4049 = vadd.f32 0.0, %v4048
      %v4050 = vpop.f32.mrb[0].mxu0
      %4051 = vmatprep.mubr.f32.mxu0 0.0
      %4052 = vmatmul.mubr.f32.gmra.mrb[0].mxu0 %v3841
      %v4053 = vpop.f32.mrb[0].mxu0
      %v4054 = vadd.f32 0.0, %v4053
      %v4055 = vpop.f32.mrb[0].mxu0
      %4056 = vmatprep.mubr.f32.mxu0 0.0
      %4057 = vmatmul.mubr.f32.gmra.mrb[0].mxu0 %v3844
      %v4058 = vpop.f32.mrb[0].mxu0
      %v4059 = vadd.f32 0.0, %v4058
      %v4060 = vpop.f32.mrb[0].mxu0
      %4061 = vmatprep.mubr.f32.mxu0 0.0
      %4062 = vmatmul.mubr.f32.gmra.mrb[0].mxu0 %v3847
      %v4063 = vpop.f32.mrb[0].mxu0
      %v4064 = vadd.f32 0.0, %v4063
      %v4065 = vpop.f32.mrb[0].mxu0
      %4066 = vmatprep.mubr.f32.mxu0 0.0
      %4067 = vmatmul.mubr.f32.gmra.mrb[0].mxu0 %v3850
      %v4068 = vpop.f32.mrb[0].mxu0
      %v4069 = vadd.f32 0.0, %v4068
      %v4070 = vpop.f32.mrb[0].mxu0
      %4071 = vmatprep.mubr.f32.mxu0 0.0
      %4072 = vmatmul.mubr.f32.gmra.mrb[0].mxu0 %v3853
      %v4073 = vpop.f32.mrb[0].mxu0
      %v4074 = vadd.f32 0.0, %v4073
      %v4075 = vpop.f32.mrb[0].mxu0
      %4076 = vmatprep.mubr.f32.mxu0 0.0
      %4077 = vmatmul.mubr.f32.gmra.mrb[0].mxu0 %v3856
      %v4078 = vpop.f32.mrb[0].mxu0
      %v4079 = vadd.f32 0.0, %v4078
      %v4080 = vpop.f32.mrb[0].mxu0
      %4081 = vmatprep.mubr.f32.mxu0 0.0
      %4082 = vmatmul.mubr.f32.gmra.mrb[0].mxu0 %v3859
      %v4083 = vpop.f32.mrb[0].mxu0
      %v4084 = vadd.f32 0.0, %v4083
      %v4085 = vpop.f32.mrb[0].mxu0
      %4086 = vmatprep.mubr.f32.mxu0 0.0
      %4087 = vmatmul.mubr.f32.gmra.mrb[0].mxu0 %v3862
      %v4088 = vpop.f32.mrb[0].mxu0
      %v4089 = vadd.f32 0.0, %v4088
      %v4090 = vpop.f32.mrb[0].mxu0
      %4091 = vdwg.mxu0
      %v4092 = vadd.f32 %v3670, %v3934
      %v4093 = vadd.f32 %v3671, %v3939
      %v4094 = vadd.f32 %v3672, %v3944
      %v4095 = vadd.f32 %v3673, %v3949
      %v4096 = vadd.f32 %v3674, %v3954
      %v4097 = vadd.f32 %v3675, %v3959
      %v4098 = vadd.f32 %v3676, %v3964
      %v4099 = vadd.f32 %v3677, %v3969
      %v4100 = vadd.f32 %v3678, %v3974
      %v4101 = vadd.f32 %v3679, %v3979
      %v4102 = vadd.f32 %v3680, %v3984
      %v4103 = vadd.f32 %v3681, %v3989
      %v4104 = vadd.f32 %v3682, %v3994
      %v4105 = vadd.f32 %v3683, %v3999
      %v4106 = vadd.f32 %v3684, %v4004
      %v4107 = vadd.f32 %v3685, %v4009
      %v4108 = vadd.f32 %v3686, %v4014
      %v4109 = vadd.f32 %v3687, %v4019
      %v4110 = vadd.f32 %v3688, %v4024
      %v4111 = vadd.f32 %v3689, %v4029
      %v4112 = vadd.f32 %v3690, %v4034
      %v4113 = vadd.f32 %v3691, %v4039
      %v4114 = vadd.f32 %v3692, %v4044
      %v4115 = vadd.f32 %v3693, %v4049
      %v4116 = vadd.f32 %v3694, %v4054
      %v4117 = vadd.f32 %v3695, %v4059
      %v4118 = vadd.f32 %v3696, %v4064
      %v4119 = vadd.f32 %v3697, %v4069
      %v4120 = vadd.f32 %v3698, %v4074
      %v4121 = vadd.f32 %v3699, %v4079
      %v4122 = vadd.f32 %v3700, %v4084
      %v4123 = vadd.f32 %v3701, %v4089
      %s4124 = scalar_lea.vmem %s3, 16
      %v4125 = vld [vmem:[%s4124] sm:$0xf]
      %v4127 = vsel %vm353, %v3734, 0
      %v4130 = vsel %vm353, %v3735, 0
      %v4133 = vsel %vm353, %v3736, 0
      %v4136 = vsel %vm353, %v3737, 0
      %v4139 = vsel %vm353, %v3738, 0
      %v4142 = vsel %vm353, %v3739, 0
      %v4145 = vsel %vm353, %v3740, 0
      %v4148 = vsel %vm353, %v3741, 0
      %v4151 = vsel %vm353, %v3742, 0
      %v4154 = vsel %vm353, %v3743, 0
      %v4157 = vsel %vm353, %v3744, 0
      %v4160 = vsel %vm353, %v3745, 0
      %v4163 = vsel %vm353, %v3746, 0
      %v4166 = vsel %vm353, %v3747, 0
      %v4169 = vsel %vm353, %v3748, 0
      %v4172 = vsel %vm353, %v3749, 0
      %v4175 = vsel %vm353, %v3750, 0
      %v4178 = vsel %vm353, %v3751, 0
      %v4181 = vsel %vm353, %v3752, 0
      %v4184 = vsel %vm353, %v3753, 0
      %v4187 = vsel %vm353, %v3754, 0
      %v4190 = vsel %vm353, %v3755, 0
      %v4193 = vsel %vm353, %v3756, 0
      %v4196 = vsel %vm353, %v3757, 0
      %v4199 = vsel %vm353, %v3758, 0
      %v4202 = vsel %vm353, %v3759, 0
      %v4205 = vsel %vm353, %v3760, 0
      %v4208 = vsel %vm353, %v3761, 0
      %v4211 = vsel %vm353, %v3762, 0
      %v4214 = vsel %vm353, %v3763, 0
      %v4217 = vsel %vm353, %v3764, 0
      %v4220 = vsel %vm353, %v3765, 0
      %v4223 = vsel %vm809, %v4125, 0
      %4225 = vmatprep.subr.mxu0 0.0
      %4226 = vmatpush1.msra.mxu0 %v4223
      %4227 = vmatprep.subr.mxu0 0.0
      %4228 = vmatpush1.msra.mxu0 0.0
      %4229 = vmatprep.subr.mxu0 0.0
      %4230 = vmatpush1.msra.mxu0 0.0
      %4231 = vmatprep.subr.mxu0 0.0
      %4232 = vmatpush1.msra.mxu0 0.0
      %4233 = vmatprep.subr.mxu0 0.0
      %4234 = vmatpush1.msra.mxu0 0.0
      %4235 = vmatprep.subr.mxu0 0.0
      %4236 = vmatpush1.msra.mxu0 0.0
      %4237 = vmatprep.subr.mxu0 0.0
      %4238 = vmatpush1.msra.mxu0 0.0
      %4239 = vmatprep.subr.mxu0 0.0
      %4240 = vmatpush1.msra.mxu0 0.0
      %4241 = vmatprep.subr.mxu0 0.0
      %4242 = vmatpush1.msra.mxu0 0.0
      %4243 = vmatprep.subr.mxu0 0.0
      %4244 = vmatpush1.msra.mxu0 0.0
      %4245 = vmatprep.subr.mxu0 0.0
      %4246 = vmatpush1.msra.mxu0 0.0
      %4247 = vmatprep.subr.mxu0 0.0
      %4248 = vmatpush1.msra.mxu0 0.0
      %4249 = vmatprep.subr.mxu0 0.0
      %4250 = vmatpush1.msra.mxu0 0.0
      %4251 = vmatprep.subr.mxu0 0.0
      %4252 = vmatpush1.msra.mxu0 0.0
      %4253 = vmatprep.subr.mxu0 0.0
      %4254 = vmatpush1.msra.mxu0 0.0
      %4255 = vmatprep.subr.mxu0 0.0
      %4256 = vmatpush1.msra.mxu0 0.0
      %4257 = vmatprep.subr.mxu0 0.0
      %4258 = vmatpush1.msra.mxu0 0.0
      %4259 = vmatprep.subr.mxu0 0.0
      %4260 = vmatpush1.msra.mxu0 0.0
      %4261 = vmatprep.subr.mxu0 0.0
      %4262 = vmatpush1.msra.mxu0 0.0
      %4263 = vmatprep.subr.mxu0 0.0
      %4264 = vmatpush1.msra.mxu0 0.0
      %4265 = vmatprep.subr.mxu0 0.0
      %4266 = vmatpush1.msra.mxu0 0.0
      %4267 = vmatprep.subr.mxu0 0.0
      %4268 = vmatpush1.msra.mxu0 0.0
      %4269 = vmatprep.subr.mxu0 0.0
      %4270 = vmatpush1.msra.mxu0 0.0
      %4271 = vmatprep.subr.mxu0 0.0
      %4272 = vmatpush1.msra.mxu0 0.0
      %4273 = vmatprep.subr.mxu0 0.0
      %4274 = vmatpush1.msra.mxu0 0.0
      %4275 = vmatprep.subr.mxu0 0.0
      %4276 = vmatpush1.msra.mxu0 0.0
      %4277 = vmatprep.subr.mxu0 0.0
      %4278 = vmatpush1.msra.mxu0 0.0
      %4279 = vmatprep.subr.mxu0 0.0
      %4280 = vmatpush1.msra.mxu0 0.0
      %4281 = vmatprep.subr.mxu0 0.0
      %4282 = vmatpush1.msra.mxu0 0.0
      %4283 = vmatprep.subr.mxu0 0.0
      %4284 = vmatpush1.msra.mxu0 0.0
      %4285 = vmatprep.subr.mxu0 0.0
      %4286 = vmatpush1.msra.mxu0 0.0
      %4287 = vmatprep.subr.mxu0 0.0
      %4288 = vmatpush1.msra.mxu0 0.0
      %4289 = vmatprep.mubr.f32.mxu0 0.0
      %4290 = vmatmul.mubr.f32.gmra.mrb[0].mxu0 %v4127
      %v4291 = vpop.f32.mrb[0].mxu0
      %v4292 = vadd.f32 0.0, %v4291
      %v4293 = vpop.f32.mrb[0].mxu0
      %4294 = vmatprep.mubr.f32.mxu0 0.0
      %4295 = vmatmul.mubr.f32.gmra.mrb[0].mxu0 %v4130
      %v4296 = vpop.f32.mrb[0].mxu0
      %v4297 = vadd.f32 0.0, %v4296
      %v4298 = vpop.f32.mrb[0].mxu0
      %4299 = vmatprep.mubr.f32.mxu0 0.0
      %4300 = vmatmul.mubr.f32.gmra.mrb[0].mxu0 %v4133
      %v4301 = vpop.f32.mrb[0].mxu0
      %v4302 = vadd.f32 0.0, %v4301
      %v4303 = vpop.f32.mrb[0].mxu0
      %4304 = vmatprep.mubr.f32.mxu0 0.0
      %4305 = vmatmul.mubr.f32.gmra.mrb[0].mxu0 %v4136
      %v4306 = vpop.f32.mrb[0].mxu0
      %v4307 = vadd.f32 0.0, %v4306
      %v4308 = vpop.f32.mrb[0].mxu0
      %4309 = vmatprep.mubr.f32.mxu0 0.0
      %4310 = vmatmul.mubr.f32.gmra.mrb[0].mxu0 %v4139
      %v4311 = vpop.f32.mrb[0].mxu0
      %v4312 = vadd.f32 0.0, %v4311
      %v4313 = vpop.f32.mrb[0].mxu0
      %4314 = vmatprep.mubr.f32.mxu0 0.0
      %4315 = vmatmul.mubr.f32.gmra.mrb[0].mxu0 %v4142
      %v4316 = vpop.f32.mrb[0].mxu0
      %v4317 = vadd.f32 0.0, %v4316
      %v4318 = vpop.f32.mrb[0].mxu0
      %4319 = vmatprep.mubr.f32.mxu0 0.0
      %4320 = vmatmul.mubr.f32.gmra.mrb[0].mxu0 %v4145
      %v4321 = vpop.f32.mrb[0].mxu0
      %v4322 = vadd.f32 0.0, %v4321
      %v4323 = vpop.f32.mrb[0].mxu0
      %4324 = vmatprep.mubr.f32.mxu0 0.0
      %4325 = vmatmul.mubr.f32.gmra.mrb[0].mxu0 %v4148
      %v4326 = vpop.f32.mrb[0].mxu0
      %v4327 = vadd.f32 0.0, %v4326
      %v4328 = vpop.f32.mrb[0].mxu0
      %4329 = vmatprep.mubr.f32.mxu0 0.0
      %4330 = vmatmul.mubr.f32.gmra.mrb[0].mxu0 %v4151
      %v4331 = vpop.f32.mrb[0].mxu0
      %v4332 = vadd.f32 0.0, %v4331
      %v4333 = vpop.f32.mrb[0].mxu0
      %4334 = vmatprep.mubr.f32.mxu0 0.0
      %4335 = vmatmul.mubr.f32.gmra.mrb[0].mxu0 %v4154
      %v4336 = vpop.f32.mrb[0].mxu0
      %v4337 = vadd.f32 0.0, %v4336
      %v4338 = vpop.f32.mrb[0].mxu0
      %4339 = vmatprep.mubr.f32.mxu0 0.0
      %4340 = vmatmul.mubr.f32.gmra.mrb[0].mxu0 %v4157
      %v4341 = vpop.f32.mrb[0].mxu0
      %v4342 = vadd.f32 0.0, %v4341
      %v4343 = vpop.f32.mrb[0].mxu0
      %4344 = vmatprep.mubr.f32.mxu0 0.0
      %4345 = vmatmul.mubr.f32.gmra.mrb[0].mxu0 %v4160
      %v4346 = vpop.f32.mrb[0].mxu0
      %v4347 = vadd.f32 0.0, %v4346
      %v4348 = vpop.f32.mrb[0].mxu0
      %4349 = vmatprep.mubr.f32.mxu0 0.0
      %4350 = vmatmul.mubr.f32.gmra.mrb[0].mxu0 %v4163
      %v4351 = vpop.f32.mrb[0].mxu0
      %v4352 = vadd.f32 0.0, %v4351
      %v4353 = vpop.f32.mrb[0].mxu0
      %4354 = vmatprep.mubr.f32.mxu0 0.0
      %4355 = vmatmul.mubr.f32.gmra.mrb[0].mxu0 %v4166
      %v4356 = vpop.f32.mrb[0].mxu0
      %v4357 = vadd.f32 0.0, %v4356
      %v4358 = vpop.f32.mrb[0].mxu0
      %4359 = vmatprep.mubr.f32.mxu0 0.0
      %4360 = vmatmul.mubr.f32.gmra.mrb[0].mxu0 %v4169
      %v4361 = vpop.f32.mrb[0].mxu0
      %v4362 = vadd.f32 0.0, %v4361
      %v4363 = vpop.f32.mrb[0].mxu0
      %4364 = vmatprep.mubr.f32.mxu0 0.0
      %4365 = vmatmul.mubr.f32.gmra.mrb[0].mxu0 %v4172
      %v4366 = vpop.f32.mrb[0].mxu0
      %v4367 = vadd.f32 0.0, %v4366
      %v4368 = vpop.f32.mrb[0].mxu0
      %4369 = vmatprep.mubr.f32.mxu0 0.0
      %4370 = vmatmul.mubr.f32.gmra.mrb[0].mxu0 %v4175
      %v4371 = vpop.f32.mrb[0].mxu0
      %v4372 = vadd.f32 0.0, %v4371
      %v4373 = vpop.f32.mrb[0].mxu0
      %4374 = vmatprep.mubr.f32.mxu0 0.0
      %4375 = vmatmul.mubr.f32.gmra.mrb[0].mxu0 %v4178
      %v4376 = vpop.f32.mrb[0].mxu0
      %v4377 = vadd.f32 0.0, %v4376
      %v4378 = vpop.f32.mrb[0].mxu0
      %4379 = vmatprep.mubr.f32.mxu0 0.0
      %4380 = vmatmul.mubr.f32.gmra.mrb[0].mxu0 %v4181
      %v4381 = vpop.f32.mrb[0].mxu0
      %v4382 = vadd.f32 0.0, %v4381
      %v4383 = vpop.f32.mrb[0].mxu0
      %4384 = vmatprep.mubr.f32.mxu0 0.0
      %4385 = vmatmul.mubr.f32.gmra.mrb[0].mxu0 %v4184
      %v4386 = vpop.f32.mrb[0].mxu0
      %v4387 = vadd.f32 0.0, %v4386
      %v4388 = vpop.f32.mrb[0].mxu0
      %4389 = vmatprep.mubr.f32.mxu0 0.0
      %4390 = vmatmul.mubr.f32.gmra.mrb[0].mxu0 %v4187
      %v4391 = vpop.f32.mrb[0].mxu0
      %v4392 = vadd.f32 0.0, %v4391
      %v4393 = vpop.f32.mrb[0].mxu0
      %4394 = vmatprep.mubr.f32.mxu0 0.0
      %4395 = vmatmul.mubr.f32.gmra.mrb[0].mxu0 %v4190
      %v4396 = vpop.f32.mrb[0].mxu0
      %v4397 = vadd.f32 0.0, %v4396
      %v4398 = vpop.f32.mrb[0].mxu0
      %4399 = vmatprep.mubr.f32.mxu0 0.0
      %4400 = vmatmul.mubr.f32.gmra.mrb[0].mxu0 %v4193
      %v4401 = vpop.f32.mrb[0].mxu0
      %v4402 = vadd.f32 0.0, %v4401
      %v4403 = vpop.f32.mrb[0].mxu0
      %4404 = vmatprep.mubr.f32.mxu0 0.0
      %4405 = vmatmul.mubr.f32.gmra.mrb[0].mxu0 %v4196
      %v4406 = vpop.f32.mrb[0].mxu0
      %v4407 = vadd.f32 0.0, %v4406
      %v4408 = vpop.f32.mrb[0].mxu0
      %4409 = vmatprep.mubr.f32.mxu0 0.0
      %4410 = vmatmul.mubr.f32.gmra.mrb[0].mxu0 %v4199
      %v4411 = vpop.f32.mrb[0].mxu0
      %v4412 = vadd.f32 0.0, %v4411
      %v4413 = vpop.f32.mrb[0].mxu0
      %4414 = vmatprep.mubr.f32.mxu0 0.0
      %4415 = vmatmul.mubr.f32.gmra.mrb[0].mxu0 %v4202
      %v4416 = vpop.f32.mrb[0].mxu0
      %v4417 = vadd.f32 0.0, %v4416
      %v4418 = vpop.f32.mrb[0].mxu0
      %4419 = vmatprep.mubr.f32.mxu0 0.0
      %4420 = vmatmul.mubr.f32.gmra.mrb[0].mxu0 %v4205
      %v4421 = vpop.f32.mrb[0].mxu0
      %v4422 = vadd.f32 0.0, %v4421
      %v4423 = vpop.f32.mrb[0].mxu0
      %4424 = vmatprep.mubr.f32.mxu0 0.0
      %4425 = vmatmul.mubr.f32.gmra.mrb[0].mxu0 %v4208
      %v4426 = vpop.f32.mrb[0].mxu0
      %v4427 = vadd.f32 0.0, %v4426
      %v4428 = vpop.f32.mrb[0].mxu0
      %4429 = vmatprep.mubr.f32.mxu0 0.0
      %4430 = vmatmul.mubr.f32.gmra.mrb[0].mxu0 %v4211
      %v4431 = vpop.f32.mrb[0].mxu0
      %v4432 = vadd.f32 0.0, %v4431
      %v4433 = vpop.f32.mrb[0].mxu0
      %4434 = vmatprep.mubr.f32.mxu0 0.0
      %4435 = vmatmul.mubr.f32.gmra.mrb[0].mxu0 %v4214
      %v4436 = vpop.f32.mrb[0].mxu0
      %v4437 = vadd.f32 0.0, %v4436
      %v4438 = vpop.f32.mrb[0].mxu0
      %4439 = vmatprep.mubr.f32.mxu0 0.0
      %4440 = vmatmul.mubr.f32.gmra.mrb[0].mxu0 %v4217
      %v4441 = vpop.f32.mrb[0].mxu0
      %v4442 = vadd.f32 0.0, %v4441
      %v4443 = vpop.f32.mrb[0].mxu0
      %4444 = vmatprep.mubr.f32.mxu0 0.0
      %4445 = vmatmul.mubr.f32.gmra.mrb[0].mxu0 %v4220
      %v4446 = vpop.f32.mrb[0].mxu0
      %v4447 = vadd.f32 0.0, %v4446
      %v4448 = vpop.f32.mrb[0].mxu0
      %4449 = vdwg.mxu0
      %v4450 = vadd.f32 %v4092, %v4292
      %v4451 = vadd.f32 %v4093, %v4297
      %v4452 = vadd.f32 %v4094, %v4302
      %v4453 = vadd.f32 %v4095, %v4307
      %v4454 = vadd.f32 %v4096, %v4312
      %v4455 = vadd.f32 %v4097, %v4317
      %v4456 = vadd.f32 %v4098, %v4322
      %v4457 = vadd.f32 %v4099, %v4327
      %v4458 = vadd.f32 %v4100, %v4332
      %v4459 = vadd.f32 %v4101, %v4337
      %v4460 = vadd.f32 %v4102, %v4342
      %v4461 = vadd.f32 %v4103, %v4347
      %v4462 = vadd.f32 %v4104, %v4352
      %v4463 = vadd.f32 %v4105, %v4357
      %v4464 = vadd.f32 %v4106, %v4362
      %v4465 = vadd.f32 %v4107, %v4367
      %v4466 = vadd.f32 %v4108, %v4372
      %v4467 = vadd.f32 %v4109, %v4377
      %v4468 = vadd.f32 %v4110, %v4382
      %v4469 = vadd.f32 %v4111, %v4387
      %v4470 = vadd.f32 %v4112, %v4392
      %v4471 = vadd.f32 %v4113, %v4397
      %v4472 = vadd.f32 %v4114, %v4402
      %v4473 = vadd.f32 %v4115, %v4407
      %v4474 = vadd.f32 %v4116, %v4412
      %v4475 = vadd.f32 %v4117, %v4417
      %v4476 = vadd.f32 %v4118, %v4422
      %v4477 = vadd.f32 %v4119, %v4427
      %v4478 = vadd.f32 %v4120, %v4432
      %v4479 = vadd.f32 %v4121, %v4437
      %v4480 = vadd.f32 %v4122, %v4442
      %v4481 = vadd.f32 %v4123, %v4447
      %v4482 = vld [vmem:[%s549 + $0x2] sm:$0xff]
      %v4483 = vld [vmem:[%s549 + $0xa] sm:$0xff]
      %v4484 = vld [vmem:[%s549 + $0x1a] sm:$0xff]
      %v4485 = vld [vmem:[%s549 + $0x22] sm:$0xff]
      %v4486 = vld [vmem:[%s549 + $0x32] sm:$0xff]
      %v4487 = vld [vmem:[%s549 + $0x3a] sm:$0xff]
      %v4488 = vld [vmem:[%s549 + $0x4a] sm:$0xff]
      %v4489 = vld [vmem:[%s549 + $0x52] sm:$0xff]
      %v4490 = vld [vmem:[%s549 + $0x62] sm:$0xff]
      %v4491 = vld [vmem:[%s549 + $0x6a] sm:$0xff]
      %v4492 = vld [vmem:[%s549 + $0x7a] sm:$0xff]
      %v4493 = vld [vmem:[%s549 + $0x82] sm:$0xff]
      %v4494 = vld [vmem:[%s549 + $0x92] sm:$0xff]
      %v4495 = vld [vmem:[%s549 + $0x9a] sm:$0xff]
      %v4496 = vld [vmem:[%s549 + $0xaa] sm:$0xff]
      %v4497 = vld [vmem:[%s549 + $0xb2] sm:$0xff]
      %v4498 = vld [vmem:[%s549 + $0xc2] sm:$0xff]
      %v4499 = vld [vmem:[%s549 + $0xca] sm:$0xff]
      %v4500 = vld [vmem:[%s549 + $0xda] sm:$0xff]
      %v4501 = vld [vmem:[%s549 + $0xe2] sm:$0xff]
      %v4502 = vld [vmem:[%s549 + $0xf2] sm:$0xff]
      %v4503 = vld [vmem:[%s549 + $0xfa] sm:$0xff]
      %v4504 = vld [vmem:[%s549 + $0x10a] sm:$0xff]
      %v4505 = vld [vmem:[%s549 + $0x112] sm:$0xff]
      %v4506 = vld [vmem:[%s549 + $0x122] sm:$0xff]
      %v4507 = vld [vmem:[%s549 + $0x12a] sm:$0xff]
      %v4508 = vld [vmem:[%s549 + $0x13a] sm:$0xff]
      %v4509 = vld [vmem:[%s549 + $0x142] sm:$0xff]
      %v4510 = vld [vmem:[%s549 + $0x152] sm:$0xff]
      %v4511 = vld [vmem:[%s549 + $0x15a] sm:$0xff]
      %v4512 = vld [vmem:[%s549 + $0x16a] sm:$0xff]
      %v4513 = vld [vmem:[%s549 + $0x172] sm:$0xff]
      %v4514 = vld [vmem:[%s614 + $0x2] sm:$0xff]
      %v4515 = vld [vmem:[%s614 + $0xa] sm:$0xff]
      %v4516 = vld [vmem:[%s614 + $0x1a] sm:$0xff]
      %v4517 = vld [vmem:[%s614 + $0x22] sm:$0xff]
      %v4518 = vld [vmem:[%s614 + $0x32] sm:$0xff]
      %v4519 = vld [vmem:[%s614 + $0x3a] sm:$0xff]
      %v4520 = vld [vmem:[%s614 + $0x4a] sm:$0xff]
      %v4521 = vld [vmem:[%s614 + $0x52] sm:$0xff]
      %v4522 = vld [vmem:[%s614 + $0x62] sm:$0xff]
      %v4523 = vld [vmem:[%s614 + $0x6a] sm:$0xff]
      %v4524 = vld [vmem:[%s614 + $0x7a] sm:$0xff]
      %v4525 = vld [vmem:[%s614 + $0x82] sm:$0xff]
      %v4526 = vld [vmem:[%s614 + $0x92] sm:$0xff]
      %v4527 = vld [vmem:[%s614 + $0x9a] sm:$0xff]
      %v4528 = vld [vmem:[%s614 + $0xaa] sm:$0xff]
      %v4529 = vld [vmem:[%s614 + $0xb2] sm:$0xff]
      %v4530 = vld [vmem:[%s614 + $0xc2] sm:$0xff]
      %v4531 = vld [vmem:[%s614 + $0xca] sm:$0xff]
      %v4532 = vld [vmem:[%s614 + $0xda] sm:$0xff]
      %v4533 = vld [vmem:[%s614 + $0xe2] sm:$0xff]
      %v4534 = vld [vmem:[%s614 + $0xf2] sm:$0xff]
      %v4535 = vld [vmem:[%s614 + $0xfa] sm:$0xff]
      %v4536 = vld [vmem:[%s614 + $0x10a] sm:$0xff]
      %v4537 = vld [vmem:[%s614 + $0x112] sm:$0xff]
      %v4538 = vld [vmem:[%s614 + $0x122] sm:$0xff]
      %v4539 = vld [vmem:[%s614 + $0x12a] sm:$0xff]
      %v4540 = vld [vmem:[%s614 + $0x13a] sm:$0xff]
      %v4541 = vld [vmem:[%s614 + $0x142] sm:$0xff]
      %v4542 = vld [vmem:[%s614 + $0x152] sm:$0xff]
      %v4543 = vld [vmem:[%s614 + $0x15a] sm:$0xff]
      %v4544 = vld [vmem:[%s614 + $0x16a] sm:$0xff]
      %v4545 = vld [vmem:[%s614 + $0x172] sm:$0xff]
      %s4546 = scalar_lea.vmem %s2, 20
      %v4547 = vld [vmem:[%s4546] sm:$0xf]
      %v4549 = vsel %vm353, %v4482, 0
      %v4552 = vsel %vm353, %v4483, 0
      %v4555 = vsel %vm353, %v4484, 0
      %v4558 = vsel %vm353, %v4485, 0
      %v4561 = vsel %vm353, %v4486, 0
      %v4564 = vsel %vm353, %v4487, 0
      %v4567 = vsel %vm353, %v4488, 0
      %v4570 = vsel %vm353, %v4489, 0
      %v4573 = vsel %vm353, %v4490, 0
      %v4576 = vsel %vm353, %v4491, 0
      %v4579 = vsel %vm353, %v4492, 0
      %v4582 = vsel %vm353, %v4493, 0
      %v4585 = vsel %vm353, %v4494, 0
      %v4588 = vsel %vm353, %v4495, 0
      %v4591 = vsel %vm353, %v4496, 0
      %v4594 = vsel %vm353, %v4497, 0
      %v4597 = vsel %vm353, %v4498, 0
      %v4600 = vsel %vm353, %v4499, 0
      %v4603 = vsel %vm353, %v4500, 0
      %v4606 = vsel %vm353, %v4501, 0
      %v4609 = vsel %vm353, %v4502, 0
      %v4612 = vsel %vm353, %v4503, 0
      %v4615 = vsel %vm353, %v4504, 0
      %v4618 = vsel %vm353, %v4505, 0
      %v4621 = vsel %vm353, %v4506, 0
      %v4624 = vsel %vm353, %v4507, 0
      %v4627 = vsel %vm353, %v4508, 0
      %v4630 = vsel %vm353, %v4509, 0
      %v4633 = vsel %vm353, %v4510, 0
      %v4636 = vsel %vm353, %v4511, 0
      %v4639 = vsel %vm353, %v4512, 0
      %v4642 = vsel %vm353, %v4513, 0
      %v4645 = vsel %vm809, %v4547, 0
      %4647 = vmatprep.subr.mxu0 0.0
      %4648 = vmatpush1.msra.mxu0 %v4645
      %4649 = vmatprep.subr.mxu0 0.0
      %4650 = vmatpush1.msra.mxu0 0.0
      %4651 = vmatprep.subr.mxu0 0.0
      %4652 = vmatpush1.msra.mxu0 0.0
      %4653 = vmatprep.subr.mxu0 0.0
      %4654 = vmatpush1.msra.mxu0 0.0
      %4655 = vmatprep.subr.mxu0 0.0
      %4656 = vmatpush1.msra.mxu0 0.0
      %4657 = vmatprep.subr.mxu0 0.0
      %4658 = vmatpush1.msra.mxu0 0.0
      %4659 = vmatprep.subr.mxu0 0.0
      %4660 = vmatpush1.msra.mxu0 0.0
      %4661 = vmatprep.subr.mxu0 0.0
      %4662 = vmatpush1.msra.mxu0 0.0
      %4663 = vmatprep.subr.mxu0 0.0
      %4664 = vmatpush1.msra.mxu0 0.0
      %4665 = vmatprep.subr.mxu0 0.0
      %4666 = vmatpush1.msra.mxu0 0.0
      %4667 = vmatprep.subr.mxu0 0.0
      %4668 = vmatpush1.msra.mxu0 0.0
      %4669 = vmatprep.subr.mxu0 0.0
      %4670 = vmatpush1.msra.mxu0 0.0
      %4671 = vmatprep.subr.mxu0 0.0
      %4672 = vmatpush1.msra.mxu0 0.0
      %4673 = vmatprep.subr.mxu0 0.0
      %4674 = vmatpush1.msra.mxu0 0.0
      %4675 = vmatprep.subr.mxu0 0.0
      %4676 = vmatpush1.msra.mxu0 0.0
      %4677 = vmatprep.subr.mxu0 0.0
      %4678 = vmatpush1.msra.mxu0 0.0
      %4679 = vmatprep.subr.mxu0 0.0
      %4680 = vmatpush1.msra.mxu0 0.0
      %4681 = vmatprep.subr.mxu0 0.0
      %4682 = vmatpush1.msra.mxu0 0.0
      %4683 = vmatprep.subr.mxu0 0.0
      %4684 = vmatpush1.msra.mxu0 0.0
      %4685 = vmatprep.subr.mxu0 0.0
      %4686 = vmatpush1.msra.mxu0 0.0
      %4687 = vmatprep.subr.mxu0 0.0
      %4688 = vmatpush1.msra.mxu0 0.0
      %4689 = vmatprep.subr.mxu0 0.0
      %4690 = vmatpush1.msra.mxu0 0.0
      %4691 = vmatprep.subr.mxu0 0.0
      %4692 = vmatpush1.msra.mxu0 0.0
      %4693 = vmatprep.subr.mxu0 0.0
      %4694 = vmatpush1.msra.mxu0 0.0
      %4695 = vmatprep.subr.mxu0 0.0
      %4696 = vmatpush1.msra.mxu0 0.0
      %4697 = vmatprep.subr.mxu0 0.0
      %4698 = vmatpush1.msra.mxu0 0.0
      %4699 = vmatprep.subr.mxu0 0.0
      %4700 = vmatpush1.msra.mxu0 0.0
      %4701 = vmatprep.subr.mxu0 0.0
      %4702 = vmatpush1.msra.mxu0 0.0
      %4703 = vmatprep.subr.mxu0 0.0
      %4704 = vmatpush1.msra.mxu0 0.0
      %4705 = vmatprep.subr.mxu0 0.0
      %4706 = vmatpush1.msra.mxu0 0.0
      %4707 = vmatprep.subr.mxu0 0.0
      %4708 = vmatpush1.msra.mxu0 0.0
      %4709 = vmatprep.subr.mxu0 0.0
      %4710 = vmatpush1.msra.mxu0 0.0
      %4711 = vmatprep.mubr.f32.mxu0 0.0
      %4712 = vmatmul.mubr.f32.gmra.mrb[0].mxu0 %v4549
      %v4713 = vpop.f32.mrb[0].mxu0
      %v4714 = vadd.f32 0.0, %v4713
      %v4715 = vpop.f32.mrb[0].mxu0
      %4716 = vmatprep.mubr.f32.mxu0 0.0
      %4717 = vmatmul.mubr.f32.gmra.mrb[0].mxu0 %v4552
      %v4718 = vpop.f32.mrb[0].mxu0
      %v4719 = vadd.f32 0.0, %v4718
      %v4720 = vpop.f32.mrb[0].mxu0
      %4721 = vmatprep.mubr.f32.mxu0 0.0
      %4722 = vmatmul.mubr.f32.gmra.mrb[0].mxu0 %v4555
      %v4723 = vpop.f32.mrb[0].mxu0
      %v4724 = vadd.f32 0.0, %v4723
      %v4725 = vpop.f32.mrb[0].mxu0
      %4726 = vmatprep.mubr.f32.mxu0 0.0
      %4727 = vmatmul.mubr.f32.gmra.mrb[0].mxu0 %v4558
      %v4728 = vpop.f32.mrb[0].mxu0
      %v4729 = vadd.f32 0.0, %v4728
      %v4730 = vpop.f32.mrb[0].mxu0
      %4731 = vmatprep.mubr.f32.mxu0 0.0
      %4732 = vmatmul.mubr.f32.gmra.mrb[0].mxu0 %v4561
      %v4733 = vpop.f32.mrb[0].mxu0
      %v4734 = vadd.f32 0.0, %v4733
      %v4735 = vpop.f32.mrb[0].mxu0
      %4736 = vmatprep.mubr.f32.mxu0 0.0
      %4737 = vmatmul.mubr.f32.gmra.mrb[0].mxu0 %v4564
      %v4738 = vpop.f32.mrb[0].mxu0
      %v4739 = vadd.f32 0.0, %v4738
      %v4740 = vpop.f32.mrb[0].mxu0
      %4741 = vmatprep.mubr.f32.mxu0 0.0
      %4742 = vmatmul.mubr.f32.gmra.mrb[0].mxu0 %v4567
      %v4743 = vpop.f32.mrb[0].mxu0
      %v4744 = vadd.f32 0.0, %v4743
      %v4745 = vpop.f32.mrb[0].mxu0
      %4746 = vmatprep.mubr.f32.mxu0 0.0
      %4747 = vmatmul.mubr.f32.gmra.mrb[0].mxu0 %v4570
      %v4748 = vpop.f32.mrb[0].mxu0
      %v4749 = vadd.f32 0.0, %v4748
      %v4750 = vpop.f32.mrb[0].mxu0
      %4751 = vmatprep.mubr.f32.mxu0 0.0
      %4752 = vmatmul.mubr.f32.gmra.mrb[0].mxu0 %v4573
      %v4753 = vpop.f32.mrb[0].mxu0
      %v4754 = vadd.f32 0.0, %v4753
      %v4755 = vpop.f32.mrb[0].mxu0
      %4756 = vmatprep.mubr.f32.mxu0 0.0
      %4757 = vmatmul.mubr.f32.gmra.mrb[0].mxu0 %v4576
      %v4758 = vpop.f32.mrb[0].mxu0
      %v4759 = vadd.f32 0.0, %v4758
      %v4760 = vpop.f32.mrb[0].mxu0
      %4761 = vmatprep.mubr.f32.mxu0 0.0
      %4762 = vmatmul.mubr.f32.gmra.mrb[0].mxu0 %v4579
      %v4763 = vpop.f32.mrb[0].mxu0
      %v4764 = vadd.f32 0.0, %v4763
      %v4765 = vpop.f32.mrb[0].mxu0
      %4766 = vmatprep.mubr.f32.mxu0 0.0
      %4767 = vmatmul.mubr.f32.gmra.mrb[0].mxu0 %v4582
      %v4768 = vpop.f32.mrb[0].mxu0
      %v4769 = vadd.f32 0.0, %v4768
      %v4770 = vpop.f32.mrb[0].mxu0
      %4771 = vmatprep.mubr.f32.mxu0 0.0
      %4772 = vmatmul.mubr.f32.gmra.mrb[0].mxu0 %v4585
      %v4773 = vpop.f32.mrb[0].mxu0
      %v4774 = vadd.f32 0.0, %v4773
      %v4775 = vpop.f32.mrb[0].mxu0
      %4776 = vmatprep.mubr.f32.mxu0 0.0
      %4777 = vmatmul.mubr.f32.gmra.mrb[0].mxu0 %v4588
      %v4778 = vpop.f32.mrb[0].mxu0
      %v4779 = vadd.f32 0.0, %v4778
      %v4780 = vpop.f32.mrb[0].mxu0
      %4781 = vmatprep.mubr.f32.mxu0 0.0
      %4782 = vmatmul.mubr.f32.gmra.mrb[0].mxu0 %v4591
      %v4783 = vpop.f32.mrb[0].mxu0
      %v4784 = vadd.f32 0.0, %v4783
      %v4785 = vpop.f32.mrb[0].mxu0
      %4786 = vmatprep.mubr.f32.mxu0 0.0
      %4787 = vmatmul.mubr.f32.gmra.mrb[0].mxu0 %v4594
      %v4788 = vpop.f32.mrb[0].mxu0
      %v4789 = vadd.f32 0.0, %v4788
      %v4790 = vpop.f32.mrb[0].mxu0
      %4791 = vmatprep.mubr.f32.mxu0 0.0
      %4792 = vmatmul.mubr.f32.gmra.mrb[0].mxu0 %v4597
      %v4793 = vpop.f32.mrb[0].mxu0
      %v4794 = vadd.f32 0.0, %v4793
      %v4795 = vpop.f32.mrb[0].mxu0
      %4796 = vmatprep.mubr.f32.mxu0 0.0
      %4797 = vmatmul.mubr.f32.gmra.mrb[0].mxu0 %v4600
      %v4798 = vpop.f32.mrb[0].mxu0
      %v4799 = vadd.f32 0.0, %v4798
      %v4800 = vpop.f32.mrb[0].mxu0
      %4801 = vmatprep.mubr.f32.mxu0 0.0
      %4802 = vmatmul.mubr.f32.gmra.mrb[0].mxu0 %v4603
      %v4803 = vpop.f32.mrb[0].mxu0
      %v4804 = vadd.f32 0.0, %v4803
      %v4805 = vpop.f32.mrb[0].mxu0
      %4806 = vmatprep.mubr.f32.mxu0 0.0
      %4807 = vmatmul.mubr.f32.gmra.mrb[0].mxu0 %v4606
      %v4808 = vpop.f32.mrb[0].mxu0
      %v4809 = vadd.f32 0.0, %v4808
      %v4810 = vpop.f32.mrb[0].mxu0
      %4811 = vmatprep.mubr.f32.mxu0 0.0
      %4812 = vmatmul.mubr.f32.gmra.mrb[0].mxu0 %v4609
      %v4813 = vpop.f32.mrb[0].mxu0
      %v4814 = vadd.f32 0.0, %v4813
      %v4815 = vpop.f32.mrb[0].mxu0
      %4816 = vmatprep.mubr.f32.mxu0 0.0
      %4817 = vmatmul.mubr.f32.gmra.mrb[0].mxu0 %v4612
      %v4818 = vpop.f32.mrb[0].mxu0
      %v4819 = vadd.f32 0.0, %v4818
      %v4820 = vpop.f32.mrb[0].mxu0
      %4821 = vmatprep.mubr.f32.mxu0 0.0
      %4822 = vmatmul.mubr.f32.gmra.mrb[0].mxu0 %v4615
      %v4823 = vpop.f32.mrb[0].mxu0
      %v4824 = vadd.f32 0.0, %v4823
      %v4825 = vpop.f32.mrb[0].mxu0
      %4826 = vmatprep.mubr.f32.mxu0 0.0
      %4827 = vmatmul.mubr.f32.gmra.mrb[0].mxu0 %v4618
      %v4828 = vpop.f32.mrb[0].mxu0
      %v4829 = vadd.f32 0.0, %v4828
      %v4830 = vpop.f32.mrb[0].mxu0
      %4831 = vmatprep.mubr.f32.mxu0 0.0
      %4832 = vmatmul.mubr.f32.gmra.mrb[0].mxu0 %v4621
      %v4833 = vpop.f32.mrb[0].mxu0
      %v4834 = vadd.f32 0.0, %v4833
      %v4835 = vpop.f32.mrb[0].mxu0
      %4836 = vmatprep.mubr.f32.mxu0 0.0
      %4837 = vmatmul.mubr.f32.gmra.mrb[0].mxu0 %v4624
      %v4838 = vpop.f32.mrb[0].mxu0
      %v4839 = vadd.f32 0.0, %v4838
      %v4840 = vpop.f32.mrb[0].mxu0
      %4841 = vmatprep.mubr.f32.mxu0 0.0
      %4842 = vmatmul.mubr.f32.gmra.mrb[0].mxu0 %v4627
      %v4843 = vpop.f32.mrb[0].mxu0
      %v4844 = vadd.f32 0.0, %v4843
      %v4845 = vpop.f32.mrb[0].mxu0
      %4846 = vmatprep.mubr.f32.mxu0 0.0
      %4847 = vmatmul.mubr.f32.gmra.mrb[0].mxu0 %v4630
      %v4848 = vpop.f32.mrb[0].mxu0
      %v4849 = vadd.f32 0.0, %v4848
      %v4850 = vpop.f32.mrb[0].mxu0
      %4851 = vmatprep.mubr.f32.mxu0 0.0
      %4852 = vmatmul.mubr.f32.gmra.mrb[0].mxu0 %v4633
      %v4853 = vpop.f32.mrb[0].mxu0
      %v4854 = vadd.f32 0.0, %v4853
      %v4855 = vpop.f32.mrb[0].mxu0
      %4856 = vmatprep.mubr.f32.mxu0 0.0
      %4857 = vmatmul.mubr.f32.gmra.mrb[0].mxu0 %v4636
      %v4858 = vpop.f32.mrb[0].mxu0
      %v4859 = vadd.f32 0.0, %v4858
      %v4860 = vpop.f32.mrb[0].mxu0
      %4861 = vmatprep.mubr.f32.mxu0 0.0
      %4862 = vmatmul.mubr.f32.gmra.mrb[0].mxu0 %v4639
      %v4863 = vpop.f32.mrb[0].mxu0
      %v4864 = vadd.f32 0.0, %v4863
      %v4865 = vpop.f32.mrb[0].mxu0
      %4866 = vmatprep.mubr.f32.mxu0 0.0
      %4867 = vmatmul.mubr.f32.gmra.mrb[0].mxu0 %v4642
      %v4868 = vpop.f32.mrb[0].mxu0
      %v4869 = vadd.f32 0.0, %v4868
      %v4870 = vpop.f32.mrb[0].mxu0
      %4871 = vdwg.mxu0
      %v4872 = vadd.f32 %v4450, %v4714
      %v4873 = vadd.f32 %v4451, %v4719
      %v4874 = vadd.f32 %v4452, %v4724
      %v4875 = vadd.f32 %v4453, %v4729
      %v4876 = vadd.f32 %v4454, %v4734
      %v4877 = vadd.f32 %v4455, %v4739
      %v4878 = vadd.f32 %v4456, %v4744
      %v4879 = vadd.f32 %v4457, %v4749
      %v4880 = vadd.f32 %v4458, %v4754
      %v4881 = vadd.f32 %v4459, %v4759
      %v4882 = vadd.f32 %v4460, %v4764
      %v4883 = vadd.f32 %v4461, %v4769
      %v4884 = vadd.f32 %v4462, %v4774
      %v4885 = vadd.f32 %v4463, %v4779
      %v4886 = vadd.f32 %v4464, %v4784
      %v4887 = vadd.f32 %v4465, %v4789
      %v4888 = vadd.f32 %v4466, %v4794
      %v4889 = vadd.f32 %v4467, %v4799
      %v4890 = vadd.f32 %v4468, %v4804
      %v4891 = vadd.f32 %v4469, %v4809
      %v4892 = vadd.f32 %v4470, %v4814
      %v4893 = vadd.f32 %v4471, %v4819
      %v4894 = vadd.f32 %v4472, %v4824
      %v4895 = vadd.f32 %v4473, %v4829
      %v4896 = vadd.f32 %v4474, %v4834
      %v4897 = vadd.f32 %v4475, %v4839
      %v4898 = vadd.f32 %v4476, %v4844
      %v4899 = vadd.f32 %v4477, %v4849
      %v4900 = vadd.f32 %v4478, %v4854
      %v4901 = vadd.f32 %v4479, %v4859
      %v4902 = vadd.f32 %v4480, %v4864
      %v4903 = vadd.f32 %v4481, %v4869
      %s4904 = scalar_lea.vmem %s3, 20
      %v4905 = vld [vmem:[%s4904] sm:$0xf]
      %v4907 = vsel %vm353, %v4514, 0
      %v4910 = vsel %vm353, %v4515, 0
      %v4913 = vsel %vm353, %v4516, 0
      %v4916 = vsel %vm353, %v4517, 0
      %v4919 = vsel %vm353, %v4518, 0
      %v4922 = vsel %vm353, %v4519, 0
      %v4925 = vsel %vm353, %v4520, 0
      %v4928 = vsel %vm353, %v4521, 0
      %v4931 = vsel %vm353, %v4522, 0
      %v4934 = vsel %vm353, %v4523, 0
      %v4937 = vsel %vm353, %v4524, 0
      %v4940 = vsel %vm353, %v4525, 0
      %v4943 = vsel %vm353, %v4526, 0
      %v4946 = vsel %vm353, %v4527, 0
      %v4949 = vsel %vm353, %v4528, 0
      %v4952 = vsel %vm353, %v4529, 0
      %v4955 = vsel %vm353, %v4530, 0
      %v4958 = vsel %vm353, %v4531, 0
      %v4961 = vsel %vm353, %v4532, 0
      %v4964 = vsel %vm353, %v4533, 0
      %v4967 = vsel %vm353, %v4534, 0
      %v4970 = vsel %vm353, %v4535, 0
      %v4973 = vsel %vm353, %v4536, 0
      %v4976 = vsel %vm353, %v4537, 0
      %v4979 = vsel %vm353, %v4538, 0
      %v4982 = vsel %vm353, %v4539, 0
      %v4985 = vsel %vm353, %v4540, 0
      %v4988 = vsel %vm353, %v4541, 0
      %v4991 = vsel %vm353, %v4542, 0
      %v4994 = vsel %vm353, %v4543, 0
      %v4997 = vsel %vm353, %v4544, 0
      %v5000 = vsel %vm353, %v4545, 0
      %v5003 = vsel %vm809, %v4905, 0
      %5005 = vmatprep.subr.mxu0 0.0
      %5006 = vmatpush1.msra.mxu0 %v5003
      %5007 = vmatprep.subr.mxu0 0.0
      %5008 = vmatpush1.msra.mxu0 0.0
      %5009 = vmatprep.subr.mxu0 0.0
      %5010 = vmatpush1.msra.mxu0 0.0
      %5011 = vmatprep.subr.mxu0 0.0
      %5012 = vmatpush1.msra.mxu0 0.0
      %5013 = vmatprep.subr.mxu0 0.0
      %5014 = vmatpush1.msra.mxu0 0.0
      %5015 = vmatprep.subr.mxu0 0.0
      %5016 = vmatpush1.msra.mxu0 0.0
      %5017 = vmatprep.subr.mxu0 0.0
      %5018 = vmatpush1.msra.mxu0 0.0
      %5019 = vmatprep.subr.mxu0 0.0
      %5020 = vmatpush1.msra.mxu0 0.0
      %5021 = vmatprep.subr.mxu0 0.0
      %5022 = vmatpush1.msra.mxu0 0.0
      %5023 = vmatprep.subr.mxu0 0.0
      %5024 = vmatpush1.msra.mxu0 0.0
      %5025 = vmatprep.subr.mxu0 0.0
      %5026 = vmatpush1.msra.mxu0 0.0
      %5027 = vmatprep.subr.mxu0 0.0
      %5028 = vmatpush1.msra.mxu0 0.0
      %5029 = vmatprep.subr.mxu0 0.0
      %5030 = vmatpush1.msra.mxu0 0.0
      %5031 = vmatprep.subr.mxu0 0.0
      %5032 = vmatpush1.msra.mxu0 0.0
      %5033 = vmatprep.subr.mxu0 0.0
      %5034 = vmatpush1.msra.mxu0 0.0
      %5035 = vmatprep.subr.mxu0 0.0
      %5036 = vmatpush1.msra.mxu0 0.0
      %5037 = vmatprep.subr.mxu0 0.0
      %5038 = vmatpush1.msra.mxu0 0.0
      %5039 = vmatprep.subr.mxu0 0.0
      %5040 = vmatpush1.msra.mxu0 0.0
      %5041 = vmatprep.subr.mxu0 0.0
      %5042 = vmatpush1.msra.mxu0 0.0
      %5043 = vmatprep.subr.mxu0 0.0
      %5044 = vmatpush1.msra.mxu0 0.0
      %5045 = vmatprep.subr.mxu0 0.0
      %5046 = vmatpush1.msra.mxu0 0.0
      %5047 = vmatprep.subr.mxu0 0.0
      %5048 = vmatpush1.msra.mxu0 0.0
      %5049 = vmatprep.subr.mxu0 0.0
      %5050 = vmatpush1.msra.mxu0 0.0
      %5051 = vmatprep.subr.mxu0 0.0
      %5052 = vmatpush1.msra.mxu0 0.0
      %5053 = vmatprep.subr.mxu0 0.0
      %5054 = vmatpush1.msra.mxu0 0.0
      %5055 = vmatprep.subr.mxu0 0.0
      %5056 = vmatpush1.msra.mxu0 0.0
      %5057 = vmatprep.subr.mxu0 0.0
      %5058 = vmatpush1.msra.mxu0 0.0
      %5059 = vmatprep.subr.mxu0 0.0
      %5060 = vmatpush1.msra.mxu0 0.0
      %5061 = vmatprep.subr.mxu0 0.0
      %5062 = vmatpush1.msra.mxu0 0.0
      %5063 = vmatprep.subr.mxu0 0.0
      %5064 = vmatpush1.msra.mxu0 0.0
      %5065 = vmatprep.subr.mxu0 0.0
      %5066 = vmatpush1.msra.mxu0 0.0
      %5067 = vmatprep.subr.mxu0 0.0
      %5068 = vmatpush1.msra.mxu0 0.0
      %5069 = vmatprep.mubr.f32.mxu0 0.0
      %5070 = vmatmul.mubr.f32.gmra.mrb[0].mxu0 %v4907
      %v5071 = vpop.f32.mrb[0].mxu0
      %v5072 = vadd.f32 0.0, %v5071
      %v5073 = vpop.f32.mrb[0].mxu0
      %5074 = vmatprep.mubr.f32.mxu0 0.0
      %5075 = vmatmul.mubr.f32.gmra.mrb[0].mxu0 %v4910
      %v5076 = vpop.f32.mrb[0].mxu0
      %v5077 = vadd.f32 0.0, %v5076
      %v5078 = vpop.f32.mrb[0].mxu0
      %5079 = vmatprep.mubr.f32.mxu0 0.0
      %5080 = vmatmul.mubr.f32.gmra.mrb[0].mxu0 %v4913
      %v5081 = vpop.f32.mrb[0].mxu0
      %v5082 = vadd.f32 0.0, %v5081
      %v5083 = vpop.f32.mrb[0].mxu0
      %5084 = vmatprep.mubr.f32.mxu0 0.0
      %5085 = vmatmul.mubr.f32.gmra.mrb[0].mxu0 %v4916
      %v5086 = vpop.f32.mrb[0].mxu0
      %v5087 = vadd.f32 0.0, %v5086
      %v5088 = vpop.f32.mrb[0].mxu0
      %5089 = vmatprep.mubr.f32.mxu0 0.0
      %5090 = vmatmul.mubr.f32.gmra.mrb[0].mxu0 %v4919
      %v5091 = vpop.f32.mrb[0].mxu0
      %v5092 = vadd.f32 0.0, %v5091
      %v5093 = vpop.f32.mrb[0].mxu0
      %5094 = vmatprep.mubr.f32.mxu0 0.0
      %5095 = vmatmul.mubr.f32.gmra.mrb[0].mxu0 %v4922
      %v5096 = vpop.f32.mrb[0].mxu0
      %v5097 = vadd.f32 0.0, %v5096
      %v5098 = vpop.f32.mrb[0].mxu0
      %5099 = vmatprep.mubr.f32.mxu0 0.0
      %5100 = vmatmul.mubr.f32.gmra.mrb[0].mxu0 %v4925
      %v5101 = vpop.f32.mrb[0].mxu0
      %v5102 = vadd.f32 0.0, %v5101
      %v5103 = vpop.f32.mrb[0].mxu0
      %5104 = vmatprep.mubr.f32.mxu0 0.0
      %5105 = vmatmul.mubr.f32.gmra.mrb[0].mxu0 %v4928
      %v5106 = vpop.f32.mrb[0].mxu0
      %v5107 = vadd.f32 0.0, %v5106
      %v5108 = vpop.f32.mrb[0].mxu0
      %5109 = vmatprep.mubr.f32.mxu0 0.0
      %5110 = vmatmul.mubr.f32.gmra.mrb[0].mxu0 %v4931
      %v5111 = vpop.f32.mrb[0].mxu0
      %v5112 = vadd.f32 0.0, %v5111
      %v5113 = vpop.f32.mrb[0].mxu0
      %5114 = vmatprep.mubr.f32.mxu0 0.0
      %5115 = vmatmul.mubr.f32.gmra.mrb[0].mxu0 %v4934
      %v5116 = vpop.f32.mrb[0].mxu0
      %v5117 = vadd.f32 0.0, %v5116
      %v5118 = vpop.f32.mrb[0].mxu0
      %5119 = vmatprep.mubr.f32.mxu0 0.0
      %5120 = vmatmul.mubr.f32.gmra.mrb[0].mxu0 %v4937
      %v5121 = vpop.f32.mrb[0].mxu0
      %v5122 = vadd.f32 0.0, %v5121
      %v5123 = vpop.f32.mrb[0].mxu0
      %5124 = vmatprep.mubr.f32.mxu0 0.0
      %5125 = vmatmul.mubr.f32.gmra.mrb[0].mxu0 %v4940
      %v5126 = vpop.f32.mrb[0].mxu0
      %v5127 = vadd.f32 0.0, %v5126
      %v5128 = vpop.f32.mrb[0].mxu0
      %5129 = vmatprep.mubr.f32.mxu0 0.0
      %5130 = vmatmul.mubr.f32.gmra.mrb[0].mxu0 %v4943
      %v5131 = vpop.f32.mrb[0].mxu0
      %v5132 = vadd.f32 0.0, %v5131
      %v5133 = vpop.f32.mrb[0].mxu0
      %5134 = vmatprep.mubr.f32.mxu0 0.0
      %5135 = vmatmul.mubr.f32.gmra.mrb[0].mxu0 %v4946
      %v5136 = vpop.f32.mrb[0].mxu0
      %v5137 = vadd.f32 0.0, %v5136
      %v5138 = vpop.f32.mrb[0].mxu0
      %5139 = vmatprep.mubr.f32.mxu0 0.0
      %5140 = vmatmul.mubr.f32.gmra.mrb[0].mxu0 %v4949
      %v5141 = vpop.f32.mrb[0].mxu0
      %v5142 = vadd.f32 0.0, %v5141
      %v5143 = vpop.f32.mrb[0].mxu0
      %5144 = vmatprep.mubr.f32.mxu0 0.0
      %5145 = vmatmul.mubr.f32.gmra.mrb[0].mxu0 %v4952
      %v5146 = vpop.f32.mrb[0].mxu0
      %v5147 = vadd.f32 0.0, %v5146
      %v5148 = vpop.f32.mrb[0].mxu0
      %5149 = vmatprep.mubr.f32.mxu0 0.0
      %5150 = vmatmul.mubr.f32.gmra.mrb[0].mxu0 %v4955
      %v5151 = vpop.f32.mrb[0].mxu0
      %v5152 = vadd.f32 0.0, %v5151
      %v5153 = vpop.f32.mrb[0].mxu0
      %5154 = vmatprep.mubr.f32.mxu0 0.0
      %5155 = vmatmul.mubr.f32.gmra.mrb[0].mxu0 %v4958
      %v5156 = vpop.f32.mrb[0].mxu0
      %v5157 = vadd.f32 0.0, %v5156
      %v5158 = vpop.f32.mrb[0].mxu0
      %5159 = vmatprep.mubr.f32.mxu0 0.0
      %5160 = vmatmul.mubr.f32.gmra.mrb[0].mxu0 %v4961
      %v5161 = vpop.f32.mrb[0].mxu0
      %v5162 = vadd.f32 0.0, %v5161
      %v5163 = vpop.f32.mrb[0].mxu0
      %5164 = vmatprep.mubr.f32.mxu0 0.0
      %5165 = vmatmul.mubr.f32.gmra.mrb[0].mxu0 %v4964
      %v5166 = vpop.f32.mrb[0].mxu0
      %v5167 = vadd.f32 0.0, %v5166
      %v5168 = vpop.f32.mrb[0].mxu0
      %5169 = vmatprep.mubr.f32.mxu0 0.0
      %5170 = vmatmul.mubr.f32.gmra.mrb[0].mxu0 %v4967
      %v5171 = vpop.f32.mrb[0].mxu0
      %v5172 = vadd.f32 0.0, %v5171
      %v5173 = vpop.f32.mrb[0].mxu0
      %5174 = vmatprep.mubr.f32.mxu0 0.0
      %5175 = vmatmul.mubr.f32.gmra.mrb[0].mxu0 %v4970
      %v5176 = vpop.f32.mrb[0].mxu0
      %v5177 = vadd.f32 0.0, %v5176
      %v5178 = vpop.f32.mrb[0].mxu0
      %5179 = vmatprep.mubr.f32.mxu0 0.0
      %5180 = vmatmul.mubr.f32.gmra.mrb[0].mxu0 %v4973
      %v5181 = vpop.f32.mrb[0].mxu0
      %v5182 = vadd.f32 0.0, %v5181
      %v5183 = vpop.f32.mrb[0].mxu0
      %5184 = vmatprep.mubr.f32.mxu0 0.0
      %5185 = vmatmul.mubr.f32.gmra.mrb[0].mxu0 %v4976
      %v5186 = vpop.f32.mrb[0].mxu0
      %v5187 = vadd.f32 0.0, %v5186
      %v5188 = vpop.f32.mrb[0].mxu0
      %5189 = vmatprep.mubr.f32.mxu0 0.0
      %5190 = vmatmul.mubr.f32.gmra.mrb[0].mxu0 %v4979
      %v5191 = vpop.f32.mrb[0].mxu0
      %v5192 = vadd.f32 0.0, %v5191
      %v5193 = vpop.f32.mrb[0].mxu0
      %5194 = vmatprep.mubr.f32.mxu0 0.0
      %5195 = vmatmul.mubr.f32.gmra.mrb[0].mxu0 %v4982
      %v5196 = vpop.f32.mrb[0].mxu0
      %v5197 = vadd.f32 0.0, %v5196
      %v5198 = vpop.f32.mrb[0].mxu0
      %5199 = vmatprep.mubr.f32.mxu0 0.0
      %5200 = vmatmul.mubr.f32.gmra.mrb[0].mxu0 %v4985
      %v5201 = vpop.f32.mrb[0].mxu0
      %v5202 = vadd.f32 0.0, %v5201
      %v5203 = vpop.f32.mrb[0].mxu0
      %5204 = vmatprep.mubr.f32.mxu0 0.0
      %5205 = vmatmul.mubr.f32.gmra.mrb[0].mxu0 %v4988
      %v5206 = vpop.f32.mrb[0].mxu0
      %v5207 = vadd.f32 0.0, %v5206
      %v5208 = vpop.f32.mrb[0].mxu0
      %5209 = vmatprep.mubr.f32.mxu0 0.0
      %5210 = vmatmul.mubr.f32.gmra.mrb[0].mxu0 %v4991
      %v5211 = vpop.f32.mrb[0].mxu0
      %v5212 = vadd.f32 0.0, %v5211
      %v5213 = vpop.f32.mrb[0].mxu0
      %5214 = vmatprep.mubr.f32.mxu0 0.0
      %5215 = vmatmul.mubr.f32.gmra.mrb[0].mxu0 %v4994
      %v5216 = vpop.f32.mrb[0].mxu0
      %v5217 = vadd.f32 0.0, %v5216
      %v5218 = vpop.f32.mrb[0].mxu0
      %5219 = vmatprep.mubr.f32.mxu0 0.0
      %5220 = vmatmul.mubr.f32.gmra.mrb[0].mxu0 %v4997
      %v5221 = vpop.f32.mrb[0].mxu0
      %v5222 = vadd.f32 0.0, %v5221
      %v5223 = vpop.f32.mrb[0].mxu0
      %5224 = vmatprep.mubr.f32.mxu0 0.0
      %5225 = vmatmul.mubr.f32.gmra.mrb[0].mxu0 %v5000
      %v5226 = vpop.f32.mrb[0].mxu0
      %v5227 = vadd.f32 0.0, %v5226
      %v5228 = vpop.f32.mrb[0].mxu0
      %5229 = vdwg.mxu0
      %v5230 = vadd.f32 %v4872, %v5072
      %v5231 = vadd.f32 %v4873, %v5077
      %v5232 = vadd.f32 %v4874, %v5082
      %v5233 = vadd.f32 %v4875, %v5087
      %v5234 = vadd.f32 %v4876, %v5092
      %v5235 = vadd.f32 %v4877, %v5097
      %v5236 = vadd.f32 %v4878, %v5102
      %v5237 = vadd.f32 %v4879, %v5107
      %v5238 = vadd.f32 %v4880, %v5112
      %v5239 = vadd.f32 %v4881, %v5117
      %v5240 = vadd.f32 %v4882, %v5122
      %v5241 = vadd.f32 %v4883, %v5127
      %v5242 = vadd.f32 %v4884, %v5132
      %v5243 = vadd.f32 %v4885, %v5137
      %v5244 = vadd.f32 %v4886, %v5142
      %v5245 = vadd.f32 %v4887, %v5147
      %v5246 = vadd.f32 %v4888, %v5152
      %v5247 = vadd.f32 %v4889, %v5157
      %v5248 = vadd.f32 %v4890, %v5162
      %v5249 = vadd.f32 %v4891, %v5167
      %v5250 = vadd.f32 %v4892, %v5172
      %v5251 = vadd.f32 %v4893, %v5177
      %v5252 = vadd.f32 %v4894, %v5182
      %v5253 = vadd.f32 %v4895, %v5187
      %v5254 = vadd.f32 %v4896, %v5192
      %v5255 = vadd.f32 %v4897, %v5197
      %v5256 = vadd.f32 %v4898, %v5202
      %v5257 = vadd.f32 %v4899, %v5207
      %v5258 = vadd.f32 %v4900, %v5212
      %v5259 = vadd.f32 %v4901, %v5217
      %v5260 = vadd.f32 %v4902, %v5222
      %v5261 = vadd.f32 %v4903, %v5227
      %s5262 = scalar_lea.vmem [#allocation2], 48
      %v5263 = vld [vmem:[%s5262] sm:$0xff]
      %v5264 = vld [vmem:[%s5262 + $0x8] sm:$0xff]
      %v5265 = vld [vmem:[%s5262 + $0x18] sm:$0xff]
      %v5266 = vld [vmem:[%s5262 + $0x20] sm:$0xff]
      %v5267 = vld [vmem:[%s5262 + $0x30] sm:$0xff]
      %v5268 = vld [vmem:[%s5262 + $0x38] sm:$0xff]
      %v5269 = vld [vmem:[%s5262 + $0x48] sm:$0xff]
      %v5270 = vld [vmem:[%s5262 + $0x50] sm:$0xff]
      %v5271 = vld [vmem:[%s5262 + $0x60] sm:$0xff]
      %v5272 = vld [vmem:[%s5262 + $0x68] sm:$0xff]
      %v5273 = vld [vmem:[%s5262 + $0x78] sm:$0xff]
      %v5274 = vld [vmem:[%s5262 + $0x80] sm:$0xff]
      %v5275 = vld [vmem:[%s5262 + $0x90] sm:$0xff]
      %v5276 = vld [vmem:[%s5262 + $0x98] sm:$0xff]
      %v5277 = vld [vmem:[%s5262 + $0xa8] sm:$0xff]
      %v5278 = vld [vmem:[%s5262 + $0xb0] sm:$0xff]
      %v5279 = vld [vmem:[%s5262 + $0xc0] sm:$0xff]
      %v5280 = vld [vmem:[%s5262 + $0xc8] sm:$0xff]
      %v5281 = vld [vmem:[%s5262 + $0xd8] sm:$0xff]
      %v5282 = vld [vmem:[%s5262 + $0xe0] sm:$0xff]
      %v5283 = vld [vmem:[%s5262 + $0xf0] sm:$0xff]
      %v5284 = vld [vmem:[%s5262 + $0xf8] sm:$0xff]
      %v5285 = vld [vmem:[%s5262 + $0x108] sm:$0xff]
      %v5286 = vld [vmem:[%s5262 + $0x110] sm:$0xff]
      %v5287 = vld [vmem:[%s5262 + $0x120] sm:$0xff]
      %v5288 = vld [vmem:[%s5262 + $0x128] sm:$0xff]
      %v5289 = vld [vmem:[%s5262 + $0x138] sm:$0xff]
      %v5290 = vld [vmem:[%s5262 + $0x140] sm:$0xff]
      %v5291 = vld [vmem:[%s5262 + $0x150] sm:$0xff]
      %v5292 = vld [vmem:[%s5262 + $0x158] sm:$0xff]
      %v5293 = vld [vmem:[%s5262 + $0x168] sm:$0xff]
      %v5294 = vld [vmem:[%s5262 + $0x170] sm:$0xff]
      %s5295 = scalar_lea.vmem [#allocation3], 48
      %v5296 = vld [vmem:[%s5295] sm:$0xff]
      %v5297 = vld [vmem:[%s5295 + $0x8] sm:$0xff]
      %v5298 = vld [vmem:[%s5295 + $0x18] sm:$0xff]
      %v5299 = vld [vmem:[%s5295 + $0x20] sm:$0xff]
      %v5300 = vld [vmem:[%s5295 + $0x30] sm:$0xff]
      %v5301 = vld [vmem:[%s5295 + $0x38] sm:$0xff]
      %v5302 = vld [vmem:[%s5295 + $0x48] sm:$0xff]
      %v5303 = vld [vmem:[%s5295 + $0x50] sm:$0xff]
      %v5304 = vld [vmem:[%s5295 + $0x60] sm:$0xff]
      %v5305 = vld [vmem:[%s5295 + $0x68] sm:$0xff]
      %v5306 = vld [vmem:[%s5295 + $0x78] sm:$0xff]
      %v5307 = vld [vmem:[%s5295 + $0x80] sm:$0xff]
      %v5308 = vld [vmem:[%s5295 + $0x90] sm:$0xff]
      %v5309 = vld [vmem:[%s5295 + $0x98] sm:$0xff]
      %v5310 = vld [vmem:[%s5295 + $0xa8] sm:$0xff]
      %v5311 = vld [vmem:[%s5295 + $0xb0] sm:$0xff]
      %v5312 = vld [vmem:[%s5295 + $0xc0] sm:$0xff]
      %v5313 = vld [vmem:[%s5295 + $0xc8] sm:$0xff]
      %v5314 = vld [vmem:[%s5295 + $0xd8] sm:$0xff]
      %v5315 = vld [vmem:[%s5295 + $0xe0] sm:$0xff]
      %v5316 = vld [vmem:[%s5295 + $0xf0] sm:$0xff]
      %v5317 = vld [vmem:[%s5295 + $0xf8] sm:$0xff]
      %v5318 = vld [vmem:[%s5295 + $0x108] sm:$0xff]
      %v5319 = vld [vmem:[%s5295 + $0x110] sm:$0xff]
      %v5320 = vld [vmem:[%s5295 + $0x120] sm:$0xff]
      %v5321 = vld [vmem:[%s5295 + $0x128] sm:$0xff]
      %v5322 = vld [vmem:[%s5295 + $0x138] sm:$0xff]
      %v5323 = vld [vmem:[%s5295 + $0x140] sm:$0xff]
      %v5324 = vld [vmem:[%s5295 + $0x150] sm:$0xff]
      %v5325 = vld [vmem:[%s5295 + $0x158] sm:$0xff]
      %v5326 = vld [vmem:[%s5295 + $0x168] sm:$0xff]
      %v5327 = vld [vmem:[%s5295 + $0x170] sm:$0xff]
      %s5328 = scalar_lea.vmem %s2, 24
      %v5329 = vld [vmem:[%s5328] sm:$0xf]
      %v5331 = vsel %vm353, %v5263, 0
      %v5334 = vsel %vm353, %v5264, 0
      %v5337 = vsel %vm353, %v5265, 0
      %v5340 = vsel %vm353, %v5266, 0
      %v5343 = vsel %vm353, %v5267, 0
      %v5346 = vsel %vm353, %v5268, 0
      %v5349 = vsel %vm353, %v5269, 0
      %v5352 = vsel %vm353, %v5270, 0
      %v5355 = vsel %vm353, %v5271, 0
      %v5358 = vsel %vm353, %v5272, 0
      %v5361 = vsel %vm353, %v5273, 0
      %v5364 = vsel %vm353, %v5274, 0
      %v5367 = vsel %vm353, %v5275, 0
      %v5370 = vsel %vm353, %v5276, 0
      %v5373 = vsel %vm353, %v5277, 0
      %v5376 = vsel %vm353, %v5278, 0
      %v5379 = vsel %vm353, %v5279, 0
      %v5382 = vsel %vm353, %v5280, 0
      %v5385 = vsel %vm353, %v5281, 0
      %v5388 = vsel %vm353, %v5282, 0
      %v5391 = vsel %vm353, %v5283, 0
      %v5394 = vsel %vm353, %v5284, 0
      %v5397 = vsel %vm353, %v5285, 0
      %v5400 = vsel %vm353, %v5286, 0
      %v5403 = vsel %vm353, %v5287, 0
      %v5406 = vsel %vm353, %v5288, 0
      %v5409 = vsel %vm353, %v5289, 0
      %v5412 = vsel %vm353, %v5290, 0
      %v5415 = vsel %vm353, %v5291, 0
      %v5418 = vsel %vm353, %v5292, 0
      %v5421 = vsel %vm353, %v5293, 0
      %v5424 = vsel %vm353, %v5294, 0
      %v5427 = vsel %vm809, %v5329, 0
      %5429 = vmatprep.subr.mxu0 0.0
      %5430 = vmatpush1.msra.mxu0 %v5427
      %5431 = vmatprep.subr.mxu0 0.0
      %5432 = vmatpush1.msra.mxu0 0.0
      %5433 = vmatprep.subr.mxu0 0.0
      %5434 = vmatpush1.msra.mxu0 0.0
      %5435 = vmatprep.subr.mxu0 0.0
      %5436 = vmatpush1.msra.mxu0 0.0
      %5437 = vmatprep.subr.mxu0 0.0
      %5438 = vmatpush1.msra.mxu0 0.0
      %5439 = vmatprep.subr.mxu0 0.0
      %5440 = vmatpush1.msra.mxu0 0.0
      %5441 = vmatprep.subr.mxu0 0.0
      %5442 = vmatpush1.msra.mxu0 0.0
      %5443 = vmatprep.subr.mxu0 0.0
      %5444 = vmatpush1.msra.mxu0 0.0
      %5445 = vmatprep.subr.mxu0 0.0
      %5446 = vmatpush1.msra.mxu0 0.0
      %5447 = vmatprep.subr.mxu0 0.0
      %5448 = vmatpush1.msra.mxu0 0.0
      %5449 = vmatprep.subr.mxu0 0.0
      %5450 = vmatpush1.msra.mxu0 0.0
      %5451 = vmatprep.subr.mxu0 0.0
      %5452 = vmatpush1.msra.mxu0 0.0
      %5453 = vmatprep.subr.mxu0 0.0
      %5454 = vmatpush1.msra.mxu0 0.0
      %5455 = vmatprep.subr.mxu0 0.0
      %5456 = vmatpush1.msra.mxu0 0.0
      %5457 = vmatprep.subr.mxu0 0.0
      %5458 = vmatpush1.msra.mxu0 0.0
      %5459 = vmatprep.subr.mxu0 0.0
      %5460 = vmatpush1.msra.mxu0 0.0
      %5461 = vmatprep.subr.mxu0 0.0
      %5462 = vmatpush1.msra.mxu0 0.0
      %5463 = vmatprep.subr.mxu0 0.0
      %5464 = vmatpush1.msra.mxu0 0.0
      %5465 = vmatprep.subr.mxu0 0.0
      %5466 = vmatpush1.msra.mxu0 0.0
      %5467 = vmatprep.subr.mxu0 0.0
      %5468 = vmatpush1.msra.mxu0 0.0
      %5469 = vmatprep.subr.mxu0 0.0
      %5470 = vmatpush1.msra.mxu0 0.0
      %5471 = vmatprep.subr.mxu0 0.0
      %5472 = vmatpush1.msra.mxu0 0.0
      %5473 = vmatprep.subr.mxu0 0.0
      %5474 = vmatpush1.msra.mxu0 0.0
      %5475 = vmatprep.subr.mxu0 0.0
      %5476 = vmatpush1.msra.mxu0 0.0
      %5477 = vmatprep.subr.mxu0 0.0
      %5478 = vmatpush1.msra.mxu0 0.0
      %5479 = vmatprep.subr.mxu0 0.0
      %5480 = vmatpush1.msra.mxu0 0.0
      %5481 = vmatprep.subr.mxu0 0.0
      %5482 = vmatpush1.msra.mxu0 0.0
      %5483 = vmatprep.subr.mxu0 0.0
      %5484 = vmatpush1.msra.mxu0 0.0
      %5485 = vmatprep.subr.mxu0 0.0
      %5486 = vmatpush1.msra.mxu0 0.0
      %5487 = vmatprep.subr.mxu0 0.0
      %5488 = vmatpush1.msra.mxu0 0.0
      %5489 = vmatprep.subr.mxu0 0.0
      %5490 = vmatpush1.msra.mxu0 0.0
      %5491 = vmatprep.subr.mxu0 0.0
      %5492 = vmatpush1.msra.mxu0 0.0
      %5493 = vmatprep.mubr.f32.mxu0 0.0
      %5494 = vmatmul.mubr.f32.gmra.mrb[0].mxu0 %v5331
      %v5495 = vpop.f32.mrb[0].mxu0
      %v5496 = vadd.f32 0.0, %v5495
      %v5497 = vpop.f32.mrb[0].mxu0
      %5498 = vmatprep.mubr.f32.mxu0 0.0
      %5499 = vmatmul.mubr.f32.gmra.mrb[0].mxu0 %v5334
      %v5500 = vpop.f32.mrb[0].mxu0
      %v5501 = vadd.f32 0.0, %v5500
      %v5502 = vpop.f32.mrb[0].mxu0
      %5503 = vmatprep.mubr.f32.mxu0 0.0
      %5504 = vmatmul.mubr.f32.gmra.mrb[0].mxu0 %v5337
      %v5505 = vpop.f32.mrb[0].mxu0
      %v5506 = vadd.f32 0.0, %v5505
      %v5507 = vpop.f32.mrb[0].mxu0
      %5508 = vmatprep.mubr.f32.mxu0 0.0
      %5509 = vmatmul.mubr.f32.gmra.mrb[0].mxu0 %v5340
      %v5510 = vpop.f32.mrb[0].mxu0
      %v5511 = vadd.f32 0.0, %v5510
      %v5512 = vpop.f32.mrb[0].mxu0
      %5513 = vmatprep.mubr.f32.mxu0 0.0
      %5514 = vmatmul.mubr.f32.gmra.mrb[0].mxu0 %v5343
      %v5515 = vpop.f32.mrb[0].mxu0
      %v5516 = vadd.f32 0.0, %v5515
      %v5517 = vpop.f32.mrb[0].mxu0
      %5518 = vmatprep.mubr.f32.mxu0 0.0
      %5519 = vmatmul.mubr.f32.gmra.mrb[0].mxu0 %v5346
      %v5520 = vpop.f32.mrb[0].mxu0
      %v5521 = vadd.f32 0.0, %v5520
      %v5522 = vpop.f32.mrb[0].mxu0
      %5523 = vmatprep.mubr.f32.mxu0 0.0
      %5524 = vmatmul.mubr.f32.gmra.mrb[0].mxu0 %v5349
      %v5525 = vpop.f32.mrb[0].mxu0
      %v5526 = vadd.f32 0.0, %v5525
      %v5527 = vpop.f32.mrb[0].mxu0
      %5528 = vmatprep.mubr.f32.mxu0 0.0
      %5529 = vmatmul.mubr.f32.gmra.mrb[0].mxu0 %v5352
      %v5530 = vpop.f32.mrb[0].mxu0
      %v5531 = vadd.f32 0.0, %v5530
      %v5532 = vpop.f32.mrb[0].mxu0
      %5533 = vmatprep.mubr.f32.mxu0 0.0
      %5534 = vmatmul.mubr.f32.gmra.mrb[0].mxu0 %v5355
      %v5535 = vpop.f32.mrb[0].mxu0
      %v5536 = vadd.f32 0.0, %v5535
      %v5537 = vpop.f32.mrb[0].mxu0
      %5538 = vmatprep.mubr.f32.mxu0 0.0
      %5539 = vmatmul.mubr.f32.gmra.mrb[0].mxu0 %v5358
      %v5540 = vpop.f32.mrb[0].mxu0
      %v5541 = vadd.f32 0.0, %v5540
      %v5542 = vpop.f32.mrb[0].mxu0
      %5543 = vmatprep.mubr.f32.mxu0 0.0
      %5544 = vmatmul.mubr.f32.gmra.mrb[0].mxu0 %v5361
      %v5545 = vpop.f32.mrb[0].mxu0
      %v5546 = vadd.f32 0.0, %v5545
      %v5547 = vpop.f32.mrb[0].mxu0
      %5548 = vmatprep.mubr.f32.mxu0 0.0
      %5549 = vmatmul.mubr.f32.gmra.mrb[0].mxu0 %v5364
      %v5550 = vpop.f32.mrb[0].mxu0
      %v5551 = vadd.f32 0.0, %v5550
      %v5552 = vpop.f32.mrb[0].mxu0
      %5553 = vmatprep.mubr.f32.mxu0 0.0
      %5554 = vmatmul.mubr.f32.gmra.mrb[0].mxu0 %v5367
      %v5555 = vpop.f32.mrb[0].mxu0
      %v5556 = vadd.f32 0.0, %v5555
      %v5557 = vpop.f32.mrb[0].mxu0
      %5558 = vmatprep.mubr.f32.mxu0 0.0
      %5559 = vmatmul.mubr.f32.gmra.mrb[0].mxu0 %v5370
      %v5560 = vpop.f32.mrb[0].mxu0
      %v5561 = vadd.f32 0.0, %v5560
      %v5562 = vpop.f32.mrb[0].mxu0
      %5563 = vmatprep.mubr.f32.mxu0 0.0
      %5564 = vmatmul.mubr.f32.gmra.mrb[0].mxu0 %v5373
      %v5565 = vpop.f32.mrb[0].mxu0
      %v5566 = vadd.f32 0.0, %v5565
      %v5567 = vpop.f32.mrb[0].mxu0
      %5568 = vmatprep.mubr.f32.mxu0 0.0
      %5569 = vmatmul.mubr.f32.gmra.mrb[0].mxu0 %v5376
      %v5570 = vpop.f32.mrb[0].mxu0
      %v5571 = vadd.f32 0.0, %v5570
      %v5572 = vpop.f32.mrb[0].mxu0
      %5573 = vmatprep.mubr.f32.mxu0 0.0
      %5574 = vmatmul.mubr.f32.gmra.mrb[0].mxu0 %v5379
      %v5575 = vpop.f32.mrb[0].mxu0
      %v5576 = vadd.f32 0.0, %v5575
      %v5577 = vpop.f32.mrb[0].mxu0
      %5578 = vmatprep.mubr.f32.mxu0 0.0
      %5579 = vmatmul.mubr.f32.gmra.mrb[0].mxu0 %v5382
      %v5580 = vpop.f32.mrb[0].mxu0
      %v5581 = vadd.f32 0.0, %v5580
      %v5582 = vpop.f32.mrb[0].mxu0
      %5583 = vmatprep.mubr.f32.mxu0 0.0
      %5584 = vmatmul.mubr.f32.gmra.mrb[0].mxu0 %v5385
      %v5585 = vpop.f32.mrb[0].mxu0
      %v5586 = vadd.f32 0.0, %v5585
      %v5587 = vpop.f32.mrb[0].mxu0
      %5588 = vmatprep.mubr.f32.mxu0 0.0
      %5589 = vmatmul.mubr.f32.gmra.mrb[0].mxu0 %v5388
      %v5590 = vpop.f32.mrb[0].mxu0
      %v5591 = vadd.f32 0.0, %v5590
      %v5592 = vpop.f32.mrb[0].mxu0
      %5593 = vmatprep.mubr.f32.mxu0 0.0
      %5594 = vmatmul.mubr.f32.gmra.mrb[0].mxu0 %v5391
      %v5595 = vpop.f32.mrb[0].mxu0
      %v5596 = vadd.f32 0.0, %v5595
      %v5597 = vpop.f32.mrb[0].mxu0
      %5598 = vmatprep.mubr.f32.mxu0 0.0
      %5599 = vmatmul.mubr.f32.gmra.mrb[0].mxu0 %v5394
      %v5600 = vpop.f32.mrb[0].mxu0
      %v5601 = vadd.f32 0.0, %v5600
      %v5602 = vpop.f32.mrb[0].mxu0
      %5603 = vmatprep.mubr.f32.mxu0 0.0
      %5604 = vmatmul.mubr.f32.gmra.mrb[0].mxu0 %v5397
      %v5605 = vpop.f32.mrb[0].mxu0
      %v5606 = vadd.f32 0.0, %v5605
      %v5607 = vpop.f32.mrb[0].mxu0
      %5608 = vmatprep.mubr.f32.mxu0 0.0
      %5609 = vmatmul.mubr.f32.gmra.mrb[0].mxu0 %v5400
      %v5610 = vpop.f32.mrb[0].mxu0
      %v5611 = vadd.f32 0.0, %v5610
      %v5612 = vpop.f32.mrb[0].mxu0
      %5613 = vmatprep.mubr.f32.mxu0 0.0
      %5614 = vmatmul.mubr.f32.gmra.mrb[0].mxu0 %v5403
      %v5615 = vpop.f32.mrb[0].mxu0
      %v5616 = vadd.f32 0.0, %v5615
      %v5617 = vpop.f32.mrb[0].mxu0
      %5618 = vmatprep.mubr.f32.mxu0 0.0
      %5619 = vmatmul.mubr.f32.gmra.mrb[0].mxu0 %v5406
      %v5620 = vpop.f32.mrb[0].mxu0
      %v5621 = vadd.f32 0.0, %v5620
      %v5622 = vpop.f32.mrb[0].mxu0
      %5623 = vmatprep.mubr.f32.mxu0 0.0
      %5624 = vmatmul.mubr.f32.gmra.mrb[0].mxu0 %v5409
      %v5625 = vpop.f32.mrb[0].mxu0
      %v5626 = vadd.f32 0.0, %v5625
      %v5627 = vpop.f32.mrb[0].mxu0
      %5628 = vmatprep.mubr.f32.mxu0 0.0
      %5629 = vmatmul.mubr.f32.gmra.mrb[0].mxu0 %v5412
      %v5630 = vpop.f32.mrb[0].mxu0
      %v5631 = vadd.f32 0.0, %v5630
      %v5632 = vpop.f32.mrb[0].mxu0
      %5633 = vmatprep.mubr.f32.mxu0 0.0
      %5634 = vmatmul.mubr.f32.gmra.mrb[0].mxu0 %v5415
      %v5635 = vpop.f32.mrb[0].mxu0
      %v5636 = vadd.f32 0.0, %v5635
      %v5637 = vpop.f32.mrb[0].mxu0
      %5638 = vmatprep.mubr.f32.mxu0 0.0
      %5639 = vmatmul.mubr.f32.gmra.mrb[0].mxu0 %v5418
      %v5640 = vpop.f32.mrb[0].mxu0
      %v5641 = vadd.f32 0.0, %v5640
      %v5642 = vpop.f32.mrb[0].mxu0
      %5643 = vmatprep.mubr.f32.mxu0 0.0
      %5644 = vmatmul.mubr.f32.gmra.mrb[0].mxu0 %v5421
      %v5645 = vpop.f32.mrb[0].mxu0
      %v5646 = vadd.f32 0.0, %v5645
      %v5647 = vpop.f32.mrb[0].mxu0
      %5648 = vmatprep.mubr.f32.mxu0 0.0
      %5649 = vmatmul.mubr.f32.gmra.mrb[0].mxu0 %v5424
      %v5650 = vpop.f32.mrb[0].mxu0
      %v5651 = vadd.f32 0.0, %v5650
      %v5652 = vpop.f32.mrb[0].mxu0
      %5653 = vdwg.mxu0
      %v5654 = vadd.f32 %v5230, %v5496
      %v5655 = vadd.f32 %v5231, %v5501
      %v5656 = vadd.f32 %v5232, %v5506
      %v5657 = vadd.f32 %v5233, %v5511
      %v5658 = vadd.f32 %v5234, %v5516
      %v5659 = vadd.f32 %v5235, %v5521
      %v5660 = vadd.f32 %v5236, %v5526
      %v5661 = vadd.f32 %v5237, %v5531
      %v5662 = vadd.f32 %v5238, %v5536
      %v5663 = vadd.f32 %v5239, %v5541
      %v5664 = vadd.f32 %v5240, %v5546
      %v5665 = vadd.f32 %v5241, %v5551
      %v5666 = vadd.f32 %v5242, %v5556
      %v5667 = vadd.f32 %v5243, %v5561
      %v5668 = vadd.f32 %v5244, %v5566
      %v5669 = vadd.f32 %v5245, %v5571
      %v5670 = vadd.f32 %v5246, %v5576
      %v5671 = vadd.f32 %v5247, %v5581
      %v5672 = vadd.f32 %v5248, %v5586
      %v5673 = vadd.f32 %v5249, %v5591
      %v5674 = vadd.f32 %v5250, %v5596
      %v5675 = vadd.f32 %v5251, %v5601
      %v5676 = vadd.f32 %v5252, %v5606
      %v5677 = vadd.f32 %v5253, %v5611
      %v5678 = vadd.f32 %v5254, %v5616
      %v5679 = vadd.f32 %v5255, %v5621
      %v5680 = vadd.f32 %v5256, %v5626
      %v5681 = vadd.f32 %v5257, %v5631
      %v5682 = vadd.f32 %v5258, %v5636
      %v5683 = vadd.f32 %v5259, %v5641
      %v5684 = vadd.f32 %v5260, %v5646
      %v5685 = vadd.f32 %v5261, %v5651
      %s5686 = scalar_lea.vmem %s3, 24
      %v5687 = vld [vmem:[%s5686] sm:$0xf]
      %v5689 = vsel %vm353, %v5296, 0
      %v5692 = vsel %vm353, %v5297, 0
      %v5695 = vsel %vm353, %v5298, 0
      %v5698 = vsel %vm353, %v5299, 0
      %v5701 = vsel %vm353, %v5300, 0
      %v5704 = vsel %vm353, %v5301, 0
      %v5707 = vsel %vm353, %v5302, 0
      %v5710 = vsel %vm353, %v5303, 0
      %v5713 = vsel %vm353, %v5304, 0
      %v5716 = vsel %vm353, %v5305, 0
      %v5719 = vsel %vm353, %v5306, 0
      %v5722 = vsel %vm353, %v5307, 0
      %v5725 = vsel %vm353, %v5308, 0
      %v5728 = vsel %vm353, %v5309, 0
      %v5731 = vsel %vm353, %v5310, 0
      %v5734 = vsel %vm353, %v5311, 0
      %v5737 = vsel %vm353, %v5312, 0
      %v5740 = vsel %vm353, %v5313, 0
      %v5743 = vsel %vm353, %v5314, 0
      %v5746 = vsel %vm353, %v5315, 0
      %v5749 = vsel %vm353, %v5316, 0
      %v5752 = vsel %vm353, %v5317, 0
      %v5755 = vsel %vm353, %v5318, 0
      %v5758 = vsel %vm353, %v5319, 0
      %v5761 = vsel %vm353, %v5320, 0
      %v5764 = vsel %vm353, %v5321, 0
      %v5767 = vsel %vm353, %v5322, 0
      %v5770 = vsel %vm353, %v5323, 0
      %v5773 = vsel %vm353, %v5324, 0
      %v5776 = vsel %vm353, %v5325, 0
      %v5779 = vsel %vm353, %v5326, 0
      %v5782 = vsel %vm353, %v5327, 0
      %v5785 = vsel %vm809, %v5687, 0
      %5787 = vmatprep.subr.mxu0 0.0
      %5788 = vmatpush1.msra.mxu0 %v5785
      %5789 = vmatprep.subr.mxu0 0.0
      %5790 = vmatpush1.msra.mxu0 0.0
      %5791 = vmatprep.subr.mxu0 0.0
      %5792 = vmatpush1.msra.mxu0 0.0
      %5793 = vmatprep.subr.mxu0 0.0
      %5794 = vmatpush1.msra.mxu0 0.0
      %5795 = vmatprep.subr.mxu0 0.0
      %5796 = vmatpush1.msra.mxu0 0.0
      %5797 = vmatprep.subr.mxu0 0.0
      %5798 = vmatpush1.msra.mxu0 0.0
      %5799 = vmatprep.subr.mxu0 0.0
      %5800 = vmatpush1.msra.mxu0 0.0
      %5801 = vmatprep.subr.mxu0 0.0
      %5802 = vmatpush1.msra.mxu0 0.0
      %5803 = vmatprep.subr.mxu0 0.0
      %5804 = vmatpush1.msra.mxu0 0.0
      %5805 = vmatprep.subr.mxu0 0.0
      %5806 = vmatpush1.msra.mxu0 0.0
      %5807 = vmatprep.subr.mxu0 0.0
      %5808 = vmatpush1.msra.mxu0 0.0
      %5809 = vmatprep.subr.mxu0 0.0
      %5810 = vmatpush1.msra.mxu0 0.0
      %5811 = vmatprep.subr.mxu0 0.0
      %5812 = vmatpush1.msra.mxu0 0.0
      %5813 = vmatprep.subr.mxu0 0.0
      %5814 = vmatpush1.msra.mxu0 0.0
      %5815 = vmatprep.subr.mxu0 0.0
      %5816 = vmatpush1.msra.mxu0 0.0
      %5817 = vmatprep.subr.mxu0 0.0
      %5818 = vmatpush1.msra.mxu0 0.0
      %5819 = vmatprep.subr.mxu0 0.0
      %5820 = vmatpush1.msra.mxu0 0.0
      %5821 = vmatprep.subr.mxu0 0.0
      %5822 = vmatpush1.msra.mxu0 0.0
      %5823 = vmatprep.subr.mxu0 0.0
      %5824 = vmatpush1.msra.mxu0 0.0
      %5825 = vmatprep.subr.mxu0 0.0
      %5826 = vmatpush1.msra.mxu0 0.0
      %5827 = vmatprep.subr.mxu0 0.0
      %5828 = vmatpush1.msra.mxu0 0.0
      %5829 = vmatprep.subr.mxu0 0.0
      %5830 = vmatpush1.msra.mxu0 0.0
      %5831 = vmatprep.subr.mxu0 0.0
      %5832 = vmatpush1.msra.mxu0 0.0
      %5833 = vmatprep.subr.mxu0 0.0
      %5834 = vmatpush1.msra.mxu0 0.0
      %5835 = vmatprep.subr.mxu0 0.0
      %5836 = vmatpush1.msra.mxu0 0.0
      %5837 = vmatprep.subr.mxu0 0.0
      %5838 = vmatpush1.msra.mxu0 0.0
      %5839 = vmatprep.subr.mxu0 0.0
      %5840 = vmatpush1.msra.mxu0 0.0
      %5841 = vmatprep.subr.mxu0 0.0
      %5842 = vmatpush1.msra.mxu0 0.0
      %5843 = vmatprep.subr.mxu0 0.0
      %5844 = vmatpush1.msra.mxu0 0.0
      %5845 = vmatprep.subr.mxu0 0.0
      %5846 = vmatpush1.msra.mxu0 0.0
      %5847 = vmatprep.subr.mxu0 0.0
      %5848 = vmatpush1.msra.mxu0 0.0
      %5849 = vmatprep.subr.mxu0 0.0
      %5850 = vmatpush1.msra.mxu0 0.0
      %5851 = vmatprep.mubr.f32.mxu0 0.0
      %5852 = vmatmul.mubr.f32.gmra.mrb[0].mxu0 %v5689
      %v5853 = vpop.f32.mrb[0].mxu0
      %v5854 = vadd.f32 0.0, %v5853
      %v5855 = vpop.f32.mrb[0].mxu0
      %5856 = vmatprep.mubr.f32.mxu0 0.0
      %5857 = vmatmul.mubr.f32.gmra.mrb[0].mxu0 %v5692
      %v5858 = vpop.f32.mrb[0].mxu0
      %v5859 = vadd.f32 0.0, %v5858
      %v5860 = vpop.f32.mrb[0].mxu0
      %5861 = vmatprep.mubr.f32.mxu0 0.0
      %5862 = vmatmul.mubr.f32.gmra.mrb[0].mxu0 %v5695
      %v5863 = vpop.f32.mrb[0].mxu0
      %v5864 = vadd.f32 0.0, %v5863
      %v5865 = vpop.f32.mrb[0].mxu0
      %5866 = vmatprep.mubr.f32.mxu0 0.0
      %5867 = vmatmul.mubr.f32.gmra.mrb[0].mxu0 %v5698
      %v5868 = vpop.f32.mrb[0].mxu0
      %v5869 = vadd.f32 0.0, %v5868
      %v5870 = vpop.f32.mrb[0].mxu0
      %5871 = vmatprep.mubr.f32.mxu0 0.0
      %5872 = vmatmul.mubr.f32.gmra.mrb[0].mxu0 %v5701
      %v5873 = vpop.f32.mrb[0].mxu0
      %v5874 = vadd.f32 0.0, %v5873
      %v5875 = vpop.f32.mrb[0].mxu0
      %5876 = vmatprep.mubr.f32.mxu0 0.0
      %5877 = vmatmul.mubr.f32.gmra.mrb[0].mxu0 %v5704
      %v5878 = vpop.f32.mrb[0].mxu0
      %v5879 = vadd.f32 0.0, %v5878
      %v5880 = vpop.f32.mrb[0].mxu0
      %5881 = vmatprep.mubr.f32.mxu0 0.0
      %5882 = vmatmul.mubr.f32.gmra.mrb[0].mxu0 %v5707
      %v5883 = vpop.f32.mrb[0].mxu0
      %v5884 = vadd.f32 0.0, %v5883
      %v5885 = vpop.f32.mrb[0].mxu0
      %5886 = vmatprep.mubr.f32.mxu0 0.0
      %5887 = vmatmul.mubr.f32.gmra.mrb[0].mxu0 %v5710
      %v5888 = vpop.f32.mrb[0].mxu0
      %v5889 = vadd.f32 0.0, %v5888
      %v5890 = vpop.f32.mrb[0].mxu0
      %5891 = vmatprep.mubr.f32.mxu0 0.0
      %5892 = vmatmul.mubr.f32.gmra.mrb[0].mxu0 %v5713
      %v5893 = vpop.f32.mrb[0].mxu0
      %v5894 = vadd.f32 0.0, %v5893
      %v5895 = vpop.f32.mrb[0].mxu0
      %5896 = vmatprep.mubr.f32.mxu0 0.0
      %5897 = vmatmul.mubr.f32.gmra.mrb[0].mxu0 %v5716
      %v5898 = vpop.f32.mrb[0].mxu0
      %v5899 = vadd.f32 0.0, %v5898
      %v5900 = vpop.f32.mrb[0].mxu0
      %5901 = vmatprep.mubr.f32.mxu0 0.0
      %5902 = vmatmul.mubr.f32.gmra.mrb[0].mxu0 %v5719
      %v5903 = vpop.f32.mrb[0].mxu0
      %v5904 = vadd.f32 0.0, %v5903
      %v5905 = vpop.f32.mrb[0].mxu0
      %5906 = vmatprep.mubr.f32.mxu0 0.0
      %5907 = vmatmul.mubr.f32.gmra.mrb[0].mxu0 %v5722
      %v5908 = vpop.f32.mrb[0].mxu0
      %v5909 = vadd.f32 0.0, %v5908
      %v5910 = vpop.f32.mrb[0].mxu0
      %5911 = vmatprep.mubr.f32.mxu0 0.0
      %5912 = vmatmul.mubr.f32.gmra.mrb[0].mxu0 %v5725
      %v5913 = vpop.f32.mrb[0].mxu0
      %v5914 = vadd.f32 0.0, %v5913
      %v5915 = vpop.f32.mrb[0].mxu0
      %5916 = vmatprep.mubr.f32.mxu0 0.0
      %5917 = vmatmul.mubr.f32.gmra.mrb[0].mxu0 %v5728
      %v5918 = vpop.f32.mrb[0].mxu0
      %v5919 = vadd.f32 0.0, %v5918
      %v5920 = vpop.f32.mrb[0].mxu0
      %5921 = vmatprep.mubr.f32.mxu0 0.0
      %5922 = vmatmul.mubr.f32.gmra.mrb[0].mxu0 %v5731
      %v5923 = vpop.f32.mrb[0].mxu0
      %v5924 = vadd.f32 0.0, %v5923
      %v5925 = vpop.f32.mrb[0].mxu0
      %5926 = vmatprep.mubr.f32.mxu0 0.0
      %5927 = vmatmul.mubr.f32.gmra.mrb[0].mxu0 %v5734
      %v5928 = vpop.f32.mrb[0].mxu0
      %v5929 = vadd.f32 0.0, %v5928
      %v5930 = vpop.f32.mrb[0].mxu0
      %5931 = vmatprep.mubr.f32.mxu0 0.0
      %5932 = vmatmul.mubr.f32.gmra.mrb[0].mxu0 %v5737
      %v5933 = vpop.f32.mrb[0].mxu0
      %v5934 = vadd.f32 0.0, %v5933
      %v5935 = vpop.f32.mrb[0].mxu0
      %5936 = vmatprep.mubr.f32.mxu0 0.0
      %5937 = vmatmul.mubr.f32.gmra.mrb[0].mxu0 %v5740
      %v5938 = vpop.f32.mrb[0].mxu0
      %v5939 = vadd.f32 0.0, %v5938
      %v5940 = vpop.f32.mrb[0].mxu0
      %5941 = vmatprep.mubr.f32.mxu0 0.0
      %5942 = vmatmul.mubr.f32.gmra.mrb[0].mxu0 %v5743
      %v5943 = vpop.f32.mrb[0].mxu0
      %v5944 = vadd.f32 0.0, %v5943
      %v5945 = vpop.f32.mrb[0].mxu0
      %5946 = vmatprep.mubr.f32.mxu0 0.0
      %5947 = vmatmul.mubr.f32.gmra.mrb[0].mxu0 %v5746
      %v5948 = vpop.f32.mrb[0].mxu0
      %v5949 = vadd.f32 0.0, %v5948
      %v5950 = vpop.f32.mrb[0].mxu0
      %5951 = vmatprep.mubr.f32.mxu0 0.0
      %5952 = vmatmul.mubr.f32.gmra.mrb[0].mxu0 %v5749
      %v5953 = vpop.f32.mrb[0].mxu0
      %v5954 = vadd.f32 0.0, %v5953
      %v5955 = vpop.f32.mrb[0].mxu0
      %5956 = vmatprep.mubr.f32.mxu0 0.0
      %5957 = vmatmul.mubr.f32.gmra.mrb[0].mxu0 %v5752
      %v5958 = vpop.f32.mrb[0].mxu0
      %v5959 = vadd.f32 0.0, %v5958
      %v5960 = vpop.f32.mrb[0].mxu0
      %5961 = vmatprep.mubr.f32.mxu0 0.0
      %5962 = vmatmul.mubr.f32.gmra.mrb[0].mxu0 %v5755
      %v5963 = vpop.f32.mrb[0].mxu0
      %v5964 = vadd.f32 0.0, %v5963
      %v5965 = vpop.f32.mrb[0].mxu0
      %5966 = vmatprep.mubr.f32.mxu0 0.0
      %5967 = vmatmul.mubr.f32.gmra.mrb[0].mxu0 %v5758
      %v5968 = vpop.f32.mrb[0].mxu0
      %v5969 = vadd.f32 0.0, %v5968
      %v5970 = vpop.f32.mrb[0].mxu0
      %5971 = vmatprep.mubr.f32.mxu0 0.0
      %5972 = vmatmul.mubr.f32.gmra.mrb[0].mxu0 %v5761
      %v5973 = vpop.f32.mrb[0].mxu0
      %v5974 = vadd.f32 0.0, %v5973
      %v5975 = vpop.f32.mrb[0].mxu0
      %5976 = vmatprep.mubr.f32.mxu0 0.0
      %5977 = vmatmul.mubr.f32.gmra.mrb[0].mxu0 %v5764
      %v5978 = vpop.f32.mrb[0].mxu0
      %v5979 = vadd.f32 0.0, %v5978
      %v5980 = vpop.f32.mrb[0].mxu0
      %5981 = vmatprep.mubr.f32.mxu0 0.0
      %5982 = vmatmul.mubr.f32.gmra.mrb[0].mxu0 %v5767
      %v5983 = vpop.f32.mrb[0].mxu0
      %v5984 = vadd.f32 0.0, %v5983
      %v5985 = vpop.f32.mrb[0].mxu0
      %5986 = vmatprep.mubr.f32.mxu0 0.0
      %5987 = vmatmul.mubr.f32.gmra.mrb[0].mxu0 %v5770
      %v5988 = vpop.f32.mrb[0].mxu0
      %v5989 = vadd.f32 0.0, %v5988
      %v5990 = vpop.f32.mrb[0].mxu0
      %5991 = vmatprep.mubr.f32.mxu0 0.0
      %5992 = vmatmul.mubr.f32.gmra.mrb[0].mxu0 %v5773
      %v5993 = vpop.f32.mrb[0].mxu0
      %v5994 = vadd.f32 0.0, %v5993
      %v5995 = vpop.f32.mrb[0].mxu0
      %5996 = vmatprep.mubr.f32.mxu0 0.0
      %5997 = vmatmul.mubr.f32.gmra.mrb[0].mxu0 %v5776
      %v5998 = vpop.f32.mrb[0].mxu0
      %v5999 = vadd.f32 0.0, %v5998
      %v6000 = vpop.f32.mrb[0].mxu0
      %6001 = vmatprep.mubr.f32.mxu0 0.0
      %6002 = vmatmul.mubr.f32.gmra.mrb[0].mxu0 %v5779
      %v6003 = vpop.f32.mrb[0].mxu0
      %v6004 = vadd.f32 0.0, %v6003
      %v6005 = vpop.f32.mrb[0].mxu0
      %6006 = vmatprep.mubr.f32.mxu0 0.0
      %6007 = vmatmul.mubr.f32.gmra.mrb[0].mxu0 %v5782
      %v6008 = vpop.f32.mrb[0].mxu0
      %v6009 = vadd.f32 0.0, %v6008
      %v6010 = vpop.f32.mrb[0].mxu0
      %6011 = vdwg.mxu0
      %v6012 = vadd.f32 %v5654, %v5854
      %v6013 = vadd.f32 %v5655, %v5859
      %v6014 = vadd.f32 %v5656, %v5864
      %v6015 = vadd.f32 %v5657, %v5869
      %v6016 = vadd.f32 %v5658, %v5874
      %v6017 = vadd.f32 %v5659, %v5879
      %v6018 = vadd.f32 %v5660, %v5884
      %v6019 = vadd.f32 %v5661, %v5889
      %v6020 = vadd.f32 %v5662, %v5894
      %v6021 = vadd.f32 %v5663, %v5899
      %v6022 = vadd.f32 %v5664, %v5904
      %v6023 = vadd.f32 %v5665, %v5909
      %v6024 = vadd.f32 %v5666, %v5914
      %v6025 = vadd.f32 %v5667, %v5919
      %v6026 = vadd.f32 %v5668, %v5924
      %v6027 = vadd.f32 %v5669, %v5929
      %v6028 = vadd.f32 %v5670, %v5934
      %v6029 = vadd.f32 %v5671, %v5939
      %v6030 = vadd.f32 %v5672, %v5944
      %v6031 = vadd.f32 %v5673, %v5949
      %v6032 = vadd.f32 %v5674, %v5954
      %v6033 = vadd.f32 %v5675, %v5959
      %v6034 = vadd.f32 %v5676, %v5964
      %v6035 = vadd.f32 %v5677, %v5969
      %v6036 = vadd.f32 %v5678, %v5974
      %v6037 = vadd.f32 %v5679, %v5979
      %v6038 = vadd.f32 %v5680, %v5984
      %v6039 = vadd.f32 %v5681, %v5989
      %v6040 = vadd.f32 %v5682, %v5994
      %v6041 = vadd.f32 %v5683, %v5999
      %v6042 = vadd.f32 %v5684, %v6004
      %v6043 = vadd.f32 %v5685, %v6009
      %v6044 = vld [vmem:[%s5262 + $0x1] sm:$0xff]
      %v6045 = vld [vmem:[%s5262 + $0x9] sm:$0xff]
      %v6046 = vld [vmem:[%s5262 + $0x19] sm:$0xff]
      %v6047 = vld [vmem:[%s5262 + $0x21] sm:$0xff]
      %v6048 = vld [vmem:[%s5262 + $0x31] sm:$0xff]
      %v6049 = vld [vmem:[%s5262 + $0x39] sm:$0xff]
      %v6050 = vld [vmem:[%s5262 + $0x49] sm:$0xff]
      %v6051 = vld [vmem:[%s5262 + $0x51] sm:$0xff]
      %v6052 = vld [vmem:[%s5262 + $0x61] sm:$0xff]
      %v6053 = vld [vmem:[%s5262 + $0x69] sm:$0xff]
      %v6054 = vld [vmem:[%s5262 + $0x79] sm:$0xff]
      %v6055 = vld [vmem:[%s5262 + $0x81] sm:$0xff]
      %v6056 = vld [vmem:[%s5262 + $0x91] sm:$0xff]
      %v6057 = vld [vmem:[%s5262 + $0x99] sm:$0xff]
      %v6058 = vld [vmem:[%s5262 + $0xa9] sm:$0xff]
      %v6059 = vld [vmem:[%s5262 + $0xb1] sm:$0xff]
      %v6060 = vld [vmem:[%s5262 + $0xc1] sm:$0xff]
      %v6061 = vld [vmem:[%s5262 + $0xc9] sm:$0xff]
      %v6062 = vld [vmem:[%s5262 + $0xd9] sm:$0xff]
      %v6063 = vld [vmem:[%s5262 + $0xe1] sm:$0xff]
      %v6064 = vld [vmem:[%s5262 + $0xf1] sm:$0xff]
      %v6065 = vld [vmem:[%s5262 + $0xf9] sm:$0xff]
      %v6066 = vld [vmem:[%s5262 + $0x109] sm:$0xff]
      %v6067 = vld [vmem:[%s5262 + $0x111] sm:$0xff]
      %v6068 = vld [vmem:[%s5262 + $0x121] sm:$0xff]
      %v6069 = vld [vmem:[%s5262 + $0x129] sm:$0xff]
      %v6070 = vld [vmem:[%s5262 + $0x139] sm:$0xff]
      %v6071 = vld [vmem:[%s5262 + $0x141] sm:$0xff]
      %v6072 = vld [vmem:[%s5262 + $0x151] sm:$0xff]
      %v6073 = vld [vmem:[%s5262 + $0x159] sm:$0xff]
      %v6074 = vld [vmem:[%s5262 + $0x169] sm:$0xff]
      %v6075 = vld [vmem:[%s5262 + $0x171] sm:$0xff]
      %v6076 = vld [vmem:[%s5295 + $0x1] sm:$0xff]
      %v6077 = vld [vmem:[%s5295 + $0x9] sm:$0xff]
      %v6078 = vld [vmem:[%s5295 + $0x19] sm:$0xff]
      %v6079 = vld [vmem:[%s5295 + $0x21] sm:$0xff]
      %v6080 = vld [vmem:[%s5295 + $0x31] sm:$0xff]
      %v6081 = vld [vmem:[%s5295 + $0x39] sm:$0xff]
      %v6082 = vld [vmem:[%s5295 + $0x49] sm:$0xff]
      %v6083 = vld [vmem:[%s5295 + $0x51] sm:$0xff]
      %v6084 = vld [vmem:[%s5295 + $0x61] sm:$0xff]
      %v6085 = vld [vmem:[%s5295 + $0x69] sm:$0xff]
      %v6086 = vld [vmem:[%s5295 + $0x79] sm:$0xff]
      %v6087 = vld [vmem:[%s5295 + $0x81] sm:$0xff]
      %v6088 = vld [vmem:[%s5295 + $0x91] sm:$0xff]
      %v6089 = vld [vmem:[%s5295 + $0x99] sm:$0xff]
      %v6090 = vld [vmem:[%s5295 + $0xa9] sm:$0xff]
      %v6091 = vld [vmem:[%s5295 + $0xb1] sm:$0xff]
      %v6092 = vld [vmem:[%s5295 + $0xc1] sm:$0xff]
      %v6093 = vld [vmem:[%s5295 + $0xc9] sm:$0xff]
      %v6094 = vld [vmem:[%s5295 + $0xd9] sm:$0xff]
      %v6095 = vld [vmem:[%s5295 + $0xe1] sm:$0xff]
      %v6096 = vld [vmem:[%s5295 + $0xf1] sm:$0xff]
      %v6097 = vld [vmem:[%s5295 + $0xf9] sm:$0xff]
      %v6098 = vld [vmem:[%s5295 + $0x109] sm:$0xff]
      %v6099 = vld [vmem:[%s5295 + $0x111] sm:$0xff]
      %v6100 = vld [vmem:[%s5295 + $0x121] sm:$0xff]
      %v6101 = vld [vmem:[%s5295 + $0x129] sm:$0xff]
      %v6102 = vld [vmem:[%s5295 + $0x139] sm:$0xff]
      %v6103 = vld [vmem:[%s5295 + $0x141] sm:$0xff]
      %v6104 = vld [vmem:[%s5295 + $0x151] sm:$0xff]
      %v6105 = vld [vmem:[%s5295 + $0x159] sm:$0xff]
      %v6106 = vld [vmem:[%s5295 + $0x169] sm:$0xff]
      %v6107 = vld [vmem:[%s5295 + $0x171] sm:$0xff]
      %s6108 = scalar_lea.vmem %s2, 28
      %v6109 = vld [vmem:[%s6108] sm:$0xf]
      %v6111 = vsel %vm353, %v6044, 0
      %v6114 = vsel %vm353, %v6045, 0
      %v6117 = vsel %vm353, %v6046, 0
      %v6120 = vsel %vm353, %v6047, 0
      %v6123 = vsel %vm353, %v6048, 0
      %v6126 = vsel %vm353, %v6049, 0
      %v6129 = vsel %vm353, %v6050, 0
      %v6132 = vsel %vm353, %v6051, 0
      %v6135 = vsel %vm353, %v6052, 0
      %v6138 = vsel %vm353, %v6053, 0
      %v6141 = vsel %vm353, %v6054, 0
      %v6144 = vsel %vm353, %v6055, 0
      %v6147 = vsel %vm353, %v6056, 0
      %v6150 = vsel %vm353, %v6057, 0
      %v6153 = vsel %vm353, %v6058, 0
      %v6156 = vsel %vm353, %v6059, 0
      %v6159 = vsel %vm353, %v6060, 0
      %v6162 = vsel %vm353, %v6061, 0
      %v6165 = vsel %vm353, %v6062, 0
      %v6168 = vsel %vm353, %v6063, 0
      %v6171 = vsel %vm353, %v6064, 0
      %v6174 = vsel %vm353, %v6065, 0
      %v6177 = vsel %vm353, %v6066, 0
      %v6180 = vsel %vm353, %v6067, 0
      %v6183 = vsel %vm353, %v6068, 0
      %v6186 = vsel %vm353, %v6069, 0
      %v6189 = vsel %vm353, %v6070, 0
      %v6192 = vsel %vm353, %v6071, 0
      %v6195 = vsel %vm353, %v6072, 0
      %v6198 = vsel %vm353, %v6073, 0
      %v6201 = vsel %vm353, %v6074, 0
      %v6204 = vsel %vm353, %v6075, 0
      %v6207 = vsel %vm809, %v6109, 0
      %6209 = vmatprep.subr.mxu0 0.0
      %6210 = vmatpush1.msra.mxu0 %v6207
      %6211 = vmatprep.subr.mxu0 0.0
      %6212 = vmatpush1.msra.mxu0 0.0
      %6213 = vmatprep.subr.mxu0 0.0
      %6214 = vmatpush1.msra.mxu0 0.0
      %6215 = vmatprep.subr.mxu0 0.0
      %6216 = vmatpush1.msra.mxu0 0.0
      %6217 = vmatprep.subr.mxu0 0.0
      %6218 = vmatpush1.msra.mxu0 0.0
      %6219 = vmatprep.subr.mxu0 0.0
      %6220 = vmatpush1.msra.mxu0 0.0
      %6221 = vmatprep.subr.mxu0 0.0
      %6222 = vmatpush1.msra.mxu0 0.0
      %6223 = vmatprep.subr.mxu0 0.0
      %6224 = vmatpush1.msra.mxu0 0.0
      %6225 = vmatprep.subr.mxu0 0.0
      %6226 = vmatpush1.msra.mxu0 0.0
      %6227 = vmatprep.subr.mxu0 0.0
      %6228 = vmatpush1.msra.mxu0 0.0
      %6229 = vmatprep.subr.mxu0 0.0
      %6230 = vmatpush1.msra.mxu0 0.0
      %6231 = vmatprep.subr.mxu0 0.0
      %6232 = vmatpush1.msra.mxu0 0.0
      %6233 = vmatprep.subr.mxu0 0.0
      %6234 = vmatpush1.msra.mxu0 0.0
      %6235 = vmatprep.subr.mxu0 0.0
      %6236 = vmatpush1.msra.mxu0 0.0
      %6237 = vmatprep.subr.mxu0 0.0
      %6238 = vmatpush1.msra.mxu0 0.0
      %6239 = vmatprep.subr.mxu0 0.0
      %6240 = vmatpush1.msra.mxu0 0.0
      %6241 = vmatprep.subr.mxu0 0.0
      %6242 = vmatpush1.msra.mxu0 0.0
      %6243 = vmatprep.subr.mxu0 0.0
      %6244 = vmatpush1.msra.mxu0 0.0
      %6245 = vmatprep.subr.mxu0 0.0
      %6246 = vmatpush1.msra.mxu0 0.0
      %6247 = vmatprep.subr.mxu0 0.0
      %6248 = vmatpush1.msra.mxu0 0.0
      %6249 = vmatprep.subr.mxu0 0.0
      %6250 = vmatpush1.msra.mxu0 0.0
      %6251 = vmatprep.subr.mxu0 0.0
      %6252 = vmatpush1.msra.mxu0 0.0
      %6253 = vmatprep.subr.mxu0 0.0
      %6254 = vmatpush1.msra.mxu0 0.0
      %6255 = vmatprep.subr.mxu0 0.0
      %6256 = vmatpush1.msra.mxu0 0.0
      %6257 = vmatprep.subr.mxu0 0.0
      %6258 = vmatpush1.msra.mxu0 0.0
      %6259 = vmatprep.subr.mxu0 0.0
      %6260 = vmatpush1.msra.mxu0 0.0
      %6261 = vmatprep.subr.mxu0 0.0
      %6262 = vmatpush1.msra.mxu0 0.0
      %6263 = vmatprep.subr.mxu0 0.0
      %6264 = vmatpush1.msra.mxu0 0.0
      %6265 = vmatprep.subr.mxu0 0.0
      %6266 = vmatpush1.msra.mxu0 0.0
      %6267 = vmatprep.subr.mxu0 0.0
      %6268 = vmatpush1.msra.mxu0 0.0
      %6269 = vmatprep.subr.mxu0 0.0
      %6270 = vmatpush1.msra.mxu0 0.0
      %6271 = vmatprep.subr.mxu0 0.0
      %6272 = vmatpush1.msra.mxu0 0.0
      %6273 = vmatprep.mubr.f32.mxu0 0.0
      %6274 = vmatmul.mubr.f32.gmra.mrb[0].mxu0 %v6111
      %v6275 = vpop.f32.mrb[0].mxu0
      %v6276 = vadd.f32 0.0, %v6275
      %v6277 = vpop.f32.mrb[0].mxu0
      %6278 = vmatprep.mubr.f32.mxu0 0.0
      %6279 = vmatmul.mubr.f32.gmra.mrb[0].mxu0 %v6114
      %v6280 = vpop.f32.mrb[0].mxu0
      %v6281 = vadd.f32 0.0, %v6280
      %v6282 = vpop.f32.mrb[0].mxu0
      %6283 = vmatprep.mubr.f32.mxu0 0.0
      %6284 = vmatmul.mubr.f32.gmra.mrb[0].mxu0 %v6117
      %v6285 = vpop.f32.mrb[0].mxu0
      %v6286 = vadd.f32 0.0, %v6285
      %v6287 = vpop.f32.mrb[0].mxu0
      %6288 = vmatprep.mubr.f32.mxu0 0.0
      %6289 = vmatmul.mubr.f32.gmra.mrb[0].mxu0 %v6120
      %v6290 = vpop.f32.mrb[0].mxu0
      %v6291 = vadd.f32 0.0, %v6290
      %v6292 = vpop.f32.mrb[0].mxu0
      %6293 = vmatprep.mubr.f32.mxu0 0.0
      %6294 = vmatmul.mubr.f32.gmra.mrb[0].mxu0 %v6123
      %v6295 = vpop.f32.mrb[0].mxu0
      %v6296 = vadd.f32 0.0, %v6295
      %v6297 = vpop.f32.mrb[0].mxu0
      %6298 = vmatprep.mubr.f32.mxu0 0.0
      %6299 = vmatmul.mubr.f32.gmra.mrb[0].mxu0 %v6126
      %v6300 = vpop.f32.mrb[0].mxu0
      %v6301 = vadd.f32 0.0, %v6300
      %v6302 = vpop.f32.mrb[0].mxu0
      %6303 = vmatprep.mubr.f32.mxu0 0.0
      %6304 = vmatmul.mubr.f32.gmra.mrb[0].mxu0 %v6129
      %v6305 = vpop.f32.mrb[0].mxu0
      %v6306 = vadd.f32 0.0, %v6305
      %v6307 = vpop.f32.mrb[0].mxu0
      %6308 = vmatprep.mubr.f32.mxu0 0.0
      %6309 = vmatmul.mubr.f32.gmra.mrb[0].mxu0 %v6132
      %v6310 = vpop.f32.mrb[0].mxu0
      %v6311 = vadd.f32 0.0, %v6310
      %v6312 = vpop.f32.mrb[0].mxu0
      %6313 = vmatprep.mubr.f32.mxu0 0.0
      %6314 = vmatmul.mubr.f32.gmra.mrb[0].mxu0 %v6135
      %v6315 = vpop.f32.mrb[0].mxu0
      %v6316 = vadd.f32 0.0, %v6315
      %v6317 = vpop.f32.mrb[0].mxu0
      %6318 = vmatprep.mubr.f32.mxu0 0.0
      %6319 = vmatmul.mubr.f32.gmra.mrb[0].mxu0 %v6138
      %v6320 = vpop.f32.mrb[0].mxu0
      %v6321 = vadd.f32 0.0, %v6320
      %v6322 = vpop.f32.mrb[0].mxu0
      %6323 = vmatprep.mubr.f32.mxu0 0.0
      %6324 = vmatmul.mubr.f32.gmra.mrb[0].mxu0 %v6141
      %v6325 = vpop.f32.mrb[0].mxu0
      %v6326 = vadd.f32 0.0, %v6325
      %v6327 = vpop.f32.mrb[0].mxu0
      %6328 = vmatprep.mubr.f32.mxu0 0.0
      %6329 = vmatmul.mubr.f32.gmra.mrb[0].mxu0 %v6144
      %v6330 = vpop.f32.mrb[0].mxu0
      %v6331 = vadd.f32 0.0, %v6330
      %v6332 = vpop.f32.mrb[0].mxu0
      %6333 = vmatprep.mubr.f32.mxu0 0.0
      %6334 = vmatmul.mubr.f32.gmra.mrb[0].mxu0 %v6147
      %v6335 = vpop.f32.mrb[0].mxu0
      %v6336 = vadd.f32 0.0, %v6335
      %v6337 = vpop.f32.mrb[0].mxu0
      %6338 = vmatprep.mubr.f32.mxu0 0.0
      %6339 = vmatmul.mubr.f32.gmra.mrb[0].mxu0 %v6150
      %v6340 = vpop.f32.mrb[0].mxu0
      %v6341 = vadd.f32 0.0, %v6340
      %v6342 = vpop.f32.mrb[0].mxu0
      %6343 = vmatprep.mubr.f32.mxu0 0.0
      %6344 = vmatmul.mubr.f32.gmra.mrb[0].mxu0 %v6153
      %v6345 = vpop.f32.mrb[0].mxu0
      %v6346 = vadd.f32 0.0, %v6345
      %v6347 = vpop.f32.mrb[0].mxu0
      %6348 = vmatprep.mubr.f32.mxu0 0.0
      %6349 = vmatmul.mubr.f32.gmra.mrb[0].mxu0 %v6156
      %v6350 = vpop.f32.mrb[0].mxu0
      %v6351 = vadd.f32 0.0, %v6350
      %v6352 = vpop.f32.mrb[0].mxu0
      %6353 = vmatprep.mubr.f32.mxu0 0.0
      %6354 = vmatmul.mubr.f32.gmra.mrb[0].mxu0 %v6159
      %v6355 = vpop.f32.mrb[0].mxu0
      %v6356 = vadd.f32 0.0, %v6355
      %v6357 = vpop.f32.mrb[0].mxu0
      %6358 = vmatprep.mubr.f32.mxu0 0.0
      %6359 = vmatmul.mubr.f32.gmra.mrb[0].mxu0 %v6162
      %v6360 = vpop.f32.mrb[0].mxu0
      %v6361 = vadd.f32 0.0, %v6360
      %v6362 = vpop.f32.mrb[0].mxu0
      %6363 = vmatprep.mubr.f32.mxu0 0.0
      %6364 = vmatmul.mubr.f32.gmra.mrb[0].mxu0 %v6165
      %v6365 = vpop.f32.mrb[0].mxu0
      %v6366 = vadd.f32 0.0, %v6365
      %v6367 = vpop.f32.mrb[0].mxu0
      %6368 = vmatprep.mubr.f32.mxu0 0.0
      %6369 = vmatmul.mubr.f32.gmra.mrb[0].mxu0 %v6168
      %v6370 = vpop.f32.mrb[0].mxu0
      %v6371 = vadd.f32 0.0, %v6370
      %v6372 = vpop.f32.mrb[0].mxu0
      %6373 = vmatprep.mubr.f32.mxu0 0.0
      %6374 = vmatmul.mubr.f32.gmra.mrb[0].mxu0 %v6171
      %v6375 = vpop.f32.mrb[0].mxu0
      %v6376 = vadd.f32 0.0, %v6375
      %v6377 = vpop.f32.mrb[0].mxu0
      %6378 = vmatprep.mubr.f32.mxu0 0.0
      %6379 = vmatmul.mubr.f32.gmra.mrb[0].mxu0 %v6174
      %v6380 = vpop.f32.mrb[0].mxu0
      %v6381 = vadd.f32 0.0, %v6380
      %v6382 = vpop.f32.mrb[0].mxu0
      %6383 = vmatprep.mubr.f32.mxu0 0.0
      %6384 = vmatmul.mubr.f32.gmra.mrb[0].mxu0 %v6177
      %v6385 = vpop.f32.mrb[0].mxu0
      %v6386 = vadd.f32 0.0, %v6385
      %v6387 = vpop.f32.mrb[0].mxu0
      %6388 = vmatprep.mubr.f32.mxu0 0.0
      %6389 = vmatmul.mubr.f32.gmra.mrb[0].mxu0 %v6180
      %v6390 = vpop.f32.mrb[0].mxu0
      %v6391 = vadd.f32 0.0, %v6390
      %v6392 = vpop.f32.mrb[0].mxu0
      %6393 = vmatprep.mubr.f32.mxu0 0.0
      %6394 = vmatmul.mubr.f32.gmra.mrb[0].mxu0 %v6183
      %v6395 = vpop.f32.mrb[0].mxu0
      %v6396 = vadd.f32 0.0, %v6395
      %v6397 = vpop.f32.mrb[0].mxu0
      %6398 = vmatprep.mubr.f32.mxu0 0.0
      %6399 = vmatmul.mubr.f32.gmra.mrb[0].mxu0 %v6186
      %v6400 = vpop.f32.mrb[0].mxu0
      %v6401 = vadd.f32 0.0, %v6400
      %v6402 = vpop.f32.mrb[0].mxu0
      %6403 = vmatprep.mubr.f32.mxu0 0.0
      %6404 = vmatmul.mubr.f32.gmra.mrb[0].mxu0 %v6189
      %v6405 = vpop.f32.mrb[0].mxu0
      %v6406 = vadd.f32 0.0, %v6405
      %v6407 = vpop.f32.mrb[0].mxu0
      %6408 = vmatprep.mubr.f32.mxu0 0.0
      %6409 = vmatmul.mubr.f32.gmra.mrb[0].mxu0 %v6192
      %v6410 = vpop.f32.mrb[0].mxu0
      %v6411 = vadd.f32 0.0, %v6410
      %v6412 = vpop.f32.mrb[0].mxu0
      %6413 = vmatprep.mubr.f32.mxu0 0.0
      %6414 = vmatmul.mubr.f32.gmra.mrb[0].mxu0 %v6195
      %v6415 = vpop.f32.mrb[0].mxu0
      %v6416 = vadd.f32 0.0, %v6415
      %v6417 = vpop.f32.mrb[0].mxu0
      %6418 = vmatprep.mubr.f32.mxu0 0.0
      %6419 = vmatmul.mubr.f32.gmra.mrb[0].mxu0 %v6198
      %v6420 = vpop.f32.mrb[0].mxu0
      %v6421 = vadd.f32 0.0, %v6420
      %v6422 = vpop.f32.mrb[0].mxu0
      %6423 = vmatprep.mubr.f32.mxu0 0.0
      %6424 = vmatmul.mubr.f32.gmra.mrb[0].mxu0 %v6201
      %v6425 = vpop.f32.mrb[0].mxu0
      %v6426 = vadd.f32 0.0, %v6425
      %v6427 = vpop.f32.mrb[0].mxu0
      %6428 = vmatprep.mubr.f32.mxu0 0.0
      %6429 = vmatmul.mubr.f32.gmra.mrb[0].mxu0 %v6204
      %v6430 = vpop.f32.mrb[0].mxu0
      %v6431 = vadd.f32 0.0, %v6430
      %v6432 = vpop.f32.mrb[0].mxu0
      %6433 = vdwg.mxu0
      %v6434 = vadd.f32 %v6012, %v6276
      %v6435 = vadd.f32 %v6013, %v6281
      %v6436 = vadd.f32 %v6014, %v6286
      %v6437 = vadd.f32 %v6015, %v6291
      %v6438 = vadd.f32 %v6016, %v6296
      %v6439 = vadd.f32 %v6017, %v6301
      %v6440 = vadd.f32 %v6018, %v6306
      %v6441 = vadd.f32 %v6019, %v6311
      %v6442 = vadd.f32 %v6020, %v6316
      %v6443 = vadd.f32 %v6021, %v6321
      %v6444 = vadd.f32 %v6022, %v6326
      %v6445 = vadd.f32 %v6023, %v6331
      %v6446 = vadd.f32 %v6024, %v6336
      %v6447 = vadd.f32 %v6025, %v6341
      %v6448 = vadd.f32 %v6026, %v6346
      %v6449 = vadd.f32 %v6027, %v6351
      %v6450 = vadd.f32 %v6028, %v6356
      %v6451 = vadd.f32 %v6029, %v6361
      %v6452 = vadd.f32 %v6030, %v6366
      %v6453 = vadd.f32 %v6031, %v6371
      %v6454 = vadd.f32 %v6032, %v6376
      %v6455 = vadd.f32 %v6033, %v6381
      %v6456 = vadd.f32 %v6034, %v6386
      %v6457 = vadd.f32 %v6035, %v6391
      %v6458 = vadd.f32 %v6036, %v6396
      %v6459 = vadd.f32 %v6037, %v6401
      %v6460 = vadd.f32 %v6038, %v6406
      %v6461 = vadd.f32 %v6039, %v6411
      %v6462 = vadd.f32 %v6040, %v6416
      %v6463 = vadd.f32 %v6041, %v6421
      %v6464 = vadd.f32 %v6042, %v6426
      %v6465 = vadd.f32 %v6043, %v6431
      %s6466 = scalar_lea.vmem %s3, 28
      %v6467 = vld [vmem:[%s6466] sm:$0xf]
      %v6469 = vsel %vm353, %v6076, 0
      %v6472 = vsel %vm353, %v6077, 0
      %v6475 = vsel %vm353, %v6078, 0
      %v6478 = vsel %vm353, %v6079, 0
      %v6481 = vsel %vm353, %v6080, 0
      %v6484 = vsel %vm353, %v6081, 0
      %v6487 = vsel %vm353, %v6082, 0
      %v6490 = vsel %vm353, %v6083, 0
      %v6493 = vsel %vm353, %v6084, 0
      %v6496 = vsel %vm353, %v6085, 0
      %v6499 = vsel %vm353, %v6086, 0
      %v6502 = vsel %vm353, %v6087, 0
      %v6505 = vsel %vm353, %v6088, 0
      %v6508 = vsel %vm353, %v6089, 0
      %v6511 = vsel %vm353, %v6090, 0
      %v6514 = vsel %vm353, %v6091, 0
      %v6517 = vsel %vm353, %v6092, 0
      %v6520 = vsel %vm353, %v6093, 0
      %v6523 = vsel %vm353, %v6094, 0
      %v6526 = vsel %vm353, %v6095, 0
      %v6529 = vsel %vm353, %v6096, 0
      %v6532 = vsel %vm353, %v6097, 0
      %v6535 = vsel %vm353, %v6098, 0
      %v6538 = vsel %vm353, %v6099, 0
      %v6541 = vsel %vm353, %v6100, 0
      %v6544 = vsel %vm353, %v6101, 0
      %v6547 = vsel %vm353, %v6102, 0
      %v6550 = vsel %vm353, %v6103, 0
      %v6553 = vsel %vm353, %v6104, 0
      %v6556 = vsel %vm353, %v6105, 0
      %v6559 = vsel %vm353, %v6106, 0
      %v6562 = vsel %vm353, %v6107, 0
      %v6565 = vsel %vm809, %v6467, 0
      %6567 = vmatprep.subr.mxu0 0.0
      %6568 = vmatpush1.msra.mxu0 %v6565
      %6569 = vmatprep.subr.mxu0 0.0
      %6570 = vmatpush1.msra.mxu0 0.0
      %6571 = vmatprep.subr.mxu0 0.0
      %6572 = vmatpush1.msra.mxu0 0.0
      %6573 = vmatprep.subr.mxu0 0.0
      %6574 = vmatpush1.msra.mxu0 0.0
      %6575 = vmatprep.subr.mxu0 0.0
      %6576 = vmatpush1.msra.mxu0 0.0
      %6577 = vmatprep.subr.mxu0 0.0
      %6578 = vmatpush1.msra.mxu0 0.0
      %6579 = vmatprep.subr.mxu0 0.0
      %6580 = vmatpush1.msra.mxu0 0.0
      %6581 = vmatprep.subr.mxu0 0.0
      %6582 = vmatpush1.msra.mxu0 0.0
      %6583 = vmatprep.subr.mxu0 0.0
      %6584 = vmatpush1.msra.mxu0 0.0
      %6585 = vmatprep.subr.mxu0 0.0
      %6586 = vmatpush1.msra.mxu0 0.0
      %6587 = vmatprep.subr.mxu0 0.0
      %6588 = vmatpush1.msra.mxu0 0.0
      %6589 = vmatprep.subr.mxu0 0.0
      %6590 = vmatpush1.msra.mxu0 0.0
      %6591 = vmatprep.subr.mxu0 0.0
      %6592 = vmatpush1.msra.mxu0 0.0
      %6593 = vmatprep.subr.mxu0 0.0
      %6594 = vmatpush1.msra.mxu0 0.0
      %6595 = vmatprep.subr.mxu0 0.0
      %6596 = vmatpush1.msra.mxu0 0.0
      %6597 = vmatprep.subr.mxu0 0.0
      %6598 = vmatpush1.msra.mxu0 0.0
      %6599 = vmatprep.subr.mxu0 0.0
      %6600 = vmatpush1.msra.mxu0 0.0
      %6601 = vmatprep.subr.mxu0 0.0
      %6602 = vmatpush1.msra.mxu0 0.0
      %6603 = vmatprep.subr.mxu0 0.0
      %6604 = vmatpush1.msra.mxu0 0.0
      %6605 = vmatprep.subr.mxu0 0.0
      %6606 = vmatpush1.msra.mxu0 0.0
      %6607 = vmatprep.subr.mxu0 0.0
      %6608 = vmatpush1.msra.mxu0 0.0
      %6609 = vmatprep.subr.mxu0 0.0
      %6610 = vmatpush1.msra.mxu0 0.0
      %6611 = vmatprep.subr.mxu0 0.0
      %6612 = vmatpush1.msra.mxu0 0.0
      %6613 = vmatprep.subr.mxu0 0.0
      %6614 = vmatpush1.msra.mxu0 0.0
      %6615 = vmatprep.subr.mxu0 0.0
      %6616 = vmatpush1.msra.mxu0 0.0
      %6617 = vmatprep.subr.mxu0 0.0
      %6618 = vmatpush1.msra.mxu0 0.0
      %6619 = vmatprep.subr.mxu0 0.0
      %6620 = vmatpush1.msra.mxu0 0.0
      %6621 = vmatprep.subr.mxu0 0.0
      %6622 = vmatpush1.msra.mxu0 0.0
      %6623 = vmatprep.subr.mxu0 0.0
      %6624 = vmatpush1.msra.mxu0 0.0
      %6625 = vmatprep.subr.mxu0 0.0
      %6626 = vmatpush1.msra.mxu0 0.0
      %6627 = vmatprep.subr.mxu0 0.0
      %6628 = vmatpush1.msra.mxu0 0.0
      %6629 = vmatprep.subr.mxu0 0.0
      %6630 = vmatpush1.msra.mxu0 0.0
      %6631 = vmatprep.mubr.f32.mxu0 0.0
      %6632 = vmatmul.mubr.f32.gmra.mrb[0].mxu0 %v6469
      %v6633 = vpop.f32.mrb[0].mxu0
      %v6634 = vadd.f32 0.0, %v6633
      %v6635 = vpop.f32.mrb[0].mxu0
      %6636 = vmatprep.mubr.f32.mxu0 0.0
      %6637 = vmatmul.mubr.f32.gmra.mrb[0].mxu0 %v6472
      %v6638 = vpop.f32.mrb[0].mxu0
      %v6639 = vadd.f32 0.0, %v6638
      %v6640 = vpop.f32.mrb[0].mxu0
      %6641 = vmatprep.mubr.f32.mxu0 0.0
      %6642 = vmatmul.mubr.f32.gmra.mrb[0].mxu0 %v6475
      %v6643 = vpop.f32.mrb[0].mxu0
      %v6644 = vadd.f32 0.0, %v6643
      %v6645 = vpop.f32.mrb[0].mxu0
      %6646 = vmatprep.mubr.f32.mxu0 0.0
      %6647 = vmatmul.mubr.f32.gmra.mrb[0].mxu0 %v6478
      %v6648 = vpop.f32.mrb[0].mxu0
      %v6649 = vadd.f32 0.0, %v6648
      %v6650 = vpop.f32.mrb[0].mxu0
      %6651 = vmatprep.mubr.f32.mxu0 0.0
      %6652 = vmatmul.mubr.f32.gmra.mrb[0].mxu0 %v6481
      %v6653 = vpop.f32.mrb[0].mxu0
      %v6654 = vadd.f32 0.0, %v6653
      %v6655 = vpop.f32.mrb[0].mxu0
      %6656 = vmatprep.mubr.f32.mxu0 0.0
      %6657 = vmatmul.mubr.f32.gmra.mrb[0].mxu0 %v6484
      %v6658 = vpop.f32.mrb[0].mxu0
      %v6659 = vadd.f32 0.0, %v6658
      %v6660 = vpop.f32.mrb[0].mxu0
      %6661 = vmatprep.mubr.f32.mxu0 0.0
      %6662 = vmatmul.mubr.f32.gmra.mrb[0].mxu0 %v6487
      %v6663 = vpop.f32.mrb[0].mxu0
      %v6664 = vadd.f32 0.0, %v6663
      %v6665 = vpop.f32.mrb[0].mxu0
      %6666 = vmatprep.mubr.f32.mxu0 0.0
      %6667 = vmatmul.mubr.f32.gmra.mrb[0].mxu0 %v6490
      %v6668 = vpop.f32.mrb[0].mxu0
      %v6669 = vadd.f32 0.0, %v6668
      %v6670 = vpop.f32.mrb[0].mxu0
      %6671 = vmatprep.mubr.f32.mxu0 0.0
      %6672 = vmatmul.mubr.f32.gmra.mrb[0].mxu0 %v6493
      %v6673 = vpop.f32.mrb[0].mxu0
      %v6674 = vadd.f32 0.0, %v6673
      %v6675 = vpop.f32.mrb[0].mxu0
      %6676 = vmatprep.mubr.f32.mxu0 0.0
      %6677 = vmatmul.mubr.f32.gmra.mrb[0].mxu0 %v6496
      %v6678 = vpop.f32.mrb[0].mxu0
      %v6679 = vadd.f32 0.0, %v6678
      %v6680 = vpop.f32.mrb[0].mxu0
      %6681 = vmatprep.mubr.f32.mxu0 0.0
      %6682 = vmatmul.mubr.f32.gmra.mrb[0].mxu0 %v6499
      %v6683 = vpop.f32.mrb[0].mxu0
      %v6684 = vadd.f32 0.0, %v6683
      %v6685 = vpop.f32.mrb[0].mxu0
      %6686 = vmatprep.mubr.f32.mxu0 0.0
      %6687 = vmatmul.mubr.f32.gmra.mrb[0].mxu0 %v6502
      %v6688 = vpop.f32.mrb[0].mxu0
      %v6689 = vadd.f32 0.0, %v6688
      %v6690 = vpop.f32.mrb[0].mxu0
      %6691 = vmatprep.mubr.f32.mxu0 0.0
      %6692 = vmatmul.mubr.f32.gmra.mrb[0].mxu0 %v6505
      %v6693 = vpop.f32.mrb[0].mxu0
      %v6694 = vadd.f32 0.0, %v6693
      %v6695 = vpop.f32.mrb[0].mxu0
      %6696 = vmatprep.mubr.f32.mxu0 0.0
      %6697 = vmatmul.mubr.f32.gmra.mrb[0].mxu0 %v6508
      %v6698 = vpop.f32.mrb[0].mxu0
      %v6699 = vadd.f32 0.0, %v6698
      %v6700 = vpop.f32.mrb[0].mxu0
      %6701 = vmatprep.mubr.f32.mxu0 0.0
      %6702 = vmatmul.mubr.f32.gmra.mrb[0].mxu0 %v6511
      %v6703 = vpop.f32.mrb[0].mxu0
      %v6704 = vadd.f32 0.0, %v6703
      %v6705 = vpop.f32.mrb[0].mxu0
      %6706 = vmatprep.mubr.f32.mxu0 0.0
      %6707 = vmatmul.mubr.f32.gmra.mrb[0].mxu0 %v6514
      %v6708 = vpop.f32.mrb[0].mxu0
      %v6709 = vadd.f32 0.0, %v6708
      %v6710 = vpop.f32.mrb[0].mxu0
      %6711 = vmatprep.mubr.f32.mxu0 0.0
      %6712 = vmatmul.mubr.f32.gmra.mrb[0].mxu0 %v6517
      %v6713 = vpop.f32.mrb[0].mxu0
      %v6714 = vadd.f32 0.0, %v6713
      %v6715 = vpop.f32.mrb[0].mxu0
      %6716 = vmatprep.mubr.f32.mxu0 0.0
      %6717 = vmatmul.mubr.f32.gmra.mrb[0].mxu0 %v6520
      %v6718 = vpop.f32.mrb[0].mxu0
      %v6719 = vadd.f32 0.0, %v6718
      %v6720 = vpop.f32.mrb[0].mxu0
      %6721 = vmatprep.mubr.f32.mxu0 0.0
      %6722 = vmatmul.mubr.f32.gmra.mrb[0].mxu0 %v6523
      %v6723 = vpop.f32.mrb[0].mxu0
      %v6724 = vadd.f32 0.0, %v6723
      %v6725 = vpop.f32.mrb[0].mxu0
      %6726 = vmatprep.mubr.f32.mxu0 0.0
      %6727 = vmatmul.mubr.f32.gmra.mrb[0].mxu0 %v6526
      %v6728 = vpop.f32.mrb[0].mxu0
      %v6729 = vadd.f32 0.0, %v6728
      %v6730 = vpop.f32.mrb[0].mxu0
      %6731 = vmatprep.mubr.f32.mxu0 0.0
      %6732 = vmatmul.mubr.f32.gmra.mrb[0].mxu0 %v6529
      %v6733 = vpop.f32.mrb[0].mxu0
      %v6734 = vadd.f32 0.0, %v6733
      %v6735 = vpop.f32.mrb[0].mxu0
      %6736 = vmatprep.mubr.f32.mxu0 0.0
      %6737 = vmatmul.mubr.f32.gmra.mrb[0].mxu0 %v6532
      %v6738 = vpop.f32.mrb[0].mxu0
      %v6739 = vadd.f32 0.0, %v6738
      %v6740 = vpop.f32.mrb[0].mxu0
      %6741 = vmatprep.mubr.f32.mxu0 0.0
      %6742 = vmatmul.mubr.f32.gmra.mrb[0].mxu0 %v6535
      %v6743 = vpop.f32.mrb[0].mxu0
      %v6744 = vadd.f32 0.0, %v6743
      %v6745 = vpop.f32.mrb[0].mxu0
      %6746 = vmatprep.mubr.f32.mxu0 0.0
      %6747 = vmatmul.mubr.f32.gmra.mrb[0].mxu0 %v6538
      %v6748 = vpop.f32.mrb[0].mxu0
      %v6749 = vadd.f32 0.0, %v6748
      %v6750 = vpop.f32.mrb[0].mxu0
      %6751 = vmatprep.mubr.f32.mxu0 0.0
      %6752 = vmatmul.mubr.f32.gmra.mrb[0].mxu0 %v6541
      %v6753 = vpop.f32.mrb[0].mxu0
      %v6754 = vadd.f32 0.0, %v6753
      %v6755 = vpop.f32.mrb[0].mxu0
      %6756 = vmatprep.mubr.f32.mxu0 0.0
      %6757 = vmatmul.mubr.f32.gmra.mrb[0].mxu0 %v6544
      %v6758 = vpop.f32.mrb[0].mxu0
      %v6759 = vadd.f32 0.0, %v6758
      %v6760 = vpop.f32.mrb[0].mxu0
      %6761 = vmatprep.mubr.f32.mxu0 0.0
      %6762 = vmatmul.mubr.f32.gmra.mrb[0].mxu0 %v6547
      %v6763 = vpop.f32.mrb[0].mxu0
      %v6764 = vadd.f32 0.0, %v6763
      %v6765 = vpop.f32.mrb[0].mxu0
      %6766 = vmatprep.mubr.f32.mxu0 0.0
      %6767 = vmatmul.mubr.f32.gmra.mrb[0].mxu0 %v6550
      %v6768 = vpop.f32.mrb[0].mxu0
      %v6769 = vadd.f32 0.0, %v6768
      %v6770 = vpop.f32.mrb[0].mxu0
      %6771 = vmatprep.mubr.f32.mxu0 0.0
      %6772 = vmatmul.mubr.f32.gmra.mrb[0].mxu0 %v6553
      %v6773 = vpop.f32.mrb[0].mxu0
      %v6774 = vadd.f32 0.0, %v6773
      %v6775 = vpop.f32.mrb[0].mxu0
      %6776 = vmatprep.mubr.f32.mxu0 0.0
      %6777 = vmatmul.mubr.f32.gmra.mrb[0].mxu0 %v6556
      %v6778 = vpop.f32.mrb[0].mxu0
      %v6779 = vadd.f32 0.0, %v6778
      %v6780 = vpop.f32.mrb[0].mxu0
      %6781 = vmatprep.mubr.f32.mxu0 0.0
      %6782 = vmatmul.mubr.f32.gmra.mrb[0].mxu0 %v6559
      %v6783 = vpop.f32.mrb[0].mxu0
      %v6784 = vadd.f32 0.0, %v6783
      %v6785 = vpop.f32.mrb[0].mxu0
      %6786 = vmatprep.mubr.f32.mxu0 0.0
      %6787 = vmatmul.mubr.f32.gmra.mrb[0].mxu0 %v6562
      %v6788 = vpop.f32.mrb[0].mxu0
      %v6789 = vadd.f32 0.0, %v6788
      %v6790 = vpop.f32.mrb[0].mxu0
      %6791 = vdwg.mxu0
      %v6792 = vadd.f32 %v6434, %v6634
      %v6793 = vadd.f32 %v6435, %v6639
      %v6794 = vadd.f32 %v6436, %v6644
      %v6795 = vadd.f32 %v6437, %v6649
      %v6796 = vadd.f32 %v6438, %v6654
      %v6797 = vadd.f32 %v6439, %v6659
      %v6798 = vadd.f32 %v6440, %v6664
      %v6799 = vadd.f32 %v6441, %v6669
      %v6800 = vadd.f32 %v6442, %v6674
      %v6801 = vadd.f32 %v6443, %v6679
      %v6802 = vadd.f32 %v6444, %v6684
      %v6803 = vadd.f32 %v6445, %v6689
      %v6804 = vadd.f32 %v6446, %v6694
      %v6805 = vadd.f32 %v6447, %v6699
      %v6806 = vadd.f32 %v6448, %v6704
      %v6807 = vadd.f32 %v6449, %v6709
      %v6808 = vadd.f32 %v6450, %v6714
      %v6809 = vadd.f32 %v6451, %v6719
      %v6810 = vadd.f32 %v6452, %v6724
      %v6811 = vadd.f32 %v6453, %v6729
      %v6812 = vadd.f32 %v6454, %v6734
      %v6813 = vadd.f32 %v6455, %v6739
      %v6814 = vadd.f32 %v6456, %v6744
      %v6815 = vadd.f32 %v6457, %v6749
      %v6816 = vadd.f32 %v6458, %v6754
      %v6817 = vadd.f32 %v6459, %v6759
      %v6818 = vadd.f32 %v6460, %v6764
      %v6819 = vadd.f32 %v6461, %v6769
      %v6820 = vadd.f32 %v6462, %v6774
      %v6821 = vadd.f32 %v6463, %v6779
      %v6822 = vadd.f32 %v6464, %v6784
      %v6823 = vadd.f32 %v6465, %v6789
      %v6824 = vld [vmem:[%s5262 + $0x2] sm:$0xff]
      %v6825 = vld [vmem:[%s5262 + $0xa] sm:$0xff]
      %v6826 = vld [vmem:[%s5262 + $0x1a] sm:$0xff]
      %v6827 = vld [vmem:[%s5262 + $0x22] sm:$0xff]
      %v6828 = vld [vmem:[%s5262 + $0x32] sm:$0xff]
      %v6829 = vld [vmem:[%s5262 + $0x3a] sm:$0xff]
      %v6830 = vld [vmem:[%s5262 + $0x4a] sm:$0xff]
      %v6831 = vld [vmem:[%s5262 + $0x52] sm:$0xff]
      %v6832 = vld [vmem:[%s5262 + $0x62] sm:$0xff]
      %v6833 = vld [vmem:[%s5262 + $0x6a] sm:$0xff]
      %v6834 = vld [vmem:[%s5262 + $0x7a] sm:$0xff]
      %v6835 = vld [vmem:[%s5262 + $0x82] sm:$0xff]
      %v6836 = vld [vmem:[%s5262 + $0x92] sm:$0xff]
      %v6837 = vld [vmem:[%s5262 + $0x9a] sm:$0xff]
      %v6838 = vld [vmem:[%s5262 + $0xaa] sm:$0xff]
      %v6839 = vld [vmem:[%s5262 + $0xb2] sm:$0xff]
      %v6840 = vld [vmem:[%s5262 + $0xc2] sm:$0xff]
      %v6841 = vld [vmem:[%s5262 + $0xca] sm:$0xff]
      %v6842 = vld [vmem:[%s5262 + $0xda] sm:$0xff]
      %v6843 = vld [vmem:[%s5262 + $0xe2] sm:$0xff]
      %v6844 = vld [vmem:[%s5262 + $0xf2] sm:$0xff]
      %v6845 = vld [vmem:[%s5262 + $0xfa] sm:$0xff]
      %v6846 = vld [vmem:[%s5262 + $0x10a] sm:$0xff]
      %v6847 = vld [vmem:[%s5262 + $0x112] sm:$0xff]
      %v6848 = vld [vmem:[%s5262 + $0x122] sm:$0xff]
      %v6849 = vld [vmem:[%s5262 + $0x12a] sm:$0xff]
      %v6850 = vld [vmem:[%s5262 + $0x13a] sm:$0xff]
      %v6851 = vld [vmem:[%s5262 + $0x142] sm:$0xff]
      %v6852 = vld [vmem:[%s5262 + $0x152] sm:$0xff]
      %v6853 = vld [vmem:[%s5262 + $0x15a] sm:$0xff]
      %v6854 = vld [vmem:[%s5262 + $0x16a] sm:$0xff]
      %v6855 = vld [vmem:[%s5262 + $0x172] sm:$0xff]
      %v6856 = vld [vmem:[%s5295 + $0x2] sm:$0xff]
      %v6857 = vld [vmem:[%s5295 + $0xa] sm:$0xff]
      %v6858 = vld [vmem:[%s5295 + $0x1a] sm:$0xff]
      %v6859 = vld [vmem:[%s5295 + $0x22] sm:$0xff]
      %v6860 = vld [vmem:[%s5295 + $0x32] sm:$0xff]
      %v6861 = vld [vmem:[%s5295 + $0x3a] sm:$0xff]
      %v6862 = vld [vmem:[%s5295 + $0x4a] sm:$0xff]
      %v6863 = vld [vmem:[%s5295 + $0x52] sm:$0xff]
      %v6864 = vld [vmem:[%s5295 + $0x62] sm:$0xff]
      %v6865 = vld [vmem:[%s5295 + $0x6a] sm:$0xff]
      %v6866 = vld [vmem:[%s5295 + $0x7a] sm:$0xff]
      %v6867 = vld [vmem:[%s5295 + $0x82] sm:$0xff]
      %v6868 = vld [vmem:[%s5295 + $0x92] sm:$0xff]
      %v6869 = vld [vmem:[%s5295 + $0x9a] sm:$0xff]
      %v6870 = vld [vmem:[%s5295 + $0xaa] sm:$0xff]
      %v6871 = vld [vmem:[%s5295 + $0xb2] sm:$0xff]
      %v6872 = vld [vmem:[%s5295 + $0xc2] sm:$0xff]
      %v6873 = vld [vmem:[%s5295 + $0xca] sm:$0xff]
      %v6874 = vld [vmem:[%s5295 + $0xda] sm:$0xff]
      %v6875 = vld [vmem:[%s5295 + $0xe2] sm:$0xff]
      %v6876 = vld [vmem:[%s5295 + $0xf2] sm:$0xff]
      %v6877 = vld [vmem:[%s5295 + $0xfa] sm:$0xff]
      %v6878 = vld [vmem:[%s5295 + $0x10a] sm:$0xff]
      %v6879 = vld [vmem:[%s5295 + $0x112] sm:$0xff]
      %v6880 = vld [vmem:[%s5295 + $0x122] sm:$0xff]
      %v6881 = vld [vmem:[%s5295 + $0x12a] sm:$0xff]
      %v6882 = vld [vmem:[%s5295 + $0x13a] sm:$0xff]
      %v6883 = vld [vmem:[%s5295 + $0x142] sm:$0xff]
      %v6884 = vld [vmem:[%s5295 + $0x152] sm:$0xff]
      %v6885 = vld [vmem:[%s5295 + $0x15a] sm:$0xff]
      %v6886 = vld [vmem:[%s5295 + $0x16a] sm:$0xff]
      %v6887 = vld [vmem:[%s5295 + $0x172] sm:$0xff]
      %s6888 = scalar_lea.vmem %s2, 32
      %v6889 = vld [vmem:[%s6888] sm:$0xf]
      %v6891 = vsel %vm353, %v6824, 0
      %v6894 = vsel %vm353, %v6825, 0
      %v6897 = vsel %vm353, %v6826, 0
      %v6900 = vsel %vm353, %v6827, 0
      %v6903 = vsel %vm353, %v6828, 0
      %v6906 = vsel %vm353, %v6829, 0
      %v6909 = vsel %vm353, %v6830, 0
      %v6912 = vsel %vm353, %v6831, 0
      %v6915 = vsel %vm353, %v6832, 0
      %v6918 = vsel %vm353, %v6833, 0
      %v6921 = vsel %vm353, %v6834, 0
      %v6924 = vsel %vm353, %v6835, 0
      %v6927 = vsel %vm353, %v6836, 0
      %v6930 = vsel %vm353, %v6837, 0
      %v6933 = vsel %vm353, %v6838, 0
      %v6936 = vsel %vm353, %v6839, 0
      %v6939 = vsel %vm353, %v6840, 0
      %v6942 = vsel %vm353, %v6841, 0
      %v6945 = vsel %vm353, %v6842, 0
      %v6948 = vsel %vm353, %v6843, 0
      %v6951 = vsel %vm353, %v6844, 0
      %v6954 = vsel %vm353, %v6845, 0
      %v6957 = vsel %vm353, %v6846, 0
      %v6960 = vsel %vm353, %v6847, 0
      %v6963 = vsel %vm353, %v6848, 0
      %v6966 = vsel %vm353, %v6849, 0
      %v6969 = vsel %vm353, %v6850, 0
      %v6972 = vsel %vm353, %v6851, 0
      %v6975 = vsel %vm353, %v6852, 0
      %v6978 = vsel %vm353, %v6853, 0
      %v6981 = vsel %vm353, %v6854, 0
      %v6984 = vsel %vm353, %v6855, 0
      %v6987 = vsel %vm809, %v6889, 0
      %6989 = vmatprep.subr.mxu0 0.0
      %6990 = vmatpush1.msra.mxu0 %v6987
      %6991 = vmatprep.subr.mxu0 0.0
      %6992 = vmatpush1.msra.mxu0 0.0
      %6993 = vmatprep.subr.mxu0 0.0
      %6994 = vmatpush1.msra.mxu0 0.0
      %6995 = vmatprep.subr.mxu0 0.0
      %6996 = vmatpush1.msra.mxu0 0.0
      %6997 = vmatprep.subr.mxu0 0.0
      %6998 = vmatpush1.msra.mxu0 0.0
      %6999 = vmatprep.subr.mxu0 0.0
      %7000 = vmatpush1.msra.mxu0 0.0
      %7001 = vmatprep.subr.mxu0 0.0
      %7002 = vmatpush1.msra.mxu0 0.0
      %7003 = vmatprep.subr.mxu0 0.0
      %7004 = vmatpush1.msra.mxu0 0.0
      %7005 = vmatprep.subr.mxu0 0.0
      %7006 = vmatpush1.msra.mxu0 0.0
      %7007 = vmatprep.subr.mxu0 0.0
      %7008 = vmatpush1.msra.mxu0 0.0
      %7009 = vmatprep.subr.mxu0 0.0
      %7010 = vmatpush1.msra.mxu0 0.0
      %7011 = vmatprep.subr.mxu0 0.0
      %7012 = vmatpush1.msra.mxu0 0.0
      %7013 = vmatprep.subr.mxu0 0.0
      %7014 = vmatpush1.msra.mxu0 0.0
      %7015 = vmatprep.subr.mxu0 0.0
      %7016 = vmatpush1.msra.mxu0 0.0
      %7017 = vmatprep.subr.mxu0 0.0
      %7018 = vmatpush1.msra.mxu0 0.0
      %7019 = vmatprep.subr.mxu0 0.0
      %7020 = vmatpush1.msra.mxu0 0.0
      %7021 = vmatprep.subr.mxu0 0.0
      %7022 = vmatpush1.msra.mxu0 0.0
      %7023 = vmatprep.subr.mxu0 0.0
      %7024 = vmatpush1.msra.mxu0 0.0
      %7025 = vmatprep.subr.mxu0 0.0
      %7026 = vmatpush1.msra.mxu0 0.0
      %7027 = vmatprep.subr.mxu0 0.0
      %7028 = vmatpush1.msra.mxu0 0.0
      %7029 = vmatprep.subr.mxu0 0.0
      %7030 = vmatpush1.msra.mxu0 0.0
      %7031 = vmatprep.subr.mxu0 0.0
      %7032 = vmatpush1.msra.mxu0 0.0
      %7033 = vmatprep.subr.mxu0 0.0
      %7034 = vmatpush1.msra.mxu0 0.0
      %7035 = vmatprep.subr.mxu0 0.0
      %7036 = vmatpush1.msra.mxu0 0.0
      %7037 = vmatprep.subr.mxu0 0.0
      %7038 = vmatpush1.msra.mxu0 0.0
      %7039 = vmatprep.subr.mxu0 0.0
      %7040 = vmatpush1.msra.mxu0 0.0
      %7041 = vmatprep.subr.mxu0 0.0
      %7042 = vmatpush1.msra.mxu0 0.0
      %7043 = vmatprep.subr.mxu0 0.0
      %7044 = vmatpush1.msra.mxu0 0.0
      %7045 = vmatprep.subr.mxu0 0.0
      %7046 = vmatpush1.msra.mxu0 0.0
      %7047 = vmatprep.subr.mxu0 0.0
      %7048 = vmatpush1.msra.mxu0 0.0
      %7049 = vmatprep.subr.mxu0 0.0
      %7050 = vmatpush1.msra.mxu0 0.0
      %7051 = vmatprep.subr.mxu0 0.0
      %7052 = vmatpush1.msra.mxu0 0.0
      %7053 = vmatprep.mubr.f32.mxu0 0.0
      %7054 = vmatmul.mubr.f32.gmra.mrb[0].mxu0 %v6891
      %v7055 = vpop.f32.mrb[0].mxu0
      %v7056 = vadd.f32 0.0, %v7055
      %v7057 = vpop.f32.mrb[0].mxu0
      %7058 = vmatprep.mubr.f32.mxu0 0.0
      %7059 = vmatmul.mubr.f32.gmra.mrb[0].mxu0 %v6894
      %v7060 = vpop.f32.mrb[0].mxu0
      %v7061 = vadd.f32 0.0, %v7060
      %v7062 = vpop.f32.mrb[0].mxu0
      %7063 = vmatprep.mubr.f32.mxu0 0.0
      %7064 = vmatmul.mubr.f32.gmra.mrb[0].mxu0 %v6897
      %v7065 = vpop.f32.mrb[0].mxu0
      %v7066 = vadd.f32 0.0, %v7065
      %v7067 = vpop.f32.mrb[0].mxu0
      %7068 = vmatprep.mubr.f32.mxu0 0.0
      %7069 = vmatmul.mubr.f32.gmra.mrb[0].mxu0 %v6900
      %v7070 = vpop.f32.mrb[0].mxu0
      %v7071 = vadd.f32 0.0, %v7070
      %v7072 = vpop.f32.mrb[0].mxu0
      %7073 = vmatprep.mubr.f32.mxu0 0.0
      %7074 = vmatmul.mubr.f32.gmra.mrb[0].mxu0 %v6903
      %v7075 = vpop.f32.mrb[0].mxu0
      %v7076 = vadd.f32 0.0, %v7075
      %v7077 = vpop.f32.mrb[0].mxu0
      %7078 = vmatprep.mubr.f32.mxu0 0.0
      %7079 = vmatmul.mubr.f32.gmra.mrb[0].mxu0 %v6906
      %v7080 = vpop.f32.mrb[0].mxu0
      %v7081 = vadd.f32 0.0, %v7080
      %v7082 = vpop.f32.mrb[0].mxu0
      %7083 = vmatprep.mubr.f32.mxu0 0.0
      %7084 = vmatmul.mubr.f32.gmra.mrb[0].mxu0 %v6909
      %v7085 = vpop.f32.mrb[0].mxu0
      %v7086 = vadd.f32 0.0, %v7085
      %v7087 = vpop.f32.mrb[0].mxu0
      %7088 = vmatprep.mubr.f32.mxu0 0.0
      %7089 = vmatmul.mubr.f32.gmra.mrb[0].mxu0 %v6912
      %v7090 = vpop.f32.mrb[0].mxu0
      %v7091 = vadd.f32 0.0, %v7090
      %v7092 = vpop.f32.mrb[0].mxu0
      %7093 = vmatprep.mubr.f32.mxu0 0.0
      %7094 = vmatmul.mubr.f32.gmra.mrb[0].mxu0 %v6915
      %v7095 = vpop.f32.mrb[0].mxu0
      %v7096 = vadd.f32 0.0, %v7095
      %v7097 = vpop.f32.mrb[0].mxu0
      %7098 = vmatprep.mubr.f32.mxu0 0.0
      %7099 = vmatmul.mubr.f32.gmra.mrb[0].mxu0 %v6918
      %v7100 = vpop.f32.mrb[0].mxu0
      %v7101 = vadd.f32 0.0, %v7100
      %v7102 = vpop.f32.mrb[0].mxu0
      %7103 = vmatprep.mubr.f32.mxu0 0.0
      %7104 = vmatmul.mubr.f32.gmra.mrb[0].mxu0 %v6921
      %v7105 = vpop.f32.mrb[0].mxu0
      %v7106 = vadd.f32 0.0, %v7105
      %v7107 = vpop.f32.mrb[0].mxu0
      %7108 = vmatprep.mubr.f32.mxu0 0.0
      %7109 = vmatmul.mubr.f32.gmra.mrb[0].mxu0 %v6924
      %v7110 = vpop.f32.mrb[0].mxu0
      %v7111 = vadd.f32 0.0, %v7110
      %v7112 = vpop.f32.mrb[0].mxu0
      %7113 = vmatprep.mubr.f32.mxu0 0.0
      %7114 = vmatmul.mubr.f32.gmra.mrb[0].mxu0 %v6927
      %v7115 = vpop.f32.mrb[0].mxu0
      %v7116 = vadd.f32 0.0, %v7115
      %v7117 = vpop.f32.mrb[0].mxu0
      %7118 = vmatprep.mubr.f32.mxu0 0.0
      %7119 = vmatmul.mubr.f32.gmra.mrb[0].mxu0 %v6930
      %v7120 = vpop.f32.mrb[0].mxu0
      %v7121 = vadd.f32 0.0, %v7120
      %v7122 = vpop.f32.mrb[0].mxu0
      %7123 = vmatprep.mubr.f32.mxu0 0.0
      %7124 = vmatmul.mubr.f32.gmra.mrb[0].mxu0 %v6933
      %v7125 = vpop.f32.mrb[0].mxu0
      %v7126 = vadd.f32 0.0, %v7125
      %v7127 = vpop.f32.mrb[0].mxu0
      %7128 = vmatprep.mubr.f32.mxu0 0.0
      %7129 = vmatmul.mubr.f32.gmra.mrb[0].mxu0 %v6936
      %v7130 = vpop.f32.mrb[0].mxu0
      %v7131 = vadd.f32 0.0, %v7130
      %v7132 = vpop.f32.mrb[0].mxu0
      %7133 = vmatprep.mubr.f32.mxu0 0.0
      %7134 = vmatmul.mubr.f32.gmra.mrb[0].mxu0 %v6939
      %v7135 = vpop.f32.mrb[0].mxu0
      %v7136 = vadd.f32 0.0, %v7135
      %v7137 = vpop.f32.mrb[0].mxu0
      %7138 = vmatprep.mubr.f32.mxu0 0.0
      %7139 = vmatmul.mubr.f32.gmra.mrb[0].mxu0 %v6942
      %v7140 = vpop.f32.mrb[0].mxu0
      %v7141 = vadd.f32 0.0, %v7140
      %v7142 = vpop.f32.mrb[0].mxu0
      %7143 = vmatprep.mubr.f32.mxu0 0.0
      %7144 = vmatmul.mubr.f32.gmra.mrb[0].mxu0 %v6945
      %v7145 = vpop.f32.mrb[0].mxu0
      %v7146 = vadd.f32 0.0, %v7145
      %v7147 = vpop.f32.mrb[0].mxu0
      %7148 = vmatprep.mubr.f32.mxu0 0.0
      %7149 = vmatmul.mubr.f32.gmra.mrb[0].mxu0 %v6948
      %v7150 = vpop.f32.mrb[0].mxu0
      %v7151 = vadd.f32 0.0, %v7150
      %v7152 = vpop.f32.mrb[0].mxu0
      %7153 = vmatprep.mubr.f32.mxu0 0.0
      %7154 = vmatmul.mubr.f32.gmra.mrb[0].mxu0 %v6951
      %v7155 = vpop.f32.mrb[0].mxu0
      %v7156 = vadd.f32 0.0, %v7155
      %v7157 = vpop.f32.mrb[0].mxu0
      %7158 = vmatprep.mubr.f32.mxu0 0.0
      %7159 = vmatmul.mubr.f32.gmra.mrb[0].mxu0 %v6954
      %v7160 = vpop.f32.mrb[0].mxu0
      %v7161 = vadd.f32 0.0, %v7160
      %v7162 = vpop.f32.mrb[0].mxu0
      %7163 = vmatprep.mubr.f32.mxu0 0.0
      %7164 = vmatmul.mubr.f32.gmra.mrb[0].mxu0 %v6957
      %v7165 = vpop.f32.mrb[0].mxu0
      %v7166 = vadd.f32 0.0, %v7165
      %v7167 = vpop.f32.mrb[0].mxu0
      %7168 = vmatprep.mubr.f32.mxu0 0.0
      %7169 = vmatmul.mubr.f32.gmra.mrb[0].mxu0 %v6960
      %v7170 = vpop.f32.mrb[0].mxu0
      %v7171 = vadd.f32 0.0, %v7170
      %v7172 = vpop.f32.mrb[0].mxu0
      %7173 = vmatprep.mubr.f32.mxu0 0.0
      %7174 = vmatmul.mubr.f32.gmra.mrb[0].mxu0 %v6963
      %v7175 = vpop.f32.mrb[0].mxu0
      %v7176 = vadd.f32 0.0, %v7175
      %v7177 = vpop.f32.mrb[0].mxu0
      %7178 = vmatprep.mubr.f32.mxu0 0.0
      %7179 = vmatmul.mubr.f32.gmra.mrb[0].mxu0 %v6966
      %v7180 = vpop.f32.mrb[0].mxu0
      %v7181 = vadd.f32 0.0, %v7180
      %v7182 = vpop.f32.mrb[0].mxu0
      %7183 = vmatprep.mubr.f32.mxu0 0.0
      %7184 = vmatmul.mubr.f32.gmra.mrb[0].mxu0 %v6969
      %v7185 = vpop.f32.mrb[0].mxu0
      %v7186 = vadd.f32 0.0, %v7185
      %v7187 = vpop.f32.mrb[0].mxu0
      %7188 = vmatprep.mubr.f32.mxu0 0.0
      %7189 = vmatmul.mubr.f32.gmra.mrb[0].mxu0 %v6972
      %v7190 = vpop.f32.mrb[0].mxu0
      %v7191 = vadd.f32 0.0, %v7190
      %v7192 = vpop.f32.mrb[0].mxu0
      %7193 = vmatprep.mubr.f32.mxu0 0.0
      %7194 = vmatmul.mubr.f32.gmra.mrb[0].mxu0 %v6975
      %v7195 = vpop.f32.mrb[0].mxu0
      %v7196 = vadd.f32 0.0, %v7195
      %v7197 = vpop.f32.mrb[0].mxu0
      %7198 = vmatprep.mubr.f32.mxu0 0.0
      %7199 = vmatmul.mubr.f32.gmra.mrb[0].mxu0 %v6978
      %v7200 = vpop.f32.mrb[0].mxu0
      %v7201 = vadd.f32 0.0, %v7200
      %v7202 = vpop.f32.mrb[0].mxu0
      %7203 = vmatprep.mubr.f32.mxu0 0.0
      %7204 = vmatmul.mubr.f32.gmra.mrb[0].mxu0 %v6981
      %v7205 = vpop.f32.mrb[0].mxu0
      %v7206 = vadd.f32 0.0, %v7205
      %v7207 = vpop.f32.mrb[0].mxu0
      %7208 = vmatprep.mubr.f32.mxu0 0.0
      %7209 = vmatmul.mubr.f32.gmra.mrb[0].mxu0 %v6984
      %v7210 = vpop.f32.mrb[0].mxu0
      %v7211 = vadd.f32 0.0, %v7210
      %v7212 = vpop.f32.mrb[0].mxu0
      %7213 = vdwg.mxu0
      %v7214 = vadd.f32 %v6792, %v7056
      %v7215 = vadd.f32 %v6793, %v7061
      %v7216 = vadd.f32 %v6794, %v7066
      %v7217 = vadd.f32 %v6795, %v7071
      %v7218 = vadd.f32 %v6796, %v7076
      %v7219 = vadd.f32 %v6797, %v7081
      %v7220 = vadd.f32 %v6798, %v7086
      %v7221 = vadd.f32 %v6799, %v7091
      %v7222 = vadd.f32 %v6800, %v7096
      %v7223 = vadd.f32 %v6801, %v7101
      %v7224 = vadd.f32 %v6802, %v7106
      %v7225 = vadd.f32 %v6803, %v7111
      %v7226 = vadd.f32 %v6804, %v7116
      %v7227 = vadd.f32 %v6805, %v7121
      %v7228 = vadd.f32 %v6806, %v7126
      %v7229 = vadd.f32 %v6807, %v7131
      %v7230 = vadd.f32 %v6808, %v7136
      %v7231 = vadd.f32 %v6809, %v7141
      %v7232 = vadd.f32 %v6810, %v7146
      %v7233 = vadd.f32 %v6811, %v7151
      %v7234 = vadd.f32 %v6812, %v7156
      %v7235 = vadd.f32 %v6813, %v7161
      %v7236 = vadd.f32 %v6814, %v7166
      %v7237 = vadd.f32 %v6815, %v7171
      %v7238 = vadd.f32 %v6816, %v7176
      %v7239 = vadd.f32 %v6817, %v7181
      %v7240 = vadd.f32 %v6818, %v7186
      %v7241 = vadd.f32 %v6819, %v7191
      %v7242 = vadd.f32 %v6820, %v7196
      %v7243 = vadd.f32 %v6821, %v7201
      %v7244 = vadd.f32 %v6822, %v7206
      %v7245 = vadd.f32 %v6823, %v7211
      %s7246 = scalar_lea.vmem %s3, 32
      %v7247 = vld [vmem:[%s7246] sm:$0xf]
      %v7249 = vsel %vm353, %v6856, 0
      %v7252 = vsel %vm353, %v6857, 0
      %v7255 = vsel %vm353, %v6858, 0
      %v7258 = vsel %vm353, %v6859, 0
      %v7261 = vsel %vm353, %v6860, 0
      %v7264 = vsel %vm353, %v6861, 0
      %v7267 = vsel %vm353, %v6862, 0
      %v7270 = vsel %vm353, %v6863, 0
      %v7273 = vsel %vm353, %v6864, 0
      %v7276 = vsel %vm353, %v6865, 0
      %v7279 = vsel %vm353, %v6866, 0
      %v7282 = vsel %vm353, %v6867, 0
      %v7285 = vsel %vm353, %v6868, 0
      %v7288 = vsel %vm353, %v6869, 0
      %v7291 = vsel %vm353, %v6870, 0
      %v7294 = vsel %vm353, %v6871, 0
      %v7297 = vsel %vm353, %v6872, 0
      %v7300 = vsel %vm353, %v6873, 0
      %v7303 = vsel %vm353, %v6874, 0
      %v7306 = vsel %vm353, %v6875, 0
      %v7309 = vsel %vm353, %v6876, 0
      %v7312 = vsel %vm353, %v6877, 0
      %v7315 = vsel %vm353, %v6878, 0
      %v7318 = vsel %vm353, %v6879, 0
      %v7321 = vsel %vm353, %v6880, 0
      %v7324 = vsel %vm353, %v6881, 0
      %v7327 = vsel %vm353, %v6882, 0
      %v7330 = vsel %vm353, %v6883, 0
      %v7333 = vsel %vm353, %v6884, 0
      %v7336 = vsel %vm353, %v6885, 0
      %v7339 = vsel %vm353, %v6886, 0
      %v7342 = vsel %vm353, %v6887, 0
      %v7345 = vsel %vm809, %v7247, 0
      %7347 = vmatprep.subr.mxu0 0.0
      %7348 = vmatpush1.msra.mxu0 %v7345
      %7349 = vmatprep.subr.mxu0 0.0
      %7350 = vmatpush1.msra.mxu0 0.0
      %7351 = vmatprep.subr.mxu0 0.0
      %7352 = vmatpush1.msra.mxu0 0.0
      %7353 = vmatprep.subr.mxu0 0.0
      %7354 = vmatpush1.msra.mxu0 0.0
      %7355 = vmatprep.subr.mxu0 0.0
      %7356 = vmatpush1.msra.mxu0 0.0
      %7357 = vmatprep.subr.mxu0 0.0
      %7358 = vmatpush1.msra.mxu0 0.0
      %7359 = vmatprep.subr.mxu0 0.0
      %7360 = vmatpush1.msra.mxu0 0.0
      %7361 = vmatprep.subr.mxu0 0.0
      %7362 = vmatpush1.msra.mxu0 0.0
      %7363 = vmatprep.subr.mxu0 0.0
      %7364 = vmatpush1.msra.mxu0 0.0
      %7365 = vmatprep.subr.mxu0 0.0
      %7366 = vmatpush1.msra.mxu0 0.0
      %7367 = vmatprep.subr.mxu0 0.0
      %7368 = vmatpush1.msra.mxu0 0.0
      %7369 = vmatprep.subr.mxu0 0.0
      %7370 = vmatpush1.msra.mxu0 0.0
      %7371 = vmatprep.subr.mxu0 0.0
      %7372 = vmatpush1.msra.mxu0 0.0
      %7373 = vmatprep.subr.mxu0 0.0
      %7374 = vmatpush1.msra.mxu0 0.0
      %7375 = vmatprep.subr.mxu0 0.0
      %7376 = vmatpush1.msra.mxu0 0.0
      %7377 = vmatprep.subr.mxu0 0.0
      %7378 = vmatpush1.msra.mxu0 0.0
      %7379 = vmatprep.subr.mxu0 0.0
      %7380 = vmatpush1.msra.mxu0 0.0
      %7381 = vmatprep.subr.mxu0 0.0
      %7382 = vmatpush1.msra.mxu0 0.0
      %7383 = vmatprep.subr.mxu0 0.0
      %7384 = vmatpush1.msra.mxu0 0.0
      %7385 = vmatprep.subr.mxu0 0.0
      %7386 = vmatpush1.msra.mxu0 0.0
      %7387 = vmatprep.subr.mxu0 0.0
      %7388 = vmatpush1.msra.mxu0 0.0
      %7389 = vmatprep.subr.mxu0 0.0
      %7390 = vmatpush1.msra.mxu0 0.0
      %7391 = vmatprep.subr.mxu0 0.0
      %7392 = vmatpush1.msra.mxu0 0.0
      %7393 = vmatprep.subr.mxu0 0.0
      %7394 = vmatpush1.msra.mxu0 0.0
      %7395 = vmatprep.subr.mxu0 0.0
      %7396 = vmatpush1.msra.mxu0 0.0
      %7397 = vmatprep.subr.mxu0 0.0
      %7398 = vmatpush1.msra.mxu0 0.0
      %7399 = vmatprep.subr.mxu0 0.0
      %7400 = vmatpush1.msra.mxu0 0.0
      %7401 = vmatprep.subr.mxu0 0.0
      %7402 = vmatpush1.msra.mxu0 0.0
      %7403 = vmatprep.subr.mxu0 0.0
      %7404 = vmatpush1.msra.mxu0 0.0
      %7405 = vmatprep.subr.mxu0 0.0
      %7406 = vmatpush1.msra.mxu0 0.0
      %7407 = vmatprep.subr.mxu0 0.0
      %7408 = vmatpush1.msra.mxu0 0.0
      %7409 = vmatprep.subr.mxu0 0.0
      %7410 = vmatpush1.msra.mxu0 0.0
      %7411 = vmatprep.mubr.f32.mxu0 0.0
      %7412 = vmatmul.mubr.f32.gmra.mrb[0].mxu0 %v7249
      %v7413 = vpop.f32.mrb[0].mxu0
      %v7414 = vadd.f32 0.0, %v7413
      %v7415 = vpop.f32.mrb[0].mxu0
      %7416 = vmatprep.mubr.f32.mxu0 0.0
      %7417 = vmatmul.mubr.f32.gmra.mrb[0].mxu0 %v7252
      %v7418 = vpop.f32.mrb[0].mxu0
      %v7419 = vadd.f32 0.0, %v7418
      %v7420 = vpop.f32.mrb[0].mxu0
      %7421 = vmatprep.mubr.f32.mxu0 0.0
      %7422 = vmatmul.mubr.f32.gmra.mrb[0].mxu0 %v7255
      %v7423 = vpop.f32.mrb[0].mxu0
      %v7424 = vadd.f32 0.0, %v7423
      %v7425 = vpop.f32.mrb[0].mxu0
      %7426 = vmatprep.mubr.f32.mxu0 0.0
      %7427 = vmatmul.mubr.f32.gmra.mrb[0].mxu0 %v7258
      %v7428 = vpop.f32.mrb[0].mxu0
      %v7429 = vadd.f32 0.0, %v7428
      %v7430 = vpop.f32.mrb[0].mxu0
      %7431 = vmatprep.mubr.f32.mxu0 0.0
      %7432 = vmatmul.mubr.f32.gmra.mrb[0].mxu0 %v7261
      %v7433 = vpop.f32.mrb[0].mxu0
      %v7434 = vadd.f32 0.0, %v7433
      %v7435 = vpop.f32.mrb[0].mxu0
      %7436 = vmatprep.mubr.f32.mxu0 0.0
      %7437 = vmatmul.mubr.f32.gmra.mrb[0].mxu0 %v7264
      %v7438 = vpop.f32.mrb[0].mxu0
      %v7439 = vadd.f32 0.0, %v7438
      %v7440 = vpop.f32.mrb[0].mxu0
      %7441 = vmatprep.mubr.f32.mxu0 0.0
      %7442 = vmatmul.mubr.f32.gmra.mrb[0].mxu0 %v7267
      %v7443 = vpop.f32.mrb[0].mxu0
      %v7444 = vadd.f32 0.0, %v7443
      %v7445 = vpop.f32.mrb[0].mxu0
      %7446 = vmatprep.mubr.f32.mxu0 0.0
      %7447 = vmatmul.mubr.f32.gmra.mrb[0].mxu0 %v7270
      %v7448 = vpop.f32.mrb[0].mxu0
      %v7449 = vadd.f32 0.0, %v7448
      %v7450 = vpop.f32.mrb[0].mxu0
      %7451 = vmatprep.mubr.f32.mxu0 0.0
      %7452 = vmatmul.mubr.f32.gmra.mrb[0].mxu0 %v7273
      %v7453 = vpop.f32.mrb[0].mxu0
      %v7454 = vadd.f32 0.0, %v7453
      %v7455 = vpop.f32.mrb[0].mxu0
      %7456 = vmatprep.mubr.f32.mxu0 0.0
      %7457 = vmatmul.mubr.f32.gmra.mrb[0].mxu0 %v7276
      %v7458 = vpop.f32.mrb[0].mxu0
      %v7459 = vadd.f32 0.0, %v7458
      %v7460 = vpop.f32.mrb[0].mxu0
      %7461 = vmatprep.mubr.f32.mxu0 0.0
      %7462 = vmatmul.mubr.f32.gmra.mrb[0].mxu0 %v7279
      %v7463 = vpop.f32.mrb[0].mxu0
      %v7464 = vadd.f32 0.0, %v7463
      %v7465 = vpop.f32.mrb[0].mxu0
      %7466 = vmatprep.mubr.f32.mxu0 0.0
      %7467 = vmatmul.mubr.f32.gmra.mrb[0].mxu0 %v7282
      %v7468 = vpop.f32.mrb[0].mxu0
      %v7469 = vadd.f32 0.0, %v7468
      %v7470 = vpop.f32.mrb[0].mxu0
      %7471 = vmatprep.mubr.f32.mxu0 0.0
      %7472 = vmatmul.mubr.f32.gmra.mrb[0].mxu0 %v7285
      %v7473 = vpop.f32.mrb[0].mxu0
      %v7474 = vadd.f32 0.0, %v7473
      %v7475 = vpop.f32.mrb[0].mxu0
      %7476 = vmatprep.mubr.f32.mxu0 0.0
      %7477 = vmatmul.mubr.f32.gmra.mrb[0].mxu0 %v7288
      %v7478 = vpop.f32.mrb[0].mxu0
      %v7479 = vadd.f32 0.0, %v7478
      %v7480 = vpop.f32.mrb[0].mxu0
      %7481 = vmatprep.mubr.f32.mxu0 0.0
      %7482 = vmatmul.mubr.f32.gmra.mrb[0].mxu0 %v7291
      %v7483 = vpop.f32.mrb[0].mxu0
      %v7484 = vadd.f32 0.0, %v7483
      %v7485 = vpop.f32.mrb[0].mxu0
      %7486 = vmatprep.mubr.f32.mxu0 0.0
      %7487 = vmatmul.mubr.f32.gmra.mrb[0].mxu0 %v7294
      %v7488 = vpop.f32.mrb[0].mxu0
      %v7489 = vadd.f32 0.0, %v7488
      %v7490 = vpop.f32.mrb[0].mxu0
      %7491 = vmatprep.mubr.f32.mxu0 0.0
      %7492 = vmatmul.mubr.f32.gmra.mrb[0].mxu0 %v7297
      %v7493 = vpop.f32.mrb[0].mxu0
      %v7494 = vadd.f32 0.0, %v7493
      %v7495 = vpop.f32.mrb[0].mxu0
      %7496 = vmatprep.mubr.f32.mxu0 0.0
      %7497 = vmatmul.mubr.f32.gmra.mrb[0].mxu0 %v7300
      %v7498 = vpop.f32.mrb[0].mxu0
      %v7499 = vadd.f32 0.0, %v7498
      %v7500 = vpop.f32.mrb[0].mxu0
      %7501 = vmatprep.mubr.f32.mxu0 0.0
      %7502 = vmatmul.mubr.f32.gmra.mrb[0].mxu0 %v7303
      %v7503 = vpop.f32.mrb[0].mxu0
      %v7504 = vadd.f32 0.0, %v7503
      %v7505 = vpop.f32.mrb[0].mxu0
      %7506 = vmatprep.mubr.f32.mxu0 0.0
      %7507 = vmatmul.mubr.f32.gmra.mrb[0].mxu0 %v7306
      %v7508 = vpop.f32.mrb[0].mxu0
      %v7509 = vadd.f32 0.0, %v7508
      %v7510 = vpop.f32.mrb[0].mxu0
      %7511 = vmatprep.mubr.f32.mxu0 0.0
      %7512 = vmatmul.mubr.f32.gmra.mrb[0].mxu0 %v7309
      %v7513 = vpop.f32.mrb[0].mxu0
      %v7514 = vadd.f32 0.0, %v7513
      %v7515 = vpop.f32.mrb[0].mxu0
      %7516 = vmatprep.mubr.f32.mxu0 0.0
      %7517 = vmatmul.mubr.f32.gmra.mrb[0].mxu0 %v7312
      %v7518 = vpop.f32.mrb[0].mxu0
      %v7519 = vadd.f32 0.0, %v7518
      %v7520 = vpop.f32.mrb[0].mxu0
      %7521 = vmatprep.mubr.f32.mxu0 0.0
      %7522 = vmatmul.mubr.f32.gmra.mrb[0].mxu0 %v7315
      %v7523 = vpop.f32.mrb[0].mxu0
      %v7524 = vadd.f32 0.0, %v7523
      %v7525 = vpop.f32.mrb[0].mxu0
      %7526 = vmatprep.mubr.f32.mxu0 0.0
      %7527 = vmatmul.mubr.f32.gmra.mrb[0].mxu0 %v7318
      %v7528 = vpop.f32.mrb[0].mxu0
      %v7529 = vadd.f32 0.0, %v7528
      %v7530 = vpop.f32.mrb[0].mxu0
      %7531 = vmatprep.mubr.f32.mxu0 0.0
      %7532 = vmatmul.mubr.f32.gmra.mrb[0].mxu0 %v7321
      %v7533 = vpop.f32.mrb[0].mxu0
      %v7534 = vadd.f32 0.0, %v7533
      %v7535 = vpop.f32.mrb[0].mxu0
      %7536 = vmatprep.mubr.f32.mxu0 0.0
      %7537 = vmatmul.mubr.f32.gmra.mrb[0].mxu0 %v7324
      %v7538 = vpop.f32.mrb[0].mxu0
      %v7539 = vadd.f32 0.0, %v7538
      %v7540 = vpop.f32.mrb[0].mxu0
      %7541 = vmatprep.mubr.f32.mxu0 0.0
      %7542 = vmatmul.mubr.f32.gmra.mrb[0].mxu0 %v7327
      %v7543 = vpop.f32.mrb[0].mxu0
      %v7544 = vadd.f32 0.0, %v7543
      %v7545 = vpop.f32.mrb[0].mxu0
      %7546 = vmatprep.mubr.f32.mxu0 0.0
      %7547 = vmatmul.mubr.f32.gmra.mrb[0].mxu0 %v7330
      %v7548 = vpop.f32.mrb[0].mxu0
      %v7549 = vadd.f32 0.0, %v7548
      %v7550 = vpop.f32.mrb[0].mxu0
      %7551 = vmatprep.mubr.f32.mxu0 0.0
      %7552 = vmatmul.mubr.f32.gmra.mrb[0].mxu0 %v7333
      %v7553 = vpop.f32.mrb[0].mxu0
      %v7554 = vadd.f32 0.0, %v7553
      %v7555 = vpop.f32.mrb[0].mxu0
      %7556 = vmatprep.mubr.f32.mxu0 0.0
      %7557 = vmatmul.mubr.f32.gmra.mrb[0].mxu0 %v7336
      %v7558 = vpop.f32.mrb[0].mxu0
      %v7559 = vadd.f32 0.0, %v7558
      %v7560 = vpop.f32.mrb[0].mxu0
      %7561 = vmatprep.mubr.f32.mxu0 0.0
      %7562 = vmatmul.mubr.f32.gmra.mrb[0].mxu0 %v7339
      %v7563 = vpop.f32.mrb[0].mxu0
      %v7564 = vadd.f32 0.0, %v7563
      %v7565 = vpop.f32.mrb[0].mxu0
      %7566 = vmatprep.mubr.f32.mxu0 0.0
      %7567 = vmatmul.mubr.f32.gmra.mrb[0].mxu0 %v7342
      %v7568 = vpop.f32.mrb[0].mxu0
      %v7569 = vadd.f32 0.0, %v7568
      %v7570 = vpop.f32.mrb[0].mxu0
      %7571 = vdwg.mxu0
      %v7572 = vadd.f32 %v7214, %v7414
      %v7573 = vadd.f32 %v7215, %v7419
      %v7574 = vadd.f32 %v7216, %v7424
      %v7575 = vadd.f32 %v7217, %v7429
      %v7576 = vadd.f32 %v7218, %v7434
      %v7577 = vadd.f32 %v7219, %v7439
      %v7578 = vadd.f32 %v7220, %v7444
      %v7579 = vadd.f32 %v7221, %v7449
      %v7580 = vadd.f32 %v7222, %v7454
      %v7581 = vadd.f32 %v7223, %v7459
      %v7582 = vadd.f32 %v7224, %v7464
      %v7583 = vadd.f32 %v7225, %v7469
      %v7584 = vadd.f32 %v7226, %v7474
      %v7585 = vadd.f32 %v7227, %v7479
      %v7586 = vadd.f32 %v7228, %v7484
      %v7587 = vadd.f32 %v7229, %v7489
      %v7588 = vadd.f32 %v7230, %v7494
      %v7589 = vadd.f32 %v7231, %v7499
      %v7590 = vadd.f32 %v7232, %v7504
      %v7591 = vadd.f32 %v7233, %v7509
      %v7592 = vadd.f32 %v7234, %v7514
      %v7593 = vadd.f32 %v7235, %v7519
      %v7594 = vadd.f32 %v7236, %v7524
      %v7595 = vadd.f32 %v7237, %v7529
      %v7596 = vadd.f32 %v7238, %v7534
      %v7597 = vadd.f32 %v7239, %v7539
      %v7598 = vadd.f32 %v7240, %v7544
      %v7599 = vadd.f32 %v7241, %v7549
      %v7600 = vadd.f32 %v7242, %v7554
      %v7601 = vadd.f32 %v7243, %v7559
      %v7602 = vadd.f32 %v7244, %v7564
      %v7603 = vadd.f32 %v7245, %v7569
      %v7604 = vld [vmem:[%s4] sm:$0x1]
      %v7606 = vlaneseq
      %v7607 = vshrl.u32 %v7606, 7
      %v7608 = vsub.s32 0, %v7607
      %v7609 = vrot.slane %v7604, %v7608
      %v7611 = vmul.f32 %v7572, %v7609
      %v7612 = vmul.f32 %v7573, %v7609
      %v7613 = vmul.f32 %v7574, %v7609
      %v7614 = vmul.f32 %v7575, %v7609
      %v7615 = vmul.f32 %v7576, %v7609
      %v7616 = vmul.f32 %v7577, %v7609
      %v7617 = vmul.f32 %v7578, %v7609
      %v7618 = vmul.f32 %v7579, %v7609
      %v7619 = vmul.f32 %v7580, %v7609
      %v7620 = vmul.f32 %v7581, %v7609
      %v7621 = vmul.f32 %v7582, %v7609
      %v7622 = vmul.f32 %v7583, %v7609
      %v7623 = vmul.f32 %v7584, %v7609
      %v7624 = vmul.f32 %v7585, %v7609
      %v7625 = vmul.f32 %v7586, %v7609
      %v7626 = vmul.f32 %v7587, %v7609
      %v7627 = vmul.f32 %v7588, %v7609
      %v7628 = vmul.f32 %v7589, %v7609
      %v7629 = vmul.f32 %v7590, %v7609
      %v7630 = vmul.f32 %v7591, %v7609
      %v7631 = vmul.f32 %v7592, %v7609
      %v7632 = vmul.f32 %v7593, %v7609
      %v7633 = vmul.f32 %v7594, %v7609
      %v7634 = vmul.f32 %v7595, %v7609
      %v7635 = vmul.f32 %v7596, %v7609
      %v7636 = vmul.f32 %v7597, %v7609
      %v7637 = vmul.f32 %v7598, %v7609
      %v7638 = vmul.f32 %v7599, %v7609
      %v7639 = vmul.f32 %v7600, %v7609
      %v7640 = vmul.f32 %v7601, %v7609
      %v7641 = vmul.f32 %v7602, %v7609
      %v7642 = vmul.f32 %v7603, %v7609
      %v7643 = vld [vmem:[%s5] sm:$0x1]
      %v7645 = vlaneseq
      %v7646 = vshrl.u32 %v7645, 7
      %v7647 = vsub.s32 0, %v7646
      %v7648 = vrot.slane %v7643, %v7647
      %v7650 = vadd.f32 %v7611, %v7648
      %v7651 = vadd.f32 %v7612, %v7648
      %v7652 = vadd.f32 %v7613, %v7648
      %v7653 = vadd.f32 %v7614, %v7648
      %v7654 = vadd.f32 %v7615, %v7648
      %v7655 = vadd.f32 %v7616, %v7648
      %v7656 = vadd.f32 %v7617, %v7648
      %v7657 = vadd.f32 %v7618, %v7648
      %v7658 = vadd.f32 %v7619, %v7648
      %v7659 = vadd.f32 %v7620, %v7648
      %v7660 = vadd.f32 %v7621, %v7648
      %v7661 = vadd.f32 %v7622, %v7648
      %v7662 = vadd.f32 %v7623, %v7648
      %v7663 = vadd.f32 %v7624, %v7648
      %v7664 = vadd.f32 %v7625, %v7648
      %v7665 = vadd.f32 %v7626, %v7648
      %v7666 = vadd.f32 %v7627, %v7648
      %v7667 = vadd.f32 %v7628, %v7648
      %v7668 = vadd.f32 %v7629, %v7648
      %v7669 = vadd.f32 %v7630, %v7648
      %v7670 = vadd.f32 %v7631, %v7648
      %v7671 = vadd.f32 %v7632, %v7648
      %v7672 = vadd.f32 %v7633, %v7648
      %v7673 = vadd.f32 %v7634, %v7648
      %v7674 = vadd.f32 %v7635, %v7648
      %v7675 = vadd.f32 %v7636, %v7648
      %v7676 = vadd.f32 %v7637, %v7648
      %v7677 = vadd.f32 %v7638, %v7648
      %v7678 = vadd.f32 %v7639, %v7648
      %v7679 = vadd.f32 %v7640, %v7648
      %v7680 = vadd.f32 %v7641, %v7648
      %v7681 = vadd.f32 %v7642, %v7648
      %v7682 = vmax.f32 %v7650, 0.0
      %v7683 = vmax.f32 %v7651, 0.0
      %v7684 = vmax.f32 %v7652, 0.0
      %v7685 = vmax.f32 %v7653, 0.0
      %v7686 = vmax.f32 %v7654, 0.0
      %v7687 = vmax.f32 %v7655, 0.0
      %v7688 = vmax.f32 %v7656, 0.0
      %v7689 = vmax.f32 %v7657, 0.0
      %v7690 = vmax.f32 %v7658, 0.0
      %v7691 = vmax.f32 %v7659, 0.0
      %v7692 = vmax.f32 %v7660, 0.0
      %v7693 = vmax.f32 %v7661, 0.0
      %v7694 = vmax.f32 %v7662, 0.0
      %v7695 = vmax.f32 %v7663, 0.0
      %v7696 = vmax.f32 %v7664, 0.0
      %v7697 = vmax.f32 %v7665, 0.0
      %v7698 = vmax.f32 %v7666, 0.0
      %v7699 = vmax.f32 %v7667, 0.0
      %v7700 = vmax.f32 %v7668, 0.0
      %v7701 = vmax.f32 %v7669, 0.0
      %v7702 = vmax.f32 %v7670, 0.0
      %v7703 = vmax.f32 %v7671, 0.0
      %v7704 = vmax.f32 %v7672, 0.0
      %v7705 = vmax.f32 %v7673, 0.0
      %v7706 = vmax.f32 %v7674, 0.0
      %v7707 = vmax.f32 %v7675, 0.0
      %v7708 = vmax.f32 %v7676, 0.0
      %v7709 = vmax.f32 %v7677, 0.0
      %v7710 = vmax.f32 %v7678, 0.0
      %v7711 = vmax.f32 %v7679, 0.0
      %v7712 = vmax.f32 %v7680, 0.0
      %v7713 = vmax.f32 %v7681, 0.0
      %s7714 = scalar_lea.vmem [#allocation4], 24
      %7715 = vst.msk [vmem:[%s7714 + $0x1] sm:$0xff] %vm353, %v7682
      %7716 = vst.msk [vmem:[%s7714 + $0x9] sm:$0xff] %vm353, %v7683
      %7717 = vst.msk [vmem:[%s7714 + $0x19] sm:$0xff] %vm353, %v7684
      %7718 = vst.msk [vmem:[%s7714 + $0x21] sm:$0xff] %vm353, %v7685
      %7719 = vst.msk [vmem:[%s7714 + $0x31] sm:$0xff] %vm353, %v7686
      %7720 = vst.msk [vmem:[%s7714 + $0x39] sm:$0xff] %vm353, %v7687
      %7721 = vst.msk [vmem:[%s7714 + $0x49] sm:$0xff] %vm353, %v7688
      %7722 = vst.msk [vmem:[%s7714 + $0x51] sm:$0xff] %vm353, %v7689
      %7723 = vst.msk [vmem:[%s7714 + $0x61] sm:$0xff] %vm353, %v7690
      %7724 = vst.msk [vmem:[%s7714 + $0x69] sm:$0xff] %vm353, %v7691
      %7725 = vst.msk [vmem:[%s7714 + $0x79] sm:$0xff] %vm353, %v7692
      %7726 = vst.msk [vmem:[%s7714 + $0x81] sm:$0xff] %vm353, %v7693
      %7727 = vst.msk [vmem:[%s7714 + $0x91] sm:$0xff] %vm353, %v7694
      %7728 = vst.msk [vmem:[%s7714 + $0x99] sm:$0xff] %vm353, %v7695
      %7729 = vst.msk [vmem:[%s7714 + $0xa9] sm:$0xff] %vm353, %v7696
      %7730 = vst.msk [vmem:[%s7714 + $0xb1] sm:$0xff] %vm353, %v7697
      %7731 = vst.msk [vmem:[%s7714 + $0xc1] sm:$0xff] %vm353, %v7698
      %7732 = vst.msk [vmem:[%s7714 + $0xc9] sm:$0xff] %vm353, %v7699
      %7733 = vst.msk [vmem:[%s7714 + $0xd9] sm:$0xff] %vm353, %v7700
      %7734 = vst.msk [vmem:[%s7714 + $0xe1] sm:$0xff] %vm353, %v7701
      %7735 = vst.msk [vmem:[%s7714 + $0xf1] sm:$0xff] %vm353, %v7702
      %7736 = vst.msk [vmem:[%s7714 + $0xf9] sm:$0xff] %vm353, %v7703
      %7737 = vst.msk [vmem:[%s7714 + $0x109] sm:$0xff] %vm353, %v7704
      %7738 = vst.msk [vmem:[%s7714 + $0x111] sm:$0xff] %vm353, %v7705
      %7739 = vst.msk [vmem:[%s7714 + $0x121] sm:$0xff] %vm353, %v7706
      %7740 = vst.msk [vmem:[%s7714 + $0x129] sm:$0xff] %vm353, %v7707
      %7741 = vst.msk [vmem:[%s7714 + $0x139] sm:$0xff] %vm353, %v7708
      %7742 = vst.msk [vmem:[%s7714 + $0x141] sm:$0xff] %vm353, %v7709
      %7743 = vst.msk [vmem:[%s7714 + $0x151] sm:$0xff] %vm353, %v7710
      %7744 = vst.msk [vmem:[%s7714 + $0x159] sm:$0xff] %vm353, %v7711
      %7745 = vst.msk [vmem:[%s7714 + $0x169] sm:$0xff] %vm353, %v7712
      %7746 = vst.msk [vmem:[%s7714 + $0x171] sm:$0xff] %vm353, %v7713
      %v7747 = vld [vmem:[#allocation4] sm:$0xff]
      %v7748 = vld [vmem:[#allocation4 + $0x8] sm:$0xff]
      %v7749 = vld [vmem:[#allocation4 + $0x18] sm:$0xff]
      %v7750 = vld [vmem:[#allocation4 + $0x20] sm:$0xff]
      %v7751 = vld [vmem:[#allocation4 + $0x30] sm:$0xff]
      %v7752 = vld [vmem:[#allocation4 + $0x38] sm:$0xff]
      %v7753 = vld [vmem:[#allocation4 + $0x48] sm:$0xff]
      %v7754 = vld [vmem:[#allocation4 + $0x50] sm:$0xff]
      %v7755 = vld [vmem:[#allocation4 + $0x60] sm:$0xff]
      %v7756 = vld [vmem:[#allocation4 + $0x68] sm:$0xff]
      %v7757 = vld [vmem:[#allocation4 + $0x78] sm:$0xff]
      %v7758 = vld [vmem:[#allocation4 + $0x80] sm:$0xff]
      %v7759 = vld [vmem:[#allocation4 + $0x90] sm:$0xff]
      %v7760 = vld [vmem:[#allocation4 + $0x98] sm:$0xff]
      %v7761 = vld [vmem:[#allocation4 + $0xa8] sm:$0xff]
      %v7762 = vld [vmem:[#allocation4 + $0xb0] sm:$0xff]
      %v7763 = vld [vmem:[#allocation4 + $0xc0] sm:$0xff]
      %v7764 = vld [vmem:[#allocation4 + $0xc8] sm:$0xff]
      %v7765 = vld [vmem:[#allocation4 + $0xd8] sm:$0xff]
      %v7766 = vld [vmem:[#allocation4 + $0xe0] sm:$0xff]
      %v7767 = vld [vmem:[#allocation4 + $0xf0] sm:$0xff]
      %v7768 = vld [vmem:[#allocation4 + $0xf8] sm:$0xff]
      %v7769 = vld [vmem:[#allocation4 + $0x108] sm:$0xff]
      %v7770 = vld [vmem:[#allocation4 + $0x110] sm:$0xff]
      %v7771 = vld [vmem:[#allocation4 + $0x120] sm:$0xff]
      %v7772 = vld [vmem:[#allocation4 + $0x128] sm:$0xff]
      %v7773 = vld [vmem:[#allocation4 + $0x138] sm:$0xff]
      %v7774 = vld [vmem:[#allocation4 + $0x140] sm:$0xff]
      %v7775 = vld [vmem:[#allocation4 + $0x150] sm:$0xff]
      %v7776 = vld [vmem:[#allocation4 + $0x158] sm:$0xff]
      %v7777 = vld [vmem:[#allocation4 + $0x168] sm:$0xff]
      %v7778 = vld [vmem:[#allocation4 + $0x170] sm:$0xff]
      %v7779 = vld [vmem:[%s6] sm:$0xf]
      %v7780 = vld [vmem:[#allocation4 + $0x1] sm:$0xff]
      %v7781 = vld [vmem:[#allocation4 + $0x9] sm:$0xff]
      %v7782 = vld [vmem:[#allocation4 + $0x19] sm:$0xff]
      %v7783 = vld [vmem:[#allocation4 + $0x21] sm:$0xff]
      %v7784 = vld [vmem:[#allocation4 + $0x31] sm:$0xff]
      %v7785 = vld [vmem:[#allocation4 + $0x39] sm:$0xff]
      %v7786 = vld [vmem:[#allocation4 + $0x49] sm:$0xff]
      %v7787 = vld [vmem:[#allocation4 + $0x51] sm:$0xff]
      %v7788 = vld [vmem:[#allocation4 + $0x61] sm:$0xff]
      %v7789 = vld [vmem:[#allocation4 + $0x69] sm:$0xff]
      %v7790 = vld [vmem:[#allocation4 + $0x79] sm:$0xff]
      %v7791 = vld [vmem:[#allocation4 + $0x81] sm:$0xff]
      %v7792 = vld [vmem:[#allocation4 + $0x91] sm:$0xff]
      %v7793 = vld [vmem:[#allocation4 + $0x99] sm:$0xff]
      %v7794 = vld [vmem:[#allocation4 + $0xa9] sm:$0xff]
      %v7795 = vld [vmem:[#allocation4 + $0xb1] sm:$0xff]
      %v7796 = vld [vmem:[#allocation4 + $0xc1] sm:$0xff]
      %v7797 = vld [vmem:[#allocation4 + $0xc9] sm:$0xff]
      %v7798 = vld [vmem:[#allocation4 + $0xd9] sm:$0xff]
      %v7799 = vld [vmem:[#allocation4 + $0xe1] sm:$0xff]
      %v7800 = vld [vmem:[#allocation4 + $0xf1] sm:$0xff]
      %v7801 = vld [vmem:[#allocation4 + $0xf9] sm:$0xff]
      %v7802 = vld [vmem:[#allocation4 + $0x109] sm:$0xff]
      %v7803 = vld [vmem:[#allocation4 + $0x111] sm:$0xff]
      %v7804 = vld [vmem:[#allocation4 + $0x121] sm:$0xff]
      %v7805 = vld [vmem:[#allocation4 + $0x129] sm:$0xff]
      %v7806 = vld [vmem:[#allocation4 + $0x139] sm:$0xff]
      %v7807 = vld [vmem:[#allocation4 + $0x141] sm:$0xff]
      %v7808 = vld [vmem:[#allocation4 + $0x151] sm:$0xff]
      %v7809 = vld [vmem:[#allocation4 + $0x159] sm:$0xff]
      %v7810 = vld [vmem:[#allocation4 + $0x169] sm:$0xff]
      %v7811 = vld [vmem:[#allocation4 + $0x171] sm:$0xff]
      %s7812 = scalar_lea.vmem %s6, 4
      %v7813 = vld [vmem:[%s7812] sm:$0xf]
      %v7815 = vsel %vm353, %v7780, 0
      %v7818 = vsel %vm353, %v7781, 0
      %v7821 = vsel %vm353, %v7782, 0
      %v7824 = vsel %vm353, %v7783, 0
      %v7827 = vsel %vm353, %v7784, 0
      %v7830 = vsel %vm353, %v7785, 0
      %v7833 = vsel %vm353, %v7786, 0
      %v7836 = vsel %vm353, %v7787, 0
      %v7839 = vsel %vm353, %v7788, 0
      %v7842 = vsel %vm353, %v7789, 0
      %v7845 = vsel %vm353, %v7790, 0
      %v7848 = vsel %vm353, %v7791, 0
      %v7851 = vsel %vm353, %v7792, 0
      %v7854 = vsel %vm353, %v7793, 0
      %v7857 = vsel %vm353, %v7794, 0
      %v7860 = vsel %vm353, %v7795, 0
      %v7863 = vsel %vm353, %v7796, 0
      %v7866 = vsel %vm353, %v7797, 0
      %v7869 = vsel %vm353, %v7798, 0
      %v7872 = vsel %vm353, %v7799, 0
      %v7875 = vsel %vm353, %v7800, 0
      %v7878 = vsel %vm353, %v7801, 0
      %v7881 = vsel %vm353, %v7802, 0
      %v7884 = vsel %vm353, %v7803, 0
      %v7887 = vsel %vm353, %v7804, 0
      %v7890 = vsel %vm353, %v7805, 0
      %v7893 = vsel %vm353, %v7806, 0
      %v7896 = vsel %vm353, %v7807, 0
      %v7899 = vsel %vm353, %v7808, 0
      %v7902 = vsel %vm353, %v7809, 0
      %v7905 = vsel %vm353, %v7810, 0
      %v7908 = vsel %vm353, %v7811, 0
      %v7911 = vsel %vm809, %v7813, 0
      %7913 = vmatprep.subr.mxu0 0.0
      %7914 = vmatpush1.msra.mxu0 %v7911
      %7915 = vmatprep.subr.mxu0 0.0
      %7916 = vmatpush1.msra.mxu0 0.0
      %7917 = vmatprep.subr.mxu0 0.0
      %7918 = vmatpush1.msra.mxu0 0.0
      %7919 = vmatprep.subr.mxu0 0.0
      %7920 = vmatpush1.msra.mxu0 0.0
      %7921 = vmatprep.subr.mxu0 0.0
      %7922 = vmatpush1.msra.mxu0 0.0
      %7923 = vmatprep.subr.mxu0 0.0
      %7924 = vmatpush1.msra.mxu0 0.0
      %7925 = vmatprep.subr.mxu0 0.0
      %7926 = vmatpush1.msra.mxu0 0.0
      %7927 = vmatprep.subr.mxu0 0.0
      %7928 = vmatpush1.msra.mxu0 0.0
      %7929 = vmatprep.subr.mxu0 0.0
      %7930 = vmatpush1.msra.mxu0 0.0
      %7931 = vmatprep.subr.mxu0 0.0
      %7932 = vmatpush1.msra.mxu0 0.0
      %7933 = vmatprep.subr.mxu0 0.0
      %7934 = vmatpush1.msra.mxu0 0.0
      %7935 = vmatprep.subr.mxu0 0.0
      %7936 = vmatpush1.msra.mxu0 0.0
      %7937 = vmatprep.subr.mxu0 0.0
      %7938 = vmatpush1.msra.mxu0 0.0
      %7939 = vmatprep.subr.mxu0 0.0
      %7940 = vmatpush1.msra.mxu0 0.0
      %7941 = vmatprep.subr.mxu0 0.0
      %7942 = vmatpush1.msra.mxu0 0.0
      %7943 = vmatprep.subr.mxu0 0.0
      %7944 = vmatpush1.msra.mxu0 0.0
      %7945 = vmatprep.subr.mxu0 0.0
      %7946 = vmatpush1.msra.mxu0 0.0
      %7947 = vmatprep.subr.mxu0 0.0
      %7948 = vmatpush1.msra.mxu0 0.0
      %7949 = vmatprep.subr.mxu0 0.0
      %7950 = vmatpush1.msra.mxu0 0.0
      %7951 = vmatprep.subr.mxu0 0.0
      %7952 = vmatpush1.msra.mxu0 0.0
      %7953 = vmatprep.subr.mxu0 0.0
      %7954 = vmatpush1.msra.mxu0 0.0
      %7955 = vmatprep.subr.mxu0 0.0
      %7956 = vmatpush1.msra.mxu0 0.0
      %7957 = vmatprep.subr.mxu0 0.0
      %7958 = vmatpush1.msra.mxu0 0.0
      %7959 = vmatprep.subr.mxu0 0.0
      %7960 = vmatpush1.msra.mxu0 0.0
      %7961 = vmatprep.subr.mxu0 0.0
      %7962 = vmatpush1.msra.mxu0 0.0
      %7963 = vmatprep.subr.mxu0 0.0
      %7964 = vmatpush1.msra.mxu0 0.0
      %7965 = vmatprep.subr.mxu0 0.0
      %7966 = vmatpush1.msra.mxu0 0.0
      %7967 = vmatprep.subr.mxu0 0.0
      %7968 = vmatpush1.msra.mxu0 0.0
      %7969 = vmatprep.subr.mxu0 0.0
      %7970 = vmatpush1.msra.mxu0 0.0
      %7971 = vmatprep.subr.mxu0 0.0
      %7972 = vmatpush1.msra.mxu0 0.0
      %7973 = vmatprep.subr.mxu0 0.0
      %7974 = vmatpush1.msra.mxu0 0.0
      %7975 = vmatprep.subr.mxu0 0.0
      %7976 = vmatpush1.msra.mxu0 0.0
      %7977 = vmatprep.mubr.f32.mxu0 0.0
      %7978 = vmatmul.mubr.f32.gmra.mrb[0].mxu0 %v7815
      %v7979 = vpop.f32.mrb[0].mxu0
      %v7980 = vadd.f32 0.0, %v7979
      %v7981 = vpop.f32.mrb[0].mxu0
      %7982 = vmatprep.mubr.f32.mxu0 0.0
      %7983 = vmatmul.mubr.f32.gmra.mrb[0].mxu0 %v7818
      %v7984 = vpop.f32.mrb[0].mxu0
      %v7985 = vadd.f32 0.0, %v7984
      %v7986 = vpop.f32.mrb[0].mxu0
      %7987 = vmatprep.mubr.f32.mxu0 0.0
      %7988 = vmatmul.mubr.f32.gmra.mrb[0].mxu0 %v7821
      %v7989 = vpop.f32.mrb[0].mxu0
      %v7990 = vadd.f32 0.0, %v7989
      %v7991 = vpop.f32.mrb[0].mxu0
      %7992 = vmatprep.mubr.f32.mxu0 0.0
      %7993 = vmatmul.mubr.f32.gmra.mrb[0].mxu0 %v7824
      %v7994 = vpop.f32.mrb[0].mxu0
      %v7995 = vadd.f32 0.0, %v7994
      %v7996 = vpop.f32.mrb[0].mxu0
      %7997 = vmatprep.mubr.f32.mxu0 0.0
      %7998 = vmatmul.mubr.f32.gmra.mrb[0].mxu0 %v7827
      %v7999 = vpop.f32.mrb[0].mxu0
      %v8000 = vadd.f32 0.0, %v7999
      %v8001 = vpop.f32.mrb[0].mxu0
      %8002 = vmatprep.mubr.f32.mxu0 0.0
      %8003 = vmatmul.mubr.f32.gmra.mrb[0].mxu0 %v7830
      %v8004 = vpop.f32.mrb[0].mxu0
      %v8005 = vadd.f32 0.0, %v8004
      %v8006 = vpop.f32.mrb[0].mxu0
      %8007 = vmatprep.mubr.f32.mxu0 0.0
      %8008 = vmatmul.mubr.f32.gmra.mrb[0].mxu0 %v7833
      %v8009 = vpop.f32.mrb[0].mxu0
      %v8010 = vadd.f32 0.0, %v8009
      %v8011 = vpop.f32.mrb[0].mxu0
      %8012 = vmatprep.mubr.f32.mxu0 0.0
      %8013 = vmatmul.mubr.f32.gmra.mrb[0].mxu0 %v7836
      %v8014 = vpop.f32.mrb[0].mxu0
      %v8015 = vadd.f32 0.0, %v8014
      %v8016 = vpop.f32.mrb[0].mxu0
      %8017 = vmatprep.mubr.f32.mxu0 0.0
      %8018 = vmatmul.mubr.f32.gmra.mrb[0].mxu0 %v7839
      %v8019 = vpop.f32.mrb[0].mxu0
      %v8020 = vadd.f32 0.0, %v8019
      %v8021 = vpop.f32.mrb[0].mxu0
      %8022 = vmatprep.mubr.f32.mxu0 0.0
      %8023 = vmatmul.mubr.f32.gmra.mrb[0].mxu0 %v7842
      %v8024 = vpop.f32.mrb[0].mxu0
      %v8025 = vadd.f32 0.0, %v8024
      %v8026 = vpop.f32.mrb[0].mxu0
      %8027 = vmatprep.mubr.f32.mxu0 0.0
      %8028 = vmatmul.mubr.f32.gmra.mrb[0].mxu0 %v7845
      %v8029 = vpop.f32.mrb[0].mxu0
      %v8030 = vadd.f32 0.0, %v8029
      %v8031 = vpop.f32.mrb[0].mxu0
      %8032 = vmatprep.mubr.f32.mxu0 0.0
      %8033 = vmatmul.mubr.f32.gmra.mrb[0].mxu0 %v7848
      %v8034 = vpop.f32.mrb[0].mxu0
      %v8035 = vadd.f32 0.0, %v8034
      %v8036 = vpop.f32.mrb[0].mxu0
      %8037 = vmatprep.mubr.f32.mxu0 0.0
      %8038 = vmatmul.mubr.f32.gmra.mrb[0].mxu0 %v7851
      %v8039 = vpop.f32.mrb[0].mxu0
      %v8040 = vadd.f32 0.0, %v8039
      %v8041 = vpop.f32.mrb[0].mxu0
      %8042 = vmatprep.mubr.f32.mxu0 0.0
      %8043 = vmatmul.mubr.f32.gmra.mrb[0].mxu0 %v7854
      %v8044 = vpop.f32.mrb[0].mxu0
      %v8045 = vadd.f32 0.0, %v8044
      %v8046 = vpop.f32.mrb[0].mxu0
      %8047 = vmatprep.mubr.f32.mxu0 0.0
      %8048 = vmatmul.mubr.f32.gmra.mrb[0].mxu0 %v7857
      %v8049 = vpop.f32.mrb[0].mxu0
      %v8050 = vadd.f32 0.0, %v8049
      %v8051 = vpop.f32.mrb[0].mxu0
      %8052 = vmatprep.mubr.f32.mxu0 0.0
      %8053 = vmatmul.mubr.f32.gmra.mrb[0].mxu0 %v7860
      %v8054 = vpop.f32.mrb[0].mxu0
      %v8055 = vadd.f32 0.0, %v8054
      %v8056 = vpop.f32.mrb[0].mxu0
      %8057 = vmatprep.mubr.f32.mxu0 0.0
      %8058 = vmatmul.mubr.f32.gmra.mrb[0].mxu0 %v7863
      %v8059 = vpop.f32.mrb[0].mxu0
      %v8060 = vadd.f32 0.0, %v8059
      %v8061 = vpop.f32.mrb[0].mxu0
      %8062 = vmatprep.mubr.f32.mxu0 0.0
      %8063 = vmatmul.mubr.f32.gmra.mrb[0].mxu0 %v7866
      %v8064 = vpop.f32.mrb[0].mxu0
      %v8065 = vadd.f32 0.0, %v8064
      %v8066 = vpop.f32.mrb[0].mxu0
      %8067 = vmatprep.mubr.f32.mxu0 0.0
      %8068 = vmatmul.mubr.f32.gmra.mrb[0].mxu0 %v7869
      %v8069 = vpop.f32.mrb[0].mxu0
      %v8070 = vadd.f32 0.0, %v8069
      %v8071 = vpop.f32.mrb[0].mxu0
      %8072 = vmatprep.mubr.f32.mxu0 0.0
      %8073 = vmatmul.mubr.f32.gmra.mrb[0].mxu0 %v7872
      %v8074 = vpop.f32.mrb[0].mxu0
      %v8075 = vadd.f32 0.0, %v8074
      %v8076 = vpop.f32.mrb[0].mxu0
      %8077 = vmatprep.mubr.f32.mxu0 0.0
      %8078 = vmatmul.mubr.f32.gmra.mrb[0].mxu0 %v7875
      %v8079 = vpop.f32.mrb[0].mxu0
      %v8080 = vadd.f32 0.0, %v8079
      %v8081 = vpop.f32.mrb[0].mxu0
      %8082 = vmatprep.mubr.f32.mxu0 0.0
      %8083 = vmatmul.mubr.f32.gmra.mrb[0].mxu0 %v7878
      %v8084 = vpop.f32.mrb[0].mxu0
      %v8085 = vadd.f32 0.0, %v8084
      %v8086 = vpop.f32.mrb[0].mxu0
      %8087 = vmatprep.mubr.f32.mxu0 0.0
      %8088 = vmatmul.mubr.f32.gmra.mrb[0].mxu0 %v7881
      %v8089 = vpop.f32.mrb[0].mxu0
      %v8090 = vadd.f32 0.0, %v8089
      %v8091 = vpop.f32.mrb[0].mxu0
      %8092 = vmatprep.mubr.f32.mxu0 0.0
      %8093 = vmatmul.mubr.f32.gmra.mrb[0].mxu0 %v7884
      %v8094 = vpop.f32.mrb[0].mxu0
      %v8095 = vadd.f32 0.0, %v8094
      %v8096 = vpop.f32.mrb[0].mxu0
      %8097 = vmatprep.mubr.f32.mxu0 0.0
      %8098 = vmatmul.mubr.f32.gmra.mrb[0].mxu0 %v7887
      %v8099 = vpop.f32.mrb[0].mxu0
      %v8100 = vadd.f32 0.0, %v8099
      %v8101 = vpop.f32.mrb[0].mxu0
      %8102 = vmatprep.mubr.f32.mxu0 0.0
      %8103 = vmatmul.mubr.f32.gmra.mrb[0].mxu0 %v7890
      %v8104 = vpop.f32.mrb[0].mxu0
      %v8105 = vadd.f32 0.0, %v8104
      %v8106 = vpop.f32.mrb[0].mxu0
      %8107 = vmatprep.mubr.f32.mxu0 0.0
      %8108 = vmatmul.mubr.f32.gmra.mrb[0].mxu0 %v7893
      %v8109 = vpop.f32.mrb[0].mxu0
      %v8110 = vadd.f32 0.0, %v8109
      %v8111 = vpop.f32.mrb[0].mxu0
      %8112 = vmatprep.mubr.f32.mxu0 0.0
      %8113 = vmatmul.mubr.f32.gmra.mrb[0].mxu0 %v7896
      %v8114 = vpop.f32.mrb[0].mxu0
      %v8115 = vadd.f32 0.0, %v8114
      %v8116 = vpop.f32.mrb[0].mxu0
      %8117 = vmatprep.mubr.f32.mxu0 0.0
      %8118 = vmatmul.mubr.f32.gmra.mrb[0].mxu0 %v7899
      %v8119 = vpop.f32.mrb[0].mxu0
      %v8120 = vadd.f32 0.0, %v8119
      %v8121 = vpop.f32.mrb[0].mxu0
      %8122 = vmatprep.mubr.f32.mxu0 0.0
      %8123 = vmatmul.mubr.f32.gmra.mrb[0].mxu0 %v7902
      %v8124 = vpop.f32.mrb[0].mxu0
      %v8125 = vadd.f32 0.0, %v8124
      %v8126 = vpop.f32.mrb[0].mxu0
      %8127 = vmatprep.mubr.f32.mxu0 0.0
      %8128 = vmatmul.mubr.f32.gmra.mrb[0].mxu0 %v7905
      %v8129 = vpop.f32.mrb[0].mxu0
      %v8130 = vadd.f32 0.0, %v8129
      %v8131 = vpop.f32.mrb[0].mxu0
      %8132 = vmatprep.mubr.f32.mxu0 0.0
      %8133 = vmatmul.mubr.f32.gmra.mrb[0].mxu0 %v7908
      %v8134 = vpop.f32.mrb[0].mxu0
      %v8135 = vadd.f32 0.0, %v8134
      %v8136 = vpop.f32.mrb[0].mxu0
      %8137 = vdwg.mxu0
      %v8139 = vsel %vm353, %v7747, 0
      %v8142 = vsel %vm353, %v7748, 0
      %v8145 = vsel %vm353, %v7749, 0
      %v8148 = vsel %vm353, %v7750, 0
      %v8151 = vsel %vm353, %v7751, 0
      %v8154 = vsel %vm353, %v7752, 0
      %v8157 = vsel %vm353, %v7753, 0
      %v8160 = vsel %vm353, %v7754, 0
      %v8163 = vsel %vm353, %v7755, 0
      %v8166 = vsel %vm353, %v7756, 0
      %v8169 = vsel %vm353, %v7757, 0
      %v8172 = vsel %vm353, %v7758, 0
      %v8175 = vsel %vm353, %v7759, 0
      %v8178 = vsel %vm353, %v7760, 0
      %v8181 = vsel %vm353, %v7761, 0
      %v8184 = vsel %vm353, %v7762, 0
      %v8187 = vsel %vm353, %v7763, 0
      %v8190 = vsel %vm353, %v7764, 0
      %v8193 = vsel %vm353, %v7765, 0
      %v8196 = vsel %vm353, %v7766, 0
      %v8199 = vsel %vm353, %v7767, 0
      %v8202 = vsel %vm353, %v7768, 0
      %v8205 = vsel %vm353, %v7769, 0
      %v8208 = vsel %vm353, %v7770, 0
      %v8211 = vsel %vm353, %v7771, 0
      %v8214 = vsel %vm353, %v7772, 0
      %v8217 = vsel %vm353, %v7773, 0
      %v8220 = vsel %vm353, %v7774, 0
      %v8223 = vsel %vm353, %v7775, 0
      %v8226 = vsel %vm353, %v7776, 0
      %v8229 = vsel %vm353, %v7777, 0
      %v8232 = vsel %vm353, %v7778, 0
      %v8235 = vsel %vm809, %v7779, 0
      %8237 = vmatprep.subr.mxu0 0.0
      %8238 = vmatpush1.msra.mxu0 %v8235
      %8239 = vmatprep.subr.mxu0 0.0
      %8240 = vmatpush1.msra.mxu0 0.0
      %8241 = vmatprep.subr.mxu0 0.0
      %8242 = vmatpush1.msra.mxu0 0.0
      %8243 = vmatprep.subr.mxu0 0.0
      %8244 = vmatpush1.msra.mxu0 0.0
      %8245 = vmatprep.subr.mxu0 0.0
      %8246 = vmatpush1.msra.mxu0 0.0
      %8247 = vmatprep.subr.mxu0 0.0
      %8248 = vmatpush1.msra.mxu0 0.0
      %8249 = vmatprep.subr.mxu0 0.0
      %8250 = vmatpush1.msra.mxu0 0.0
      %8251 = vmatprep.subr.mxu0 0.0
      %8252 = vmatpush1.msra.mxu0 0.0
      %8253 = vmatprep.subr.mxu0 0.0
      %8254 = vmatpush1.msra.mxu0 0.0
      %8255 = vmatprep.subr.mxu0 0.0
      %8256 = vmatpush1.msra.mxu0 0.0
      %8257 = vmatprep.subr.mxu0 0.0
      %8258 = vmatpush1.msra.mxu0 0.0
      %8259 = vmatprep.subr.mxu0 0.0
      %8260 = vmatpush1.msra.mxu0 0.0
      %8261 = vmatprep.subr.mxu0 0.0
      %8262 = vmatpush1.msra.mxu0 0.0
      %8263 = vmatprep.subr.mxu0 0.0
      %8264 = vmatpush1.msra.mxu0 0.0
      %8265 = vmatprep.subr.mxu0 0.0
      %8266 = vmatpush1.msra.mxu0 0.0
      %8267 = vmatprep.subr.mxu0 0.0
      %8268 = vmatpush1.msra.mxu0 0.0
      %8269 = vmatprep.subr.mxu0 0.0
      %8270 = vmatpush1.msra.mxu0 0.0
      %8271 = vmatprep.subr.mxu0 0.0
      %8272 = vmatpush1.msra.mxu0 0.0
      %8273 = vmatprep.subr.mxu0 0.0
      %8274 = vmatpush1.msra.mxu0 0.0
      %8275 = vmatprep.subr.mxu0 0.0
      %8276 = vmatpush1.msra.mxu0 0.0
      %8277 = vmatprep.subr.mxu0 0.0
      %8278 = vmatpush1.msra.mxu0 0.0
      %8279 = vmatprep.subr.mxu0 0.0
      %8280 = vmatpush1.msra.mxu0 0.0
      %8281 = vmatprep.subr.mxu0 0.0
      %8282 = vmatpush1.msra.mxu0 0.0
      %8283 = vmatprep.subr.mxu0 0.0
      %8284 = vmatpush1.msra.mxu0 0.0
      %8285 = vmatprep.subr.mxu0 0.0
      %8286 = vmatpush1.msra.mxu0 0.0
      %8287 = vmatprep.subr.mxu0 0.0
      %8288 = vmatpush1.msra.mxu0 0.0
      %8289 = vmatprep.subr.mxu0 0.0
      %8290 = vmatpush1.msra.mxu0 0.0
      %8291 = vmatprep.subr.mxu0 0.0
      %8292 = vmatpush1.msra.mxu0 0.0
      %8293 = vmatprep.subr.mxu0 0.0
      %8294 = vmatpush1.msra.mxu0 0.0
      %8295 = vmatprep.subr.mxu0 0.0
      %8296 = vmatpush1.msra.mxu0 0.0
      %8297 = vmatprep.subr.mxu0 0.0
      %8298 = vmatpush1.msra.mxu0 0.0
      %8299 = vmatprep.subr.mxu0 0.0
      %8300 = vmatpush1.msra.mxu0 0.0
      %8301 = vmatprep.mubr.f32.mxu0 0.0
      %8302 = vmatmul.mubr.f32.gmra.mrb[0].mxu0 %v8139
      %v8303 = vpop.f32.mrb[0].mxu0
      %v8304 = vadd.f32 %v7980, %v8303
      %v8305 = vpop.f32.mrb[0].mxu0
      %8306 = vmatprep.mubr.f32.mxu0 0.0
      %8307 = vmatmul.mubr.f32.gmra.mrb[0].mxu0 %v8142
      %v8308 = vpop.f32.mrb[0].mxu0
      %v8309 = vadd.f32 %v7985, %v8308
      %v8310 = vpop.f32.mrb[0].mxu0
      %8311 = vmatprep.mubr.f32.mxu0 0.0
      %8312 = vmatmul.mubr.f32.gmra.mrb[0].mxu0 %v8145
      %v8313 = vpop.f32.mrb[0].mxu0
      %v8314 = vadd.f32 %v7990, %v8313
      %v8315 = vpop.f32.mrb[0].mxu0
      %8316 = vmatprep.mubr.f32.mxu0 0.0
      %8317 = vmatmul.mubr.f32.gmra.mrb[0].mxu0 %v8148
      %v8318 = vpop.f32.mrb[0].mxu0
      %v8319 = vadd.f32 %v7995, %v8318
      %v8320 = vpop.f32.mrb[0].mxu0
      %8321 = vmatprep.mubr.f32.mxu0 0.0
      %8322 = vmatmul.mubr.f32.gmra.mrb[0].mxu0 %v8151
      %v8323 = vpop.f32.mrb[0].mxu0
      %v8324 = vadd.f32 %v8000, %v8323
      %v8325 = vpop.f32.mrb[0].mxu0
      %8326 = vmatprep.mubr.f32.mxu0 0.0
      %8327 = vmatmul.mubr.f32.gmra.mrb[0].mxu0 %v8154
      %v8328 = vpop.f32.mrb[0].mxu0
      %v8329 = vadd.f32 %v8005, %v8328
      %v8330 = vpop.f32.mrb[0].mxu0
      %8331 = vmatprep.mubr.f32.mxu0 0.0
      %8332 = vmatmul.mubr.f32.gmra.mrb[0].mxu0 %v8157
      %v8333 = vpop.f32.mrb[0].mxu0
      %v8334 = vadd.f32 %v8010, %v8333
      %v8335 = vpop.f32.mrb[0].mxu0
      %8336 = vmatprep.mubr.f32.mxu0 0.0
      %8337 = vmatmul.mubr.f32.gmra.mrb[0].mxu0 %v8160
      %v8338 = vpop.f32.mrb[0].mxu0
      %v8339 = vadd.f32 %v8015, %v8338
      %v8340 = vpop.f32.mrb[0].mxu0
      %8341 = vmatprep.mubr.f32.mxu0 0.0
      %8342 = vmatmul.mubr.f32.gmra.mrb[0].mxu0 %v8163
      %v8343 = vpop.f32.mrb[0].mxu0
      %v8344 = vadd.f32 %v8020, %v8343
      %v8345 = vpop.f32.mrb[0].mxu0
      %8346 = vmatprep.mubr.f32.mxu0 0.0
      %8347 = vmatmul.mubr.f32.gmra.mrb[0].mxu0 %v8166
      %v8348 = vpop.f32.mrb[0].mxu0
      %v8349 = vadd.f32 %v8025, %v8348
      %v8350 = vpop.f32.mrb[0].mxu0
      %8351 = vmatprep.mubr.f32.mxu0 0.0
      %8352 = vmatmul.mubr.f32.gmra.mrb[0].mxu0 %v8169
      %v8353 = vpop.f32.mrb[0].mxu0
      %v8354 = vadd.f32 %v8030, %v8353
      %v8355 = vpop.f32.mrb[0].mxu0
      %8356 = vmatprep.mubr.f32.mxu0 0.0
      %8357 = vmatmul.mubr.f32.gmra.mrb[0].mxu0 %v8172
      %v8358 = vpop.f32.mrb[0].mxu0
      %v8359 = vadd.f32 %v8035, %v8358
      %v8360 = vpop.f32.mrb[0].mxu0
      %8361 = vmatprep.mubr.f32.mxu0 0.0
      %8362 = vmatmul.mubr.f32.gmra.mrb[0].mxu0 %v8175
      %v8363 = vpop.f32.mrb[0].mxu0
      %v8364 = vadd.f32 %v8040, %v8363
      %v8365 = vpop.f32.mrb[0].mxu0
      %8366 = vmatprep.mubr.f32.mxu0 0.0
      %8367 = vmatmul.mubr.f32.gmra.mrb[0].mxu0 %v8178
      %v8368 = vpop.f32.mrb[0].mxu0
      %v8369 = vadd.f32 %v8045, %v8368
      %v8370 = vpop.f32.mrb[0].mxu0
      %8371 = vmatprep.mubr.f32.mxu0 0.0
      %8372 = vmatmul.mubr.f32.gmra.mrb[0].mxu0 %v8181
      %v8373 = vpop.f32.mrb[0].mxu0
      %v8374 = vadd.f32 %v8050, %v8373
      %v8375 = vpop.f32.mrb[0].mxu0
      %8376 = vmatprep.mubr.f32.mxu0 0.0
      %8377 = vmatmul.mubr.f32.gmra.mrb[0].mxu0 %v8184
      %v8378 = vpop.f32.mrb[0].mxu0
      %v8379 = vadd.f32 %v8055, %v8378
      %v8380 = vpop.f32.mrb[0].mxu0
      %8381 = vmatprep.mubr.f32.mxu0 0.0
      %8382 = vmatmul.mubr.f32.gmra.mrb[0].mxu0 %v8187
      %v8383 = vpop.f32.mrb[0].mxu0
      %v8384 = vadd.f32 %v8060, %v8383
      %v8385 = vpop.f32.mrb[0].mxu0
      %8386 = vmatprep.mubr.f32.mxu0 0.0
      %8387 = vmatmul.mubr.f32.gmra.mrb[0].mxu0 %v8190
      %v8388 = vpop.f32.mrb[0].mxu0
      %v8389 = vadd.f32 %v8065, %v8388
      %v8390 = vpop.f32.mrb[0].mxu0
      %8391 = vmatprep.mubr.f32.mxu0 0.0
      %8392 = vmatmul.mubr.f32.gmra.mrb[0].mxu0 %v8193
      %v8393 = vpop.f32.mrb[0].mxu0
      %v8394 = vadd.f32 %v8070, %v8393
      %v8395 = vpop.f32.mrb[0].mxu0
      %8396 = vmatprep.mubr.f32.mxu0 0.0
      %8397 = vmatmul.mubr.f32.gmra.mrb[0].mxu0 %v8196
      %v8398 = vpop.f32.mrb[0].mxu0
      %v8399 = vadd.f32 %v8075, %v8398
      %v8400 = vpop.f32.mrb[0].mxu0
      %8401 = vmatprep.mubr.f32.mxu0 0.0
      %8402 = vmatmul.mubr.f32.gmra.mrb[0].mxu0 %v8199
      %v8403 = vpop.f32.mrb[0].mxu0
      %v8404 = vadd.f32 %v8080, %v8403
      %v8405 = vpop.f32.mrb[0].mxu0
      %8406 = vmatprep.mubr.f32.mxu0 0.0
      %8407 = vmatmul.mubr.f32.gmra.mrb[0].mxu0 %v8202
      %v8408 = vpop.f32.mrb[0].mxu0
      %v8409 = vadd.f32 %v8085, %v8408
      %v8410 = vpop.f32.mrb[0].mxu0
      %8411 = vmatprep.mubr.f32.mxu0 0.0
      %8412 = vmatmul.mubr.f32.gmra.mrb[0].mxu0 %v8205
      %v8413 = vpop.f32.mrb[0].mxu0
      %v8414 = vadd.f32 %v8090, %v8413
      %v8415 = vpop.f32.mrb[0].mxu0
      %8416 = vmatprep.mubr.f32.mxu0 0.0
      %8417 = vmatmul.mubr.f32.gmra.mrb[0].mxu0 %v8208
      %v8418 = vpop.f32.mrb[0].mxu0
      %v8419 = vadd.f32 %v8095, %v8418
      %v8420 = vpop.f32.mrb[0].mxu0
      %8421 = vmatprep.mubr.f32.mxu0 0.0
      %8422 = vmatmul.mubr.f32.gmra.mrb[0].mxu0 %v8211
      %v8423 = vpop.f32.mrb[0].mxu0
      %v8424 = vadd.f32 %v8100, %v8423
      %v8425 = vpop.f32.mrb[0].mxu0
      %8426 = vmatprep.mubr.f32.mxu0 0.0
      %8427 = vmatmul.mubr.f32.gmra.mrb[0].mxu0 %v8214
      %v8428 = vpop.f32.mrb[0].mxu0
      %v8429 = vadd.f32 %v8105, %v8428
      %v8430 = vpop.f32.mrb[0].mxu0
      %8431 = vmatprep.mubr.f32.mxu0 0.0
      %8432 = vmatmul.mubr.f32.gmra.mrb[0].mxu0 %v8217
      %v8433 = vpop.f32.mrb[0].mxu0
      %v8434 = vadd.f32 %v8110, %v8433
      %v8435 = vpop.f32.mrb[0].mxu0
      %8436 = vmatprep.mubr.f32.mxu0 0.0
      %8437 = vmatmul.mubr.f32.gmra.mrb[0].mxu0 %v8220
      %v8438 = vpop.f32.mrb[0].mxu0
      %v8439 = vadd.f32 %v8115, %v8438
      %v8440 = vpop.f32.mrb[0].mxu0
      %8441 = vmatprep.mubr.f32.mxu0 0.0
      %8442 = vmatmul.mubr.f32.gmra.mrb[0].mxu0 %v8223
      %v8443 = vpop.f32.mrb[0].mxu0
      %v8444 = vadd.f32 %v8120, %v8443
      %v8445 = vpop.f32.mrb[0].mxu0
      %8446 = vmatprep.mubr.f32.mxu0 0.0
      %8447 = vmatmul.mubr.f32.gmra.mrb[0].mxu0 %v8226
      %v8448 = vpop.f32.mrb[0].mxu0
      %v8449 = vadd.f32 %v8125, %v8448
      %v8450 = vpop.f32.mrb[0].mxu0
      %8451 = vmatprep.mubr.f32.mxu0 0.0
      %8452 = vmatmul.mubr.f32.gmra.mrb[0].mxu0 %v8229
      %v8453 = vpop.f32.mrb[0].mxu0
      %v8454 = vadd.f32 %v8130, %v8453
      %v8455 = vpop.f32.mrb[0].mxu0
      %8456 = vmatprep.mubr.f32.mxu0 0.0
      %8457 = vmatmul.mubr.f32.gmra.mrb[0].mxu0 %v8232
      %v8458 = vpop.f32.mrb[0].mxu0
      %v8459 = vadd.f32 %v8135, %v8458
      %v8460 = vpop.f32.mrb[0].mxu0
      %8461 = vdwg.mxu0
      %v8462 = vld [vmem:[#allocation4 + $0x2] sm:$0xff]
      %v8463 = vld [vmem:[#allocation4 + $0xa] sm:$0xff]
      %v8464 = vld [vmem:[#allocation4 + $0x1a] sm:$0xff]
      %v8465 = vld [vmem:[#allocation4 + $0x22] sm:$0xff]
      %v8466 = vld [vmem:[#allocation4 + $0x32] sm:$0xff]
      %v8467 = vld [vmem:[#allocation4 + $0x3a] sm:$0xff]
      %v8468 = vld [vmem:[#allocation4 + $0x4a] sm:$0xff]
      %v8469 = vld [vmem:[#allocation4 + $0x52] sm:$0xff]
      %v8470 = vld [vmem:[#allocation4 + $0x62] sm:$0xff]
      %v8471 = vld [vmem:[#allocation4 + $0x6a] sm:$0xff]
      %v8472 = vld [vmem:[#allocation4 + $0x7a] sm:$0xff]
      %v8473 = vld [vmem:[#allocation4 + $0x82] sm:$0xff]
      %v8474 = vld [vmem:[#allocation4 + $0x92] sm:$0xff]
      %v8475 = vld [vmem:[#allocation4 + $0x9a] sm:$0xff]
      %v8476 = vld [vmem:[#allocation4 + $0xaa] sm:$0xff]
      %v8477 = vld [vmem:[#allocation4 + $0xb2] sm:$0xff]
      %v8478 = vld [vmem:[#allocation4 + $0xc2] sm:$0xff]
      %v8479 = vld [vmem:[#allocation4 + $0xca] sm:$0xff]
      %v8480 = vld [vmem:[#allocation4 + $0xda] sm:$0xff]
      %v8481 = vld [vmem:[#allocation4 + $0xe2] sm:$0xff]
      %v8482 = vld [vmem:[#allocation4 + $0xf2] sm:$0xff]
      %v8483 = vld [vmem:[#allocation4 + $0xfa] sm:$0xff]
      %v8484 = vld [vmem:[#allocation4 + $0x10a] sm:$0xff]
      %v8485 = vld [vmem:[#allocation4 + $0x112] sm:$0xff]
      %v8486 = vld [vmem:[#allocation4 + $0x122] sm:$0xff]
      %v8487 = vld [vmem:[#allocation4 + $0x12a] sm:$0xff]
      %v8488 = vld [vmem:[#allocation4 + $0x13a] sm:$0xff]
      %v8489 = vld [vmem:[#allocation4 + $0x142] sm:$0xff]
      %v8490 = vld [vmem:[#allocation4 + $0x152] sm:$0xff]
      %v8491 = vld [vmem:[#allocation4 + $0x15a] sm:$0xff]
      %v8492 = vld [vmem:[#allocation4 + $0x16a] sm:$0xff]
      %v8493 = vld [vmem:[#allocation4 + $0x172] sm:$0xff]
      %s8494 = scalar_lea.vmem %s6, 8
      %v8495 = vld [vmem:[%s8494] sm:$0xf]
      %v8497 = vsel %vm353, %v8462, 0
      %v8500 = vsel %vm353, %v8463, 0
      %v8503 = vsel %vm353, %v8464, 0
      %v8506 = vsel %vm353, %v8465, 0
      %v8509 = vsel %vm353, %v8466, 0
      %v8512 = vsel %vm353, %v8467, 0
      %v8515 = vsel %vm353, %v8468, 0
      %v8518 = vsel %vm353, %v8469, 0
      %v8521 = vsel %vm353, %v8470, 0
      %v8524 = vsel %vm353, %v8471, 0
      %v8527 = vsel %vm353, %v8472, 0
      %v8530 = vsel %vm353, %v8473, 0
      %v8533 = vsel %vm353, %v8474, 0
      %v8536 = vsel %vm353, %v8475, 0
      %v8539 = vsel %vm353, %v8476, 0
      %v8542 = vsel %vm353, %v8477, 0
      %v8545 = vsel %vm353, %v8478, 0
      %v8548 = vsel %vm353, %v8479, 0
      %v8551 = vsel %vm353, %v8480, 0
      %v8554 = vsel %vm353, %v8481, 0
      %v8557 = vsel %vm353, %v8482, 0
      %v8560 = vsel %vm353, %v8483, 0
      %v8563 = vsel %vm353, %v8484, 0
      %v8566 = vsel %vm353, %v8485, 0
      %v8569 = vsel %vm353, %v8486, 0
      %v8572 = vsel %vm353, %v8487, 0
      %v8575 = vsel %vm353, %v8488, 0
      %v8578 = vsel %vm353, %v8489, 0
      %v8581 = vsel %vm353, %v8490, 0
      %v8584 = vsel %vm353, %v8491, 0
      %v8587 = vsel %vm353, %v8492, 0
      %v8590 = vsel %vm353, %v8493, 0
      %v8593 = vsel %vm809, %v8495, 0
      %8595 = vmatprep.subr.mxu0 0.0
      %8596 = vmatpush1.msra.mxu0 %v8593
      %8597 = vmatprep.subr.mxu0 0.0
      %8598 = vmatpush1.msra.mxu0 0.0
      %8599 = vmatprep.subr.mxu0 0.0
      %8600 = vmatpush1.msra.mxu0 0.0
      %8601 = vmatprep.subr.mxu0 0.0
      %8602 = vmatpush1.msra.mxu0 0.0
      %8603 = vmatprep.subr.mxu0 0.0
      %8604 = vmatpush1.msra.mxu0 0.0
      %8605 = vmatprep.subr.mxu0 0.0
      %8606 = vmatpush1.msra.mxu0 0.0
      %8607 = vmatprep.subr.mxu0 0.0
      %8608 = vmatpush1.msra.mxu0 0.0
      %8609 = vmatprep.subr.mxu0 0.0
      %8610 = vmatpush1.msra.mxu0 0.0
      %8611 = vmatprep.subr.mxu0 0.0
      %8612 = vmatpush1.msra.mxu0 0.0
      %8613 = vmatprep.subr.mxu0 0.0
      %8614 = vmatpush1.msra.mxu0 0.0
      %8615 = vmatprep.subr.mxu0 0.0
      %8616 = vmatpush1.msra.mxu0 0.0
      %8617 = vmatprep.subr.mxu0 0.0
      %8618 = vmatpush1.msra.mxu0 0.0
      %8619 = vmatprep.subr.mxu0 0.0
      %8620 = vmatpush1.msra.mxu0 0.0
      %8621 = vmatprep.subr.mxu0 0.0
      %8622 = vmatpush1.msra.mxu0 0.0
      %8623 = vmatprep.subr.mxu0 0.0
      %8624 = vmatpush1.msra.mxu0 0.0
      %8625 = vmatprep.subr.mxu0 0.0
      %8626 = vmatpush1.msra.mxu0 0.0
      %8627 = vmatprep.subr.mxu0 0.0
      %8628 = vmatpush1.msra.mxu0 0.0
      %8629 = vmatprep.subr.mxu0 0.0
      %8630 = vmatpush1.msra.mxu0 0.0
      %8631 = vmatprep.subr.mxu0 0.0
      %8632 = vmatpush1.msra.mxu0 0.0
      %8633 = vmatprep.subr.mxu0 0.0
      %8634 = vmatpush1.msra.mxu0 0.0
      %8635 = vmatprep.subr.mxu0 0.0
      %8636 = vmatpush1.msra.mxu0 0.0
      %8637 = vmatprep.subr.mxu0 0.0
      %8638 = vmatpush1.msra.mxu0 0.0
      %8639 = vmatprep.subr.mxu0 0.0
      %8640 = vmatpush1.msra.mxu0 0.0
      %8641 = vmatprep.subr.mxu0 0.0
      %8642 = vmatpush1.msra.mxu0 0.0
      %8643 = vmatprep.subr.mxu0 0.0
      %8644 = vmatpush1.msra.mxu0 0.0
      %8645 = vmatprep.subr.mxu0 0.0
      %8646 = vmatpush1.msra.mxu0 0.0
      %8647 = vmatprep.subr.mxu0 0.0
      %8648 = vmatpush1.msra.mxu0 0.0
      %8649 = vmatprep.subr.mxu0 0.0
      %8650 = vmatpush1.msra.mxu0 0.0
      %8651 = vmatprep.subr.mxu0 0.0
      %8652 = vmatpush1.msra.mxu0 0.0
      %8653 = vmatprep.subr.mxu0 0.0
      %8654 = vmatpush1.msra.mxu0 0.0
      %8655 = vmatprep.subr.mxu0 0.0
      %8656 = vmatpush1.msra.mxu0 0.0
      %8657 = vmatprep.subr.mxu0 0.0
      %8658 = vmatpush1.msra.mxu0 0.0
      %8659 = vmatprep.mubr.f32.mxu0 0.0
      %8660 = vmatmul.mubr.f32.gmra.mrb[0].mxu0 %v8497
      %v8661 = vpop.f32.mrb[0].mxu0
      %v8662 = vadd.f32 0.0, %v8661
      %v8663 = vpop.f32.mrb[0].mxu0
      %8664 = vmatprep.mubr.f32.mxu0 0.0
      %8665 = vmatmul.mubr.f32.gmra.mrb[0].mxu0 %v8500
      %v8666 = vpop.f32.mrb[0].mxu0
      %v8667 = vadd.f32 0.0, %v8666
      %v8668 = vpop.f32.mrb[0].mxu0
      %8669 = vmatprep.mubr.f32.mxu0 0.0
      %8670 = vmatmul.mubr.f32.gmra.mrb[0].mxu0 %v8503
      %v8671 = vpop.f32.mrb[0].mxu0
      %v8672 = vadd.f32 0.0, %v8671
      %v8673 = vpop.f32.mrb[0].mxu0
      %8674 = vmatprep.mubr.f32.mxu0 0.0
      %8675 = vmatmul.mubr.f32.gmra.mrb[0].mxu0 %v8506
      %v8676 = vpop.f32.mrb[0].mxu0
      %v8677 = vadd.f32 0.0, %v8676
      %v8678 = vpop.f32.mrb[0].mxu0
      %8679 = vmatprep.mubr.f32.mxu0 0.0
      %8680 = vmatmul.mubr.f32.gmra.mrb[0].mxu0 %v8509
      %v8681 = vpop.f32.mrb[0].mxu0
      %v8682 = vadd.f32 0.0, %v8681
      %v8683 = vpop.f32.mrb[0].mxu0
      %8684 = vmatprep.mubr.f32.mxu0 0.0
      %8685 = vmatmul.mubr.f32.gmra.mrb[0].mxu0 %v8512
      %v8686 = vpop.f32.mrb[0].mxu0
      %v8687 = vadd.f32 0.0, %v8686
      %v8688 = vpop.f32.mrb[0].mxu0
      %8689 = vmatprep.mubr.f32.mxu0 0.0
      %8690 = vmatmul.mubr.f32.gmra.mrb[0].mxu0 %v8515
      %v8691 = vpop.f32.mrb[0].mxu0
      %v8692 = vadd.f32 0.0, %v8691
      %v8693 = vpop.f32.mrb[0].mxu0
      %8694 = vmatprep.mubr.f32.mxu0 0.0
      %8695 = vmatmul.mubr.f32.gmra.mrb[0].mxu0 %v8518
      %v8696 = vpop.f32.mrb[0].mxu0
      %v8697 = vadd.f32 0.0, %v8696
      %v8698 = vpop.f32.mrb[0].mxu0
      %8699 = vmatprep.mubr.f32.mxu0 0.0
      %8700 = vmatmul.mubr.f32.gmra.mrb[0].mxu0 %v8521
      %v8701 = vpop.f32.mrb[0].mxu0
      %v8702 = vadd.f32 0.0, %v8701
      %v8703 = vpop.f32.mrb[0].mxu0
      %8704 = vmatprep.mubr.f32.mxu0 0.0
      %8705 = vmatmul.mubr.f32.gmra.mrb[0].mxu0 %v8524
      %v8706 = vpop.f32.mrb[0].mxu0
      %v8707 = vadd.f32 0.0, %v8706
      %v8708 = vpop.f32.mrb[0].mxu0
      %8709 = vmatprep.mubr.f32.mxu0 0.0
      %8710 = vmatmul.mubr.f32.gmra.mrb[0].mxu0 %v8527
      %v8711 = vpop.f32.mrb[0].mxu0
      %v8712 = vadd.f32 0.0, %v8711
      %v8713 = vpop.f32.mrb[0].mxu0
      %8714 = vmatprep.mubr.f32.mxu0 0.0
      %8715 = vmatmul.mubr.f32.gmra.mrb[0].mxu0 %v8530
      %v8716 = vpop.f32.mrb[0].mxu0
      %v8717 = vadd.f32 0.0, %v8716
      %v8718 = vpop.f32.mrb[0].mxu0
      %8719 = vmatprep.mubr.f32.mxu0 0.0
      %8720 = vmatmul.mubr.f32.gmra.mrb[0].mxu0 %v8533
      %v8721 = vpop.f32.mrb[0].mxu0
      %v8722 = vadd.f32 0.0, %v8721
      %v8723 = vpop.f32.mrb[0].mxu0
      %8724 = vmatprep.mubr.f32.mxu0 0.0
      %8725 = vmatmul.mubr.f32.gmra.mrb[0].mxu0 %v8536
      %v8726 = vpop.f32.mrb[0].mxu0
      %v8727 = vadd.f32 0.0, %v8726
      %v8728 = vpop.f32.mrb[0].mxu0
      %8729 = vmatprep.mubr.f32.mxu0 0.0
      %8730 = vmatmul.mubr.f32.gmra.mrb[0].mxu0 %v8539
      %v8731 = vpop.f32.mrb[0].mxu0
      %v8732 = vadd.f32 0.0, %v8731
      %v8733 = vpop.f32.mrb[0].mxu0
      %8734 = vmatprep.mubr.f32.mxu0 0.0
      %8735 = vmatmul.mubr.f32.gmra.mrb[0].mxu0 %v8542
      %v8736 = vpop.f32.mrb[0].mxu0
      %v8737 = vadd.f32 0.0, %v8736
      %v8738 = vpop.f32.mrb[0].mxu0
      %8739 = vmatprep.mubr.f32.mxu0 0.0
      %8740 = vmatmul.mubr.f32.gmra.mrb[0].mxu0 %v8545
      %v8741 = vpop.f32.mrb[0].mxu0
      %v8742 = vadd.f32 0.0, %v8741
      %v8743 = vpop.f32.mrb[0].mxu0
      %8744 = vmatprep.mubr.f32.mxu0 0.0
      %8745 = vmatmul.mubr.f32.gmra.mrb[0].mxu0 %v8548
      %v8746 = vpop.f32.mrb[0].mxu0
      %v8747 = vadd.f32 0.0, %v8746
      %v8748 = vpop.f32.mrb[0].mxu0
      %8749 = vmatprep.mubr.f32.mxu0 0.0
      %8750 = vmatmul.mubr.f32.gmra.mrb[0].mxu0 %v8551
      %v8751 = vpop.f32.mrb[0].mxu0
      %v8752 = vadd.f32 0.0, %v8751
      %v8753 = vpop.f32.mrb[0].mxu0
      %8754 = vmatprep.mubr.f32.mxu0 0.0
      %8755 = vmatmul.mubr.f32.gmra.mrb[0].mxu0 %v8554
      %v8756 = vpop.f32.mrb[0].mxu0
      %v8757 = vadd.f32 0.0, %v8756
      %v8758 = vpop.f32.mrb[0].mxu0
      %8759 = vmatprep.mubr.f32.mxu0 0.0
      %8760 = vmatmul.mubr.f32.gmra.mrb[0].mxu0 %v8557
      %v8761 = vpop.f32.mrb[0].mxu0
      %v8762 = vadd.f32 0.0, %v8761
      %v8763 = vpop.f32.mrb[0].mxu0
      %8764 = vmatprep.mubr.f32.mxu0 0.0
      %8765 = vmatmul.mubr.f32.gmra.mrb[0].mxu0 %v8560
      %v8766 = vpop.f32.mrb[0].mxu0
      %v8767 = vadd.f32 0.0, %v8766
      %v8768 = vpop.f32.mrb[0].mxu0
      %8769 = vmatprep.mubr.f32.mxu0 0.0
      %8770 = vmatmul.mubr.f32.gmra.mrb[0].mxu0 %v8563
      %v8771 = vpop.f32.mrb[0].mxu0
      %v8772 = vadd.f32 0.0, %v8771
      %v8773 = vpop.f32.mrb[0].mxu0
      %8774 = vmatprep.mubr.f32.mxu0 0.0
      %8775 = vmatmul.mubr.f32.gmra.mrb[0].mxu0 %v8566
      %v8776 = vpop.f32.mrb[0].mxu0
      %v8777 = vadd.f32 0.0, %v8776
      %v8778 = vpop.f32.mrb[0].mxu0
      %8779 = vmatprep.mubr.f32.mxu0 0.0
      %8780 = vmatmul.mubr.f32.gmra.mrb[0].mxu0 %v8569
      %v8781 = vpop.f32.mrb[0].mxu0
      %v8782 = vadd.f32 0.0, %v8781
      %v8783 = vpop.f32.mrb[0].mxu0
      %8784 = vmatprep.mubr.f32.mxu0 0.0
      %8785 = vmatmul.mubr.f32.gmra.mrb[0].mxu0 %v8572
      %v8786 = vpop.f32.mrb[0].mxu0
      %v8787 = vadd.f32 0.0, %v8786
      %v8788 = vpop.f32.mrb[0].mxu0
      %8789 = vmatprep.mubr.f32.mxu0 0.0
      %8790 = vmatmul.mubr.f32.gmra.mrb[0].mxu0 %v8575
      %v8791 = vpop.f32.mrb[0].mxu0
      %v8792 = vadd.f32 0.0, %v8791
      %v8793 = vpop.f32.mrb[0].mxu0
      %8794 = vmatprep.mubr.f32.mxu0 0.0
      %8795 = vmatmul.mubr.f32.gmra.mrb[0].mxu0 %v8578
      %v8796 = vpop.f32.mrb[0].mxu0
      %v8797 = vadd.f32 0.0, %v8796
      %v8798 = vpop.f32.mrb[0].mxu0
      %8799 = vmatprep.mubr.f32.mxu0 0.0
      %8800 = vmatmul.mubr.f32.gmra.mrb[0].mxu0 %v8581
      %v8801 = vpop.f32.mrb[0].mxu0
      %v8802 = vadd.f32 0.0, %v8801
      %v8803 = vpop.f32.mrb[0].mxu0
      %8804 = vmatprep.mubr.f32.mxu0 0.0
      %8805 = vmatmul.mubr.f32.gmra.mrb[0].mxu0 %v8584
      %v8806 = vpop.f32.mrb[0].mxu0
      %v8807 = vadd.f32 0.0, %v8806
      %v8808 = vpop.f32.mrb[0].mxu0
      %8809 = vmatprep.mubr.f32.mxu0 0.0
      %8810 = vmatmul.mubr.f32.gmra.mrb[0].mxu0 %v8587
      %v8811 = vpop.f32.mrb[0].mxu0
      %v8812 = vadd.f32 0.0, %v8811
      %v8813 = vpop.f32.mrb[0].mxu0
      %8814 = vmatprep.mubr.f32.mxu0 0.0
      %8815 = vmatmul.mubr.f32.gmra.mrb[0].mxu0 %v8590
      %v8816 = vpop.f32.mrb[0].mxu0
      %v8817 = vadd.f32 0.0, %v8816
      %v8818 = vpop.f32.mrb[0].mxu0
      %8819 = vdwg.mxu0
      %v8820 = vadd.f32 %v8304, %v8662
      %v8821 = vadd.f32 %v8309, %v8667
      %v8822 = vadd.f32 %v8314, %v8672
      %v8823 = vadd.f32 %v8319, %v8677
      %v8824 = vadd.f32 %v8324, %v8682
      %v8825 = vadd.f32 %v8329, %v8687
      %v8826 = vadd.f32 %v8334, %v8692
      %v8827 = vadd.f32 %v8339, %v8697
      %v8828 = vadd.f32 %v8344, %v8702
      %v8829 = vadd.f32 %v8349, %v8707
      %v8830 = vadd.f32 %v8354, %v8712
      %v8831 = vadd.f32 %v8359, %v8717
      %v8832 = vadd.f32 %v8364, %v8722
      %v8833 = vadd.f32 %v8369, %v8727
      %v8834 = vadd.f32 %v8374, %v8732
      %v8835 = vadd.f32 %v8379, %v8737
      %v8836 = vadd.f32 %v8384, %v8742
      %v8837 = vadd.f32 %v8389, %v8747
      %v8838 = vadd.f32 %v8394, %v8752
      %v8839 = vadd.f32 %v8399, %v8757
      %v8840 = vadd.f32 %v8404, %v8762
      %v8841 = vadd.f32 %v8409, %v8767
      %v8842 = vadd.f32 %v8414, %v8772
      %v8843 = vadd.f32 %v8419, %v8777
      %v8844 = vadd.f32 %v8424, %v8782
      %v8845 = vadd.f32 %v8429, %v8787
      %v8846 = vadd.f32 %v8434, %v8792
      %v8847 = vadd.f32 %v8439, %v8797
      %v8848 = vadd.f32 %v8444, %v8802
      %v8849 = vadd.f32 %v8449, %v8807
      %v8850 = vadd.f32 %v8454, %v8812
      %v8851 = vadd.f32 %v8459, %v8817
      %v8852 = vld [vmem:[%s7714] sm:$0xff]
      %v8853 = vld [vmem:[%s7714 + $0x8] sm:$0xff]
      %v8854 = vld [vmem:[%s7714 + $0x18] sm:$0xff]
      %v8855 = vld [vmem:[%s7714 + $0x20] sm:$0xff]
      %v8856 = vld [vmem:[%s7714 + $0x30] sm:$0xff]
      %v8857 = vld [vmem:[%s7714 + $0x38] sm:$0xff]
      %v8858 = vld [vmem:[%s7714 + $0x48] sm:$0xff]
      %v8859 = vld [vmem:[%s7714 + $0x50] sm:$0xff]
      %v8860 = vld [vmem:[%s7714 + $0x60] sm:$0xff]
      %v8861 = vld [vmem:[%s7714 + $0x68] sm:$0xff]
      %v8862 = vld [vmem:[%s7714 + $0x78] sm:$0xff]
      %v8863 = vld [vmem:[%s7714 + $0x80] sm:$0xff]
      %v8864 = vld [vmem:[%s7714 + $0x90] sm:$0xff]
      %v8865 = vld [vmem:[%s7714 + $0x98] sm:$0xff]
      %v8866 = vld [vmem:[%s7714 + $0xa8] sm:$0xff]
      %v8867 = vld [vmem:[%s7714 + $0xb0] sm:$0xff]
      %v8868 = vld [vmem:[%s7714 + $0xc0] sm:$0xff]
      %v8869 = vld [vmem:[%s7714 + $0xc8] sm:$0xff]
      %v8870 = vld [vmem:[%s7714 + $0xd8] sm:$0xff]
      %v8871 = vld [vmem:[%s7714 + $0xe0] sm:$0xff]
      %v8872 = vld [vmem:[%s7714 + $0xf0] sm:$0xff]
      %v8873 = vld [vmem:[%s7714 + $0xf8] sm:$0xff]
      %v8874 = vld [vmem:[%s7714 + $0x108] sm:$0xff]
      %v8875 = vld [vmem:[%s7714 + $0x110] sm:$0xff]
      %v8876 = vld [vmem:[%s7714 + $0x120] sm:$0xff]
      %v8877 = vld [vmem:[%s7714 + $0x128] sm:$0xff]
      %v8878 = vld [vmem:[%s7714 + $0x138] sm:$0xff]
      %v8879 = vld [vmem:[%s7714 + $0x140] sm:$0xff]
      %v8880 = vld [vmem:[%s7714 + $0x150] sm:$0xff]
      %v8881 = vld [vmem:[%s7714 + $0x158] sm:$0xff]
      %v8882 = vld [vmem:[%s7714 + $0x168] sm:$0xff]
      %v8883 = vld [vmem:[%s7714 + $0x170] sm:$0xff]
      %s8884 = scalar_lea.vmem %s6, 12
      %v8885 = vld [vmem:[%s8884] sm:$0xf]
      %v8887 = vsel %vm353, %v8852, 0
      %v8890 = vsel %vm353, %v8853, 0
      %v8893 = vsel %vm353, %v8854, 0
      %v8896 = vsel %vm353, %v8855, 0
      %v8899 = vsel %vm353, %v8856, 0
      %v8902 = vsel %vm353, %v8857, 0
      %v8905 = vsel %vm353, %v8858, 0
      %v8908 = vsel %vm353, %v8859, 0
      %v8911 = vsel %vm353, %v8860, 0
      %v8914 = vsel %vm353, %v8861, 0
      %v8917 = vsel %vm353, %v8862, 0
      %v8920 = vsel %vm353, %v8863, 0
      %v8923 = vsel %vm353, %v8864, 0
      %v8926 = vsel %vm353, %v8865, 0
      %v8929 = vsel %vm353, %v8866, 0
      %v8932 = vsel %vm353, %v8867, 0
      %v8935 = vsel %vm353, %v8868, 0
      %v8938 = vsel %vm353, %v8869, 0
      %v8941 = vsel %vm353, %v8870, 0
      %v8944 = vsel %vm353, %v8871, 0
      %v8947 = vsel %vm353, %v8872, 0
      %v8950 = vsel %vm353, %v8873, 0
      %v8953 = vsel %vm353, %v8874, 0
      %v8956 = vsel %vm353, %v8875, 0
      %v8959 = vsel %vm353, %v8876, 0
      %v8962 = vsel %vm353, %v8877, 0
      %v8965 = vsel %vm353, %v8878, 0
      %v8968 = vsel %vm353, %v8879, 0
      %v8971 = vsel %vm353, %v8880, 0
      %v8974 = vsel %vm353, %v8881, 0
      %v8977 = vsel %vm353, %v8882, 0
      %v8980 = vsel %vm353, %v8883, 0
      %v8983 = vsel %vm809, %v8885, 0
      %8985 = vmatprep.subr.mxu0 0.0
      %8986 = vmatpush1.msra.mxu0 %v8983
      %8987 = vmatprep.subr.mxu0 0.0
      %8988 = vmatpush1.msra.mxu0 0.0
      %8989 = vmatprep.subr.mxu0 0.0
      %8990 = vmatpush1.msra.mxu0 0.0
      %8991 = vmatprep.subr.mxu0 0.0
      %8992 = vmatpush1.msra.mxu0 0.0
      %8993 = vmatprep.subr.mxu0 0.0
      %8994 = vmatpush1.msra.mxu0 0.0
      %8995 = vmatprep.subr.mxu0 0.0
      %8996 = vmatpush1.msra.mxu0 0.0
      %8997 = vmatprep.subr.mxu0 0.0
      %8998 = vmatpush1.msra.mxu0 0.0
      %8999 = vmatprep.subr.mxu0 0.0
      %9000 = vmatpush1.msra.mxu0 0.0
      %9001 = vmatprep.subr.mxu0 0.0
      %9002 = vmatpush1.msra.mxu0 0.0
      %9003 = vmatprep.subr.mxu0 0.0
      %9004 = vmatpush1.msra.mxu0 0.0
      %9005 = vmatprep.subr.mxu0 0.0
      %9006 = vmatpush1.msra.mxu0 0.0
      %9007 = vmatprep.subr.mxu0 0.0
      %9008 = vmatpush1.msra.mxu0 0.0
      %9009 = vmatprep.subr.mxu0 0.0
      %9010 = vmatpush1.msra.mxu0 0.0
      %9011 = vmatprep.subr.mxu0 0.0
      %9012 = vmatpush1.msra.mxu0 0.0
      %9013 = vmatprep.subr.mxu0 0.0
      %9014 = vmatpush1.msra.mxu0 0.0
      %9015 = vmatprep.subr.mxu0 0.0
      %9016 = vmatpush1.msra.mxu0 0.0
      %9017 = vmatprep.subr.mxu0 0.0
      %9018 = vmatpush1.msra.mxu0 0.0
      %9019 = vmatprep.subr.mxu0 0.0
      %9020 = vmatpush1.msra.mxu0 0.0
      %9021 = vmatprep.subr.mxu0 0.0
      %9022 = vmatpush1.msra.mxu0 0.0
      %9023 = vmatprep.subr.mxu0 0.0
      %9024 = vmatpush1.msra.mxu0 0.0
      %9025 = vmatprep.subr.mxu0 0.0
      %9026 = vmatpush1.msra.mxu0 0.0
      %9027 = vmatprep.subr.mxu0 0.0
      %9028 = vmatpush1.msra.mxu0 0.0
      %9029 = vmatprep.subr.mxu0 0.0
      %9030 = vmatpush1.msra.mxu0 0.0
      %9031 = vmatprep.subr.mxu0 0.0
      %9032 = vmatpush1.msra.mxu0 0.0
      %9033 = vmatprep.subr.mxu0 0.0
      %9034 = vmatpush1.msra.mxu0 0.0
      %9035 = vmatprep.subr.mxu0 0.0
      %9036 = vmatpush1.msra.mxu0 0.0
      %9037 = vmatprep.subr.mxu0 0.0
      %9038 = vmatpush1.msra.mxu0 0.0
      %9039 = vmatprep.subr.mxu0 0.0
      %9040 = vmatpush1.msra.mxu0 0.0
      %9041 = vmatprep.subr.mxu0 0.0
      %9042 = vmatpush1.msra.mxu0 0.0
      %9043 = vmatprep.subr.mxu0 0.0
      %9044 = vmatpush1.msra.mxu0 0.0
      %9045 = vmatprep.subr.mxu0 0.0
      %9046 = vmatpush1.msra.mxu0 0.0
      %9047 = vmatprep.subr.mxu0 0.0
      %9048 = vmatpush1.msra.mxu0 0.0
      %9049 = vmatprep.mubr.f32.mxu0 0.0
      %9050 = vmatmul.mubr.f32.gmra.mrb[0].mxu0 %v8887
      %v9051 = vpop.f32.mrb[0].mxu0
      %v9052 = vadd.f32 0.0, %v9051
      %v9053 = vpop.f32.mrb[0].mxu0
      %9054 = vmatprep.mubr.f32.mxu0 0.0
      %9055 = vmatmul.mubr.f32.gmra.mrb[0].mxu0 %v8890
      %v9056 = vpop.f32.mrb[0].mxu0
      %v9057 = vadd.f32 0.0, %v9056
      %v9058 = vpop.f32.mrb[0].mxu0
      %9059 = vmatprep.mubr.f32.mxu0 0.0
      %9060 = vmatmul.mubr.f32.gmra.mrb[0].mxu0 %v8893
      %v9061 = vpop.f32.mrb[0].mxu0
      %v9062 = vadd.f32 0.0, %v9061
      %v9063 = vpop.f32.mrb[0].mxu0
      %9064 = vmatprep.mubr.f32.mxu0 0.0
      %9065 = vmatmul.mubr.f32.gmra.mrb[0].mxu0 %v8896
      %v9066 = vpop.f32.mrb[0].mxu0
      %v9067 = vadd.f32 0.0, %v9066
      %v9068 = vpop.f32.mrb[0].mxu0
      %9069 = vmatprep.mubr.f32.mxu0 0.0
      %9070 = vmatmul.mubr.f32.gmra.mrb[0].mxu0 %v8899
      %v9071 = vpop.f32.mrb[0].mxu0
      %v9072 = vadd.f32 0.0, %v9071
      %v9073 = vpop.f32.mrb[0].mxu0
      %9074 = vmatprep.mubr.f32.mxu0 0.0
      %9075 = vmatmul.mubr.f32.gmra.mrb[0].mxu0 %v8902
      %v9076 = vpop.f32.mrb[0].mxu0
      %v9077 = vadd.f32 0.0, %v9076
      %v9078 = vpop.f32.mrb[0].mxu0
      %9079 = vmatprep.mubr.f32.mxu0 0.0
      %9080 = vmatmul.mubr.f32.gmra.mrb[0].mxu0 %v8905
      %v9081 = vpop.f32.mrb[0].mxu0
      %v9082 = vadd.f32 0.0, %v9081
      %v9083 = vpop.f32.mrb[0].mxu0
      %9084 = vmatprep.mubr.f32.mxu0 0.0
      %9085 = vmatmul.mubr.f32.gmra.mrb[0].mxu0 %v8908
      %v9086 = vpop.f32.mrb[0].mxu0
      %v9087 = vadd.f32 0.0, %v9086
      %v9088 = vpop.f32.mrb[0].mxu0
      %9089 = vmatprep.mubr.f32.mxu0 0.0
      %9090 = vmatmul.mubr.f32.gmra.mrb[0].mxu0 %v8911
      %v9091 = vpop.f32.mrb[0].mxu0
      %v9092 = vadd.f32 0.0, %v9091
      %v9093 = vpop.f32.mrb[0].mxu0
      %9094 = vmatprep.mubr.f32.mxu0 0.0
      %9095 = vmatmul.mubr.f32.gmra.mrb[0].mxu0 %v8914
      %v9096 = vpop.f32.mrb[0].mxu0
      %v9097 = vadd.f32 0.0, %v9096
      %v9098 = vpop.f32.mrb[0].mxu0
      %9099 = vmatprep.mubr.f32.mxu0 0.0
      %9100 = vmatmul.mubr.f32.gmra.mrb[0].mxu0 %v8917
      %v9101 = vpop.f32.mrb[0].mxu0
      %v9102 = vadd.f32 0.0, %v9101
      %v9103 = vpop.f32.mrb[0].mxu0
      %9104 = vmatprep.mubr.f32.mxu0 0.0
      %9105 = vmatmul.mubr.f32.gmra.mrb[0].mxu0 %v8920
      %v9106 = vpop.f32.mrb[0].mxu0
      %v9107 = vadd.f32 0.0, %v9106
      %v9108 = vpop.f32.mrb[0].mxu0
      %9109 = vmatprep.mubr.f32.mxu0 0.0
      %9110 = vmatmul.mubr.f32.gmra.mrb[0].mxu0 %v8923
      %v9111 = vpop.f32.mrb[0].mxu0
      %v9112 = vadd.f32 0.0, %v9111
      %v9113 = vpop.f32.mrb[0].mxu0
      %9114 = vmatprep.mubr.f32.mxu0 0.0
      %9115 = vmatmul.mubr.f32.gmra.mrb[0].mxu0 %v8926
      %v9116 = vpop.f32.mrb[0].mxu0
      %v9117 = vadd.f32 0.0, %v9116
      %v9118 = vpop.f32.mrb[0].mxu0
      %9119 = vmatprep.mubr.f32.mxu0 0.0
      %9120 = vmatmul.mubr.f32.gmra.mrb[0].mxu0 %v8929
      %v9121 = vpop.f32.mrb[0].mxu0
      %v9122 = vadd.f32 0.0, %v9121
      %v9123 = vpop.f32.mrb[0].mxu0
      %9124 = vmatprep.mubr.f32.mxu0 0.0
      %9125 = vmatmul.mubr.f32.gmra.mrb[0].mxu0 %v8932
      %v9126 = vpop.f32.mrb[0].mxu0
      %v9127 = vadd.f32 0.0, %v9126
      %v9128 = vpop.f32.mrb[0].mxu0
      %9129 = vmatprep.mubr.f32.mxu0 0.0
      %9130 = vmatmul.mubr.f32.gmra.mrb[0].mxu0 %v8935
      %v9131 = vpop.f32.mrb[0].mxu0
      %v9132 = vadd.f32 0.0, %v9131
      %v9133 = vpop.f32.mrb[0].mxu0
      %9134 = vmatprep.mubr.f32.mxu0 0.0
      %9135 = vmatmul.mubr.f32.gmra.mrb[0].mxu0 %v8938
      %v9136 = vpop.f32.mrb[0].mxu0
      %v9137 = vadd.f32 0.0, %v9136
      %v9138 = vpop.f32.mrb[0].mxu0
      %9139 = vmatprep.mubr.f32.mxu0 0.0
      %9140 = vmatmul.mubr.f32.gmra.mrb[0].mxu0 %v8941
      %v9141 = vpop.f32.mrb[0].mxu0
      %v9142 = vadd.f32 0.0, %v9141
      %v9143 = vpop.f32.mrb[0].mxu0
      %9144 = vmatprep.mubr.f32.mxu0 0.0
      %9145 = vmatmul.mubr.f32.gmra.mrb[0].mxu0 %v8944
      %v9146 = vpop.f32.mrb[0].mxu0
      %v9147 = vadd.f32 0.0, %v9146
      %v9148 = vpop.f32.mrb[0].mxu0
      %9149 = vmatprep.mubr.f32.mxu0 0.0
      %9150 = vmatmul.mubr.f32.gmra.mrb[0].mxu0 %v8947
      %v9151 = vpop.f32.mrb[0].mxu0
      %v9152 = vadd.f32 0.0, %v9151
      %v9153 = vpop.f32.mrb[0].mxu0
      %9154 = vmatprep.mubr.f32.mxu0 0.0
      %9155 = vmatmul.mubr.f32.gmra.mrb[0].mxu0 %v8950
      %v9156 = vpop.f32.mrb[0].mxu0
      %v9157 = vadd.f32 0.0, %v9156
      %v9158 = vpop.f32.mrb[0].mxu0
      %9159 = vmatprep.mubr.f32.mxu0 0.0
      %9160 = vmatmul.mubr.f32.gmra.mrb[0].mxu0 %v8953
      %v9161 = vpop.f32.mrb[0].mxu0
      %v9162 = vadd.f32 0.0, %v9161
      %v9163 = vpop.f32.mrb[0].mxu0
      %9164 = vmatprep.mubr.f32.mxu0 0.0
      %9165 = vmatmul.mubr.f32.gmra.mrb[0].mxu0 %v8956
      %v9166 = vpop.f32.mrb[0].mxu0
      %v9167 = vadd.f32 0.0, %v9166
      %v9168 = vpop.f32.mrb[0].mxu0
      %9169 = vmatprep.mubr.f32.mxu0 0.0
      %9170 = vmatmul.mubr.f32.gmra.mrb[0].mxu0 %v8959
      %v9171 = vpop.f32.mrb[0].mxu0
      %v9172 = vadd.f32 0.0, %v9171
      %v9173 = vpop.f32.mrb[0].mxu0
      %9174 = vmatprep.mubr.f32.mxu0 0.0
      %9175 = vmatmul.mubr.f32.gmra.mrb[0].mxu0 %v8962
      %v9176 = vpop.f32.mrb[0].mxu0
      %v9177 = vadd.f32 0.0, %v9176
      %v9178 = vpop.f32.mrb[0].mxu0
      %9179 = vmatprep.mubr.f32.mxu0 0.0
      %9180 = vmatmul.mubr.f32.gmra.mrb[0].mxu0 %v8965
      %v9181 = vpop.f32.mrb[0].mxu0
      %v9182 = vadd.f32 0.0, %v9181
      %v9183 = vpop.f32.mrb[0].mxu0
      %9184 = vmatprep.mubr.f32.mxu0 0.0
      %9185 = vmatmul.mubr.f32.gmra.mrb[0].mxu0 %v8968
      %v9186 = vpop.f32.mrb[0].mxu0
      %v9187 = vadd.f32 0.0, %v9186
      %v9188 = vpop.f32.mrb[0].mxu0
      %9189 = vmatprep.mubr.f32.mxu0 0.0
      %9190 = vmatmul.mubr.f32.gmra.mrb[0].mxu0 %v8971
      %v9191 = vpop.f32.mrb[0].mxu0
      %v9192 = vadd.f32 0.0, %v9191
      %v9193 = vpop.f32.mrb[0].mxu0
      %9194 = vmatprep.mubr.f32.mxu0 0.0
      %9195 = vmatmul.mubr.f32.gmra.mrb[0].mxu0 %v8974
      %v9196 = vpop.f32.mrb[0].mxu0
      %v9197 = vadd.f32 0.0, %v9196
      %v9198 = vpop.f32.mrb[0].mxu0
      %9199 = vmatprep.mubr.f32.mxu0 0.0
      %9200 = vmatmul.mubr.f32.gmra.mrb[0].mxu0 %v8977
      %v9201 = vpop.f32.mrb[0].mxu0
      %v9202 = vadd.f32 0.0, %v9201
      %v9203 = vpop.f32.mrb[0].mxu0
      %9204 = vmatprep.mubr.f32.mxu0 0.0
      %9205 = vmatmul.mubr.f32.gmra.mrb[0].mxu0 %v8980
      %v9206 = vpop.f32.mrb[0].mxu0
      %v9207 = vadd.f32 0.0, %v9206
      %v9208 = vpop.f32.mrb[0].mxu0
      %9209 = vdwg.mxu0
      %v9210 = vadd.f32 %v8820, %v9052
      %v9211 = vadd.f32 %v8821, %v9057
      %v9212 = vadd.f32 %v8822, %v9062
      %v9213 = vadd.f32 %v8823, %v9067
      %v9214 = vadd.f32 %v8824, %v9072
      %v9215 = vadd.f32 %v8825, %v9077
      %v9216 = vadd.f32 %v8826, %v9082
      %v9217 = vadd.f32 %v8827, %v9087
      %v9218 = vadd.f32 %v8828, %v9092
      %v9219 = vadd.f32 %v8829, %v9097
      %v9220 = vadd.f32 %v8830, %v9102
      %v9221 = vadd.f32 %v8831, %v9107
      %v9222 = vadd.f32 %v8832, %v9112
      %v9223 = vadd.f32 %v8833, %v9117
      %v9224 = vadd.f32 %v8834, %v9122
      %v9225 = vadd.f32 %v8835, %v9127
      %v9226 = vadd.f32 %v8836, %v9132
      %v9227 = vadd.f32 %v8837, %v9137
      %v9228 = vadd.f32 %v8838, %v9142
      %v9229 = vadd.f32 %v8839, %v9147
      %v9230 = vadd.f32 %v8840, %v9152
      %v9231 = vadd.f32 %v8841, %v9157
      %v9232 = vadd.f32 %v8842, %v9162
      %v9233 = vadd.f32 %v8843, %v9167
      %v9234 = vadd.f32 %v8844, %v9172
      %v9235 = vadd.f32 %v8845, %v9177
      %v9236 = vadd.f32 %v8846, %v9182
      %v9237 = vadd.f32 %v8847, %v9187
      %v9238 = vadd.f32 %v8848, %v9192
      %v9239 = vadd.f32 %v8849, %v9197
      %v9240 = vadd.f32 %v8850, %v9202
      %v9241 = vadd.f32 %v8851, %v9207
      %v9242 = vld [vmem:[%s7714 + $0x1] sm:$0xff]
      %v9243 = vld [vmem:[%s7714 + $0x9] sm:$0xff]
      %v9244 = vld [vmem:[%s7714 + $0x19] sm:$0xff]
      %v9245 = vld [vmem:[%s7714 + $0x21] sm:$0xff]
      %v9246 = vld [vmem:[%s7714 + $0x31] sm:$0xff]
      %v9247 = vld [vmem:[%s7714 + $0x39] sm:$0xff]
      %v9248 = vld [vmem:[%s7714 + $0x49] sm:$0xff]
      %v9249 = vld [vmem:[%s7714 + $0x51] sm:$0xff]
      %v9250 = vld [vmem:[%s7714 + $0x61] sm:$0xff]
      %v9251 = vld [vmem:[%s7714 + $0x69] sm:$0xff]
      %v9252 = vld [vmem:[%s7714 + $0x79] sm:$0xff]
      %v9253 = vld [vmem:[%s7714 + $0x81] sm:$0xff]
      %v9254 = vld [vmem:[%s7714 + $0x91] sm:$0xff]
      %v9255 = vld [vmem:[%s7714 + $0x99] sm:$0xff]
      %v9256 = vld [vmem:[%s7714 + $0xa9] sm:$0xff]
      %v9257 = vld [vmem:[%s7714 + $0xb1] sm:$0xff]
      %v9258 = vld [vmem:[%s7714 + $0xc1] sm:$0xff]
      %v9259 = vld [vmem:[%s7714 + $0xc9] sm:$0xff]
      %v9260 = vld [vmem:[%s7714 + $0xd9] sm:$0xff]
      %v9261 = vld [vmem:[%s7714 + $0xe1] sm:$0xff]
      %v9262 = vld [vmem:[%s7714 + $0xf1] sm:$0xff]
      %v9263 = vld [vmem:[%s7714 + $0xf9] sm:$0xff]
      %v9264 = vld [vmem:[%s7714 + $0x109] sm:$0xff]
      %v9265 = vld [vmem:[%s7714 + $0x111] sm:$0xff]
      %v9266 = vld [vmem:[%s7714 + $0x121] sm:$0xff]
      %v9267 = vld [vmem:[%s7714 + $0x129] sm:$0xff]
      %v9268 = vld [vmem:[%s7714 + $0x139] sm:$0xff]
      %v9269 = vld [vmem:[%s7714 + $0x141] sm:$0xff]
      %v9270 = vld [vmem:[%s7714 + $0x151] sm:$0xff]
      %v9271 = vld [vmem:[%s7714 + $0x159] sm:$0xff]
      %v9272 = vld [vmem:[%s7714 + $0x169] sm:$0xff]
      %v9273 = vld [vmem:[%s7714 + $0x171] sm:$0xff]
      %s9274 = scalar_lea.vmem %s6, 16
      %v9275 = vld [vmem:[%s9274] sm:$0xf]
      %v9277 = vsel %vm353, %v9242, 0
      %v9280 = vsel %vm353, %v9243, 0
      %v9283 = vsel %vm353, %v9244, 0
      %v9286 = vsel %vm353, %v9245, 0
      %v9289 = vsel %vm353, %v9246, 0
      %v9292 = vsel %vm353, %v9247, 0
      %v9295 = vsel %vm353, %v9248, 0
      %v9298 = vsel %vm353, %v9249, 0
      %v9301 = vsel %vm353, %v9250, 0
      %v9304 = vsel %vm353, %v9251, 0
      %v9307 = vsel %vm353, %v9252, 0
      %v9310 = vsel %vm353, %v9253, 0
      %v9313 = vsel %vm353, %v9254, 0
      %v9316 = vsel %vm353, %v9255, 0
      %v9319 = vsel %vm353, %v9256, 0
      %v9322 = vsel %vm353, %v9257, 0
      %v9325 = vsel %vm353, %v9258, 0
      %v9328 = vsel %vm353, %v9259, 0
      %v9331 = vsel %vm353, %v9260, 0
      %v9334 = vsel %vm353, %v9261, 0
      %v9337 = vsel %vm353, %v9262, 0
      %v9340 = vsel %vm353, %v9263, 0
      %v9343 = vsel %vm353, %v9264, 0
      %v9346 = vsel %vm353, %v9265, 0
      %v9349 = vsel %vm353, %v9266, 0
      %v9352 = vsel %vm353, %v9267, 0
      %v9355 = vsel %vm353, %v9268, 0
      %v9358 = vsel %vm353, %v9269, 0
      %v9361 = vsel %vm353, %v9270, 0
      %v9364 = vsel %vm353, %v9271, 0
      %v9367 = vsel %vm353, %v9272, 0
      %v9370 = vsel %vm353, %v9273, 0
      %v9373 = vsel %vm809, %v9275, 0
      %9375 = vmatprep.subr.mxu0 0.0
      %9376 = vmatpush1.msra.mxu0 %v9373
      %9377 = vmatprep.subr.mxu0 0.0
      %9378 = vmatpush1.msra.mxu0 0.0
      %9379 = vmatprep.subr.mxu0 0.0
      %9380 = vmatpush1.msra.mxu0 0.0
      %9381 = vmatprep.subr.mxu0 0.0
      %9382 = vmatpush1.msra.mxu0 0.0
      %9383 = vmatprep.subr.mxu0 0.0
      %9384 = vmatpush1.msra.mxu0 0.0
      %9385 = vmatprep.subr.mxu0 0.0
      %9386 = vmatpush1.msra.mxu0 0.0
      %9387 = vmatprep.subr.mxu0 0.0
      %9388 = vmatpush1.msra.mxu0 0.0
      %9389 = vmatprep.subr.mxu0 0.0
      %9390 = vmatpush1.msra.mxu0 0.0
      %9391 = vmatprep.subr.mxu0 0.0
      %9392 = vmatpush1.msra.mxu0 0.0
      %9393 = vmatprep.subr.mxu0 0.0
      %9394 = vmatpush1.msra.mxu0 0.0
      %9395 = vmatprep.subr.mxu0 0.0
      %9396 = vmatpush1.msra.mxu0 0.0
      %9397 = vmatprep.subr.mxu0 0.0
      %9398 = vmatpush1.msra.mxu0 0.0
      %9399 = vmatprep.subr.mxu0 0.0
      %9400 = vmatpush1.msra.mxu0 0.0
      %9401 = vmatprep.subr.mxu0 0.0
      %9402 = vmatpush1.msra.mxu0 0.0
      %9403 = vmatprep.subr.mxu0 0.0
      %9404 = vmatpush1.msra.mxu0 0.0
      %9405 = vmatprep.subr.mxu0 0.0
      %9406 = vmatpush1.msra.mxu0 0.0
      %9407 = vmatprep.subr.mxu0 0.0
      %9408 = vmatpush1.msra.mxu0 0.0
      %9409 = vmatprep.subr.mxu0 0.0
      %9410 = vmatpush1.msra.mxu0 0.0
      %9411 = vmatprep.subr.mxu0 0.0
      %9412 = vmatpush1.msra.mxu0 0.0
      %9413 = vmatprep.subr.mxu0 0.0
      %9414 = vmatpush1.msra.mxu0 0.0
      %9415 = vmatprep.subr.mxu0 0.0
      %9416 = vmatpush1.msra.mxu0 0.0
      %9417 = vmatprep.subr.mxu0 0.0
      %9418 = vmatpush1.msra.mxu0 0.0
      %9419 = vmatprep.subr.mxu0 0.0
      %9420 = vmatpush1.msra.mxu0 0.0
      %9421 = vmatprep.subr.mxu0 0.0
      %9422 = vmatpush1.msra.mxu0 0.0
      %9423 = vmatprep.subr.mxu0 0.0
      %9424 = vmatpush1.msra.mxu0 0.0
      %9425 = vmatprep.subr.mxu0 0.0
      %9426 = vmatpush1.msra.mxu0 0.0
      %9427 = vmatprep.subr.mxu0 0.0
      %9428 = vmatpush1.msra.mxu0 0.0
      %9429 = vmatprep.subr.mxu0 0.0
      %9430 = vmatpush1.msra.mxu0 0.0
      %9431 = vmatprep.subr.mxu0 0.0
      %9432 = vmatpush1.msra.mxu0 0.0
      %9433 = vmatprep.subr.mxu0 0.0
      %9434 = vmatpush1.msra.mxu0 0.0
      %9435 = vmatprep.subr.mxu0 0.0
      %9436 = vmatpush1.msra.mxu0 0.0
      %9437 = vmatprep.subr.mxu0 0.0
      %9438 = vmatpush1.msra.mxu0 0.0
      %9439 = vmatprep.mubr.f32.mxu0 0.0
      %9440 = vmatmul.mubr.f32.gmra.mrb[0].mxu0 %v9277
      %v9441 = vpop.f32.mrb[0].mxu0
      %v9442 = vadd.f32 0.0, %v9441
      %v9443 = vpop.f32.mrb[0].mxu0
      %9444 = vmatprep.mubr.f32.mxu0 0.0
      %9445 = vmatmul.mubr.f32.gmra.mrb[0].mxu0 %v9280
      %v9446 = vpop.f32.mrb[0].mxu0
      %v9447 = vadd.f32 0.0, %v9446
      %v9448 = vpop.f32.mrb[0].mxu0
      %9449 = vmatprep.mubr.f32.mxu0 0.0
      %9450 = vmatmul.mubr.f32.gmra.mrb[0].mxu0 %v9283
      %v9451 = vpop.f32.mrb[0].mxu0
      %v9452 = vadd.f32 0.0, %v9451
      %v9453 = vpop.f32.mrb[0].mxu0
      %9454 = vmatprep.mubr.f32.mxu0 0.0
      %9455 = vmatmul.mubr.f32.gmra.mrb[0].mxu0 %v9286
      %v9456 = vpop.f32.mrb[0].mxu0
      %v9457 = vadd.f32 0.0, %v9456
      %v9458 = vpop.f32.mrb[0].mxu0
      %9459 = vmatprep.mubr.f32.mxu0 0.0
      %9460 = vmatmul.mubr.f32.gmra.mrb[0].mxu0 %v9289
      %v9461 = vpop.f32.mrb[0].mxu0
      %v9462 = vadd.f32 0.0, %v9461
      %v9463 = vpop.f32.mrb[0].mxu0
      %9464 = vmatprep.mubr.f32.mxu0 0.0
      %9465 = vmatmul.mubr.f32.gmra.mrb[0].mxu0 %v9292
      %v9466 = vpop.f32.mrb[0].mxu0
      %v9467 = vadd.f32 0.0, %v9466
      %v9468 = vpop.f32.mrb[0].mxu0
      %9469 = vmatprep.mubr.f32.mxu0 0.0
      %9470 = vmatmul.mubr.f32.gmra.mrb[0].mxu0 %v9295
      %v9471 = vpop.f32.mrb[0].mxu0
      %v9472 = vadd.f32 0.0, %v9471
      %v9473 = vpop.f32.mrb[0].mxu0
      %9474 = vmatprep.mubr.f32.mxu0 0.0
      %9475 = vmatmul.mubr.f32.gmra.mrb[0].mxu0 %v9298
      %v9476 = vpop.f32.mrb[0].mxu0
      %v9477 = vadd.f32 0.0, %v9476
      %v9478 = vpop.f32.mrb[0].mxu0
      %9479 = vmatprep.mubr.f32.mxu0 0.0
      %9480 = vmatmul.mubr.f32.gmra.mrb[0].mxu0 %v9301
      %v9481 = vpop.f32.mrb[0].mxu0
      %v9482 = vadd.f32 0.0, %v9481
      %v9483 = vpop.f32.mrb[0].mxu0
      %9484 = vmatprep.mubr.f32.mxu0 0.0
      %9485 = vmatmul.mubr.f32.gmra.mrb[0].mxu0 %v9304
      %v9486 = vpop.f32.mrb[0].mxu0
      %v9487 = vadd.f32 0.0, %v9486
      %v9488 = vpop.f32.mrb[0].mxu0
      %9489 = vmatprep.mubr.f32.mxu0 0.0
      %9490 = vmatmul.mubr.f32.gmra.mrb[0].mxu0 %v9307
      %v9491 = vpop.f32.mrb[0].mxu0
      %v9492 = vadd.f32 0.0, %v9491
      %v9493 = vpop.f32.mrb[0].mxu0
      %9494 = vmatprep.mubr.f32.mxu0 0.0
      %9495 = vmatmul.mubr.f32.gmra.mrb[0].mxu0 %v9310
      %v9496 = vpop.f32.mrb[0].mxu0
      %v9497 = vadd.f32 0.0, %v9496
      %v9498 = vpop.f32.mrb[0].mxu0
      %9499 = vmatprep.mubr.f32.mxu0 0.0
      %9500 = vmatmul.mubr.f32.gmra.mrb[0].mxu0 %v9313
      %v9501 = vpop.f32.mrb[0].mxu0
      %v9502 = vadd.f32 0.0, %v9501
      %v9503 = vpop.f32.mrb[0].mxu0
      %9504 = vmatprep.mubr.f32.mxu0 0.0
      %9505 = vmatmul.mubr.f32.gmra.mrb[0].mxu0 %v9316
      %v9506 = vpop.f32.mrb[0].mxu0
      %v9507 = vadd.f32 0.0, %v9506
      %v9508 = vpop.f32.mrb[0].mxu0
      %9509 = vmatprep.mubr.f32.mxu0 0.0
      %9510 = vmatmul.mubr.f32.gmra.mrb[0].mxu0 %v9319
      %v9511 = vpop.f32.mrb[0].mxu0
      %v9512 = vadd.f32 0.0, %v9511
      %v9513 = vpop.f32.mrb[0].mxu0
      %9514 = vmatprep.mubr.f32.mxu0 0.0
      %9515 = vmatmul.mubr.f32.gmra.mrb[0].mxu0 %v9322
      %v9516 = vpop.f32.mrb[0].mxu0
      %v9517 = vadd.f32 0.0, %v9516
      %v9518 = vpop.f32.mrb[0].mxu0
      %9519 = vmatprep.mubr.f32.mxu0 0.0
      %9520 = vmatmul.mubr.f32.gmra.mrb[0].mxu0 %v9325
      %v9521 = vpop.f32.mrb[0].mxu0
      %v9522 = vadd.f32 0.0, %v9521
      %v9523 = vpop.f32.mrb[0].mxu0
      %9524 = vmatprep.mubr.f32.mxu0 0.0
      %9525 = vmatmul.mubr.f32.gmra.mrb[0].mxu0 %v9328
      %v9526 = vpop.f32.mrb[0].mxu0
      %v9527 = vadd.f32 0.0, %v9526
      %v9528 = vpop.f32.mrb[0].mxu0
      %9529 = vmatprep.mubr.f32.mxu0 0.0
      %9530 = vmatmul.mubr.f32.gmra.mrb[0].mxu0 %v9331
      %v9531 = vpop.f32.mrb[0].mxu0
      %v9532 = vadd.f32 0.0, %v9531
      %v9533 = vpop.f32.mrb[0].mxu0
      %9534 = vmatprep.mubr.f32.mxu0 0.0
      %9535 = vmatmul.mubr.f32.gmra.mrb[0].mxu0 %v9334
      %v9536 = vpop.f32.mrb[0].mxu0
      %v9537 = vadd.f32 0.0, %v9536
      %v9538 = vpop.f32.mrb[0].mxu0
      %9539 = vmatprep.mubr.f32.mxu0 0.0
      %9540 = vmatmul.mubr.f32.gmra.mrb[0].mxu0 %v9337
      %v9541 = vpop.f32.mrb[0].mxu0
      %v9542 = vadd.f32 0.0, %v9541
      %v9543 = vpop.f32.mrb[0].mxu0
      %9544 = vmatprep.mubr.f32.mxu0 0.0
      %9545 = vmatmul.mubr.f32.gmra.mrb[0].mxu0 %v9340
      %v9546 = vpop.f32.mrb[0].mxu0
      %v9547 = vadd.f32 0.0, %v9546
      %v9548 = vpop.f32.mrb[0].mxu0
      %9549 = vmatprep.mubr.f32.mxu0 0.0
      %9550 = vmatmul.mubr.f32.gmra.mrb[0].mxu0 %v9343
      %v9551 = vpop.f32.mrb[0].mxu0
      %v9552 = vadd.f32 0.0, %v9551
      %v9553 = vpop.f32.mrb[0].mxu0
      %9554 = vmatprep.mubr.f32.mxu0 0.0
      %9555 = vmatmul.mubr.f32.gmra.mrb[0].mxu0 %v9346
      %v9556 = vpop.f32.mrb[0].mxu0
      %v9557 = vadd.f32 0.0, %v9556
      %v9558 = vpop.f32.mrb[0].mxu0
      %9559 = vmatprep.mubr.f32.mxu0 0.0
      %9560 = vmatmul.mubr.f32.gmra.mrb[0].mxu0 %v9349
      %v9561 = vpop.f32.mrb[0].mxu0
      %v9562 = vadd.f32 0.0, %v9561
      %v9563 = vpop.f32.mrb[0].mxu0
      %9564 = vmatprep.mubr.f32.mxu0 0.0
      %9565 = vmatmul.mubr.f32.gmra.mrb[0].mxu0 %v9352
      %v9566 = vpop.f32.mrb[0].mxu0
      %v9567 = vadd.f32 0.0, %v9566
      %v9568 = vpop.f32.mrb[0].mxu0
      %9569 = vmatprep.mubr.f32.mxu0 0.0
      %9570 = vmatmul.mubr.f32.gmra.mrb[0].mxu0 %v9355
      %v9571 = vpop.f32.mrb[0].mxu0
      %v9572 = vadd.f32 0.0, %v9571
      %v9573 = vpop.f32.mrb[0].mxu0
      %9574 = vmatprep.mubr.f32.mxu0 0.0
      %9575 = vmatmul.mubr.f32.gmra.mrb[0].mxu0 %v9358
      %v9576 = vpop.f32.mrb[0].mxu0
      %v9577 = vadd.f32 0.0, %v9576
      %v9578 = vpop.f32.mrb[0].mxu0
      %9579 = vmatprep.mubr.f32.mxu0 0.0
      %9580 = vmatmul.mubr.f32.gmra.mrb[0].mxu0 %v9361
      %v9581 = vpop.f32.mrb[0].mxu0
      %v9582 = vadd.f32 0.0, %v9581
      %v9583 = vpop.f32.mrb[0].mxu0
      %9584 = vmatprep.mubr.f32.mxu0 0.0
      %9585 = vmatmul.mubr.f32.gmra.mrb[0].mxu0 %v9364
      %v9586 = vpop.f32.mrb[0].mxu0
      %v9587 = vadd.f32 0.0, %v9586
      %v9588 = vpop.f32.mrb[0].mxu0
      %9589 = vmatprep.mubr.f32.mxu0 0.0
      %9590 = vmatmul.mubr.f32.gmra.mrb[0].mxu0 %v9367
      %v9591 = vpop.f32.mrb[0].mxu0
      %v9592 = vadd.f32 0.0, %v9591
      %v9593 = vpop.f32.mrb[0].mxu0
      %9594 = vmatprep.mubr.f32.mxu0 0.0
      %9595 = vmatmul.mubr.f32.gmra.mrb[0].mxu0 %v9370
      %v9596 = vpop.f32.mrb[0].mxu0
      %v9597 = vadd.f32 0.0, %v9596
      %v9598 = vpop.f32.mrb[0].mxu0
      %9599 = vdwg.mxu0
      %v9600 = vadd.f32 %v9210, %v9442
      %v9601 = vadd.f32 %v9211, %v9447
      %v9602 = vadd.f32 %v9212, %v9452
      %v9603 = vadd.f32 %v9213, %v9457
      %v9604 = vadd.f32 %v9214, %v9462
      %v9605 = vadd.f32 %v9215, %v9467
      %v9606 = vadd.f32 %v9216, %v9472
      %v9607 = vadd.f32 %v9217, %v9477
      %v9608 = vadd.f32 %v9218, %v9482
      %v9609 = vadd.f32 %v9219, %v9487
      %v9610 = vadd.f32 %v9220, %v9492
      %v9611 = vadd.f32 %v9221, %v9497
      %v9612 = vadd.f32 %v9222, %v9502
      %v9613 = vadd.f32 %v9223, %v9507
      %v9614 = vadd.f32 %v9224, %v9512
      %v9615 = vadd.f32 %v9225, %v9517
      %v9616 = vadd.f32 %v9226, %v9522
      %v9617 = vadd.f32 %v9227, %v9527
      %v9618 = vadd.f32 %v9228, %v9532
      %v9619 = vadd.f32 %v9229, %v9537
      %v9620 = vadd.f32 %v9230, %v9542
      %v9621 = vadd.f32 %v9231, %v9547
      %v9622 = vadd.f32 %v9232, %v9552
      %v9623 = vadd.f32 %v9233, %v9557
      %v9624 = vadd.f32 %v9234, %v9562
      %v9625 = vadd.f32 %v9235, %v9567
      %v9626 = vadd.f32 %v9236, %v9572
      %v9627 = vadd.f32 %v9237, %v9577
      %v9628 = vadd.f32 %v9238, %v9582
      %v9629 = vadd.f32 %v9239, %v9587
      %v9630 = vadd.f32 %v9240, %v9592
      %v9631 = vadd.f32 %v9241, %v9597
      %v9632 = vld [vmem:[%s7714 + $0x2] sm:$0xff]
      %v9633 = vld [vmem:[%s7714 + $0xa] sm:$0xff]
      %v9634 = vld [vmem:[%s7714 + $0x1a] sm:$0xff]
      %v9635 = vld [vmem:[%s7714 + $0x22] sm:$0xff]
      %v9636 = vld [vmem:[%s7714 + $0x32] sm:$0xff]
      %v9637 = vld [vmem:[%s7714 + $0x3a] sm:$0xff]
      %v9638 = vld [vmem:[%s7714 + $0x4a] sm:$0xff]
      %v9639 = vld [vmem:[%s7714 + $0x52] sm:$0xff]
      %v9640 = vld [vmem:[%s7714 + $0x62] sm:$0xff]
      %v9641 = vld [vmem:[%s7714 + $0x6a] sm:$0xff]
      %v9642 = vld [vmem:[%s7714 + $0x7a] sm:$0xff]
      %v9643 = vld [vmem:[%s7714 + $0x82] sm:$0xff]
      %v9644 = vld [vmem:[%s7714 + $0x92] sm:$0xff]
      %v9645 = vld [vmem:[%s7714 + $0x9a] sm:$0xff]
      %v9646 = vld [vmem:[%s7714 + $0xaa] sm:$0xff]
      %v9647 = vld [vmem:[%s7714 + $0xb2] sm:$0xff]
      %v9648 = vld [vmem:[%s7714 + $0xc2] sm:$0xff]
      %v9649 = vld [vmem:[%s7714 + $0xca] sm:$0xff]
      %v9650 = vld [vmem:[%s7714 + $0xda] sm:$0xff]
      %v9651 = vld [vmem:[%s7714 + $0xe2] sm:$0xff]
      %v9652 = vld [vmem:[%s7714 + $0xf2] sm:$0xff]
      %v9653 = vld [vmem:[%s7714 + $0xfa] sm:$0xff]
      %v9654 = vld [vmem:[%s7714 + $0x10a] sm:$0xff]
      %v9655 = vld [vmem:[%s7714 + $0x112] sm:$0xff]
      %v9656 = vld [vmem:[%s7714 + $0x122] sm:$0xff]
      %v9657 = vld [vmem:[%s7714 + $0x12a] sm:$0xff]
      %v9658 = vld [vmem:[%s7714 + $0x13a] sm:$0xff]
      %v9659 = vld [vmem:[%s7714 + $0x142] sm:$0xff]
      %v9660 = vld [vmem:[%s7714 + $0x152] sm:$0xff]
      %v9661 = vld [vmem:[%s7714 + $0x15a] sm:$0xff]
      %v9662 = vld [vmem:[%s7714 + $0x16a] sm:$0xff]
      %v9663 = vld [vmem:[%s7714 + $0x172] sm:$0xff]
      %s9664 = scalar_lea.vmem %s6, 20
      %v9665 = vld [vmem:[%s9664] sm:$0xf]
      %v9667 = vsel %vm353, %v9632, 0
      %v9670 = vsel %vm353, %v9633, 0
      %v9673 = vsel %vm353, %v9634, 0
      %v9676 = vsel %vm353, %v9635, 0
      %v9679 = vsel %vm353, %v9636, 0
      %v9682 = vsel %vm353, %v9637, 0
      %v9685 = vsel %vm353, %v9638, 0
      %v9688 = vsel %vm353, %v9639, 0
      %v9691 = vsel %vm353, %v9640, 0
      %v9694 = vsel %vm353, %v9641, 0
      %v9697 = vsel %vm353, %v9642, 0
      %v9700 = vsel %vm353, %v9643, 0
      %v9703 = vsel %vm353, %v9644, 0
      %v9706 = vsel %vm353, %v9645, 0
      %v9709 = vsel %vm353, %v9646, 0
      %v9712 = vsel %vm353, %v9647, 0
      %v9715 = vsel %vm353, %v9648, 0
      %v9718 = vsel %vm353, %v9649, 0
      %v9721 = vsel %vm353, %v9650, 0
      %v9724 = vsel %vm353, %v9651, 0
      %v9727 = vsel %vm353, %v9652, 0
      %v9730 = vsel %vm353, %v9653, 0
      %v9733 = vsel %vm353, %v9654, 0
      %v9736 = vsel %vm353, %v9655, 0
      %v9739 = vsel %vm353, %v9656, 0
      %v9742 = vsel %vm353, %v9657, 0
      %v9745 = vsel %vm353, %v9658, 0
      %v9748 = vsel %vm353, %v9659, 0
      %v9751 = vsel %vm353, %v9660, 0
      %v9754 = vsel %vm353, %v9661, 0
      %v9757 = vsel %vm353, %v9662, 0
      %v9760 = vsel %vm353, %v9663, 0
      %v9763 = vsel %vm809, %v9665, 0
      %9765 = vmatprep.subr.mxu0 0.0
      %9766 = vmatpush1.msra.mxu0 %v9763
      %9767 = vmatprep.subr.mxu0 0.0
      %9768 = vmatpush1.msra.mxu0 0.0
      %9769 = vmatprep.subr.mxu0 0.0
      %9770 = vmatpush1.msra.mxu0 0.0
      %9771 = vmatprep.subr.mxu0 0.0
      %9772 = vmatpush1.msra.mxu0 0.0
      %9773 = vmatprep.subr.mxu0 0.0
      %9774 = vmatpush1.msra.mxu0 0.0
      %9775 = vmatprep.subr.mxu0 0.0
      %9776 = vmatpush1.msra.mxu0 0.0
      %9777 = vmatprep.subr.mxu0 0.0
      %9778 = vmatpush1.msra.mxu0 0.0
      %9779 = vmatprep.subr.mxu0 0.0
      %9780 = vmatpush1.msra.mxu0 0.0
      %9781 = vmatprep.subr.mxu0 0.0
      %9782 = vmatpush1.msra.mxu0 0.0
      %9783 = vmatprep.subr.mxu0 0.0
      %9784 = vmatpush1.msra.mxu0 0.0
      %9785 = vmatprep.subr.mxu0 0.0
      %9786 = vmatpush1.msra.mxu0 0.0
      %9787 = vmatprep.subr.mxu0 0.0
      %9788 = vmatpush1.msra.mxu0 0.0
      %9789 = vmatprep.subr.mxu0 0.0
      %9790 = vmatpush1.msra.mxu0 0.0
      %9791 = vmatprep.subr.mxu0 0.0
      %9792 = vmatpush1.msra.mxu0 0.0
      %9793 = vmatprep.subr.mxu0 0.0
      %9794 = vmatpush1.msra.mxu0 0.0
      %9795 = vmatprep.subr.mxu0 0.0
      %9796 = vmatpush1.msra.mxu0 0.0
      %9797 = vmatprep.subr.mxu0 0.0
      %9798 = vmatpush1.msra.mxu0 0.0
      %9799 = vmatprep.subr.mxu0 0.0
      %9800 = vmatpush1.msra.mxu0 0.0
      %9801 = vmatprep.subr.mxu0 0.0
      %9802 = vmatpush1.msra.mxu0 0.0
      %9803 = vmatprep.subr.mxu0 0.0
      %9804 = vmatpush1.msra.mxu0 0.0
      %9805 = vmatprep.subr.mxu0 0.0
      %9806 = vmatpush1.msra.mxu0 0.0
      %9807 = vmatprep.subr.mxu0 0.0
      %9808 = vmatpush1.msra.mxu0 0.0
      %9809 = vmatprep.subr.mxu0 0.0
      %9810 = vmatpush1.msra.mxu0 0.0
      %9811 = vmatprep.subr.mxu0 0.0
      %9812 = vmatpush1.msra.mxu0 0.0
      %9813 = vmatprep.subr.mxu0 0.0
      %9814 = vmatpush1.msra.mxu0 0.0
      %9815 = vmatprep.subr.mxu0 0.0
      %9816 = vmatpush1.msra.mxu0 0.0
      %9817 = vmatprep.subr.mxu0 0.0
      %9818 = vmatpush1.msra.mxu0 0.0
      %9819 = vmatprep.subr.mxu0 0.0
      %9820 = vmatpush1.msra.mxu0 0.0
      %9821 = vmatprep.subr.mxu0 0.0
      %9822 = vmatpush1.msra.mxu0 0.0
      %9823 = vmatprep.subr.mxu0 0.0
      %9824 = vmatpush1.msra.mxu0 0.0
      %9825 = vmatprep.subr.mxu0 0.0
      %9826 = vmatpush1.msra.mxu0 0.0
      %9827 = vmatprep.subr.mxu0 0.0
      %9828 = vmatpush1.msra.mxu0 0.0
      %9829 = vmatprep.mubr.f32.mxu0 0.0
      %9830 = vmatmul.mubr.f32.gmra.mrb[0].mxu0 %v9667
      %v9831 = vpop.f32.mrb[0].mxu0
      %v9832 = vadd.f32 0.0, %v9831
      %v9833 = vpop.f32.mrb[0].mxu0
      %9834 = vmatprep.mubr.f32.mxu0 0.0
      %9835 = vmatmul.mubr.f32.gmra.mrb[0].mxu0 %v9670
      %v9836 = vpop.f32.mrb[0].mxu0
      %v9837 = vadd.f32 0.0, %v9836
      %v9838 = vpop.f32.mrb[0].mxu0
      %9839 = vmatprep.mubr.f32.mxu0 0.0
      %9840 = vmatmul.mubr.f32.gmra.mrb[0].mxu0 %v9673
      %v9841 = vpop.f32.mrb[0].mxu0
      %v9842 = vadd.f32 0.0, %v9841
      %v9843 = vpop.f32.mrb[0].mxu0
      %9844 = vmatprep.mubr.f32.mxu0 0.0
      %9845 = vmatmul.mubr.f32.gmra.mrb[0].mxu0 %v9676
      %v9846 = vpop.f32.mrb[0].mxu0
      %v9847 = vadd.f32 0.0, %v9846
      %v9848 = vpop.f32.mrb[0].mxu0
      %9849 = vmatprep.mubr.f32.mxu0 0.0
      %9850 = vmatmul.mubr.f32.gmra.mrb[0].mxu0 %v9679
      %v9851 = vpop.f32.mrb[0].mxu0
      %v9852 = vadd.f32 0.0, %v9851
      %v9853 = vpop.f32.mrb[0].mxu0
      %9854 = vmatprep.mubr.f32.mxu0 0.0
      %9855 = vmatmul.mubr.f32.gmra.mrb[0].mxu0 %v9682
      %v9856 = vpop.f32.mrb[0].mxu0
      %v9857 = vadd.f32 0.0, %v9856
      %v9858 = vpop.f32.mrb[0].mxu0
      %9859 = vmatprep.mubr.f32.mxu0 0.0
      %9860 = vmatmul.mubr.f32.gmra.mrb[0].mxu0 %v9685
      %v9861 = vpop.f32.mrb[0].mxu0
      %v9862 = vadd.f32 0.0, %v9861
      %v9863 = vpop.f32.mrb[0].mxu0
      %9864 = vmatprep.mubr.f32.mxu0 0.0
      %9865 = vmatmul.mubr.f32.gmra.mrb[0].mxu0 %v9688
      %v9866 = vpop.f32.mrb[0].mxu0
      %v9867 = vadd.f32 0.0, %v9866
      %v9868 = vpop.f32.mrb[0].mxu0
      %9869 = vmatprep.mubr.f32.mxu0 0.0
      %9870 = vmatmul.mubr.f32.gmra.mrb[0].mxu0 %v9691
      %v9871 = vpop.f32.mrb[0].mxu0
      %v9872 = vadd.f32 0.0, %v9871
      %v9873 = vpop.f32.mrb[0].mxu0
      %9874 = vmatprep.mubr.f32.mxu0 0.0
      %9875 = vmatmul.mubr.f32.gmra.mrb[0].mxu0 %v9694
      %v9876 = vpop.f32.mrb[0].mxu0
      %v9877 = vadd.f32 0.0, %v9876
      %v9878 = vpop.f32.mrb[0].mxu0
      %9879 = vmatprep.mubr.f32.mxu0 0.0
      %9880 = vmatmul.mubr.f32.gmra.mrb[0].mxu0 %v9697
      %v9881 = vpop.f32.mrb[0].mxu0
      %v9882 = vadd.f32 0.0, %v9881
      %v9883 = vpop.f32.mrb[0].mxu0
      %9884 = vmatprep.mubr.f32.mxu0 0.0
      %9885 = vmatmul.mubr.f32.gmra.mrb[0].mxu0 %v9700
      %v9886 = vpop.f32.mrb[0].mxu0
      %v9887 = vadd.f32 0.0, %v9886
      %v9888 = vpop.f32.mrb[0].mxu0
      %9889 = vmatprep.mubr.f32.mxu0 0.0
      %9890 = vmatmul.mubr.f32.gmra.mrb[0].mxu0 %v9703
      %v9891 = vpop.f32.mrb[0].mxu0
      %v9892 = vadd.f32 0.0, %v9891
      %v9893 = vpop.f32.mrb[0].mxu0
      %9894 = vmatprep.mubr.f32.mxu0 0.0
      %9895 = vmatmul.mubr.f32.gmra.mrb[0].mxu0 %v9706
      %v9896 = vpop.f32.mrb[0].mxu0
      %v9897 = vadd.f32 0.0, %v9896
      %v9898 = vpop.f32.mrb[0].mxu0
      %9899 = vmatprep.mubr.f32.mxu0 0.0
      %9900 = vmatmul.mubr.f32.gmra.mrb[0].mxu0 %v9709
      %v9901 = vpop.f32.mrb[0].mxu0
      %v9902 = vadd.f32 0.0, %v9901
      %v9903 = vpop.f32.mrb[0].mxu0
      %9904 = vmatprep.mubr.f32.mxu0 0.0
      %9905 = vmatmul.mubr.f32.gmra.mrb[0].mxu0 %v9712
      %v9906 = vpop.f32.mrb[0].mxu0
      %v9907 = vadd.f32 0.0, %v9906
      %v9908 = vpop.f32.mrb[0].mxu0
      %9909 = vmatprep.mubr.f32.mxu0 0.0
      %9910 = vmatmul.mubr.f32.gmra.mrb[0].mxu0 %v9715
      %v9911 = vpop.f32.mrb[0].mxu0
      %v9912 = vadd.f32 0.0, %v9911
      %v9913 = vpop.f32.mrb[0].mxu0
      %9914 = vmatprep.mubr.f32.mxu0 0.0
      %9915 = vmatmul.mubr.f32.gmra.mrb[0].mxu0 %v9718
      %v9916 = vpop.f32.mrb[0].mxu0
      %v9917 = vadd.f32 0.0, %v9916
      %v9918 = vpop.f32.mrb[0].mxu0
      %9919 = vmatprep.mubr.f32.mxu0 0.0
      %9920 = vmatmul.mubr.f32.gmra.mrb[0].mxu0 %v9721
      %v9921 = vpop.f32.mrb[0].mxu0
      %v9922 = vadd.f32 0.0, %v9921
      %v9923 = vpop.f32.mrb[0].mxu0
      %9924 = vmatprep.mubr.f32.mxu0 0.0
      %9925 = vmatmul.mubr.f32.gmra.mrb[0].mxu0 %v9724
      %v9926 = vpop.f32.mrb[0].mxu0
      %v9927 = vadd.f32 0.0, %v9926
      %v9928 = vpop.f32.mrb[0].mxu0
      %9929 = vmatprep.mubr.f32.mxu0 0.0
      %9930 = vmatmul.mubr.f32.gmra.mrb[0].mxu0 %v9727
      %v9931 = vpop.f32.mrb[0].mxu0
      %v9932 = vadd.f32 0.0, %v9931
      %v9933 = vpop.f32.mrb[0].mxu0
      %9934 = vmatprep.mubr.f32.mxu0 0.0
      %9935 = vmatmul.mubr.f32.gmra.mrb[0].mxu0 %v9730
      %v9936 = vpop.f32.mrb[0].mxu0
      %v9937 = vadd.f32 0.0, %v9936
      %v9938 = vpop.f32.mrb[0].mxu0
      %9939 = vmatprep.mubr.f32.mxu0 0.0
      %9940 = vmatmul.mubr.f32.gmra.mrb[0].mxu0 %v9733
      %v9941 = vpop.f32.mrb[0].mxu0
      %v9942 = vadd.f32 0.0, %v9941
      %v9943 = vpop.f32.mrb[0].mxu0
      %9944 = vmatprep.mubr.f32.mxu0 0.0
      %9945 = vmatmul.mubr.f32.gmra.mrb[0].mxu0 %v9736
      %v9946 = vpop.f32.mrb[0].mxu0
      %v9947 = vadd.f32 0.0, %v9946
      %v9948 = vpop.f32.mrb[0].mxu0
      %9949 = vmatprep.mubr.f32.mxu0 0.0
      %9950 = vmatmul.mubr.f32.gmra.mrb[0].mxu0 %v9739
      %v9951 = vpop.f32.mrb[0].mxu0
      %v9952 = vadd.f32 0.0, %v9951
      %v9953 = vpop.f32.mrb[0].mxu0
      %9954 = vmatprep.mubr.f32.mxu0 0.0
      %9955 = vmatmul.mubr.f32.gmra.mrb[0].mxu0 %v9742
      %v9956 = vpop.f32.mrb[0].mxu0
      %v9957 = vadd.f32 0.0, %v9956
      %v9958 = vpop.f32.mrb[0].mxu0
      %9959 = vmatprep.mubr.f32.mxu0 0.0
      %9960 = vmatmul.mubr.f32.gmra.mrb[0].mxu0 %v9745
      %v9961 = vpop.f32.mrb[0].mxu0
      %v9962 = vadd.f32 0.0, %v9961
      %v9963 = vpop.f32.mrb[0].mxu0
      %9964 = vmatprep.mubr.f32.mxu0 0.0
      %9965 = vmatmul.mubr.f32.gmra.mrb[0].mxu0 %v9748
      %v9966 = vpop.f32.mrb[0].mxu0
      %v9967 = vadd.f32 0.0, %v9966
      %v9968 = vpop.f32.mrb[0].mxu0
      %9969 = vmatprep.mubr.f32.mxu0 0.0
      %9970 = vmatmul.mubr.f32.gmra.mrb[0].mxu0 %v9751
      %v9971 = vpop.f32.mrb[0].mxu0
      %v9972 = vadd.f32 0.0, %v9971
      %v9973 = vpop.f32.mrb[0].mxu0
      %9974 = vmatprep.mubr.f32.mxu0 0.0
      %9975 = vmatmul.mubr.f32.gmra.mrb[0].mxu0 %v9754
      %v9976 = vpop.f32.mrb[0].mxu0
      %v9977 = vadd.f32 0.0, %v9976
      %v9978 = vpop.f32.mrb[0].mxu0
      %9979 = vmatprep.mubr.f32.mxu0 0.0
      %9980 = vmatmul.mubr.f32.gmra.mrb[0].mxu0 %v9757
      %v9981 = vpop.f32.mrb[0].mxu0
      %v9982 = vadd.f32 0.0, %v9981
      %v9983 = vpop.f32.mrb[0].mxu0
      %9984 = vmatprep.mubr.f32.mxu0 0.0
      %9985 = vmatmul.mubr.f32.gmra.mrb[0].mxu0 %v9760
      %v9986 = vpop.f32.mrb[0].mxu0
      %v9987 = vadd.f32 0.0, %v9986
      %v9988 = vpop.f32.mrb[0].mxu0
      %9989 = vdwg.mxu0
      %v9990 = vadd.f32 %v9600, %v9832
      %v9991 = vadd.f32 %v9601, %v9837
      %v9992 = vadd.f32 %v9602, %v9842
      %v9993 = vadd.f32 %v9603, %v9847
      %v9994 = vadd.f32 %v9604, %v9852
      %v9995 = vadd.f32 %v9605, %v9857
      %v9996 = vadd.f32 %v9606, %v9862
      %v9997 = vadd.f32 %v9607, %v9867
      %v9998 = vadd.f32 %v9608, %v9872
      %v9999 = vadd.f32 %v9609, %v9877
      %v10000 = vadd.f32 %v9610, %v9882
      %v10001 = vadd.f32 %v9611, %v9887
      %v10002 = vadd.f32 %v9612, %v9892
      %v10003 = vadd.f32 %v9613, %v9897
      %v10004 = vadd.f32 %v9614, %v9902
      %v10005 = vadd.f32 %v9615, %v9907
      %v10006 = vadd.f32 %v9616, %v9912
      %v10007 = vadd.f32 %v9617, %v9917
      %v10008 = vadd.f32 %v9618, %v9922
      %v10009 = vadd.f32 %v9619, %v9927
      %v10010 = vadd.f32 %v9620, %v9932
      %v10011 = vadd.f32 %v9621, %v9937
      %v10012 = vadd.f32 %v9622, %v9942
      %v10013 = vadd.f32 %v9623, %v9947
      %v10014 = vadd.f32 %v9624, %v9952
      %v10015 = vadd.f32 %v9625, %v9957
      %v10016 = vadd.f32 %v9626, %v9962
      %v10017 = vadd.f32 %v9627, %v9967
      %v10018 = vadd.f32 %v9628, %v9972
      %v10019 = vadd.f32 %v9629, %v9977
      %v10020 = vadd.f32 %v9630, %v9982
      %v10021 = vadd.f32 %v9631, %v9987
      %s10022 = scalar_lea.vmem [#allocation4], 48
      %v10023 = vld [vmem:[%s10022] sm:$0xff]
      %v10024 = vld [vmem:[%s10022 + $0x8] sm:$0xff]
      %v10025 = vld [vmem:[%s10022 + $0x18] sm:$0xff]
      %v10026 = vld [vmem:[%s10022 + $0x20] sm:$0xff]
      %v10027 = vld [vmem:[%s10022 + $0x30] sm:$0xff]
      %v10028 = vld [vmem:[%s10022 + $0x38] sm:$0xff]
      %v10029 = vld [vmem:[%s10022 + $0x48] sm:$0xff]
      %v10030 = vld [vmem:[%s10022 + $0x50] sm:$0xff]
      %v10031 = vld [vmem:[%s10022 + $0x60] sm:$0xff]
      %v10032 = vld [vmem:[%s10022 + $0x68] sm:$0xff]
      %v10033 = vld [vmem:[%s10022 + $0x78] sm:$0xff]
      %v10034 = vld [vmem:[%s10022 + $0x80] sm:$0xff]
      %v10035 = vld [vmem:[%s10022 + $0x90] sm:$0xff]
      %v10036 = vld [vmem:[%s10022 + $0x98] sm:$0xff]
      %v10037 = vld [vmem:[%s10022 + $0xa8] sm:$0xff]
      %v10038 = vld [vmem:[%s10022 + $0xb0] sm:$0xff]
      %v10039 = vld [vmem:[%s10022 + $0xc0] sm:$0xff]
      %v10040 = vld [vmem:[%s10022 + $0xc8] sm:$0xff]
      %v10041 = vld [vmem:[%s10022 + $0xd8] sm:$0xff]
      %v10042 = vld [vmem:[%s10022 + $0xe0] sm:$0xff]
      %v10043 = vld [vmem:[%s10022 + $0xf0] sm:$0xff]
      %v10044 = vld [vmem:[%s10022 + $0xf8] sm:$0xff]
      %v10045 = vld [vmem:[%s10022 + $0x108] sm:$0xff]
      %v10046 = vld [vmem:[%s10022 + $0x110] sm:$0xff]
      %v10047 = vld [vmem:[%s10022 + $0x120] sm:$0xff]
      %v10048 = vld [vmem:[%s10022 + $0x128] sm:$0xff]
      %v10049 = vld [vmem:[%s10022 + $0x138] sm:$0xff]
      %v10050 = vld [vmem:[%s10022 + $0x140] sm:$0xff]
      %v10051 = vld [vmem:[%s10022 + $0x150] sm:$0xff]
      %v10052 = vld [vmem:[%s10022 + $0x158] sm:$0xff]
      %v10053 = vld [vmem:[%s10022 + $0x168] sm:$0xff]
      %v10054 = vld [vmem:[%s10022 + $0x170] sm:$0xff]
      %s10055 = scalar_lea.vmem %s6, 24
      %v10056 = vld [vmem:[%s10055] sm:$0xf]
      %v10058 = vsel %vm353, %v10023, 0
      %v10061 = vsel %vm353, %v10024, 0
      %v10064 = vsel %vm353, %v10025, 0
      %v10067 = vsel %vm353, %v10026, 0
      %v10070 = vsel %vm353, %v10027, 0
      %v10073 = vsel %vm353, %v10028, 0
      %v10076 = vsel %vm353, %v10029, 0
      %v10079 = vsel %vm353, %v10030, 0
      %v10082 = vsel %vm353, %v10031, 0
      %v10085 = vsel %vm353, %v10032, 0
      %v10088 = vsel %vm353, %v10033, 0
      %v10091 = vsel %vm353, %v10034, 0
      %v10094 = vsel %vm353, %v10035, 0
      %v10097 = vsel %vm353, %v10036, 0
      %v10100 = vsel %vm353, %v10037, 0
      %v10103 = vsel %vm353, %v10038, 0
      %v10106 = vsel %vm353, %v10039, 0
      %v10109 = vsel %vm353, %v10040, 0
      %v10112 = vsel %vm353, %v10041, 0
      %v10115 = vsel %vm353, %v10042, 0
      %v10118 = vsel %vm353, %v10043, 0
      %v10121 = vsel %vm353, %v10044, 0
      %v10124 = vsel %vm353, %v10045, 0
      %v10127 = vsel %vm353, %v10046, 0
      %v10130 = vsel %vm353, %v10047, 0
      %v10133 = vsel %vm353, %v10048, 0
      %v10136 = vsel %vm353, %v10049, 0
      %v10139 = vsel %vm353, %v10050, 0
      %v10142 = vsel %vm353, %v10051, 0
      %v10145 = vsel %vm353, %v10052, 0
      %v10148 = vsel %vm353, %v10053, 0
      %v10151 = vsel %vm353, %v10054, 0
      %v10154 = vsel %vm809, %v10056, 0
      %10156 = vmatprep.subr.mxu0 0.0
      %10157 = vmatpush1.msra.mxu0 %v10154
      %10158 = vmatprep.subr.mxu0 0.0
      %10159 = vmatpush1.msra.mxu0 0.0
      %10160 = vmatprep.subr.mxu0 0.0
      %10161 = vmatpush1.msra.mxu0 0.0
      %10162 = vmatprep.subr.mxu0 0.0
      %10163 = vmatpush1.msra.mxu0 0.0
      %10164 = vmatprep.subr.mxu0 0.0
      %10165 = vmatpush1.msra.mxu0 0.0
      %10166 = vmatprep.subr.mxu0 0.0
      %10167 = vmatpush1.msra.mxu0 0.0
      %10168 = vmatprep.subr.mxu0 0.0
      %10169 = vmatpush1.msra.mxu0 0.0
      %10170 = vmatprep.subr.mxu0 0.0
      %10171 = vmatpush1.msra.mxu0 0.0
      %10172 = vmatprep.subr.mxu0 0.0
      %10173 = vmatpush1.msra.mxu0 0.0
      %10174 = vmatprep.subr.mxu0 0.0
      %10175 = vmatpush1.msra.mxu0 0.0
      %10176 = vmatprep.subr.mxu0 0.0
      %10177 = vmatpush1.msra.mxu0 0.0
      %10178 = vmatprep.subr.mxu0 0.0
      %10179 = vmatpush1.msra.mxu0 0.0
      %10180 = vmatprep.subr.mxu0 0.0
      %10181 = vmatpush1.msra.mxu0 0.0
      %10182 = vmatprep.subr.mxu0 0.0
      %10183 = vmatpush1.msra.mxu0 0.0
      %10184 = vmatprep.subr.mxu0 0.0
      %10185 = vmatpush1.msra.mxu0 0.0
      %10186 = vmatprep.subr.mxu0 0.0
      %10187 = vmatpush1.msra.mxu0 0.0
      %10188 = vmatprep.subr.mxu0 0.0
      %10189 = vmatpush1.msra.mxu0 0.0
      %10190 = vmatprep.subr.mxu0 0.0
      %10191 = vmatpush1.msra.mxu0 0.0
      %10192 = vmatprep.subr.mxu0 0.0
      %10193 = vmatpush1.msra.mxu0 0.0
      %10194 = vmatprep.subr.mxu0 0.0
      %10195 = vmatpush1.msra.mxu0 0.0
      %10196 = vmatprep.subr.mxu0 0.0
      %10197 = vmatpush1.msra.mxu0 0.0
      %10198 = vmatprep.subr.mxu0 0.0
      %10199 = vmatpush1.msra.mxu0 0.0
      %10200 = vmatprep.subr.mxu0 0.0
      %10201 = vmatpush1.msra.mxu0 0.0
      %10202 = vmatprep.subr.mxu0 0.0
      %10203 = vmatpush1.msra.mxu0 0.0
      %10204 = vmatprep.subr.mxu0 0.0
      %10205 = vmatpush1.msra.mxu0 0.0
      %10206 = vmatprep.subr.mxu0 0.0
      %10207 = vmatpush1.msra.mxu0 0.0
      %10208 = vmatprep.subr.mxu0 0.0
      %10209 = vmatpush1.msra.mxu0 0.0
      %10210 = vmatprep.subr.mxu0 0.0
      %10211 = vmatpush1.msra.mxu0 0.0
      %10212 = vmatprep.subr.mxu0 0.0
      %10213 = vmatpush1.msra.mxu0 0.0
      %10214 = vmatprep.subr.mxu0 0.0
      %10215 = vmatpush1.msra.mxu0 0.0
      %10216 = vmatprep.subr.mxu0 0.0
      %10217 = vmatpush1.msra.mxu0 0.0
      %10218 = vmatprep.subr.mxu0 0.0
      %10219 = vmatpush1.msra.mxu0 0.0
      %10220 = vmatprep.mubr.f32.mxu0 0.0
      %10221 = vmatmul.mubr.f32.gmra.mrb[0].mxu0 %v10058
      %v10222 = vpop.f32.mrb[0].mxu0
      %v10223 = vadd.f32 0.0, %v10222
      %v10224 = vpop.f32.mrb[0].mxu0
      %10225 = vmatprep.mubr.f32.mxu0 0.0
      %10226 = vmatmul.mubr.f32.gmra.mrb[0].mxu0 %v10061
      %v10227 = vpop.f32.mrb[0].mxu0
      %v10228 = vadd.f32 0.0, %v10227
      %v10229 = vpop.f32.mrb[0].mxu0
      %10230 = vmatprep.mubr.f32.mxu0 0.0
      %10231 = vmatmul.mubr.f32.gmra.mrb[0].mxu0 %v10064
      %v10232 = vpop.f32.mrb[0].mxu0
      %v10233 = vadd.f32 0.0, %v10232
      %v10234 = vpop.f32.mrb[0].mxu0
      %10235 = vmatprep.mubr.f32.mxu0 0.0
      %10236 = vmatmul.mubr.f32.gmra.mrb[0].mxu0 %v10067
      %v10237 = vpop.f32.mrb[0].mxu0
      %v10238 = vadd.f32 0.0, %v10237
      %v10239 = vpop.f32.mrb[0].mxu0
      %10240 = vmatprep.mubr.f32.mxu0 0.0
      %10241 = vmatmul.mubr.f32.gmra.mrb[0].mxu0 %v10070
      %v10242 = vpop.f32.mrb[0].mxu0
      %v10243 = vadd.f32 0.0, %v10242
      %v10244 = vpop.f32.mrb[0].mxu0
      %10245 = vmatprep.mubr.f32.mxu0 0.0
      %10246 = vmatmul.mubr.f32.gmra.mrb[0].mxu0 %v10073
      %v10247 = vpop.f32.mrb[0].mxu0
      %v10248 = vadd.f32 0.0, %v10247
      %v10249 = vpop.f32.mrb[0].mxu0
      %10250 = vmatprep.mubr.f32.mxu0 0.0
      %10251 = vmatmul.mubr.f32.gmra.mrb[0].mxu0 %v10076
      %v10252 = vpop.f32.mrb[0].mxu0
      %v10253 = vadd.f32 0.0, %v10252
      %v10254 = vpop.f32.mrb[0].mxu0
      %10255 = vmatprep.mubr.f32.mxu0 0.0
      %10256 = vmatmul.mubr.f32.gmra.mrb[0].mxu0 %v10079
      %v10257 = vpop.f32.mrb[0].mxu0
      %v10258 = vadd.f32 0.0, %v10257
      %v10259 = vpop.f32.mrb[0].mxu0
      %10260 = vmatprep.mubr.f32.mxu0 0.0
      %10261 = vmatmul.mubr.f32.gmra.mrb[0].mxu0 %v10082
      %v10262 = vpop.f32.mrb[0].mxu0
      %v10263 = vadd.f32 0.0, %v10262
      %v10264 = vpop.f32.mrb[0].mxu0
      %10265 = vmatprep.mubr.f32.mxu0 0.0
      %10266 = vmatmul.mubr.f32.gmra.mrb[0].mxu0 %v10085
      %v10267 = vpop.f32.mrb[0].mxu0
      %v10268 = vadd.f32 0.0, %v10267
      %v10269 = vpop.f32.mrb[0].mxu0
      %10270 = vmatprep.mubr.f32.mxu0 0.0
      %10271 = vmatmul.mubr.f32.gmra.mrb[0].mxu0 %v10088
      %v10272 = vpop.f32.mrb[0].mxu0
      %v10273 = vadd.f32 0.0, %v10272
      %v10274 = vpop.f32.mrb[0].mxu0
      %10275 = vmatprep.mubr.f32.mxu0 0.0
      %10276 = vmatmul.mubr.f32.gmra.mrb[0].mxu0 %v10091
      %v10277 = vpop.f32.mrb[0].mxu0
      %v10278 = vadd.f32 0.0, %v10277
      %v10279 = vpop.f32.mrb[0].mxu0
      %10280 = vmatprep.mubr.f32.mxu0 0.0
      %10281 = vmatmul.mubr.f32.gmra.mrb[0].mxu0 %v10094
      %v10282 = vpop.f32.mrb[0].mxu0
      %v10283 = vadd.f32 0.0, %v10282
      %v10284 = vpop.f32.mrb[0].mxu0
      %10285 = vmatprep.mubr.f32.mxu0 0.0
      %10286 = vmatmul.mubr.f32.gmra.mrb[0].mxu0 %v10097
      %v10287 = vpop.f32.mrb[0].mxu0
      %v10288 = vadd.f32 0.0, %v10287
      %v10289 = vpop.f32.mrb[0].mxu0
      %10290 = vmatprep.mubr.f32.mxu0 0.0
      %10291 = vmatmul.mubr.f32.gmra.mrb[0].mxu0 %v10100
      %v10292 = vpop.f32.mrb[0].mxu0
      %v10293 = vadd.f32 0.0, %v10292
      %v10294 = vpop.f32.mrb[0].mxu0
      %10295 = vmatprep.mubr.f32.mxu0 0.0
      %10296 = vmatmul.mubr.f32.gmra.mrb[0].mxu0 %v10103
      %v10297 = vpop.f32.mrb[0].mxu0
      %v10298 = vadd.f32 0.0, %v10297
      %v10299 = vpop.f32.mrb[0].mxu0
      %10300 = vmatprep.mubr.f32.mxu0 0.0
      %10301 = vmatmul.mubr.f32.gmra.mrb[0].mxu0 %v10106
      %v10302 = vpop.f32.mrb[0].mxu0
      %v10303 = vadd.f32 0.0, %v10302
      %v10304 = vpop.f32.mrb[0].mxu0
      %10305 = vmatprep.mubr.f32.mxu0 0.0
      %10306 = vmatmul.mubr.f32.gmra.mrb[0].mxu0 %v10109
      %v10307 = vpop.f32.mrb[0].mxu0
      %v10308 = vadd.f32 0.0, %v10307
      %v10309 = vpop.f32.mrb[0].mxu0
      %10310 = vmatprep.mubr.f32.mxu0 0.0
      %10311 = vmatmul.mubr.f32.gmra.mrb[0].mxu0 %v10112
      %v10312 = vpop.f32.mrb[0].mxu0
      %v10313 = vadd.f32 0.0, %v10312
      %v10314 = vpop.f32.mrb[0].mxu0
      %10315 = vmatprep.mubr.f32.mxu0 0.0
      %10316 = vmatmul.mubr.f32.gmra.mrb[0].mxu0 %v10115
      %v10317 = vpop.f32.mrb[0].mxu0
      %v10318 = vadd.f32 0.0, %v10317
      %v10319 = vpop.f32.mrb[0].mxu0
      %10320 = vmatprep.mubr.f32.mxu0 0.0
      %10321 = vmatmul.mubr.f32.gmra.mrb[0].mxu0 %v10118
      %v10322 = vpop.f32.mrb[0].mxu0
      %v10323 = vadd.f32 0.0, %v10322
      %v10324 = vpop.f32.mrb[0].mxu0
      %10325 = vmatprep.mubr.f32.mxu0 0.0
      %10326 = vmatmul.mubr.f32.gmra.mrb[0].mxu0 %v10121
      %v10327 = vpop.f32.mrb[0].mxu0
      %v10328 = vadd.f32 0.0, %v10327
      %v10329 = vpop.f32.mrb[0].mxu0
      %10330 = vmatprep.mubr.f32.mxu0 0.0
      %10331 = vmatmul.mubr.f32.gmra.mrb[0].mxu0 %v10124
      %v10332 = vpop.f32.mrb[0].mxu0
      %v10333 = vadd.f32 0.0, %v10332
      %v10334 = vpop.f32.mrb[0].mxu0
      %10335 = vmatprep.mubr.f32.mxu0 0.0
      %10336 = vmatmul.mubr.f32.gmra.mrb[0].mxu0 %v10127
      %v10337 = vpop.f32.mrb[0].mxu0
      %v10338 = vadd.f32 0.0, %v10337
      %v10339 = vpop.f32.mrb[0].mxu0
      %10340 = vmatprep.mubr.f32.mxu0 0.0
      %10341 = vmatmul.mubr.f32.gmra.mrb[0].mxu0 %v10130
      %v10342 = vpop.f32.mrb[0].mxu0
      %v10343 = vadd.f32 0.0, %v10342
      %v10344 = vpop.f32.mrb[0].mxu0
      %10345 = vmatprep.mubr.f32.mxu0 0.0
      %10346 = vmatmul.mubr.f32.gmra.mrb[0].mxu0 %v10133
      %v10347 = vpop.f32.mrb[0].mxu0
      %v10348 = vadd.f32 0.0, %v10347
      %v10349 = vpop.f32.mrb[0].mxu0
      %10350 = vmatprep.mubr.f32.mxu0 0.0
      %10351 = vmatmul.mubr.f32.gmra.mrb[0].mxu0 %v10136
      %v10352 = vpop.f32.mrb[0].mxu0
      %v10353 = vadd.f32 0.0, %v10352
      %v10354 = vpop.f32.mrb[0].mxu0
      %10355 = vmatprep.mubr.f32.mxu0 0.0
      %10356 = vmatmul.mubr.f32.gmra.mrb[0].mxu0 %v10139
      %v10357 = vpop.f32.mrb[0].mxu0
      %v10358 = vadd.f32 0.0, %v10357
      %v10359 = vpop.f32.mrb[0].mxu0
      %10360 = vmatprep.mubr.f32.mxu0 0.0
      %10361 = vmatmul.mubr.f32.gmra.mrb[0].mxu0 %v10142
      %v10362 = vpop.f32.mrb[0].mxu0
      %v10363 = vadd.f32 0.0, %v10362
      %v10364 = vpop.f32.mrb[0].mxu0
      %10365 = vmatprep.mubr.f32.mxu0 0.0
      %10366 = vmatmul.mubr.f32.gmra.mrb[0].mxu0 %v10145
      %v10367 = vpop.f32.mrb[0].mxu0
      %v10368 = vadd.f32 0.0, %v10367
      %v10369 = vpop.f32.mrb[0].mxu0
      %10370 = vmatprep.mubr.f32.mxu0 0.0
      %10371 = vmatmul.mubr.f32.gmra.mrb[0].mxu0 %v10148
      %v10372 = vpop.f32.mrb[0].mxu0
      %v10373 = vadd.f32 0.0, %v10372
      %v10374 = vpop.f32.mrb[0].mxu0
      %10375 = vmatprep.mubr.f32.mxu0 0.0
      %10376 = vmatmul.mubr.f32.gmra.mrb[0].mxu0 %v10151
      %v10377 = vpop.f32.mrb[0].mxu0
      %v10378 = vadd.f32 0.0, %v10377
      %v10379 = vpop.f32.mrb[0].mxu0
      %10380 = vdwg.mxu0
      %v10381 = vadd.f32 %v9990, %v10223
      %v10382 = vadd.f32 %v9991, %v10228
      %v10383 = vadd.f32 %v9992, %v10233
      %v10384 = vadd.f32 %v9993, %v10238
      %v10385 = vadd.f32 %v9994, %v10243
      %v10386 = vadd.f32 %v9995, %v10248
      %v10387 = vadd.f32 %v9996, %v10253
      %v10388 = vadd.f32 %v9997, %v10258
      %v10389 = vadd.f32 %v9998, %v10263
      %v10390 = vadd.f32 %v9999, %v10268
      %v10391 = vadd.f32 %v10000, %v10273
      %v10392 = vadd.f32 %v10001, %v10278
      %v10393 = vadd.f32 %v10002, %v10283
      %v10394 = vadd.f32 %v10003, %v10288
      %v10395 = vadd.f32 %v10004, %v10293
      %v10396 = vadd.f32 %v10005, %v10298
      %v10397 = vadd.f32 %v10006, %v10303
      %v10398 = vadd.f32 %v10007, %v10308
      %v10399 = vadd.f32 %v10008, %v10313
      %v10400 = vadd.f32 %v10009, %v10318
      %v10401 = vadd.f32 %v10010, %v10323
      %v10402 = vadd.f32 %v10011, %v10328
      %v10403 = vadd.f32 %v10012, %v10333
      %v10404 = vadd.f32 %v10013, %v10338
      %v10405 = vadd.f32 %v10014, %v10343
      %v10406 = vadd.f32 %v10015, %v10348
      %v10407 = vadd.f32 %v10016, %v10353
      %v10408 = vadd.f32 %v10017, %v10358
      %v10409 = vadd.f32 %v10018, %v10363
      %v10410 = vadd.f32 %v10019, %v10368
      %v10411 = vadd.f32 %v10020, %v10373
      %v10412 = vadd.f32 %v10021, %v10378
      %v10413 = vld [vmem:[%s10022 + $0x1] sm:$0xff]
      %v10414 = vld [vmem:[%s10022 + $0x9] sm:$0xff]
      %v10415 = vld [vmem:[%s10022 + $0x19] sm:$0xff]
      %v10416 = vld [vmem:[%s10022 + $0x21] sm:$0xff]
      %v10417 = vld [vmem:[%s10022 + $0x31] sm:$0xff]
      %v10418 = vld [vmem:[%s10022 + $0x39] sm:$0xff]
      %v10419 = vld [vmem:[%s10022 + $0x49] sm:$0xff]
      %v10420 = vld [vmem:[%s10022 + $0x51] sm:$0xff]
      %v10421 = vld [vmem:[%s10022 + $0x61] sm:$0xff]
      %v10422 = vld [vmem:[%s10022 + $0x69] sm:$0xff]
      %v10423 = vld [vmem:[%s10022 + $0x79] sm:$0xff]
      %v10424 = vld [vmem:[%s10022 + $0x81] sm:$0xff]
      %v10425 = vld [vmem:[%s10022 + $0x91] sm:$0xff]
      %v10426 = vld [vmem:[%s10022 + $0x99] sm:$0xff]
      %v10427 = vld [vmem:[%s10022 + $0xa9] sm:$0xff]
      %v10428 = vld [vmem:[%s10022 + $0xb1] sm:$0xff]
      %v10429 = vld [vmem:[%s10022 + $0xc1] sm:$0xff]
      %v10430 = vld [vmem:[%s10022 + $0xc9] sm:$0xff]
      %v10431 = vld [vmem:[%s10022 + $0xd9] sm:$0xff]
      %v10432 = vld [vmem:[%s10022 + $0xe1] sm:$0xff]
      %v10433 = vld [vmem:[%s10022 + $0xf1] sm:$0xff]
      %v10434 = vld [vmem:[%s10022 + $0xf9] sm:$0xff]
      %v10435 = vld [vmem:[%s10022 + $0x109] sm:$0xff]
      %v10436 = vld [vmem:[%s10022 + $0x111] sm:$0xff]
      %v10437 = vld [vmem:[%s10022 + $0x121] sm:$0xff]
      %v10438 = vld [vmem:[%s10022 + $0x129] sm:$0xff]
      %v10439 = vld [vmem:[%s10022 + $0x139] sm:$0xff]
      %v10440 = vld [vmem:[%s10022 + $0x141] sm:$0xff]
      %v10441 = vld [vmem:[%s10022 + $0x151] sm:$0xff]
      %v10442 = vld [vmem:[%s10022 + $0x159] sm:$0xff]
      %v10443 = vld [vmem:[%s10022 + $0x169] sm:$0xff]
      %v10444 = vld [vmem:[%s10022 + $0x171] sm:$0xff]
      %s10445 = scalar_lea.vmem %s6, 28
      %v10446 = vld [vmem:[%s10445] sm:$0xf]
      %v10448 = vsel %vm353, %v10413, 0
      %v10451 = vsel %vm353, %v10414, 0
      %v10454 = vsel %vm353, %v10415, 0
      %v10457 = vsel %vm353, %v10416, 0
      %v10460 = vsel %vm353, %v10417, 0
      %v10463 = vsel %vm353, %v10418, 0
      %v10466 = vsel %vm353, %v10419, 0
      %v10469 = vsel %vm353, %v10420, 0
      %v10472 = vsel %vm353, %v10421, 0
      %v10475 = vsel %vm353, %v10422, 0
      %v10478 = vsel %vm353, %v10423, 0
      %v10481 = vsel %vm353, %v10424, 0
      %v10484 = vsel %vm353, %v10425, 0
      %v10487 = vsel %vm353, %v10426, 0
      %v10490 = vsel %vm353, %v10427, 0
      %v10493 = vsel %vm353, %v10428, 0
      %v10496 = vsel %vm353, %v10429, 0
      %v10499 = vsel %vm353, %v10430, 0
      %v10502 = vsel %vm353, %v10431, 0
      %v10505 = vsel %vm353, %v10432, 0
      %v10508 = vsel %vm353, %v10433, 0
      %v10511 = vsel %vm353, %v10434, 0
      %v10514 = vsel %vm353, %v10435, 0
      %v10517 = vsel %vm353, %v10436, 0
      %v10520 = vsel %vm353, %v10437, 0
      %v10523 = vsel %vm353, %v10438, 0
      %v10526 = vsel %vm353, %v10439, 0
      %v10529 = vsel %vm353, %v10440, 0
      %v10532 = vsel %vm353, %v10441, 0
      %v10535 = vsel %vm353, %v10442, 0
      %v10538 = vsel %vm353, %v10443, 0
      %v10541 = vsel %vm353, %v10444, 0
      %v10544 = vsel %vm809, %v10446, 0
      %10546 = vmatprep.subr.mxu0 0.0
      %10547 = vmatpush1.msra.mxu0 %v10544
      %10548 = vmatprep.subr.mxu0 0.0
      %10549 = vmatpush1.msra.mxu0 0.0
      %10550 = vmatprep.subr.mxu0 0.0
      %10551 = vmatpush1.msra.mxu0 0.0
      %10552 = vmatprep.subr.mxu0 0.0
      %10553 = vmatpush1.msra.mxu0 0.0
      %10554 = vmatprep.subr.mxu0 0.0
      %10555 = vmatpush1.msra.mxu0 0.0
      %10556 = vmatprep.subr.mxu0 0.0
      %10557 = vmatpush1.msra.mxu0 0.0
      %10558 = vmatprep.subr.mxu0 0.0
      %10559 = vmatpush1.msra.mxu0 0.0
      %10560 = vmatprep.subr.mxu0 0.0
      %10561 = vmatpush1.msra.mxu0 0.0
      %10562 = vmatprep.subr.mxu0 0.0
      %10563 = vmatpush1.msra.mxu0 0.0
      %10564 = vmatprep.subr.mxu0 0.0
      %10565 = vmatpush1.msra.mxu0 0.0
      %10566 = vmatprep.subr.mxu0 0.0
      %10567 = vmatpush1.msra.mxu0 0.0
      %10568 = vmatprep.subr.mxu0 0.0
      %10569 = vmatpush1.msra.mxu0 0.0
      %10570 = vmatprep.subr.mxu0 0.0
      %10571 = vmatpush1.msra.mxu0 0.0
      %10572 = vmatprep.subr.mxu0 0.0
      %10573 = vmatpush1.msra.mxu0 0.0
      %10574 = vmatprep.subr.mxu0 0.0
      %10575 = vmatpush1.msra.mxu0 0.0
      %10576 = vmatprep.subr.mxu0 0.0
      %10577 = vmatpush1.msra.mxu0 0.0
      %10578 = vmatprep.subr.mxu0 0.0
      %10579 = vmatpush1.msra.mxu0 0.0
      %10580 = vmatprep.subr.mxu0 0.0
      %10581 = vmatpush1.msra.mxu0 0.0
      %10582 = vmatprep.subr.mxu0 0.0
      %10583 = vmatpush1.msra.mxu0 0.0
      %10584 = vmatprep.subr.mxu0 0.0
      %10585 = vmatpush1.msra.mxu0 0.0
      %10586 = vmatprep.subr.mxu0 0.0
      %10587 = vmatpush1.msra.mxu0 0.0
      %10588 = vmatprep.subr.mxu0 0.0
      %10589 = vmatpush1.msra.mxu0 0.0
      %10590 = vmatprep.subr.mxu0 0.0
      %10591 = vmatpush1.msra.mxu0 0.0
      %10592 = vmatprep.subr.mxu0 0.0
      %10593 = vmatpush1.msra.mxu0 0.0
      %10594 = vmatprep.subr.mxu0 0.0
      %10595 = vmatpush1.msra.mxu0 0.0
      %10596 = vmatprep.subr.mxu0 0.0
      %10597 = vmatpush1.msra.mxu0 0.0
      %10598 = vmatprep.subr.mxu0 0.0
      %10599 = vmatpush1.msra.mxu0 0.0
      %10600 = vmatprep.subr.mxu0 0.0
      %10601 = vmatpush1.msra.mxu0 0.0
      %10602 = vmatprep.subr.mxu0 0.0
      %10603 = vmatpush1.msra.mxu0 0.0
      %10604 = vmatprep.subr.mxu0 0.0
      %10605 = vmatpush1.msra.mxu0 0.0
      %10606 = vmatprep.subr.mxu0 0.0
      %10607 = vmatpush1.msra.mxu0 0.0
      %10608 = vmatprep.subr.mxu0 0.0
      %10609 = vmatpush1.msra.mxu0 0.0
      %10610 = vmatprep.mubr.f32.mxu0 0.0
      %10611 = vmatmul.mubr.f32.gmra.mrb[0].mxu0 %v10448
      %v10612 = vpop.f32.mrb[0].mxu0
      %v10613 = vadd.f32 0.0, %v10612
      %v10614 = vpop.f32.mrb[0].mxu0
      %10615 = vmatprep.mubr.f32.mxu0 0.0
      %10616 = vmatmul.mubr.f32.gmra.mrb[0].mxu0 %v10451
      %v10617 = vpop.f32.mrb[0].mxu0
      %v10618 = vadd.f32 0.0, %v10617
      %v10619 = vpop.f32.mrb[0].mxu0
      %10620 = vmatprep.mubr.f32.mxu0 0.0
      %10621 = vmatmul.mubr.f32.gmra.mrb[0].mxu0 %v10454
      %v10622 = vpop.f32.mrb[0].mxu0
      %v10623 = vadd.f32 0.0, %v10622
      %v10624 = vpop.f32.mrb[0].mxu0
      %10625 = vmatprep.mubr.f32.mxu0 0.0
      %10626 = vmatmul.mubr.f32.gmra.mrb[0].mxu0 %v10457
      %v10627 = vpop.f32.mrb[0].mxu0
      %v10628 = vadd.f32 0.0, %v10627
      %v10629 = vpop.f32.mrb[0].mxu0
      %10630 = vmatprep.mubr.f32.mxu0 0.0
      %10631 = vmatmul.mubr.f32.gmra.mrb[0].mxu0 %v10460
      %v10632 = vpop.f32.mrb[0].mxu0
      %v10633 = vadd.f32 0.0, %v10632
      %v10634 = vpop.f32.mrb[0].mxu0
      %10635 = vmatprep.mubr.f32.mxu0 0.0
      %10636 = vmatmul.mubr.f32.gmra.mrb[0].mxu0 %v10463
      %v10637 = vpop.f32.mrb[0].mxu0
      %v10638 = vadd.f32 0.0, %v10637
      %v10639 = vpop.f32.mrb[0].mxu0
      %10640 = vmatprep.mubr.f32.mxu0 0.0
      %10641 = vmatmul.mubr.f32.gmra.mrb[0].mxu0 %v10466
      %v10642 = vpop.f32.mrb[0].mxu0
      %v10643 = vadd.f32 0.0, %v10642
      %v10644 = vpop.f32.mrb[0].mxu0
      %10645 = vmatprep.mubr.f32.mxu0 0.0
      %10646 = vmatmul.mubr.f32.gmra.mrb[0].mxu0 %v10469
      %v10647 = vpop.f32.mrb[0].mxu0
      %v10648 = vadd.f32 0.0, %v10647
      %v10649 = vpop.f32.mrb[0].mxu0
      %10650 = vmatprep.mubr.f32.mxu0 0.0
      %10651 = vmatmul.mubr.f32.gmra.mrb[0].mxu0 %v10472
      %v10652 = vpop.f32.mrb[0].mxu0
      %v10653 = vadd.f32 0.0, %v10652
      %v10654 = vpop.f32.mrb[0].mxu0
      %10655 = vmatprep.mubr.f32.mxu0 0.0
      %10656 = vmatmul.mubr.f32.gmra.mrb[0].mxu0 %v10475
      %v10657 = vpop.f32.mrb[0].mxu0
      %v10658 = vadd.f32 0.0, %v10657
      %v10659 = vpop.f32.mrb[0].mxu0
      %10660 = vmatprep.mubr.f32.mxu0 0.0
      %10661 = vmatmul.mubr.f32.gmra.mrb[0].mxu0 %v10478
      %v10662 = vpop.f32.mrb[0].mxu0
      %v10663 = vadd.f32 0.0, %v10662
      %v10664 = vpop.f32.mrb[0].mxu0
      %10665 = vmatprep.mubr.f32.mxu0 0.0
      %10666 = vmatmul.mubr.f32.gmra.mrb[0].mxu0 %v10481
      %v10667 = vpop.f32.mrb[0].mxu0
      %v10668 = vadd.f32 0.0, %v10667
      %v10669 = vpop.f32.mrb[0].mxu0
      %10670 = vmatprep.mubr.f32.mxu0 0.0
      %10671 = vmatmul.mubr.f32.gmra.mrb[0].mxu0 %v10484
      %v10672 = vpop.f32.mrb[0].mxu0
      %v10673 = vadd.f32 0.0, %v10672
      %v10674 = vpop.f32.mrb[0].mxu0
      %10675 = vmatprep.mubr.f32.mxu0 0.0
      %10676 = vmatmul.mubr.f32.gmra.mrb[0].mxu0 %v10487
      %v10677 = vpop.f32.mrb[0].mxu0
      %v10678 = vadd.f32 0.0, %v10677
      %v10679 = vpop.f32.mrb[0].mxu0
      %10680 = vmatprep.mubr.f32.mxu0 0.0
      %10681 = vmatmul.mubr.f32.gmra.mrb[0].mxu0 %v10490
      %v10682 = vpop.f32.mrb[0].mxu0
      %v10683 = vadd.f32 0.0, %v10682
      %v10684 = vpop.f32.mrb[0].mxu0
      %10685 = vmatprep.mubr.f32.mxu0 0.0
      %10686 = vmatmul.mubr.f32.gmra.mrb[0].mxu0 %v10493
      %v10687 = vpop.f32.mrb[0].mxu0
      %v10688 = vadd.f32 0.0, %v10687
      %v10689 = vpop.f32.mrb[0].mxu0
      %10690 = vmatprep.mubr.f32.mxu0 0.0
      %10691 = vmatmul.mubr.f32.gmra.mrb[0].mxu0 %v10496
      %v10692 = vpop.f32.mrb[0].mxu0
      %v10693 = vadd.f32 0.0, %v10692
      %v10694 = vpop.f32.mrb[0].mxu0
      %10695 = vmatprep.mubr.f32.mxu0 0.0
      %10696 = vmatmul.mubr.f32.gmra.mrb[0].mxu0 %v10499
      %v10697 = vpop.f32.mrb[0].mxu0
      %v10698 = vadd.f32 0.0, %v10697
      %v10699 = vpop.f32.mrb[0].mxu0
      %10700 = vmatprep.mubr.f32.mxu0 0.0
      %10701 = vmatmul.mubr.f32.gmra.mrb[0].mxu0 %v10502
      %v10702 = vpop.f32.mrb[0].mxu0
      %v10703 = vadd.f32 0.0, %v10702
      %v10704 = vpop.f32.mrb[0].mxu0
      %10705 = vmatprep.mubr.f32.mxu0 0.0
      %10706 = vmatmul.mubr.f32.gmra.mrb[0].mxu0 %v10505
      %v10707 = vpop.f32.mrb[0].mxu0
      %v10708 = vadd.f32 0.0, %v10707
      %v10709 = vpop.f32.mrb[0].mxu0
      %10710 = vmatprep.mubr.f32.mxu0 0.0
      %10711 = vmatmul.mubr.f32.gmra.mrb[0].mxu0 %v10508
      %v10712 = vpop.f32.mrb[0].mxu0
      %v10713 = vadd.f32 0.0, %v10712
      %v10714 = vpop.f32.mrb[0].mxu0
      %10715 = vmatprep.mubr.f32.mxu0 0.0
      %10716 = vmatmul.mubr.f32.gmra.mrb[0].mxu0 %v10511
      %v10717 = vpop.f32.mrb[0].mxu0
      %v10718 = vadd.f32 0.0, %v10717
      %v10719 = vpop.f32.mrb[0].mxu0
      %10720 = vmatprep.mubr.f32.mxu0 0.0
      %10721 = vmatmul.mubr.f32.gmra.mrb[0].mxu0 %v10514
      %v10722 = vpop.f32.mrb[0].mxu0
      %v10723 = vadd.f32 0.0, %v10722
      %v10724 = vpop.f32.mrb[0].mxu0
      %10725 = vmatprep.mubr.f32.mxu0 0.0
      %10726 = vmatmul.mubr.f32.gmra.mrb[0].mxu0 %v10517
      %v10727 = vpop.f32.mrb[0].mxu0
      %v10728 = vadd.f32 0.0, %v10727
      %v10729 = vpop.f32.mrb[0].mxu0
      %10730 = vmatprep.mubr.f32.mxu0 0.0
      %10731 = vmatmul.mubr.f32.gmra.mrb[0].mxu0 %v10520
      %v10732 = vpop.f32.mrb[0].mxu0
      %v10733 = vadd.f32 0.0, %v10732
      %v10734 = vpop.f32.mrb[0].mxu0
      %10735 = vmatprep.mubr.f32.mxu0 0.0
      %10736 = vmatmul.mubr.f32.gmra.mrb[0].mxu0 %v10523
      %v10737 = vpop.f32.mrb[0].mxu0
      %v10738 = vadd.f32 0.0, %v10737
      %v10739 = vpop.f32.mrb[0].mxu0
      %10740 = vmatprep.mubr.f32.mxu0 0.0
      %10741 = vmatmul.mubr.f32.gmra.mrb[0].mxu0 %v10526
      %v10742 = vpop.f32.mrb[0].mxu0
      %v10743 = vadd.f32 0.0, %v10742
      %v10744 = vpop.f32.mrb[0].mxu0
      %10745 = vmatprep.mubr.f32.mxu0 0.0
      %10746 = vmatmul.mubr.f32.gmra.mrb[0].mxu0 %v10529
      %v10747 = vpop.f32.mrb[0].mxu0
      %v10748 = vadd.f32 0.0, %v10747
      %v10749 = vpop.f32.mrb[0].mxu0
      %10750 = vmatprep.mubr.f32.mxu0 0.0
      %10751 = vmatmul.mubr.f32.gmra.mrb[0].mxu0 %v10532
      %v10752 = vpop.f32.mrb[0].mxu0
      %v10753 = vadd.f32 0.0, %v10752
      %v10754 = vpop.f32.mrb[0].mxu0
      %10755 = vmatprep.mubr.f32.mxu0 0.0
      %10756 = vmatmul.mubr.f32.gmra.mrb[0].mxu0 %v10535
      %v10757 = vpop.f32.mrb[0].mxu0
      %v10758 = vadd.f32 0.0, %v10757
      %v10759 = vpop.f32.mrb[0].mxu0
      %10760 = vmatprep.mubr.f32.mxu0 0.0
      %10761 = vmatmul.mubr.f32.gmra.mrb[0].mxu0 %v10538
      %v10762 = vpop.f32.mrb[0].mxu0
      %v10763 = vadd.f32 0.0, %v10762
      %v10764 = vpop.f32.mrb[0].mxu0
      %10765 = vmatprep.mubr.f32.mxu0 0.0
      %10766 = vmatmul.mubr.f32.gmra.mrb[0].mxu0 %v10541
      %v10767 = vpop.f32.mrb[0].mxu0
      %v10768 = vadd.f32 0.0, %v10767
      %v10769 = vpop.f32.mrb[0].mxu0
      %10770 = vdwg.mxu0
      %v10771 = vadd.f32 %v10381, %v10613
      %v10772 = vadd.f32 %v10382, %v10618
      %v10773 = vadd.f32 %v10383, %v10623
      %v10774 = vadd.f32 %v10384, %v10628
      %v10775 = vadd.f32 %v10385, %v10633
      %v10776 = vadd.f32 %v10386, %v10638
      %v10777 = vadd.f32 %v10387, %v10643
      %v10778 = vadd.f32 %v10388, %v10648
      %v10779 = vadd.f32 %v10389, %v10653
      %v10780 = vadd.f32 %v10390, %v10658
      %v10781 = vadd.f32 %v10391, %v10663
      %v10782 = vadd.f32 %v10392, %v10668
      %v10783 = vadd.f32 %v10393, %v10673
      %v10784 = vadd.f32 %v10394, %v10678
      %v10785 = vadd.f32 %v10395, %v10683
      %v10786 = vadd.f32 %v10396, %v10688
      %v10787 = vadd.f32 %v10397, %v10693
      %v10788 = vadd.f32 %v10398, %v10698
      %v10789 = vadd.f32 %v10399, %v10703
      %v10790 = vadd.f32 %v10400, %v10708
      %v10791 = vadd.f32 %v10401, %v10713
      %v10792 = vadd.f32 %v10402, %v10718
      %v10793 = vadd.f32 %v10403, %v10723
      %v10794 = vadd.f32 %v10404, %v10728
      %v10795 = vadd.f32 %v10405, %v10733
      %v10796 = vadd.f32 %v10406, %v10738
      %v10797 = vadd.f32 %v10407, %v10743
      %v10798 = vadd.f32 %v10408, %v10748
      %v10799 = vadd.f32 %v10409, %v10753
      %v10800 = vadd.f32 %v10410, %v10758
      %v10801 = vadd.f32 %v10411, %v10763
      %v10802 = vadd.f32 %v10412, %v10768
      %v10803 = vld [vmem:[%s10022 + $0x2] sm:$0xff]
      %v10804 = vld [vmem:[%s10022 + $0xa] sm:$0xff]
      %v10805 = vld [vmem:[%s10022 + $0x1a] sm:$0xff]
      %v10806 = vld [vmem:[%s10022 + $0x22] sm:$0xff]
      %v10807 = vld [vmem:[%s10022 + $0x32] sm:$0xff]
      %v10808 = vld [vmem:[%s10022 + $0x3a] sm:$0xff]
      %v10809 = vld [vmem:[%s10022 + $0x4a] sm:$0xff]
      %v10810 = vld [vmem:[%s10022 + $0x52] sm:$0xff]
      %v10811 = vld [vmem:[%s10022 + $0x62] sm:$0xff]
      %v10812 = vld [vmem:[%s10022 + $0x6a] sm:$0xff]
      %v10813 = vld [vmem:[%s10022 + $0x7a] sm:$0xff]
      %v10814 = vld [vmem:[%s10022 + $0x82] sm:$0xff]
      %v10815 = vld [vmem:[%s10022 + $0x92] sm:$0xff]
      %v10816 = vld [vmem:[%s10022 + $0x9a] sm:$0xff]
      %v10817 = vld [vmem:[%s10022 + $0xaa] sm:$0xff]
      %v10818 = vld [vmem:[%s10022 + $0xb2] sm:$0xff]
      %v10819 = vld [vmem:[%s10022 + $0xc2] sm:$0xff]
      %v10820 = vld [vmem:[%s10022 + $0xca] sm:$0xff]
      %v10821 = vld [vmem:[%s10022 + $0xda] sm:$0xff]
      %v10822 = vld [vmem:[%s10022 + $0xe2] sm:$0xff]
      %v10823 = vld [vmem:[%s10022 + $0xf2] sm:$0xff]
      %v10824 = vld [vmem:[%s10022 + $0xfa] sm:$0xff]
      %v10825 = vld [vmem:[%s10022 + $0x10a] sm:$0xff]
      %v10826 = vld [vmem:[%s10022 + $0x112] sm:$0xff]
      %v10827 = vld [vmem:[%s10022 + $0x122] sm:$0xff]
      %v10828 = vld [vmem:[%s10022 + $0x12a] sm:$0xff]
      %v10829 = vld [vmem:[%s10022 + $0x13a] sm:$0xff]
      %v10830 = vld [vmem:[%s10022 + $0x142] sm:$0xff]
      %v10831 = vld [vmem:[%s10022 + $0x152] sm:$0xff]
      %v10832 = vld [vmem:[%s10022 + $0x15a] sm:$0xff]
      %v10833 = vld [vmem:[%s10022 + $0x16a] sm:$0xff]
      %v10834 = vld [vmem:[%s10022 + $0x172] sm:$0xff]
      %s10835 = scalar_lea.vmem %s6, 32
      %v10836 = vld [vmem:[%s10835] sm:$0xf]
      %v10838 = vsel %vm353, %v10803, 0
      %v10841 = vsel %vm353, %v10804, 0
      %v10844 = vsel %vm353, %v10805, 0
      %v10847 = vsel %vm353, %v10806, 0
      %v10850 = vsel %vm353, %v10807, 0
      %v10853 = vsel %vm353, %v10808, 0
      %v10856 = vsel %vm353, %v10809, 0
      %v10859 = vsel %vm353, %v10810, 0
      %v10862 = vsel %vm353, %v10811, 0
      %v10865 = vsel %vm353, %v10812, 0
      %v10868 = vsel %vm353, %v10813, 0
      %v10871 = vsel %vm353, %v10814, 0
      %v10874 = vsel %vm353, %v10815, 0
      %v10877 = vsel %vm353, %v10816, 0
      %v10880 = vsel %vm353, %v10817, 0
      %v10883 = vsel %vm353, %v10818, 0
      %v10886 = vsel %vm353, %v10819, 0
      %v10889 = vsel %vm353, %v10820, 0
      %v10892 = vsel %vm353, %v10821, 0
      %v10895 = vsel %vm353, %v10822, 0
      %v10898 = vsel %vm353, %v10823, 0
      %v10901 = vsel %vm353, %v10824, 0
      %v10904 = vsel %vm353, %v10825, 0
      %v10907 = vsel %vm353, %v10826, 0
      %v10910 = vsel %vm353, %v10827, 0
      %v10913 = vsel %vm353, %v10828, 0
      %v10916 = vsel %vm353, %v10829, 0
      %v10919 = vsel %vm353, %v10830, 0
      %v10922 = vsel %vm353, %v10831, 0
      %v10925 = vsel %vm353, %v10832, 0
      %v10928 = vsel %vm353, %v10833, 0
      %v10931 = vsel %vm353, %v10834, 0
      %v10934 = vsel %vm809, %v10836, 0
      %10936 = vmatprep.subr.mxu0 0.0
      %10937 = vmatpush1.msra.mxu0 %v10934
      %10938 = vmatprep.subr.mxu0 0.0
      %10939 = vmatpush1.msra.mxu0 0.0
      %10940 = vmatprep.subr.mxu0 0.0
      %10941 = vmatpush1.msra.mxu0 0.0
      %10942 = vmatprep.subr.mxu0 0.0
      %10943 = vmatpush1.msra.mxu0 0.0
      %10944 = vmatprep.subr.mxu0 0.0
      %10945 = vmatpush1.msra.mxu0 0.0
      %10946 = vmatprep.subr.mxu0 0.0
      %10947 = vmatpush1.msra.mxu0 0.0
      %10948 = vmatprep.subr.mxu0 0.0
      %10949 = vmatpush1.msra.mxu0 0.0
      %10950 = vmatprep.subr.mxu0 0.0
      %10951 = vmatpush1.msra.mxu0 0.0
      %10952 = vmatprep.subr.mxu0 0.0
      %10953 = vmatpush1.msra.mxu0 0.0
      %10954 = vmatprep.subr.mxu0 0.0
      %10955 = vmatpush1.msra.mxu0 0.0
      %10956 = vmatprep.subr.mxu0 0.0
      %10957 = vmatpush1.msra.mxu0 0.0
      %10958 = vmatprep.subr.mxu0 0.0
      %10959 = vmatpush1.msra.mxu0 0.0
      %10960 = vmatprep.subr.mxu0 0.0
      %10961 = vmatpush1.msra.mxu0 0.0
      %10962 = vmatprep.subr.mxu0 0.0
      %10963 = vmatpush1.msra.mxu0 0.0
      %10964 = vmatprep.subr.mxu0 0.0
      %10965 = vmatpush1.msra.mxu0 0.0
      %10966 = vmatprep.subr.mxu0 0.0
      %10967 = vmatpush1.msra.mxu0 0.0
      %10968 = vmatprep.subr.mxu0 0.0
      %10969 = vmatpush1.msra.mxu0 0.0
      %10970 = vmatprep.subr.mxu0 0.0
      %10971 = vmatpush1.msra.mxu0 0.0
      %10972 = vmatprep.subr.mxu0 0.0
      %10973 = vmatpush1.msra.mxu0 0.0
      %10974 = vmatprep.subr.mxu0 0.0
      %10975 = vmatpush1.msra.mxu0 0.0
      %10976 = vmatprep.subr.mxu0 0.0
      %10977 = vmatpush1.msra.mxu0 0.0
      %10978 = vmatprep.subr.mxu0 0.0
      %10979 = vmatpush1.msra.mxu0 0.0
      %10980 = vmatprep.subr.mxu0 0.0
      %10981 = vmatpush1.msra.mxu0 0.0
      %10982 = vmatprep.subr.mxu0 0.0
      %10983 = vmatpush1.msra.mxu0 0.0
      %10984 = vmatprep.subr.mxu0 0.0
      %10985 = vmatpush1.msra.mxu0 0.0
      %10986 = vmatprep.subr.mxu0 0.0
      %10987 = vmatpush1.msra.mxu0 0.0
      %10988 = vmatprep.subr.mxu0 0.0
      %10989 = vmatpush1.msra.mxu0 0.0
      %10990 = vmatprep.subr.mxu0 0.0
      %10991 = vmatpush1.msra.mxu0 0.0
      %10992 = vmatprep.subr.mxu0 0.0
      %10993 = vmatpush1.msra.mxu0 0.0
      %10994 = vmatprep.subr.mxu0 0.0
      %10995 = vmatpush1.msra.mxu0 0.0
      %10996 = vmatprep.subr.mxu0 0.0
      %10997 = vmatpush1.msra.mxu0 0.0
      %10998 = vmatprep.subr.mxu0 0.0
      %10999 = vmatpush1.msra.mxu0 0.0
      %11000 = vmatprep.mubr.f32.mxu0 0.0
      %11001 = vmatmul.mubr.f32.gmra.mrb[0].mxu0 %v10838
      %v11002 = vpop.f32.mrb[0].mxu0
      %v11003 = vadd.f32 0.0, %v11002
      %v11004 = vpop.f32.mrb[0].mxu0
      %11005 = vmatprep.mubr.f32.mxu0 0.0
      %11006 = vmatmul.mubr.f32.gmra.mrb[0].mxu0 %v10841
      %v11007 = vpop.f32.mrb[0].mxu0
      %v11008 = vadd.f32 0.0, %v11007
      %v11009 = vpop.f32.mrb[0].mxu0
      %11010 = vmatprep.mubr.f32.mxu0 0.0
      %11011 = vmatmul.mubr.f32.gmra.mrb[0].mxu0 %v10844
      %v11012 = vpop.f32.mrb[0].mxu0
      %v11013 = vadd.f32 0.0, %v11012
      %v11014 = vpop.f32.mrb[0].mxu0
      %11015 = vmatprep.mubr.f32.mxu0 0.0
      %11016 = vmatmul.mubr.f32.gmra.mrb[0].mxu0 %v10847
      %v11017 = vpop.f32.mrb[0].mxu0
      %v11018 = vadd.f32 0.0, %v11017
      %v11019 = vpop.f32.mrb[0].mxu0
      %11020 = vmatprep.mubr.f32.mxu0 0.0
      %11021 = vmatmul.mubr.f32.gmra.mrb[0].mxu0 %v10850
      %v11022 = vpop.f32.mrb[0].mxu0
      %v11023 = vadd.f32 0.0, %v11022
      %v11024 = vpop.f32.mrb[0].mxu0
      %11025 = vmatprep.mubr.f32.mxu0 0.0
      %11026 = vmatmul.mubr.f32.gmra.mrb[0].mxu0 %v10853
      %v11027 = vpop.f32.mrb[0].mxu0
      %v11028 = vadd.f32 0.0, %v11027
      %v11029 = vpop.f32.mrb[0].mxu0
      %11030 = vmatprep.mubr.f32.mxu0 0.0
      %11031 = vmatmul.mubr.f32.gmra.mrb[0].mxu0 %v10856
      %v11032 = vpop.f32.mrb[0].mxu0
      %v11033 = vadd.f32 0.0, %v11032
      %v11034 = vpop.f32.mrb[0].mxu0
      %11035 = vmatprep.mubr.f32.mxu0 0.0
      %11036 = vmatmul.mubr.f32.gmra.mrb[0].mxu0 %v10859
      %v11037 = vpop.f32.mrb[0].mxu0
      %v11038 = vadd.f32 0.0, %v11037
      %v11039 = vpop.f32.mrb[0].mxu0
      %11040 = vmatprep.mubr.f32.mxu0 0.0
      %11041 = vmatmul.mubr.f32.gmra.mrb[0].mxu0 %v10862
      %v11042 = vpop.f32.mrb[0].mxu0
      %v11043 = vadd.f32 0.0, %v11042
      %v11044 = vpop.f32.mrb[0].mxu0
      %11045 = vmatprep.mubr.f32.mxu0 0.0
      %11046 = vmatmul.mubr.f32.gmra.mrb[0].mxu0 %v10865
      %v11047 = vpop.f32.mrb[0].mxu0
      %v11048 = vadd.f32 0.0, %v11047
      %v11049 = vpop.f32.mrb[0].mxu0
      %11050 = vmatprep.mubr.f32.mxu0 0.0
      %11051 = vmatmul.mubr.f32.gmra.mrb[0].mxu0 %v10868
      %v11052 = vpop.f32.mrb[0].mxu0
      %v11053 = vadd.f32 0.0, %v11052
      %v11054 = vpop.f32.mrb[0].mxu0
      %11055 = vmatprep.mubr.f32.mxu0 0.0
      %11056 = vmatmul.mubr.f32.gmra.mrb[0].mxu0 %v10871
      %v11057 = vpop.f32.mrb[0].mxu0
      %v11058 = vadd.f32 0.0, %v11057
      %v11059 = vpop.f32.mrb[0].mxu0
      %11060 = vmatprep.mubr.f32.mxu0 0.0
      %11061 = vmatmul.mubr.f32.gmra.mrb[0].mxu0 %v10874
      %v11062 = vpop.f32.mrb[0].mxu0
      %v11063 = vadd.f32 0.0, %v11062
      %v11064 = vpop.f32.mrb[0].mxu0
      %11065 = vmatprep.mubr.f32.mxu0 0.0
      %11066 = vmatmul.mubr.f32.gmra.mrb[0].mxu0 %v10877
      %v11067 = vpop.f32.mrb[0].mxu0
      %v11068 = vadd.f32 0.0, %v11067
      %v11069 = vpop.f32.mrb[0].mxu0
      %11070 = vmatprep.mubr.f32.mxu0 0.0
      %11071 = vmatmul.mubr.f32.gmra.mrb[0].mxu0 %v10880
      %v11072 = vpop.f32.mrb[0].mxu0
      %v11073 = vadd.f32 0.0, %v11072
      %v11074 = vpop.f32.mrb[0].mxu0
      %11075 = vmatprep.mubr.f32.mxu0 0.0
      %11076 = vmatmul.mubr.f32.gmra.mrb[0].mxu0 %v10883
      %v11077 = vpop.f32.mrb[0].mxu0
      %v11078 = vadd.f32 0.0, %v11077
      %v11079 = vpop.f32.mrb[0].mxu0
      %11080 = vmatprep.mubr.f32.mxu0 0.0
      %11081 = vmatmul.mubr.f32.gmra.mrb[0].mxu0 %v10886
      %v11082 = vpop.f32.mrb[0].mxu0
      %v11083 = vadd.f32 0.0, %v11082
      %v11084 = vpop.f32.mrb[0].mxu0
      %11085 = vmatprep.mubr.f32.mxu0 0.0
      %11086 = vmatmul.mubr.f32.gmra.mrb[0].mxu0 %v10889
      %v11087 = vpop.f32.mrb[0].mxu0
      %v11088 = vadd.f32 0.0, %v11087
      %v11089 = vpop.f32.mrb[0].mxu0
      %11090 = vmatprep.mubr.f32.mxu0 0.0
      %11091 = vmatmul.mubr.f32.gmra.mrb[0].mxu0 %v10892
      %v11092 = vpop.f32.mrb[0].mxu0
      %v11093 = vadd.f32 0.0, %v11092
      %v11094 = vpop.f32.mrb[0].mxu0
      %11095 = vmatprep.mubr.f32.mxu0 0.0
      %11096 = vmatmul.mubr.f32.gmra.mrb[0].mxu0 %v10895
      %v11097 = vpop.f32.mrb[0].mxu0
      %v11098 = vadd.f32 0.0, %v11097
      %v11099 = vpop.f32.mrb[0].mxu0
      %11100 = vmatprep.mubr.f32.mxu0 0.0
      %11101 = vmatmul.mubr.f32.gmra.mrb[0].mxu0 %v10898
      %v11102 = vpop.f32.mrb[0].mxu0
      %v11103 = vadd.f32 0.0, %v11102
      %v11104 = vpop.f32.mrb[0].mxu0
      %11105 = vmatprep.mubr.f32.mxu0 0.0
      %11106 = vmatmul.mubr.f32.gmra.mrb[0].mxu0 %v10901
      %v11107 = vpop.f32.mrb[0].mxu0
      %v11108 = vadd.f32 0.0, %v11107
      %v11109 = vpop.f32.mrb[0].mxu0
      %11110 = vmatprep.mubr.f32.mxu0 0.0
      %11111 = vmatmul.mubr.f32.gmra.mrb[0].mxu0 %v10904
      %v11112 = vpop.f32.mrb[0].mxu0
      %v11113 = vadd.f32 0.0, %v11112
      %v11114 = vpop.f32.mrb[0].mxu0
      %11115 = vmatprep.mubr.f32.mxu0 0.0
      %11116 = vmatmul.mubr.f32.gmra.mrb[0].mxu0 %v10907
      %v11117 = vpop.f32.mrb[0].mxu0
      %v11118 = vadd.f32 0.0, %v11117
      %v11119 = vpop.f32.mrb[0].mxu0
      %11120 = vmatprep.mubr.f32.mxu0 0.0
      %11121 = vmatmul.mubr.f32.gmra.mrb[0].mxu0 %v10910
      %v11122 = vpop.f32.mrb[0].mxu0
      %v11123 = vadd.f32 0.0, %v11122
      %v11124 = vpop.f32.mrb[0].mxu0
      %11125 = vmatprep.mubr.f32.mxu0 0.0
      %11126 = vmatmul.mubr.f32.gmra.mrb[0].mxu0 %v10913
      %v11127 = vpop.f32.mrb[0].mxu0
      %v11128 = vadd.f32 0.0, %v11127
      %v11129 = vpop.f32.mrb[0].mxu0
      %11130 = vmatprep.mubr.f32.mxu0 0.0
      %11131 = vmatmul.mubr.f32.gmra.mrb[0].mxu0 %v10916
      %v11132 = vpop.f32.mrb[0].mxu0
      %v11133 = vadd.f32 0.0, %v11132
      %v11134 = vpop.f32.mrb[0].mxu0
      %11135 = vmatprep.mubr.f32.mxu0 0.0
      %11136 = vmatmul.mubr.f32.gmra.mrb[0].mxu0 %v10919
      %v11137 = vpop.f32.mrb[0].mxu0
      %v11138 = vadd.f32 0.0, %v11137
      %v11139 = vpop.f32.mrb[0].mxu0
      %11140 = vmatprep.mubr.f32.mxu0 0.0
      %11141 = vmatmul.mubr.f32.gmra.mrb[0].mxu0 %v10922
      %v11142 = vpop.f32.mrb[0].mxu0
      %v11143 = vadd.f32 0.0, %v11142
      %v11144 = vpop.f32.mrb[0].mxu0
      %11145 = vmatprep.mubr.f32.mxu0 0.0
      %11146 = vmatmul.mubr.f32.gmra.mrb[0].mxu0 %v10925
      %v11147 = vpop.f32.mrb[0].mxu0
      %v11148 = vadd.f32 0.0, %v11147
      %v11149 = vpop.f32.mrb[0].mxu0
      %11150 = vmatprep.mubr.f32.mxu0 0.0
      %11151 = vmatmul.mubr.f32.gmra.mrb[0].mxu0 %v10928
      %v11152 = vpop.f32.mrb[0].mxu0
      %v11153 = vadd.f32 0.0, %v11152
      %v11154 = vpop.f32.mrb[0].mxu0
      %11155 = vmatprep.mubr.f32.mxu0 0.0
      %11156 = vmatmul.mubr.f32.gmra.mrb[0].mxu0 %v10931
      %v11157 = vpop.f32.mrb[0].mxu0
      %v11158 = vadd.f32 0.0, %v11157
      %v11159 = vpop.f32.mrb[0].mxu0
      %11160 = vdwg.mxu0
      %v11161 = vadd.f32 %v10771, %v11003
      %v11162 = vadd.f32 %v10772, %v11008
      %v11163 = vadd.f32 %v10773, %v11013
      %v11164 = vadd.f32 %v10774, %v11018
      %v11165 = vadd.f32 %v10775, %v11023
      %v11166 = vadd.f32 %v10776, %v11028
      %v11167 = vadd.f32 %v10777, %v11033
      %v11168 = vadd.f32 %v10778, %v11038
      %v11169 = vadd.f32 %v10779, %v11043
      %v11170 = vadd.f32 %v10780, %v11048
      %v11171 = vadd.f32 %v10781, %v11053
      %v11172 = vadd.f32 %v10782, %v11058
      %v11173 = vadd.f32 %v10783, %v11063
      %v11174 = vadd.f32 %v10784, %v11068
      %v11175 = vadd.f32 %v10785, %v11073
      %v11176 = vadd.f32 %v10786, %v11078
      %v11177 = vadd.f32 %v10787, %v11083
      %v11178 = vadd.f32 %v10788, %v11088
      %v11179 = vadd.f32 %v10789, %v11093
      %v11180 = vadd.f32 %v10790, %v11098
      %v11181 = vadd.f32 %v10791, %v11103
      %v11182 = vadd.f32 %v10792, %v11108
      %v11183 = vadd.f32 %v10793, %v11113
      %v11184 = vadd.f32 %v10794, %v11118
      %v11185 = vadd.f32 %v10795, %v11123
      %v11186 = vadd.f32 %v10796, %v11128
      %v11187 = vadd.f32 %v10797, %v11133
      %v11188 = vadd.f32 %v10798, %v11138
      %v11189 = vadd.f32 %v10799, %v11143
      %v11190 = vadd.f32 %v10800, %v11148
      %v11191 = vadd.f32 %v10801, %v11153
      %v11192 = vadd.f32 %v10802, %v11158
      %v11193 = vld [vmem:[%s7] sm:$0x1]
      %v11195 = vlaneseq
      %v11196 = vshrl.u32 %v11195, 7
      %v11197 = vsub.s32 0, %v11196
      %v11198 = vrot.slane %v11193, %v11197
      %v11200 = vmul.f32 %v11161, %v11198
      %v11201 = vmul.f32 %v11162, %v11198
      %v11202 = vmul.f32 %v11163, %v11198
      %v11203 = vmul.f32 %v11164, %v11198
      %v11204 = vmul.f32 %v11165, %v11198
      %v11205 = vmul.f32 %v11166, %v11198
      %v11206 = vmul.f32 %v11167, %v11198
      %v11207 = vmul.f32 %v11168, %v11198
      %v11208 = vmul.f32 %v11169, %v11198
      %v11209 = vmul.f32 %v11170, %v11198
      %v11210 = vmul.f32 %v11171, %v11198
      %v11211 = vmul.f32 %v11172, %v11198
      %v11212 = vmul.f32 %v11173, %v11198
      %v11213 = vmul.f32 %v11174, %v11198
      %v11214 = vmul.f32 %v11175, %v11198
      %v11215 = vmul.f32 %v11176, %v11198
      %v11216 = vmul.f32 %v11177, %v11198
      %v11217 = vmul.f32 %v11178, %v11198
      %v11218 = vmul.f32 %v11179, %v11198
      %v11219 = vmul.f32 %v11180, %v11198
      %v11220 = vmul.f32 %v11181, %v11198
      %v11221 = vmul.f32 %v11182, %v11198
      %v11222 = vmul.f32 %v11183, %v11198
      %v11223 = vmul.f32 %v11184, %v11198
      %v11224 = vmul.f32 %v11185, %v11198
      %v11225 = vmul.f32 %v11186, %v11198
      %v11226 = vmul.f32 %v11187, %v11198
      %v11227 = vmul.f32 %v11188, %v11198
      %v11228 = vmul.f32 %v11189, %v11198
      %v11229 = vmul.f32 %v11190, %v11198
      %v11230 = vmul.f32 %v11191, %v11198
      %v11231 = vmul.f32 %v11192, %v11198
      %v11232 = vld [vmem:[%s8] sm:$0x1]
      %v11234 = vlaneseq
      %v11235 = vshrl.u32 %v11234, 7
      %v11236 = vsub.s32 0, %v11235
      %v11237 = vrot.slane %v11232, %v11236
      %v11239 = vadd.f32 %v11200, %v11237
      %v11240 = vadd.f32 %v11201, %v11237
      %v11241 = vadd.f32 %v11202, %v11237
      %v11242 = vadd.f32 %v11203, %v11237
      %v11243 = vadd.f32 %v11204, %v11237
      %v11244 = vadd.f32 %v11205, %v11237
      %v11245 = vadd.f32 %v11206, %v11237
      %v11246 = vadd.f32 %v11207, %v11237
      %v11247 = vadd.f32 %v11208, %v11237
      %v11248 = vadd.f32 %v11209, %v11237
      %v11249 = vadd.f32 %v11210, %v11237
      %v11250 = vadd.f32 %v11211, %v11237
      %v11251 = vadd.f32 %v11212, %v11237
      %v11252 = vadd.f32 %v11213, %v11237
      %v11253 = vadd.f32 %v11214, %v11237
      %v11254 = vadd.f32 %v11215, %v11237
      %v11255 = vadd.f32 %v11216, %v11237
      %v11256 = vadd.f32 %v11217, %v11237
      %v11257 = vadd.f32 %v11218, %v11237
      %v11258 = vadd.f32 %v11219, %v11237
      %v11259 = vadd.f32 %v11220, %v11237
      %v11260 = vadd.f32 %v11221, %v11237
      %v11261 = vadd.f32 %v11222, %v11237
      %v11262 = vadd.f32 %v11223, %v11237
      %v11263 = vadd.f32 %v11224, %v11237
      %v11264 = vadd.f32 %v11225, %v11237
      %v11265 = vadd.f32 %v11226, %v11237
      %v11266 = vadd.f32 %v11227, %v11237
      %v11267 = vadd.f32 %v11228, %v11237
      %v11268 = vadd.f32 %v11229, %v11237
      %v11269 = vadd.f32 %v11230, %v11237
      %v11270 = vadd.f32 %v11231, %v11237
      %v11271 = vmax.f32 %v11239, 0.0
      %v11272 = vmax.f32 %v11240, 0.0
      %v11273 = vmax.f32 %v11241, 0.0
      %v11274 = vmax.f32 %v11242, 0.0
      %v11275 = vmax.f32 %v11243, 0.0
      %v11276 = vmax.f32 %v11244, 0.0
      %v11277 = vmax.f32 %v11245, 0.0
      %v11278 = vmax.f32 %v11246, 0.0
      %v11279 = vmax.f32 %v11247, 0.0
      %v11280 = vmax.f32 %v11248, 0.0
      %v11281 = vmax.f32 %v11249, 0.0
      %v11282 = vmax.f32 %v11250, 0.0
      %v11283 = vmax.f32 %v11251, 0.0
      %v11284 = vmax.f32 %v11252, 0.0
      %v11285 = vmax.f32 %v11253, 0.0
      %v11286 = vmax.f32 %v11254, 0.0
      %v11287 = vmax.f32 %v11255, 0.0
      %v11288 = vmax.f32 %v11256, 0.0
      %v11289 = vmax.f32 %v11257, 0.0
      %v11290 = vmax.f32 %v11258, 0.0
      %v11291 = vmax.f32 %v11259, 0.0
      %v11292 = vmax.f32 %v11260, 0.0
      %v11293 = vmax.f32 %v11261, 0.0
      %v11294 = vmax.f32 %v11262, 0.0
      %v11295 = vmax.f32 %v11263, 0.0
      %v11296 = vmax.f32 %v11264, 0.0
      %v11297 = vmax.f32 %v11265, 0.0
      %v11298 = vmax.f32 %v11266, 0.0
      %v11299 = vmax.f32 %v11267, 0.0
      %v11300 = vmax.f32 %v11268, 0.0
      %v11301 = vmax.f32 %v11269, 0.0
      %v11302 = vmax.f32 %v11270, 0.0
      %11303 = vst.msk [vmem:[%s352] sm:$0xff] %vm353, %v11271
      %11304 = vst.msk [vmem:[%s352 + $0x8] sm:$0xff] %vm353, %v11272
      %11305 = vst.msk [vmem:[%s352 + $0x10] sm:$0xff] %vm353, %v11273
      %11306 = vst.msk [vmem:[%s352 + $0x18] sm:$0xff] %vm353, %v11274
      %11307 = vst.msk [vmem:[%s352 + $0x20] sm:$0xff] %vm353, %v11275
      %11308 = vst.msk [vmem:[%s352 + $0x28] sm:$0xff] %vm353, %v11276
      %11309 = vst.msk [vmem:[%s352 + $0x30] sm:$0xff] %vm353, %v11277
      %11310 = vst.msk [vmem:[%s352 + $0x38] sm:$0xff] %vm353, %v11278
      %11311 = vst.msk [vmem:[%s352 + $0x40] sm:$0xff] %vm353, %v11279
      %11312 = vst.msk [vmem:[%s352 + $0x48] sm:$0xff] %vm353, %v11280
      %11313 = vst.msk [vmem:[%s352 + $0x50] sm:$0xff] %vm353, %v11281
      %11314 = vst.msk [vmem:[%s352 + $0x58] sm:$0xff] %vm353, %v11282
      %11315 = vst.msk [vmem:[%s352 + $0x60] sm:$0xff] %vm353, %v11283
      %11316 = vst.msk [vmem:[%s352 + $0x68] sm:$0xff] %vm353, %v11284
      %11317 = vst.msk [vmem:[%s352 + $0x70] sm:$0xff] %vm353, %v11285
      %11318 = vst.msk [vmem:[%s352 + $0x78] sm:$0xff] %vm353, %v11286
      %11319 = vst.msk [vmem:[%s352 + $0x80] sm:$0xff] %vm353, %v11287
      %11320 = vst.msk [vmem:[%s352 + $0x88] sm:$0xff] %vm353, %v11288
      %11321 = vst.msk [vmem:[%s352 + $0x90] sm:$0xff] %vm353, %v11289
      %11322 = vst.msk [vmem:[%s352 + $0x98] sm:$0xff] %vm353, %v11290
      %11323 = vst.msk [vmem:[%s352 + $0xa0] sm:$0xff] %vm353, %v11291
      %11324 = vst.msk [vmem:[%s352 + $0xa8] sm:$0xff] %vm353, %v11292
      %11325 = vst.msk [vmem:[%s352 + $0xb0] sm:$0xff] %vm353, %v11293
      %11326 = vst.msk [vmem:[%s352 + $0xb8] sm:$0xff] %vm353, %v11294
      %11327 = vst.msk [vmem:[%s352 + $0xc0] sm:$0xff] %vm353, %v11295
      %11328 = vst.msk [vmem:[%s352 + $0xc8] sm:$0xff] %vm353, %v11296
      %11329 = vst.msk [vmem:[%s352 + $0xd0] sm:$0xff] %vm353, %v11297
      %11330 = vst.msk [vmem:[%s352 + $0xd8] sm:$0xff] %vm353, %v11298
      %11331 = vst.msk [vmem:[%s352 + $0xe0] sm:$0xff] %vm353, %v11299
      %11332 = vst.msk [vmem:[%s352 + $0xe8] sm:$0xff] %vm353, %v11300
      %11333 = vst.msk [vmem:[%s352 + $0xf0] sm:$0xff] %vm353, %v11301
      %11334 = vst.msk [vmem:[%s352 + $0xf8] sm:$0xff] %vm353, %v11302
      %p11335 = scmp.lt.s32.totalorder %s20, 1
      %s11336 = scalar_select %p11335, %s20, 1
      %s11337 = smul.addr %s11336, 32
      %s11338 = smul.addr %s11337, 8
      %s11339 = scalar_lea.vmem %s9, %s11338
      // Predicated region
      $region57: #{expand_blk_forward.3} parent=55 // pred_check
        %p11340 = pneg %p237
      $region58: #{expand_blk_forward.3} parent=55 // pred_check_branch
        %11342 = sbr.rel (%p11340) target = $region60
      $region59: #{expand_blk_forward.3} parent=55 // pred_region
        _
      $region60: #{expand_blk_forward.3} parent=55 // pred_fallthru
        _
    $region56: #{expand_blk_forward.3} parent=5 // pred_fallthru
      _
    %p11343 = scmp.le.s32.totalorder 2, %s15
    // Predicated region
    $region61: #{expand_blk_forward.3} parent=5 // pred_check
      %p11344 = pneg %p11343
    $region62: #{expand_blk_forward.3} parent=5 // pred_check_branch
      %11346 = sbr.rel (%p11344) target = $region64
    $region63: #{expand_blk_forward.3} parent=5 // pred_region
      %s11347 = ssub.s32 %s15, 2
      // Predicated region
      $region65: #{expand_blk_forward.3} parent=63 // pred_check
        %p11348 = pneg %p243
      $region66: #{expand_blk_forward.3} parent=63 // pred_check_branch
        %11350 = sbr.rel (%p11348) target = $region68
      $region67: #{expand_blk_forward.3} parent=63 // pred_region
        %p11351 = scmp.lt.s32.totalorder %s21, 1
        %s11352 = scalar_select %p11351, %s21, 1
        %s11353 = smul.addr %s11352, 32
        %s11354 = smul.addr %s11353, 8
        %s11355 = scalar_lea.vmem %s9, %s11354
      $region68: #{expand_blk_forward.3} parent=63 // pred_fallthru
        _
    $region64: #{expand_blk_forward.3} parent=5 // pred_fallthru
      _
  $region6: #{expand_blk_forward.3} parent=0 // loop_footer
    %s19 = sadd.s32 1, %s15
  $region7: #{expand_blk_forward.3} parent=0 // loop_footer_branch
    %14 = sbr.rel target = $region3
  $region8: #{expand_blk_forward.3} parent=0 // loop_exit
    _

</llo_original>
